<compile_context>
chip_gen: v7x
topology: tpu7x:2x2x1
jax: 0.10.0
libtpu: 0.0.40
codegen_flags: <defaults>
</compile_context>

<pallas_src>
import numpy as np

import jax
import jax.numpy as jnp
from jax import lax
from jax.experimental import pallas as pl
from jax.experimental.pallas import tpu as pltpu

NEG_SLOPE = 0.2


def layer_defs(channels):
    # (cin, cout, kh, kw, stride, pad, spectral_norm)
    return [
        (3,            channels,     4, 4, 2, 1, True),
        (channels,     channels,     4, 4, 2, 1, True),
        (channels,     channels * 2, 4, 4, 2, 1, True),
        (channels * 2, channels * 4, 4, 4, 2, 1, True),
        (channels * 4, channels * 8, 4, 4, 2, 1, True),
        (channels * 8, 1,            4, 6, 2, 0, False),   # lastkernel=(4,6), specNorm=False
    ]


# --------------------------------- kernel ----------------------------------- #
def _fused_discriminator_kernel(x_ref,
                                m1, g1, m2, g2, m3, g3, m4, g4, m5, g5,
                                w6, o_ref):
    """Whole 6-layer discriminator for ONE image, fully VMEM-resident.

    x_ref : (1, Cin0*H0, W0) bf16        image; (channel,row) on sublanes, cols on lanes
    m_l   : (kw, Cout*OH, Cin*Hin) bf16  conv weights fused with the vertical
                                         (row) stride/pad/tap gather
    g_l   : (kw, Win, OW) bf16           0/1 horizontal (lane) stride/pad/tap gather
    w6    : (Cin*Hin, Win) bf16          last conv (4,6), pad 0 -> a plain dot product
    o_ref : (1, 1, 1) f32                final logit
    """
    x = x_ref[0]                                              # (Cin0*H0, W0) bf16
    for m_ref, g_ref in ((m1, g1), (m2, g2), (m3, g3), (m4, g4), (m5, g5)):
        acc = None
        for kx in range(g_ref.shape[0]):                      # static unroll (kw = 4)
            # horizontal gather (stride/pad/tap kx): exact 0/1 selection on the MXU
            hs = jnp.dot(x, g_ref[kx],
                         preferred_element_type=jnp.float32).astype(jnp.bfloat16)
            # vertical gather + channel/tap contraction, f32 accumulation
            t = jnp.dot(m_ref[kx], hs, preferred_element_type=jnp.float32)
            acc = t if acc is None else acc + t
        acc = jnp.maximum(acc, NEG_SLOPE * acc)               # LeakyReLU(0.2), f32
        x = acc.astype(jnp.bfloat16)                          # (Cout*OH, OW) == next (Cin*Hin, Win)

    # Last block: Conv2d(8C, 1, kernel=(4,6), stride=2, pad=0) on a (8C, 4, 6) map
    # reduces to a single dot product; LeakyReLU(0.2) afterwards as in conv2DBlock.
    v = jnp.sum(x.astype(jnp.float32) * w6[...].astype(jnp.float32), keepdims=True)
    v = jnp.maximum(v, NEG_SLOPE * v)                         # (1, 1) f32
    o_ref[0] = v


# ------------------------------- forward pass ------------------------------- #
def cars_cnn_discriminator(x_nchw, params):
    """Forward (conditional=False): GaussianNoise (identity at eval) -> 6 conv blocks
    (SpectralNorm folded, LeakyReLU 0.2) -> Rearrange flatten.  Returns (B, 1) f32."""
    b, c, h, w = x_nchw.shape
    x2 = x_nchw.reshape(b, c * h, w).astype(jnp.bfloat16)     # free reshape: (C,H)->sublanes

    in_specs = [pl.BlockSpec((1, c * h, w), lambda i: (i, 0, 0))]
    for p in params:                                          # weights: resident, constant index
        in_specs.append(pl.BlockSpec(p.shape, lambda i, _nd=p.ndim: (0,) * _nd))

    out = pl.pallas_call(
        _fused_discriminator_kernel,
        out_shape=jax.ShapeDtypeStruct((b, 1, 1), jnp.float32),
        grid_spec=pltpu.PrefetchScalarGridSpec(
            num_scalar_prefetch=0,
            grid=(b,),
            in_specs=in_specs,
            out_specs=pl.BlockSpec((1, 1, 1), lambda i: (i, 0, 0)),
        ),
        compiler_params=pltpu.CompilerParams(
            dimension_semantics=("parallel",),                # one image per TC on v7x
            vmem_limit_bytes=16 * 1024 * 1024,                # working set ~5 MiB
        ),
    )(x2, *params)
    return out.reshape(b, 1)


# ----------------------------- parameter setup ------------------------------ #
def _spectral_normalize(w_oihw, n_iter=20):
    """Fold SpectralNorm into the weight (divide by the largest singular value)."""
    wm = w_oihw.reshape(w_oihw.shape[0], -1)
    v = jnp.ones((wm.shape[1],), jnp.float32) / jnp.sqrt(wm.shape[1])
    for _ in range(n_iter):
        u = wm @ v
        u = u / (jnp.linalg.norm(u) + 1e-12)
        v = wm.T @ u
        v = v / (jnp.linalg.norm(v) + 1e-12)
    sigma = u @ (wm @ v)
    return w_oihw / sigma


def _fuse_layer(w_oihw, stride, pad, hin, win):
    """OIHW conv weight -> (M, G) for the two-matmul lane-dense formulation.

    G[kx, w, ox]              = [w == stride*ox + kx - pad]                (0/1 gather)
    M[kx, co*OH+oy, ci*Hin+h] = W[co, ci, ky, kx]  where h == stride*oy + ky - pad
    Out-of-range taps simply have no 1s / no weight entries, which realises the
    zero padding without any explicit pad op.
    """
    cout, cin, kh, kw = w_oihw.shape
    oh = (hin + 2 * pad - kh) // stride + 1
    ow = (win + 2 * pad - kw) // stride + 1
    g = np.zeros((kw, win, ow), np.float32)
    m = np.zeros((kw, cout * oh, cin * hin), np.float32)
    for kx in range(kw):
        src = stride * np.arange(ow) + kx - pad
        ok = (src >= 0) & (src < win)
        g[kx, src[ok], np.arange(ow)[ok]] = 1.0
        for ky in range(kh):
            for oy in range(oh):
                hsrc = stride * oy + ky - pad
                if 0 <= hsrc < hin:
                    m[kx, oy::oh, hsrc::hin] = w_oihw[:, :, ky, kx]
    return m, g, oh, ow


def init_params(key, channels, height, width):
    """Returns (raw OIHW f32 weights, fused bf16 Pallas params for this resolution)."""
    raw, fused = [], []
    hin, win = height, width
    defs = layer_defs(channels)
    for li, (cin, cout, kh, kw, stride, pad, sn) in enumerate(defs):
        key, sub = jax.random.split(key)
        fan_in = cin * kh * kw
        w = jax.random.normal(sub, (cout, cin, kh, kw), jnp.float32) / jnp.sqrt(fan_in)
        if sn:
            w = _spectral_normalize(w)
        raw.append(w)
        w_np = np.asarray(jax.device_get(w), np.float32)
        if li == len(defs) - 1:
            # Final block: kernel (4,6), pad 0 must consume the whole remaining map.
            assert kh == hin and kw == win and pad == 0 and cout == 1, (
                "input resolution must shrink to exactly (4, 6) before the last conv")
            fused.append(jnp.asarray(w_np[0].reshape(cin * hin, win), jnp.bfloat16))
        else:
            m, g, hin, win = _fuse_layer(w_np, stride, pad, hin, win)
            fused.append(jnp.asarray(m, jnp.bfloat16))
            fused.append(jnp.asarray(g, jnp.bfloat16))
    return raw, fused


# ------------------------------ pure-JAX references ------------------------- #
def replica_forward(x_nchw, params):
    """Same fused math as the kernel (same matrices / dtypes), in plain JAX."""
    b, c, h, w = x_nchw.shape
    x = x_nchw.reshape(b, c * h, w).astype(jnp.bfloat16)
    mats, w6 = params[:-1], params[-1]
    outs = []
    for bi in range(b):
        xi = x[bi]
        for li in range(0, len(mats), 2):
            m, g = mats[li], mats[li + 1]
            acc = None
            for kx in range(g.shape[0]):
                hs = jnp.dot(xi, g[kx],
                             preferred_element_type=jnp.float32).astype(jnp.bfloat16)
                t = jnp.dot(m[kx], hs, preferred_element_type=jnp.float32)
                acc = t if acc is None else acc + t
            acc = jnp.maximum(acc, NEG_SLOPE * acc)
            xi = acc.astype(jnp.bfloat16)
        v = jnp.sum(xi.astype(jnp.float32) * w6.astype(jnp.float32))
        outs.append(jnp.maximum(v, NEG_SLOPE * v))
    return jnp.stack(outs).reshape(b, 1)


def ref_forward(x_nchw, raw_ws, channels):
    """True conv chain (bf16 activations/weights, f32 math), mirroring the module."""
    x = jnp.transpose(x_nchw, (0, 2, 3, 1)).astype(jnp.bfloat16)      # NHWC
    for w, (_ci, _co, _kh, _kw, stride, pad, _sn) in zip(raw_ws, layer_defs(channels)):
        y = lax.conv_general_dilated(
            x.astype(jnp.float32),
            w.astype(jnp.bfloat16).astype(jnp.float32),
            window_strides=(stride, stride),
            padding=[(pad, pad), (pad, pad)],
            dimension_numbers=("NHWC", "OIHW", "NHWC"))
        y = jnp.maximum(y, NEG_SLOPE * y)
        x = y.astype(jnp.bfloat16)
    x = jnp.transpose(x, (0, 3, 1, 2)).reshape(x.shape[0], -1)        # b c h w -> b (c h w)
    return x.astype(jnp.float32)


if __name__ == "__main__":
    key = jax.random.PRNGKey(0)
    kx_key, kp_key = jax.random.split(key)

    channels = 4
    batch = 2
    # Spatial 128x192 is the minimum resolution this architecture admits on the
    # non-conditional path: five stride-2 convs -> (4,6), then kernel (4,6) -> (1,1).
    height, width = 128, 192

    x = jax.random.normal(kx_key, (batch, 3, height, width), jnp.float32)
    raw_w, params = init_params(kp_key, channels, height, width)

    fwd = jax.jit(cars_cnn_discriminator)
    out = fwd(x, params)
    jax.block_until_ready(out)
    assert out.shape == (batch, 1), out.shape
    assert bool(jnp.all(jnp.isfinite(out)))

    # Tight check: identical fused math in pure JAX (catches any plumbing/layout bug).
    rep = replica_forward(x, params)
    assert bool(jnp.allclose(out, rep, rtol=2e-2, atol=2e-3)), (np.asarray(out), np.asarray(rep))

    # Loose check: true conv chain (differences = f32 summation order per layer).
    ref = ref_forward(x, raw_w, channels)
    scale = float(jnp.max(jnp.abs(ref)))
    diff = float(jnp.max(jnp.abs(out - ref)))
    assert diff <= 5e-2 * scale + 1e-3, (diff, scale)

    print("KERNEL_OK")
</pallas_src>

<mosaic_0001>
module attributes {stable_mosaic.version = 11 : i64} {
  func.func @_fused_discriminator_kernel(%arg0: i32, %arg1: memref<1x384x192xbf16, #tpu.memory_space<vmem>>, %arg2: memref<4x256x384xbf16, #tpu.memory_space<vmem>>, %arg3: memref<4x192x96xbf16, #tpu.memory_space<vmem>>, %arg4: memref<4x128x256xbf16, #tpu.memory_space<vmem>>, %arg5: memref<4x96x48xbf16, #tpu.memory_space<vmem>>, %arg6: memref<4x128x128xbf16, #tpu.memory_space<vmem>>, %arg7: memref<4x48x24xbf16, #tpu.memory_space<vmem>>, %arg8: memref<4x128x128xbf16, #tpu.memory_space<vmem>>, %arg9: memref<4x24x12xbf16, #tpu.memory_space<vmem>>, %arg10: memref<4x128x128xbf16, #tpu.memory_space<vmem>>, %arg11: memref<4x12x6xbf16, #tpu.memory_space<vmem>>, %arg12: memref<128x6xbf16, #tpu.memory_space<vmem>>, %arg13: memref<1x1x1xf32, #tpu.memory_space<vmem>>) attributes {dimension_semantics = [#tpu.dimension_semantics<parallel>], iteration_bounds = array<i64: 2>, scalar_prefetch = 0 : i64, scratch_operands = 0 : i64, tpu.core_type = #tpu.core_type<tc>, window_params = [{transform_indices = @transform_0, window_bounds = array<i64: 1, 384, 192>}, {pipeline_mode = #tpu.pipeline_mode<synchronous>, transform_indices = @transform_1, window_bounds = array<i64: 4, 256, 384>}, {pipeline_mode = #tpu.pipeline_mode<synchronous>, transform_indices = @transform_2, window_bounds = array<i64: 4, 192, 96>}, {pipeline_mode = #tpu.pipeline_mode<synchronous>, transform_indices = @transform_3, window_bounds = array<i64: 4, 128, 256>}, {pipeline_mode = #tpu.pipeline_mode<synchronous>, transform_indices = @transform_4, window_bounds = array<i64: 4, 96, 48>}, {pipeline_mode = #tpu.pipeline_mode<synchronous>, transform_indices = @transform_5, window_bounds = array<i64: 4, 128, 128>}, {pipeline_mode = #tpu.pipeline_mode<synchronous>, transform_indices = @transform_6, window_bounds = array<i64: 4, 48, 24>}, {pipeline_mode = #tpu.pipeline_mode<synchronous>, transform_indices = @transform_7, window_bounds = array<i64: 4, 128, 128>}, {pipeline_mode = #tpu.pipeline_mode<synchronous>, transform_indices = @transform_8, window_bounds = array<i64: 4, 24, 12>}, {pipeline_mode = #tpu.pipeline_mode<synchronous>, transform_indices = @transform_9, window_bounds = array<i64: 4, 128, 128>}, {pipeline_mode = #tpu.pipeline_mode<synchronous>, transform_indices = @transform_10, window_bounds = array<i64: 4, 12, 6>}, {pipeline_mode = #tpu.pipeline_mode<synchronous>, transform_indices = @transform_11, window_bounds = array<i64: 128, 6>}, {transform_indices = @transform_12, window_bounds = array<i64: 1, 1, 1>}]} {
    %c0 = arith.constant 0 : index
    %c0_0 = arith.constant 0 : index
    %c0_1 = arith.constant 0 : index
    %0 = vector.load %arg1[%c0, %c0_0, %c0_1] : memref<1x384x192xbf16, #tpu.memory_space<vmem>>, vector<1x384x192xbf16>
    %1 = vector.shape_cast %0 : vector<1x384x192xbf16> to vector<384x192xbf16>
    %c0_2 = arith.constant 0 : index
    %c0_3 = arith.constant 0 : index
    %c0_4 = arith.constant 0 : index
    %2 = vector.load %arg3[%c0_2, %c0_3, %c0_4] : memref<4x192x96xbf16, #tpu.memory_space<vmem>>, vector<1x192x96xbf16>
    %3 = vector.shape_cast %2 : vector<1x192x96xbf16> to vector<192x96xbf16>
    %cst = arith.constant dense<0.000000e+00> : vector<384x96xf32>
    %4 = tpu.matmul %1, %3, %cst {dimension_numbers = #tpu.dot_dimension_numbers<[1], [0], [0], [1], [0, 0, 1, 1], [], []>} : vector<384x192xbf16>, vector<192x96xbf16>, vector<384x96xf32> -> vector<384x96xf32>
    %5 = arith.truncf %4 : vector<384x96xf32> to vector<384x96xbf16>
    %c0_5 = arith.constant 0 : index
    %c0_6 = arith.constant 0 : index
    %c0_7 = arith.constant 0 : index
    %6 = vector.load %arg2[%c0_5, %c0_6, %c0_7] : memref<4x256x384xbf16, #tpu.memory_space<vmem>>, vector<1x256x384xbf16>
    %7 = vector.shape_cast %6 : vector<1x256x384xbf16> to vector<256x384xbf16>
    %cst_8 = arith.constant dense<0.000000e+00> : vector<256x96xf32>
    %8 = tpu.matmul %7, %5, %cst_8 {dimension_numbers = #tpu.dot_dimension_numbers<[1], [0], [0], [1], [0, 0, 1, 1], [], []>} : vector<256x384xbf16>, vector<384x96xbf16>, vector<256x96xf32> -> vector<256x96xf32>
    %c1 = arith.constant 1 : index
    %c0_9 = arith.constant 0 : index
    %c0_10 = arith.constant 0 : index
    %9 = vector.load %arg3[%c1, %c0_9, %c0_10] : memref<4x192x96xbf16, #tpu.memory_space<vmem>>, vector<1x192x96xbf16>
    %10 = vector.shape_cast %9 : vector<1x192x96xbf16> to vector<192x96xbf16>
    %cst_11 = arith.constant dense<0.000000e+00> : vector<384x96xf32>
    %11 = tpu.matmul %1, %10, %cst_11 {dimension_numbers = #tpu.dot_dimension_numbers<[1], [0], [0], [1], [0, 0, 1, 1], [], []>} : vector<384x192xbf16>, vector<192x96xbf16>, vector<384x96xf32> -> vector<384x96xf32>
    %12 = arith.truncf %11 : vector<384x96xf32> to vector<384x96xbf16>
    %c1_12 = arith.constant 1 : index
    %c0_13 = arith.constant 0 : index
    %c0_14 = arith.constant 0 : index
    %13 = vector.load %arg2[%c1_12, %c0_13, %c0_14] : memref<4x256x384xbf16, #tpu.memory_space<vmem>>, vector<1x256x384xbf16>
    %14 = vector.shape_cast %13 : vector<1x256x384xbf16> to vector<256x384xbf16>
    %cst_15 = arith.constant dense<0.000000e+00> : vector<256x96xf32>
    %15 = tpu.matmul %14, %12, %cst_15 {dimension_numbers = #tpu.dot_dimension_numbers<[1], [0], [0], [1], [0, 0, 1, 1], [], []>} : vector<256x384xbf16>, vector<384x96xbf16>, vector<256x96xf32> -> vector<256x96xf32>
    %16 = arith.addf %8, %15 : vector<256x96xf32>
    %c2 = arith.constant 2 : index
    %c0_16 = arith.constant 0 : index
    %c0_17 = arith.constant 0 : index
    %17 = vector.load %arg3[%c2, %c0_16, %c0_17] : memref<4x192x96xbf16, #tpu.memory_space<vmem>>, vector<1x192x96xbf16>
    %18 = vector.shape_cast %17 : vector<1x192x96xbf16> to vector<192x96xbf16>
    %cst_18 = arith.constant dense<0.000000e+00> : vector<384x96xf32>
    %19 = tpu.matmul %1, %18, %cst_18 {dimension_numbers = #tpu.dot_dimension_numbers<[1], [0], [0], [1], [0, 0, 1, 1], [], []>} : vector<384x192xbf16>, vector<192x96xbf16>, vector<384x96xf32> -> vector<384x96xf32>
    %20 = arith.truncf %19 : vector<384x96xf32> to vector<384x96xbf16>
    %c2_19 = arith.constant 2 : index
    %c0_20 = arith.constant 0 : index
    %c0_21 = arith.constant 0 : index
    %21 = vector.load %arg2[%c2_19, %c0_20, %c0_21] : memref<4x256x384xbf16, #tpu.memory_space<vmem>>, vector<1x256x384xbf16>
    %22 = vector.shape_cast %21 : vector<1x256x384xbf16> to vector<256x384xbf16>
    %cst_22 = arith.constant dense<0.000000e+00> : vector<256x96xf32>
    %23 = tpu.matmul %22, %20, %cst_22 {dimension_numbers = #tpu.dot_dimension_numbers<[1], [0], [0], [1], [0, 0, 1, 1], [], []>} : vector<256x384xbf16>, vector<384x96xbf16>, vector<256x96xf32> -> vector<256x96xf32>
    %24 = arith.addf %16, %23 : vector<256x96xf32>
    %c3 = arith.constant 3 : index
    %c0_23 = arith.constant 0 : index
    %c0_24 = arith.constant 0 : index
    %25 = vector.load %arg3[%c3, %c0_23, %c0_24] : memref<4x192x96xbf16, #tpu.memory_space<vmem>>, vector<1x192x96xbf16>
    %26 = vector.shape_cast %25 : vector<1x192x96xbf16> to vector<192x96xbf16>
    %cst_25 = arith.constant dense<0.000000e+00> : vector<384x96xf32>
    %27 = tpu.matmul %1, %26, %cst_25 {dimension_numbers = #tpu.dot_dimension_numbers<[1], [0], [0], [1], [0, 0, 1, 1], [], []>} : vector<384x192xbf16>, vector<192x96xbf16>, vector<384x96xf32> -> vector<384x96xf32>
    %28 = arith.truncf %27 : vector<384x96xf32> to vector<384x96xbf16>
    %c3_26 = arith.constant 3 : index
    %c0_27 = arith.constant 0 : index
    %c0_28 = arith.constant 0 : index
    %29 = vector.load %arg2[%c3_26, %c0_27, %c0_28] : memref<4x256x384xbf16, #tpu.memory_space<vmem>>, vector<1x256x384xbf16>
    %30 = vector.shape_cast %29 : vector<1x256x384xbf16> to vector<256x384xbf16>
    %cst_29 = arith.constant dense<0.000000e+00> : vector<256x96xf32>
    %31 = tpu.matmul %30, %28, %cst_29 {dimension_numbers = #tpu.dot_dimension_numbers<[1], [0], [0], [1], [0, 0, 1, 1], [], []>} : vector<256x384xbf16>, vector<384x96xbf16>, vector<256x96xf32> -> vector<256x96xf32>
    %32 = arith.addf %24, %31 : vector<256x96xf32>
    %cst_30 = arith.constant 2.000000e-01 : f32
    %33 = vector.broadcast %cst_30 : f32 to vector<256x96xf32>
    %34 = arith.mulf %33, %32 : vector<256x96xf32>
    %35 = arith.maximumf %32, %34 : vector<256x96xf32>
    %36 = arith.truncf %35 : vector<256x96xf32> to vector<256x96xbf16>
    %c0_31 = arith.constant 0 : index
    %c0_32 = arith.constant 0 : index
    %c0_33 = arith.constant 0 : index
    %37 = vector.load %arg5[%c0_31, %c0_32, %c0_33] : memref<4x96x48xbf16, #tpu.memory_space<vmem>>, vector<1x96x48xbf16>
    %38 = vector.shape_cast %37 : vector<1x96x48xbf16> to vector<96x48xbf16>
    %cst_34 = arith.constant dense<0.000000e+00> : vector<256x48xf32>
    %39 = tpu.matmul %36, %38, %cst_34 {dimension_numbers = #tpu.dot_dimension_numbers<[1], [0], [0], [1], [0, 0, 1, 1], [], []>} : vector<256x96xbf16>, vector<96x48xbf16>, vector<256x48xf32> -> vector<256x48xf32>
    %40 = arith.truncf %39 : vector<256x48xf32> to vector<256x48xbf16>
    %c0_35 = arith.constant 0 : index
    %c0_36 = arith.constant 0 : index
    %c0_37 = arith.constant 0 : index
    %41 = vector.load %arg4[%c0_35, %c0_36, %c0_37] : memref<4x128x256xbf16, #tpu.memory_space<vmem>>, vector<1x128x256xbf16>
    %42 = vector.shape_cast %41 : vector<1x128x256xbf16> to vector<128x256xbf16>
    %cst_38 = arith.constant dense<0.000000e+00> : vector<128x48xf32>
    %43 = tpu.matmul %42, %40, %cst_38 {dimension_numbers = #tpu.dot_dimension_numbers<[1], [0], [0], [1], [0, 0, 1, 1], [], []>} : vector<128x256xbf16>, vector<256x48xbf16>, vector<128x48xf32> -> vector<128x48xf32>
    %c1_39 = arith.constant 1 : index
    %c0_40 = arith.constant 0 : index
    %c0_41 = arith.constant 0 : index
    %44 = vector.load %arg5[%c1_39, %c0_40, %c0_41] : memref<4x96x48xbf16, #tpu.memory_space<vmem>>, vector<1x96x48xbf16>
    %45 = vector.shape_cast %44 : vector<1x96x48xbf16> to vector<96x48xbf16>
    %cst_42 = arith.constant dense<0.000000e+00> : vector<256x48xf32>
    %46 = tpu.matmul %36, %45, %cst_42 {dimension_numbers = #tpu.dot_dimension_numbers<[1], [0], [0], [1], [0, 0, 1, 1], [], []>} : vector<256x96xbf16>, vector<96x48xbf16>, vector<256x48xf32> -> vector<256x48xf32>
    %47 = arith.truncf %46 : vector<256x48xf32> to vector<256x48xbf16>
    %c1_43 = arith.constant 1 : index
    %c0_44 = arith.constant 0 : index
    %c0_45 = arith.constant 0 : index
    %48 = vector.load %arg4[%c1_43, %c0_44, %c0_45] : memref<4x128x256xbf16, #tpu.memory_space<vmem>>, vector<1x128x256xbf16>
    %49 = vector.shape_cast %48 : vector<1x128x256xbf16> to vector<128x256xbf16>
    %cst_46 = arith.constant dense<0.000000e+00> : vector<128x48xf32>
    %50 = tpu.matmul %49, %47, %cst_46 {dimension_numbers = #tpu.dot_dimension_numbers<[1], [0], [0], [1], [0, 0, 1, 1], [], []>} : vector<128x256xbf16>, vector<256x48xbf16>, vector<128x48xf32> -> vector<128x48xf32>
    %51 = arith.addf %43, %50 : vector<128x48xf32>
    %c2_47 = arith.constant 2 : index
    %c0_48 = arith.constant 0 : index
    %c0_49 = arith.constant 0 : index
    %52 = vector.load %arg5[%c2_47, %c0_48, %c0_49] : memref<4x96x48xbf16, #tpu.memory_space<vmem>>, vector<1x96x48xbf16>
    %53 = vector.shape_cast %52 : vector<1x96x48xbf16> to vector<96x48xbf16>
    %cst_50 = arith.constant dense<0.000000e+00> : vector<256x48xf32>
    %54 = tpu.matmul %36, %53, %cst_50 {dimension_numbers = #tpu.dot_dimension_numbers<[1], [0], [0], [1], [0, 0, 1, 1], [], []>} : vector<256x96xbf16>, vector<96x48xbf16>, vector<256x48xf32> -> vector<256x48xf32>
    %55 = arith.truncf %54 : vector<256x48xf32> to vector<256x48xbf16>
    %c2_51 = arith.constant 2 : index
    %c0_52 = arith.constant 0 : index
    %c0_53 = arith.constant 0 : index
    %56 = vector.load %arg4[%c2_51, %c0_52, %c0_53] : memref<4x128x256xbf16, #tpu.memory_space<vmem>>, vector<1x128x256xbf16>
    %57 = vector.shape_cast %56 : vector<1x128x256xbf16> to vector<128x256xbf16>
    %cst_54 = arith.constant dense<0.000000e+00> : vector<128x48xf32>
    %58 = tpu.matmul %57, %55, %cst_54 {dimension_numbers = #tpu.dot_dimension_numbers<[1], [0], [0], [1], [0, 0, 1, 1], [], []>} : vector<128x256xbf16>, vector<256x48xbf16>, vector<128x48xf32> -> vector<128x48xf32>
    %59 = arith.addf %51, %58 : vector<128x48xf32>
    %c3_55 = arith.constant 3 : index
    %c0_56 = arith.constant 0 : index
    %c0_57 = arith.constant 0 : index
    %60 = vector.load %arg5[%c3_55, %c0_56, %c0_57] : memref<4x96x48xbf16, #tpu.memory_space<vmem>>, vector<1x96x48xbf16>
    %61 = vector.shape_cast %60 : vector<1x96x48xbf16> to vector<96x48xbf16>
    %cst_58 = arith.constant dense<0.000000e+00> : vector<256x48xf32>
    %62 = tpu.matmul %36, %61, %cst_58 {dimension_numbers = #tpu.dot_dimension_numbers<[1], [0], [0], [1], [0, 0, 1, 1], [], []>} : vector<256x96xbf16>, vector<96x48xbf16>, vector<256x48xf32> -> vector<256x48xf32>
    %63 = arith.truncf %62 : vector<256x48xf32> to vector<256x48xbf16>
    %c3_59 = arith.constant 3 : index
    %c0_60 = arith.constant 0 : index
    %c0_61 = arith.constant 0 : index
    %64 = vector.load %arg4[%c3_59, %c0_60, %c0_61] : memref<4x128x256xbf16, #tpu.memory_space<vmem>>, vector<1x128x256xbf16>
    %65 = vector.shape_cast %64 : vector<1x128x256xbf16> to vector<128x256xbf16>
    %cst_62 = arith.constant dense<0.000000e+00> : vector<128x48xf32>
    %66 = tpu.matmul %65, %63, %cst_62 {dimension_numbers = #tpu.dot_dimension_numbers<[1], [0], [0], [1], [0, 0, 1, 1], [], []>} : vector<128x256xbf16>, vector<256x48xbf16>, vector<128x48xf32> -> vector<128x48xf32>
    %67 = arith.addf %59, %66 : vector<128x48xf32>
    %cst_63 = arith.constant 2.000000e-01 : f32
    %68 = vector.broadcast %cst_63 : f32 to vector<128x48xf32>
    %69 = arith.mulf %68, %67 : vector<128x48xf32>
    %70 = arith.maximumf %67, %69 : vector<128x48xf32>
    %71 = arith.truncf %70 : vector<128x48xf32> to vector<128x48xbf16>
    %c0_64 = arith.constant 0 : index
    %c0_65 = arith.constant 0 : index
    %c0_66 = arith.constant 0 : index
    %72 = vector.load %arg7[%c0_64, %c0_65, %c0_66] : memref<4x48x24xbf16, #tpu.memory_space<vmem>>, vector<1x48x24xbf16>
    %73 = vector.shape_cast %72 : vector<1x48x24xbf16> to vector<48x24xbf16>
    %cst_67 = arith.constant dense<0.000000e+00> : vector<128x24xf32>
    %74 = tpu.matmul %71, %73, %cst_67 {dimension_numbers = #tpu.dot_dimension_numbers<[1], [0], [0], [1], [0, 0, 1, 1], [], []>} : vector<128x48xbf16>, vector<48x24xbf16>, vector<128x24xf32> -> vector<128x24xf32>
    %75 = arith.truncf %74 : vector<128x24xf32> to vector<128x24xbf16>
    %c0_68 = arith.constant 0 : index
    %c0_69 = arith.constant 0 : index
    %c0_70 = arith.constant 0 : index
    %76 = vector.load %arg6[%c0_68, %c0_69, %c0_70] : memref<4x128x128xbf16, #tpu.memory_space<vmem>>, vector<1x128x128xbf16>
    %77 = vector.shape_cast %76 : vector<1x128x128xbf16> to vector<128x128xbf16>
    %cst_71 = arith.constant dense<0.000000e+00> : vector<128x24xf32>
    %78 = tpu.matmul %77, %75, %cst_71 {dimension_numbers = #tpu.dot_dimension_numbers<[1], [0], [0], [1], [0, 0, 1, 1], [], []>} : vector<128x128xbf16>, vector<128x24xbf16>, vector<128x24xf32> -> vector<128x24xf32>
    %c1_72 = arith.constant 1 : index
    %c0_73 = arith.constant 0 : index
    %c0_74 = arith.constant 0 : index
    %79 = vector.load %arg7[%c1_72, %c0_73, %c0_74] : memref<4x48x24xbf16, #tpu.memory_space<vmem>>, vector<1x48x24xbf16>
    %80 = vector.shape_cast %79 : vector<1x48x24xbf16> to vector<48x24xbf16>
    %cst_75 = arith.constant dense<0.000000e+00> : vector<128x24xf32>
    %81 = tpu.matmul %71, %80, %cst_75 {dimension_numbers = #tpu.dot_dimension_numbers<[1], [0], [0], [1], [0, 0, 1, 1], [], []>} : vector<128x48xbf16>, vector<48x24xbf16>, vector<128x24xf32> -> vector<128x24xf32>
    %82 = arith.truncf %81 : vector<128x24xf32> to vector<128x24xbf16>
    %c1_76 = arith.constant 1 : index
    %c0_77 = arith.constant 0 : index
    %c0_78 = arith.constant 0 : index
    %83 = vector.load %arg6[%c1_76, %c0_77, %c0_78] : memref<4x128x128xbf16, #tpu.memory_space<vmem>>, vector<1x128x128xbf16>
    %84 = vector.shape_cast %83 : vector<1x128x128xbf16> to vector<128x128xbf16>
    %cst_79 = arith.constant dense<0.000000e+00> : vector<128x24xf32>
    %85 = tpu.matmul %84, %82, %cst_79 {dimension_numbers = #tpu.dot_dimension_numbers<[1], [0], [0], [1], [0, 0, 1, 1], [], []>} : vector<128x128xbf16>, vector<128x24xbf16>, vector<128x24xf32> -> vector<128x24xf32>
    %86 = arith.addf %78, %85 : vector<128x24xf32>
    %c2_80 = arith.constant 2 : index
    %c0_81 = arith.constant 0 : index
    %c0_82 = arith.constant 0 : index
    %87 = vector.load %arg7[%c2_80, %c0_81, %c0_82] : memref<4x48x24xbf16, #tpu.memory_space<vmem>>, vector<1x48x24xbf16>
    %88 = vector.shape_cast %87 : vector<1x48x24xbf16> to vector<48x24xbf16>
    %cst_83 = arith.constant dense<0.000000e+00> : vector<128x24xf32>
    %89 = tpu.matmul %71, %88, %cst_83 {dimension_numbers = #tpu.dot_dimension_numbers<[1], [0], [0], [1], [0, 0, 1, 1], [], []>} : vector<128x48xbf16>, vector<48x24xbf16>, vector<128x24xf32> -> vector<128x24xf32>
    %90 = arith.truncf %89 : vector<128x24xf32> to vector<128x24xbf16>
    %c2_84 = arith.constant 2 : index
    %c0_85 = arith.constant 0 : index
    %c0_86 = arith.constant 0 : index
    %91 = vector.load %arg6[%c2_84, %c0_85, %c0_86] : memref<4x128x128xbf16, #tpu.memory_space<vmem>>, vector<1x128x128xbf16>
    %92 = vector.shape_cast %91 : vector<1x128x128xbf16> to vector<128x128xbf16>
    %cst_87 = arith.constant dense<0.000000e+00> : vector<128x24xf32>
    %93 = tpu.matmul %92, %90, %cst_87 {dimension_numbers = #tpu.dot_dimension_numbers<[1], [0], [0], [1], [0, 0, 1, 1], [], []>} : vector<128x128xbf16>, vector<128x24xbf16>, vector<128x24xf32> -> vector<128x24xf32>
    %94 = arith.addf %86, %93 : vector<128x24xf32>
    %c3_88 = arith.constant 3 : index
    %c0_89 = arith.constant 0 : index
    %c0_90 = arith.constant 0 : index
    %95 = vector.load %arg7[%c3_88, %c0_89, %c0_90] : memref<4x48x24xbf16, #tpu.memory_space<vmem>>, vector<1x48x24xbf16>
    %96 = vector.shape_cast %95 : vector<1x48x24xbf16> to vector<48x24xbf16>
    %cst_91 = arith.constant dense<0.000000e+00> : vector<128x24xf32>
    %97 = tpu.matmul %71, %96, %cst_91 {dimension_numbers = #tpu.dot_dimension_numbers<[1], [0], [0], [1], [0, 0, 1, 1], [], []>} : vector<128x48xbf16>, vector<48x24xbf16>, vector<128x24xf32> -> vector<128x24xf32>
    %98 = arith.truncf %97 : vector<128x24xf32> to vector<128x24xbf16>
    %c3_92 = arith.constant 3 : index
    %c0_93 = arith.constant 0 : index
    %c0_94 = arith.constant 0 : index
    %99 = vector.load %arg6[%c3_92, %c0_93, %c0_94] : memref<4x128x128xbf16, #tpu.memory_space<vmem>>, vector<1x128x128xbf16>
    %100 = vector.shape_cast %99 : vector<1x128x128xbf16> to vector<128x128xbf16>
    %cst_95 = arith.constant dense<0.000000e+00> : vector<128x24xf32>
    %101 = tpu.matmul %100, %98, %cst_95 {dimension_numbers = #tpu.dot_dimension_numbers<[1], [0], [0], [1], [0, 0, 1, 1], [], []>} : vector<128x128xbf16>, vector<128x24xbf16>, vector<128x24xf32> -> vector<128x24xf32>
    %102 = arith.addf %94, %101 : vector<128x24xf32>
    %cst_96 = arith.constant 2.000000e-01 : f32
    %103 = vector.broadcast %cst_96 : f32 to vector<128x24xf32>
    %104 = arith.mulf %103, %102 : vector<128x24xf32>
    %105 = arith.maximumf %102, %104 : vector<128x24xf32>
    %106 = arith.truncf %105 : vector<128x24xf32> to vector<128x24xbf16>
    %c0_97 = arith.constant 0 : index
    %c0_98 = arith.constant 0 : index
    %c0_99 = arith.constant 0 : index
    %107 = vector.load %arg9[%c0_97, %c0_98, %c0_99] : memref<4x24x12xbf16, #tpu.memory_space<vmem>>, vector<1x24x12xbf16>
    %108 = vector.shape_cast %107 : vector<1x24x12xbf16> to vector<24x12xbf16>
    %cst_100 = arith.constant dense<0.000000e+00> : vector<128x12xf32>
    %109 = tpu.matmul %106, %108, %cst_100 {dimension_numbers = #tpu.dot_dimension_numbers<[1], [0], [0], [1], [0, 0, 1, 1], [], []>} : vector<128x24xbf16>, vector<24x12xbf16>, vector<128x12xf32> -> vector<128x12xf32>
    %110 = arith.truncf %109 : vector<128x12xf32> to vector<128x12xbf16>
    %c0_101 = arith.constant 0 : index
    %c0_102 = arith.constant 0 : index
    %c0_103 = arith.constant 0 : index
    %111 = vector.load %arg8[%c0_101, %c0_102, %c0_103] : memref<4x128x128xbf16, #tpu.memory_space<vmem>>, vector<1x128x128xbf16>
    %112 = vector.shape_cast %111 : vector<1x128x128xbf16> to vector<128x128xbf16>
    %cst_104 = arith.constant dense<0.000000e+00> : vector<128x12xf32>
    %113 = tpu.matmul %112, %110, %cst_104 {dimension_numbers = #tpu.dot_dimension_numbers<[1], [0], [0], [1], [0, 0, 1, 1], [], []>} : vector<128x128xbf16>, vector<128x12xbf16>, vector<128x12xf32> -> vector<128x12xf32>
    %c1_105 = arith.constant 1 : index
    %c0_106 = arith.constant 0 : index
    %c0_107 = arith.constant 0 : index
    %114 = vector.load %arg9[%c1_105, %c0_106, %c0_107] : memref<4x24x12xbf16, #tpu.memory_space<vmem>>, vector<1x24x12xbf16>
    %115 = vector.shape_cast %114 : vector<1x24x12xbf16> to vector<24x12xbf16>
    %cst_108 = arith.constant dense<0.000000e+00> : vector<128x12xf32>
    %116 = tpu.matmul %106, %115, %cst_108 {dimension_numbers = #tpu.dot_dimension_numbers<[1], [0], [0], [1], [0, 0, 1, 1], [], []>} : vector<128x24xbf16>, vector<24x12xbf16>, vector<128x12xf32> -> vector<128x12xf32>
    %117 = arith.truncf %116 : vector<128x12xf32> to vector<128x12xbf16>
    %c1_109 = arith.constant 1 : index
    %c0_110 = arith.constant 0 : index
    %c0_111 = arith.constant 0 : index
    %118 = vector.load %arg8[%c1_109, %c0_110, %c0_111] : memref<4x128x128xbf16, #tpu.memory_space<vmem>>, vector<1x128x128xbf16>
    %119 = vector.shape_cast %118 : vector<1x128x128xbf16> to vector<128x128xbf16>
    %cst_112 = arith.constant dense<0.000000e+00> : vector<128x12xf32>
    %120 = tpu.matmul %119, %117, %cst_112 {dimension_numbers = #tpu.dot_dimension_numbers<[1], [0], [0], [1], [0, 0, 1, 1], [], []>} : vector<128x128xbf16>, vector<128x12xbf16>, vector<128x12xf32> -> vector<128x12xf32>
    %121 = arith.addf %113, %120 : vector<128x12xf32>
    %c2_113 = arith.constant 2 : index
    %c0_114 = arith.constant 0 : index
    %c0_115 = arith.constant 0 : index
    %122 = vector.load %arg9[%c2_113, %c0_114, %c0_115] : memref<4x24x12xbf16, #tpu.memory_space<vmem>>, vector<1x24x12xbf16>
    %123 = vector.shape_cast %122 : vector<1x24x12xbf16> to vector<24x12xbf16>
    %cst_116 = arith.constant dense<0.000000e+00> : vector<128x12xf32>
    %124 = tpu.matmul %106, %123, %cst_116 {dimension_numbers = #tpu.dot_dimension_numbers<[1], [0], [0], [1], [0, 0, 1, 1], [], []>} : vector<128x24xbf16>, vector<24x12xbf16>, vector<128x12xf32> -> vector<128x12xf32>
    %125 = arith.truncf %124 : vector<128x12xf32> to vector<128x12xbf16>
    %c2_117 = arith.constant 2 : index
    %c0_118 = arith.constant 0 : index
    %c0_119 = arith.constant 0 : index
    %126 = vector.load %arg8[%c2_117, %c0_118, %c0_119] : memref<4x128x128xbf16, #tpu.memory_space<vmem>>, vector<1x128x128xbf16>
    %127 = vector.shape_cast %126 : vector<1x128x128xbf16> to vector<128x128xbf16>
    %cst_120 = arith.constant dense<0.000000e+00> : vector<128x12xf32>
    %128 = tpu.matmul %127, %125, %cst_120 {dimension_numbers = #tpu.dot_dimension_numbers<[1], [0], [0], [1], [0, 0, 1, 1], [], []>} : vector<128x128xbf16>, vector<128x12xbf16>, vector<128x12xf32> -> vector<128x12xf32>
    %129 = arith.addf %121, %128 : vector<128x12xf32>
    %c3_121 = arith.constant 3 : index
    %c0_122 = arith.constant 0 : index
    %c0_123 = arith.constant 0 : index
    %130 = vector.load %arg9[%c3_121, %c0_122, %c0_123] : memref<4x24x12xbf16, #tpu.memory_space<vmem>>, vector<1x24x12xbf16>
    %131 = vector.shape_cast %130 : vector<1x24x12xbf16> to vector<24x12xbf16>
    %cst_124 = arith.constant dense<0.000000e+00> : vector<128x12xf32>
    %132 = tpu.matmul %106, %131, %cst_124 {dimension_numbers = #tpu.dot_dimension_numbers<[1], [0], [0], [1], [0, 0, 1, 1], [], []>} : vector<128x24xbf16>, vector<24x12xbf16>, vector<128x12xf32> -> vector<128x12xf32>
    %133 = arith.truncf %132 : vector<128x12xf32> to vector<128x12xbf16>
    %c3_125 = arith.constant 3 : index
    %c0_126 = arith.constant 0 : index
    %c0_127 = arith.constant 0 : index
    %134 = vector.load %arg8[%c3_125, %c0_126, %c0_127] : memref<4x128x128xbf16, #tpu.memory_space<vmem>>, vector<1x128x128xbf16>
    %135 = vector.shape_cast %134 : vector<1x128x128xbf16> to vector<128x128xbf16>
    %cst_128 = arith.constant dense<0.000000e+00> : vector<128x12xf32>
    %136 = tpu.matmul %135, %133, %cst_128 {dimension_numbers = #tpu.dot_dimension_numbers<[1], [0], [0], [1], [0, 0, 1, 1], [], []>} : vector<128x128xbf16>, vector<128x12xbf16>, vector<128x12xf32> -> vector<128x12xf32>
    %137 = arith.addf %129, %136 : vector<128x12xf32>
    %cst_129 = arith.constant 2.000000e-01 : f32
    %138 = vector.broadcast %cst_129 : f32 to vector<128x12xf32>
    %139 = arith.mulf %138, %137 : vector<128x12xf32>
    %140 = arith.maximumf %137, %139 : vector<128x12xf32>
    %141 = arith.truncf %140 : vector<128x12xf32> to vector<128x12xbf16>
    %c0_130 = arith.constant 0 : index
    %c0_131 = arith.constant 0 : index
    %c0_132 = arith.constant 0 : index
    %142 = vector.load %arg11[%c0_130, %c0_131, %c0_132] : memref<4x12x6xbf16, #tpu.memory_space<vmem>>, vector<1x12x6xbf16>
    %143 = vector.shape_cast %142 : vector<1x12x6xbf16> to vector<12x6xbf16>
    %cst_133 = arith.constant dense<0.000000e+00> : vector<128x6xf32>
    %144 = tpu.matmul %141, %143, %cst_133 {dimension_numbers = #tpu.dot_dimension_numbers<[1], [0], [0], [1], [0, 0, 1, 1], [], []>} : vector<128x12xbf16>, vector<12x6xbf16>, vector<128x6xf32> -> vector<128x6xf32>
    %145 = arith.truncf %144 : vector<128x6xf32> to vector<128x6xbf16>
    %c0_134 = arith.constant 0 : index
    %c0_135 = arith.constant 0 : index
    %c0_136 = arith.constant 0 : index
    %146 = vector.load %arg10[%c0_134, %c0_135, %c0_136] : memref<4x128x128xbf16, #tpu.memory_space<vmem>>, vector<1x128x128xbf16>
    %147 = vector.shape_cast %146 : vector<1x128x128xbf16> to vector<128x128xbf16>
    %cst_137 = arith.constant dense<0.000000e+00> : vector<128x6xf32>
    %148 = tpu.matmul %147, %145, %cst_137 {dimension_numbers = #tpu.dot_dimension_numbers<[1], [0], [0], [1], [0, 0, 1, 1], [], []>} : vector<128x128xbf16>, vector<128x6xbf16>, vector<128x6xf32> -> vector<128x6xf32>
    %c1_138 = arith.constant 1 : index
    %c0_139 = arith.constant 0 : index
    %c0_140 = arith.constant 0 : index
    %149 = vector.load %arg11[%c1_138, %c0_139, %c0_140] : memref<4x12x6xbf16, #tpu.memory_space<vmem>>, vector<1x12x6xbf16>
    %150 = vector.shape_cast %149 : vector<1x12x6xbf16> to vector<12x6xbf16>
    %cst_141 = arith.constant dense<0.000000e+00> : vector<128x6xf32>
    %151 = tpu.matmul %141, %150, %cst_141 {dimension_numbers = #tpu.dot_dimension_numbers<[1], [0], [0], [1], [0, 0, 1, 1], [], []>} : vector<128x12xbf16>, vector<12x6xbf16>, vector<128x6xf32> -> vector<128x6xf32>
    %152 = arith.truncf %151 : vector<128x6xf32> to vector<128x6xbf16>
    %c1_142 = arith.constant 1 : index
    %c0_143 = arith.constant 0 : index
    %c0_144 = arith.constant 0 : index
    %153 = vector.load %arg10[%c1_142, %c0_143, %c0_144] : memref<4x128x128xbf16, #tpu.memory_space<vmem>>, vector<1x128x128xbf16>
    %154 = vector.shape_cast %153 : vector<1x128x128xbf16> to vector<128x128xbf16>
    %cst_145 = arith.constant dense<0.000000e+00> : vector<128x6xf32>
    %155 = tpu.matmul %154, %152, %cst_145 {dimension_numbers = #tpu.dot_dimension_numbers<[1], [0], [0], [1], [0, 0, 1, 1], [], []>} : vector<128x128xbf16>, vector<128x6xbf16>, vector<128x6xf32> -> vector<128x6xf32>
    %156 = arith.addf %148, %155 : vector<128x6xf32>
    %c2_146 = arith.constant 2 : index
    %c0_147 = arith.constant 0 : index
    %c0_148 = arith.constant 0 : index
    %157 = vector.load %arg11[%c2_146, %c0_147, %c0_148] : memref<4x12x6xbf16, #tpu.memory_space<vmem>>, vector<1x12x6xbf16>
    %158 = vector.shape_cast %157 : vector<1x12x6xbf16> to vector<12x6xbf16>
    %cst_149 = arith.constant dense<0.000000e+00> : vector<128x6xf32>
    %159 = tpu.matmul %141, %158, %cst_149 {dimension_numbers = #tpu.dot_dimension_numbers<[1], [0], [0], [1], [0, 0, 1, 1], [], []>} : vector<128x12xbf16>, vector<12x6xbf16>, vector<128x6xf32> -> vector<128x6xf32>
    %160 = arith.truncf %159 : vector<128x6xf32> to vector<128x6xbf16>
    %c2_150 = arith.constant 2 : index
    %c0_151 = arith.constant 0 : index
    %c0_152 = arith.constant 0 : index
    %161 = vector.load %arg10[%c2_150, %c0_151, %c0_152] : memref<4x128x128xbf16, #tpu.memory_space<vmem>>, vector<1x128x128xbf16>
    %162 = vector.shape_cast %161 : vector<1x128x128xbf16> to vector<128x128xbf16>
    %cst_153 = arith.constant dense<0.000000e+00> : vector<128x6xf32>
    %163 = tpu.matmul %162, %160, %cst_153 {dimension_numbers = #tpu.dot_dimension_numbers<[1], [0], [0], [1], [0, 0, 1, 1], [], []>} : vector<128x128xbf16>, vector<128x6xbf16>, vector<128x6xf32> -> vector<128x6xf32>
    %164 = arith.addf %156, %163 : vector<128x6xf32>
    %c3_154 = arith.constant 3 : index
    %c0_155 = arith.constant 0 : index
    %c0_156 = arith.constant 0 : index
    %165 = vector.load %arg11[%c3_154, %c0_155, %c0_156] : memref<4x12x6xbf16, #tpu.memory_space<vmem>>, vector<1x12x6xbf16>
    %166 = vector.shape_cast %165 : vector<1x12x6xbf16> to vector<12x6xbf16>
    %cst_157 = arith.constant dense<0.000000e+00> : vector<128x6xf32>
    %167 = tpu.matmul %141, %166, %cst_157 {dimension_numbers = #tpu.dot_dimension_numbers<[1], [0], [0], [1], [0, 0, 1, 1], [], []>} : vector<128x12xbf16>, vector<12x6xbf16>, vector<128x6xf32> -> vector<128x6xf32>
    %168 = arith.truncf %167 : vector<128x6xf32> to vector<128x6xbf16>
    %c3_158 = arith.constant 3 : index
    %c0_159 = arith.constant 0 : index
    %c0_160 = arith.constant 0 : index
    %169 = vector.load %arg10[%c3_158, %c0_159, %c0_160] : memref<4x128x128xbf16, #tpu.memory_space<vmem>>, vector<1x128x128xbf16>
    %170 = vector.shape_cast %169 : vector<1x128x128xbf16> to vector<128x128xbf16>
    %cst_161 = arith.constant dense<0.000000e+00> : vector<128x6xf32>
    %171 = tpu.matmul %170, %168, %cst_161 {dimension_numbers = #tpu.dot_dimension_numbers<[1], [0], [0], [1], [0, 0, 1, 1], [], []>} : vector<128x128xbf16>, vector<128x6xbf16>, vector<128x6xf32> -> vector<128x6xf32>
    %172 = arith.addf %164, %171 : vector<128x6xf32>
    %cst_162 = arith.constant 2.000000e-01 : f32
    %173 = vector.broadcast %cst_162 : f32 to vector<128x6xf32>
    %174 = arith.mulf %173, %172 : vector<128x6xf32>
    %175 = arith.maximumf %172, %174 : vector<128x6xf32>
    %176 = arith.truncf %175 : vector<128x6xf32> to vector<128x6xbf16>
    %177 = arith.extf %176 : vector<128x6xbf16> to vector<128x6xf32>
    %c0_163 = arith.constant 0 : index
    %c0_164 = arith.constant 0 : index
    %178 = vector.load %arg12[%c0_163, %c0_164] : memref<128x6xbf16, #tpu.memory_space<vmem>>, vector<128x6xbf16>
    %179 = arith.extf %178 : vector<128x6xbf16> to vector<128x6xf32>
    %180 = arith.mulf %177, %179 : vector<128x6xf32>
    %181 = vector.shape_cast %180 : vector<128x6xf32> to vector<1x128x6xf32>
    %cst_165 = arith.constant dense<0.000000e+00> : vector<1xf32>
    %182 = vector.multi_reduction <add>, %181, %cst_165 [1, 2] : vector<1x128x6xf32> to vector<1xf32>
    %183 = vector.shape_cast %182 : vector<1xf32> to vector<1x1x1xf32>
    %184 = vector.extract %183[0, 0, 0] : f32 from vector<1x1x1xf32>
    %185 = vector.broadcast %184 : f32 to vector<1x1xf32>
    %cst_166 = arith.constant 2.000000e-01 : f32
    %186 = vector.broadcast %cst_166 : f32 to vector<1x1xf32>
    %187 = arith.mulf %186, %185 : vector<1x1xf32>
    %188 = arith.maximumf %185, %187 : vector<1x1xf32>
    %c0_167 = arith.constant 0 : index
    %c0_168 = arith.constant 0 : index
    %c0_169 = arith.constant 0 : index
    %189 = vector.load %arg13[%c0_167, %c0_168, %c0_169] : memref<1x1x1xf32, #tpu.memory_space<vmem>>, vector<1x1x1xf32>
    %190 = vector.shape_cast %189 : vector<1x1x1xf32> to vector<1x1xf32>
    %191 = vector.shape_cast %188 : vector<1x1xf32> to vector<1x1x1xf32>
    tpu.vector_store %arg13[%c0_167, %c0_168, %c0_169], %191 {strides = array<i32>} : memref<1x1x1xf32, #tpu.memory_space<vmem>>, vector<1x1x1xf32>,
    return
  }
  func.func @transform_0(%arg0: i32) -> (i32, i32, i32) {
    %c0_i32 = arith.constant 0 : i32
    %c0_i32_0 = arith.constant 0 : i32
    %c0_i32_1 = arith.constant 0 : i32
    return %arg0, %c0_i32, %c0_i32_0 : i32, i32, i32
  }
  func.func @transform_1(%arg0: i32) -> (i32, i32, i32) {
    %c0_i32 = arith.constant 0 : i32
    %c0_i32_0 = arith.constant 0 : i32
    %c0_i32_1 = arith.constant 0 : i32
    %c0_i32_2 = arith.constant 0 : i32
    return %c0_i32, %c0_i32_0, %c0_i32_1 : i32, i32, i32
  }
  func.func @transform_2(%arg0: i32) -> (i32, i32, i32) {
    %c0_i32 = arith.constant 0 : i32
    %c0_i32_0 = arith.constant 0 : i32
    %c0_i32_1 = arith.constant 0 : i32
    %c0_i32_2 = arith.constant 0 : i32
    return %c0_i32, %c0_i32_0, %c0_i32_1 : i32, i32, i32
  }
  func.func @transform_3(%arg0: i32) -> (i32, i32, i32) {
    %c0_i32 = arith.constant 0 : i32
    %c0_i32_0 = arith.constant 0 : i32
    %c0_i32_1 = arith.constant 0 : i32
    %c0_i32_2 = arith.constant 0 : i32
    return %c0_i32, %c0_i32_0, %c0_i32_1 : i32, i32, i32
  }
  func.func @transform_4(%arg0: i32) -> (i32, i32, i32) {
    %c0_i32 = arith.constant 0 : i32
    %c0_i32_0 = arith.constant 0 : i32
    %c0_i32_1 = arith.constant 0 : i32
    %c0_i32_2 = arith.constant 0 : i32
    return %c0_i32, %c0_i32_0, %c0_i32_1 : i32, i32, i32
  }
  func.func @transform_5(%arg0: i32) -> (i32, i32, i32) {
    %c0_i32 = arith.constant 0 : i32
    %c0_i32_0 = arith.constant 0 : i32
    %c0_i32_1 = arith.constant 0 : i32
    %c0_i32_2 = arith.constant 0 : i32
    return %c0_i32, %c0_i32_0, %c0_i32_1 : i32, i32, i32
  }
  func.func @transform_6(%arg0: i32) -> (i32, i32, i32) {
    %c0_i32 = arith.constant 0 : i32
    %c0_i32_0 = arith.constant 0 : i32
    %c0_i32_1 = arith.constant 0 : i32
    %c0_i32_2 = arith.constant 0 : i32
    return %c0_i32, %c0_i32_0, %c0_i32_1 : i32, i32, i32
  }
  func.func @transform_7(%arg0: i32) -> (i32, i32, i32) {
    %c0_i32 = arith.constant 0 : i32
    %c0_i32_0 = arith.constant 0 : i32
    %c0_i32_1 = arith.constant 0 : i32
    %c0_i32_2 = arith.constant 0 : i32
    return %c0_i32, %c0_i32_0, %c0_i32_1 : i32, i32, i32
  }
  func.func @transform_8(%arg0: i32) -> (i32, i32, i32) {
    %c0_i32 = arith.constant 0 : i32
    %c0_i32_0 = arith.constant 0 : i32
    %c0_i32_1 = arith.constant 0 : i32
    %c0_i32_2 = arith.constant 0 : i32
    return %c0_i32, %c0_i32_0, %c0_i32_1 : i32, i32, i32
  }
  func.func @transform_9(%arg0: i32) -> (i32, i32, i32) {
    %c0_i32 = arith.constant 0 : i32
    %c0_i32_0 = arith.constant 0 : i32
    %c0_i32_1 = arith.constant 0 : i32
    %c0_i32_2 = arith.constant 0 : i32
    return %c0_i32, %c0_i32_0, %c0_i32_1 : i32, i32, i32
  }
  func.func @transform_10(%arg0: i32) -> (i32, i32, i32) {
    %c0_i32 = arith.constant 0 : i32
    %c0_i32_0 = arith.constant 0 : i32
    %c0_i32_1 = arith.constant 0 : i32
    %c0_i32_2 = arith.constant 0 : i32
    return %c0_i32, %c0_i32_0, %c0_i32_1 : i32, i32, i32
  }
  func.func @transform_11(%arg0: i32) -> (i32, i32) {
    %c0_i32 = arith.constant 0 : i32
    %c0_i32_0 = arith.constant 0 : i32
    %c0_i32_1 = arith.constant 0 : i32
    return %c0_i32, %c0_i32_0 : i32, i32
  }
  func.func @transform_12(%arg0: i32) -> (i32, i32, i32) {
    %c0_i32 = arith.constant 0 : i32
    %c0_i32_0 = arith.constant 0 : i32
    %c0_i32_1 = arith.constant 0 : i32
    return %arg0, %c0_i32, %c0_i32_0 : i32, i32, i32
  }
}

</mosaic_0001>

<llo_original>
// kernel: cars_cnn_discriminator.1
$region0: #{cars_cnn_discriminator.1}
  #allocation0 [shape = 'u32[]', space=smem, size = 0x4, offset = 0x4, fixed_abs, tag = 'smem constant byte address 0x4 - core index']
  #allocation1 [shape = 'u32[144,128]{1,0:T(1,128)}', space=vmem, size = 0x12000, scoped, tag = 'internal scratch']
  %s0 = inlined_call_operand.vmem [shape: bf16[2,384,192], index: 0, kind: input, shape index: {}]
  %s1 = inlined_call_operand.vmem [shape: bf16[4,256,384], index: 1, kind: input, shape index: {}]
  %s2 = inlined_call_operand.vmem [shape: bf16[4,192,96], index: 2, kind: input, shape index: {}]
  %s3 = inlined_call_operand.vmem [shape: bf16[4,128,256], index: 3, kind: input, shape index: {}]
  %s4 = inlined_call_operand.vmem [shape: bf16[4,96,48], index: 4, kind: input, shape index: {}]
  %s5 = inlined_call_operand.vmem [shape: bf16[4,128,128], index: 5, kind: input, shape index: {}]
  %s6 = inlined_call_operand.vmem [shape: bf16[4,48,24], index: 6, kind: input, shape index: {}]
  %s7 = inlined_call_operand.vmem [shape: bf16[4,128,128], index: 7, kind: input, shape index: {}]
  %s8 = inlined_call_operand.vmem [shape: bf16[4,24,12], index: 8, kind: input, shape index: {}]
  %s9 = inlined_call_operand.vmem [shape: bf16[4,128,128], index: 9, kind: input, shape index: {}]
  %s10 = inlined_call_operand.vmem [shape: bf16[4,12,6], index: 10, kind: input, shape index: {}]
  %s11 = inlined_call_operand.vmem [shape: bf16[128,6], index: 11, kind: input, shape index: {}]
  %s12 = inlined_call_operand.vmem [shape: f32[2,1,1], index: 12, kind: output, shape index: {}]
  %s13 = sld [smem:[#allocation0]]
  $region81: #{cars_cnn_discriminator.1} parent=0
    _
  %s15 = ssub.s32 1, %s13
  %s16 = scalar_select 0, %s15, %s13
  loop: start=0, step=1, limit=4
  $region2: #{cars_cnn_discriminator.1} parent=0 // loop_pre_header
    _
  $region3: #{cars_cnn_discriminator.1} parent=0 // loop_header
    %s18 = sphi 0, %s22
    %p19 = scmp.ge.s32.totalorder %s18, 4
    %s28 = sphi 0, %s30
    %s31 = sphi 0, %s28
    %s32 = sphi 0, %s31
    %s48 = sphi 0, %s32
    %s52 = sphi 0, %s52
    %s54 = sphi 0, %s52
    %s55 = sphi 0, %s54
    %s69 = sphi 0, %s55
    %s73 = sphi 0, %s73
    %s75 = sphi 0, %s73
    %s76 = sphi 0, %s75
    %s90 = sphi 0, %s76
    %s94 = sphi 0, %s94
    %s96 = sphi 0, %s94
    %s97 = sphi 0, %s96
    %s111 = sphi 0, %s97
    %s115 = sphi 0, %s115
    %s117 = sphi 0, %s115
    %s118 = sphi 0, %s117
    %s132 = sphi 0, %s118
    %s136 = sphi 0, %s136
    %s138 = sphi 0, %s136
    %s139 = sphi 0, %s138
    %s153 = sphi 0, %s139
    %s157 = sphi 0, %s157
    %s159 = sphi 0, %s157
    %s160 = sphi 0, %s159
    %s174 = sphi 0, %s160
    %s178 = sphi 0, %s178
    %s180 = sphi 0, %s178
    %s181 = sphi 0, %s180
    %s195 = sphi 0, %s181
    %s199 = sphi 0, %s199
    %s201 = sphi 0, %s199
    %s202 = sphi 0, %s201
    %s216 = sphi 0, %s202
    %s220 = sphi 0, %s220
    %s222 = sphi 0, %s220
    %s223 = sphi 0, %s222
    %s237 = sphi 0, %s223
    %s241 = sphi 0, %s241
    %s243 = sphi 0, %s241
    %s244 = sphi 0, %s243
    %s258 = sphi 0, %s244
    %s262 = sphi 0, %s262
    %s264 = sphi 0, %s262
    %s265 = sphi 0, %s264
    %s279 = sphi 0, %s265
    %s285 = sphi 0, %s287
    %s288 = sphi 0, %s285
    %s289 = sphi 0, %s288
    %s305 = sphi 0, %s289
  $region4: #{cars_cnn_discriminator.1} parent=0 // loop_header_branch
    %21 = sbr.rel (%p19) target = $region8
  $region5: #{cars_cnn_discriminator.1} parent=0 // loop_body
    %s23 = ssub.s32 %s18, 1
    %s24 = ssub.s32 %s18, 2
    %s25 = sadd.s32 %s18, 1
    %s26 = ssub.s32 %s18, %s25
    %p27 = scmp.eq.s32.totalorder %s26, 0
    %s29 = sadd.s32 %s28, 1
    %s30 = scalar_select %p27, %s28, %s29
    %p33 = pneg %p27
    %p34 = scmp.eq.s32.totalorder %s18, 1
    %p35 = por %p33, %p34
    %p36 = scmp.ne.s32.totalorder %s28, %s31
    %p37 = scmp.eq.s32.totalorder %s18, 0
    %p38 = por %p36, %p37
    %p39 = scmp.ne.s32.totalorder %s28, %s31
    %p40 = scmp.eq.s32.totalorder %s23, 1
    %p41 = por %p39, %p40
    %p42 = scmp.ne.s32.totalorder %s31, %s32
    %p43 = scmp.eq.s32.totalorder %s23, 0
    %p44 = por %p42, %p43
    %p45 = scmp.ne.s32.totalorder %s31, %s32
    %p46 = scmp.eq.s32.totalorder %s24, 1
    %p47 = por %p45, %p46
    %p49 = scmp.ne.s32.totalorder %s32, %s48
    %p50 = scmp.eq.s32.totalorder %s24, 0
    %p51 = por %p49, %p50
    %s53 = sadd.s32 %s52, 1
    %p56 = scmp.eq.s32.totalorder %s18, 1
    %p57 = scmp.ne.s32.totalorder %s52, %s54
    %p58 = scmp.eq.s32.totalorder %s18, 0
    %p59 = por %p57, %p58
    %p60 = scmp.ne.s32.totalorder %s52, %s54
    %p61 = scmp.eq.s32.totalorder %s23, 1
    %p62 = por %p60, %p61
    %p63 = scmp.ne.s32.totalorder %s54, %s55
    %p64 = scmp.eq.s32.totalorder %s23, 0
    %p65 = por %p63, %p64
    %p66 = scmp.ne.s32.totalorder %s54, %s55
    %p67 = scmp.eq.s32.totalorder %s24, 1
    %p68 = por %p66, %p67
    %p70 = scmp.ne.s32.totalorder %s55, %s69
    %p71 = scmp.eq.s32.totalorder %s24, 0
    %p72 = por %p70, %p71
    %s74 = sadd.s32 %s73, 1
    %p77 = scmp.eq.s32.totalorder %s18, 1
    %p78 = scmp.ne.s32.totalorder %s73, %s75
    %p79 = scmp.eq.s32.totalorder %s18, 0
    %p80 = por %p78, %p79
    %p81 = scmp.ne.s32.totalorder %s73, %s75
    %p82 = scmp.eq.s32.totalorder %s23, 1
    %p83 = por %p81, %p82
    %p84 = scmp.ne.s32.totalorder %s75, %s76
    %p85 = scmp.eq.s32.totalorder %s23, 0
    %p86 = por %p84, %p85
    %p87 = scmp.ne.s32.totalorder %s75, %s76
    %p88 = scmp.eq.s32.totalorder %s24, 1
    %p89 = por %p87, %p88
    %p91 = scmp.ne.s32.totalorder %s76, %s90
    %p92 = scmp.eq.s32.totalorder %s24, 0
    %p93 = por %p91, %p92
    %s95 = sadd.s32 %s94, 1
    %p98 = scmp.eq.s32.totalorder %s18, 1
    %p99 = scmp.ne.s32.totalorder %s94, %s96
    %p100 = scmp.eq.s32.totalorder %s18, 0
    %p101 = por %p99, %p100
    %p102 = scmp.ne.s32.totalorder %s94, %s96
    %p103 = scmp.eq.s32.totalorder %s23, 1
    %p104 = por %p102, %p103
    %p105 = scmp.ne.s32.totalorder %s96, %s97
    %p106 = scmp.eq.s32.totalorder %s23, 0
    %p107 = por %p105, %p106
    %p108 = scmp.ne.s32.totalorder %s96, %s97
    %p109 = scmp.eq.s32.totalorder %s24, 1
    %p110 = por %p108, %p109
    %p112 = scmp.ne.s32.totalorder %s97, %s111
    %p113 = scmp.eq.s32.totalorder %s24, 0
    %p114 = por %p112, %p113
    %s116 = sadd.s32 %s115, 1
    %p119 = scmp.eq.s32.totalorder %s18, 1
    %p120 = scmp.ne.s32.totalorder %s115, %s117
    %p121 = scmp.eq.s32.totalorder %s18, 0
    %p122 = por %p120, %p121
    %p123 = scmp.ne.s32.totalorder %s115, %s117
    %p124 = scmp.eq.s32.totalorder %s23, 1
    %p125 = por %p123, %p124
    %p126 = scmp.ne.s32.totalorder %s117, %s118
    %p127 = scmp.eq.s32.totalorder %s23, 0
    %p128 = por %p126, %p127
    %p129 = scmp.ne.s32.totalorder %s117, %s118
    %p130 = scmp.eq.s32.totalorder %s24, 1
    %p131 = por %p129, %p130
    %p133 = scmp.ne.s32.totalorder %s118, %s132
    %p134 = scmp.eq.s32.totalorder %s24, 0
    %p135 = por %p133, %p134
    %s137 = sadd.s32 %s136, 1
    %p140 = scmp.eq.s32.totalorder %s18, 1
    %p141 = scmp.ne.s32.totalorder %s136, %s138
    %p142 = scmp.eq.s32.totalorder %s18, 0
    %p143 = por %p141, %p142
    %p144 = scmp.ne.s32.totalorder %s136, %s138
    %p145 = scmp.eq.s32.totalorder %s23, 1
    %p146 = por %p144, %p145
    %p147 = scmp.ne.s32.totalorder %s138, %s139
    %p148 = scmp.eq.s32.totalorder %s23, 0
    %p149 = por %p147, %p148
    %p150 = scmp.ne.s32.totalorder %s138, %s139
    %p151 = scmp.eq.s32.totalorder %s24, 1
    %p152 = por %p150, %p151
    %p154 = scmp.ne.s32.totalorder %s139, %s153
    %p155 = scmp.eq.s32.totalorder %s24, 0
    %p156 = por %p154, %p155
    %s158 = sadd.s32 %s157, 1
    %p161 = scmp.eq.s32.totalorder %s18, 1
    %p162 = scmp.ne.s32.totalorder %s157, %s159
    %p163 = scmp.eq.s32.totalorder %s18, 0
    %p164 = por %p162, %p163
    %p165 = scmp.ne.s32.totalorder %s157, %s159
    %p166 = scmp.eq.s32.totalorder %s23, 1
    %p167 = por %p165, %p166
    %p168 = scmp.ne.s32.totalorder %s159, %s160
    %p169 = scmp.eq.s32.totalorder %s23, 0
    %p170 = por %p168, %p169
    %p171 = scmp.ne.s32.totalorder %s159, %s160
    %p172 = scmp.eq.s32.totalorder %s24, 1
    %p173 = por %p171, %p172
    %p175 = scmp.ne.s32.totalorder %s160, %s174
    %p176 = scmp.eq.s32.totalorder %s24, 0
    %p177 = por %p175, %p176
    %s179 = sadd.s32 %s178, 1
    %p182 = scmp.eq.s32.totalorder %s18, 1
    %p183 = scmp.ne.s32.totalorder %s178, %s180
    %p184 = scmp.eq.s32.totalorder %s18, 0
    %p185 = por %p183, %p184
    %p186 = scmp.ne.s32.totalorder %s178, %s180
    %p187 = scmp.eq.s32.totalorder %s23, 1
    %p188 = por %p186, %p187
    %p189 = scmp.ne.s32.totalorder %s180, %s181
    %p190 = scmp.eq.s32.totalorder %s23, 0
    %p191 = por %p189, %p190
    %p192 = scmp.ne.s32.totalorder %s180, %s181
    %p193 = scmp.eq.s32.totalorder %s24, 1
    %p194 = por %p192, %p193
    %p196 = scmp.ne.s32.totalorder %s181, %s195
    %p197 = scmp.eq.s32.totalorder %s24, 0
    %p198 = por %p196, %p197
    %s200 = sadd.s32 %s199, 1
    %p203 = scmp.eq.s32.totalorder %s18, 1
    %p204 = scmp.ne.s32.totalorder %s199, %s201
    %p205 = scmp.eq.s32.totalorder %s18, 0
    %p206 = por %p204, %p205
    %p207 = scmp.ne.s32.totalorder %s199, %s201
    %p208 = scmp.eq.s32.totalorder %s23, 1
    %p209 = por %p207, %p208
    %p210 = scmp.ne.s32.totalorder %s201, %s202
    %p211 = scmp.eq.s32.totalorder %s23, 0
    %p212 = por %p210, %p211
    %p213 = scmp.ne.s32.totalorder %s201, %s202
    %p214 = scmp.eq.s32.totalorder %s24, 1
    %p215 = por %p213, %p214
    %p217 = scmp.ne.s32.totalorder %s202, %s216
    %p218 = scmp.eq.s32.totalorder %s24, 0
    %p219 = por %p217, %p218
    %s221 = sadd.s32 %s220, 1
    %p224 = scmp.eq.s32.totalorder %s18, 1
    %p225 = scmp.ne.s32.totalorder %s220, %s222
    %p226 = scmp.eq.s32.totalorder %s18, 0
    %p227 = por %p225, %p226
    %p228 = scmp.ne.s32.totalorder %s220, %s222
    %p229 = scmp.eq.s32.totalorder %s23, 1
    %p230 = por %p228, %p229
    %p231 = scmp.ne.s32.totalorder %s222, %s223
    %p232 = scmp.eq.s32.totalorder %s23, 0
    %p233 = por %p231, %p232
    %p234 = scmp.ne.s32.totalorder %s222, %s223
    %p235 = scmp.eq.s32.totalorder %s24, 1
    %p236 = por %p234, %p235
    %p238 = scmp.ne.s32.totalorder %s223, %s237
    %p239 = scmp.eq.s32.totalorder %s24, 0
    %p240 = por %p238, %p239
    %s242 = sadd.s32 %s241, 1
    %p245 = scmp.eq.s32.totalorder %s18, 1
    %p246 = scmp.ne.s32.totalorder %s241, %s243
    %p247 = scmp.eq.s32.totalorder %s18, 0
    %p248 = por %p246, %p247
    %p249 = scmp.ne.s32.totalorder %s241, %s243
    %p250 = scmp.eq.s32.totalorder %s23, 1
    %p251 = por %p249, %p250
    %p252 = scmp.ne.s32.totalorder %s243, %s244
    %p253 = scmp.eq.s32.totalorder %s23, 0
    %p254 = por %p252, %p253
    %p255 = scmp.ne.s32.totalorder %s243, %s244
    %p256 = scmp.eq.s32.totalorder %s24, 1
    %p257 = por %p255, %p256
    %p259 = scmp.ne.s32.totalorder %s244, %s258
    %p260 = scmp.eq.s32.totalorder %s24, 0
    %p261 = por %p259, %p260
    %s263 = sadd.s32 %s262, 1
    %p266 = scmp.eq.s32.totalorder %s18, 1
    %p267 = scmp.ne.s32.totalorder %s262, %s264
    %p268 = scmp.eq.s32.totalorder %s18, 0
    %p269 = por %p267, %p268
    %p270 = scmp.ne.s32.totalorder %s262, %s264
    %p271 = scmp.eq.s32.totalorder %s23, 1
    %p272 = por %p270, %p271
    %p273 = scmp.ne.s32.totalorder %s264, %s265
    %p274 = scmp.eq.s32.totalorder %s23, 0
    %p275 = por %p273, %p274
    %p276 = scmp.ne.s32.totalorder %s264, %s265
    %p277 = scmp.eq.s32.totalorder %s24, 1
    %p278 = por %p276, %p277
    %p280 = scmp.ne.s32.totalorder %s265, %s279
    %p281 = scmp.eq.s32.totalorder %s24, 0
    %p282 = por %p280, %p281
    %s283 = ssub.s32 %s18, %s25
    %p284 = scmp.eq.s32.totalorder %s283, 0
    %s286 = sadd.s32 %s285, 1
    %s287 = scalar_select %p284, %s285, %s286
    %p290 = pneg %p284
    %p291 = scmp.eq.s32.totalorder %s18, 1
    %p292 = por %p290, %p291
    %p293 = scmp.ne.s32.totalorder %s285, %s288
    %p294 = scmp.eq.s32.totalorder %s18, 0
    %p295 = por %p293, %p294
    %p296 = scmp.ne.s32.totalorder %s285, %s288
    %p297 = scmp.eq.s32.totalorder %s23, 1
    %p298 = por %p296, %p297
    %p299 = scmp.ne.s32.totalorder %s288, %s289
    %p300 = scmp.eq.s32.totalorder %s23, 0
    %p301 = por %p299, %p300
    %p302 = scmp.ne.s32.totalorder %s288, %s289
    %p303 = scmp.eq.s32.totalorder %s24, 1
    %p304 = por %p302, %p303
    %p306 = scmp.ne.s32.totalorder %s289, %s305
    %p307 = scmp.eq.s32.totalorder %s24, 0
    %p308 = por %p306, %p307
    %p309 = scmp.le.s32.totalorder 1, %s18
    %p310 = scmp.lt.s32.totalorder %s18, 3
    %p311 = pnand %p309, %p310
    %p312 = pneg %p311
    // Predicated region
    $region9: #{cars_cnn_discriminator.1} parent=5 // pred_check
      _
    $region10: #{cars_cnn_discriminator.1} parent=5 // pred_check_branch
      %314 = sbr.rel (%p311) target = $region12
    $region11: #{cars_cnn_discriminator.1} parent=5 // pred_region
      %s315 = ssub.s32 %s18, 1
      // Predicated region
      $region13: #{cars_cnn_discriminator.1} parent=11 // pred_check
        %p316 = pneg %p65
      $region14: #{cars_cnn_discriminator.1} parent=11 // pred_check_branch
        %318 = sbr.rel (%p316) target = $region16
      $region15: #{cars_cnn_discriminator.1} parent=11 // pred_region
        _
      $region16: #{cars_cnn_discriminator.1} parent=11 // pred_fallthru
        _
      // Predicated region
      $region17: #{cars_cnn_discriminator.1} parent=11 // pred_check
        %p319 = pneg %p86
      $region18: #{cars_cnn_discriminator.1} parent=11 // pred_check_branch
        %321 = sbr.rel (%p319) target = $region20
      $region19: #{cars_cnn_discriminator.1} parent=11 // pred_region
        _
      $region20: #{cars_cnn_discriminator.1} parent=11 // pred_fallthru
        _
      // Predicated region
      $region21: #{cars_cnn_discriminator.1} parent=11 // pred_check
        %p322 = pneg %p107
      $region22: #{cars_cnn_discriminator.1} parent=11 // pred_check_branch
        %324 = sbr.rel (%p322) target = $region24
      $region23: #{cars_cnn_discriminator.1} parent=11 // pred_region
        _
      $region24: #{cars_cnn_discriminator.1} parent=11 // pred_fallthru
        _
      // Predicated region
      $region25: #{cars_cnn_discriminator.1} parent=11 // pred_check
        %p325 = pneg %p128
      $region26: #{cars_cnn_discriminator.1} parent=11 // pred_check_branch
        %327 = sbr.rel (%p325) target = $region28
      $region27: #{cars_cnn_discriminator.1} parent=11 // pred_region
        _
      $region28: #{cars_cnn_discriminator.1} parent=11 // pred_fallthru
        _
      // Predicated region
      $region29: #{cars_cnn_discriminator.1} parent=11 // pred_check
        %p328 = pneg %p149
      $region30: #{cars_cnn_discriminator.1} parent=11 // pred_check_branch
        %330 = sbr.rel (%p328) target = $region32
      $region31: #{cars_cnn_discriminator.1} parent=11 // pred_region
        _
      $region32: #{cars_cnn_discriminator.1} parent=11 // pred_fallthru
        _
      // Predicated region
      $region33: #{cars_cnn_discriminator.1} parent=11 // pred_check
        %p331 = pneg %p170
      $region34: #{cars_cnn_discriminator.1} parent=11 // pred_check_branch
        %333 = sbr.rel (%p331) target = $region36
      $region35: #{cars_cnn_discriminator.1} parent=11 // pred_region
        _
      $region36: #{cars_cnn_discriminator.1} parent=11 // pred_fallthru
        _
      // Predicated region
      $region37: #{cars_cnn_discriminator.1} parent=11 // pred_check
        %p334 = pneg %p191
      $region38: #{cars_cnn_discriminator.1} parent=11 // pred_check_branch
        %336 = sbr.rel (%p334) target = $region40
      $region39: #{cars_cnn_discriminator.1} parent=11 // pred_region
        _
      $region40: #{cars_cnn_discriminator.1} parent=11 // pred_fallthru
        _
      // Predicated region
      $region41: #{cars_cnn_discriminator.1} parent=11 // pred_check
        %p337 = pneg %p212
      $region42: #{cars_cnn_discriminator.1} parent=11 // pred_check_branch
        %339 = sbr.rel (%p337) target = $region44
      $region43: #{cars_cnn_discriminator.1} parent=11 // pred_region
        _
      $region44: #{cars_cnn_discriminator.1} parent=11 // pred_fallthru
        _
      // Predicated region
      $region45: #{cars_cnn_discriminator.1} parent=11 // pred_check
        %p340 = pneg %p233
      $region46: #{cars_cnn_discriminator.1} parent=11 // pred_check_branch
        %342 = sbr.rel (%p340) target = $region48
      $region47: #{cars_cnn_discriminator.1} parent=11 // pred_region
        _
      $region48: #{cars_cnn_discriminator.1} parent=11 // pred_fallthru
        _
      // Predicated region
      $region49: #{cars_cnn_discriminator.1} parent=11 // pred_check
        %p343 = pneg %p254
      $region50: #{cars_cnn_discriminator.1} parent=11 // pred_check_branch
        %345 = sbr.rel (%p343) target = $region52
      $region51: #{cars_cnn_discriminator.1} parent=11 // pred_region
        _
      $region52: #{cars_cnn_discriminator.1} parent=11 // pred_fallthru
        _
      // Predicated region
      $region53: #{cars_cnn_discriminator.1} parent=11 // pred_check
        %p346 = pneg %p275
      $region54: #{cars_cnn_discriminator.1} parent=11 // pred_check_branch
        %348 = sbr.rel (%p346) target = $region56
      $region55: #{cars_cnn_discriminator.1} parent=11 // pred_region
        _
      $region56: #{cars_cnn_discriminator.1} parent=11 // pred_fallthru
        _
    $region12: #{cars_cnn_discriminator.1} parent=5 // pred_fallthru
      _
    %p349 = scmp.lt.s32.totalorder %s18, 2
    // Predicated region
    $region57: #{cars_cnn_discriminator.1} parent=5 // pred_check
      %p350 = pneg %p349
    $region58: #{cars_cnn_discriminator.1} parent=5 // pred_check_branch
      %352 = sbr.rel (%p350) target = $region60
    $region59: #{cars_cnn_discriminator.1} parent=5 // pred_region
      // Predicated region
      $region61: #{cars_cnn_discriminator.1} parent=59 // pred_check
        %p353 = pneg %p38
      $region62: #{cars_cnn_discriminator.1} parent=59 // pred_check_branch
        %355 = sbr.rel (%p353) target = $region64
      $region63: #{cars_cnn_discriminator.1} parent=59 // pred_region
        %p356 = scmp.lt.s32.totalorder %s18, 1
        %s357 = scalar_select %p356, %s18, 1
        %s358 = smul.addr %s357, 96
        %s359 = smul.addr %s358, 4
        %s360 = scalar_lea.vmem %s0, %s359
      $region64: #{cars_cnn_discriminator.1} parent=59 // pred_fallthru
        _
    $region60: #{cars_cnn_discriminator.1} parent=5 // pred_fallthru
      _
    %p361 = scmp.le.s32.totalorder 1, %s18
    %p362 = scmp.lt.s32.totalorder %s18, 3
    %p363 = pnand %p361, %p362
    %p364 = pneg %p363
    // Predicated region
    $region65: #{cars_cnn_discriminator.1} parent=5 // pred_check
      _
    $region66: #{cars_cnn_discriminator.1} parent=5 // pred_check_branch
      %366 = sbr.rel (%p363) target = $region68
    $region67: #{cars_cnn_discriminator.1} parent=5 // pred_region
      %s367 = ssub.s32 %s18, 1
      %p368 = scmp.lt.s32.totalorder %s23, 1
      %s369 = scalar_select %p368, %s23, 1
      %s370 = smul.addr %s369, 96
      %s371 = smul.addr %s370, 4
      %s372 = scalar_lea.vmem %s0, %s371
      %p373 = pneg %p44
      %p374 = pneg %p41
      %p375 = pneg %p65
      %p376 = pneg %p62
      %p377 = pneg %p86
      %p378 = pneg %p83
      %p379 = pneg %p107
      %p380 = pneg %p104
      %p381 = pneg %p128
      %p382 = pneg %p125
      %p383 = pneg %p149
      %p384 = pneg %p146
      %p385 = pneg %p170
      %p386 = pneg %p167
      %p387 = pneg %p191
      %p388 = pneg %p188
      %p389 = pneg %p212
      %p390 = pneg %p209
      %p391 = pneg %p233
      %p392 = pneg %p230
      %p393 = pneg %p254
      %p394 = pneg %p251
      %p395 = pneg %p275
      %p396 = pneg %p272
      %p397 = pneg %p301
      %p398 = pneg %p298
      %p399 = scmp.lt.s32.totalorder %s23, 1
      %s400 = scalar_select %p399, %s23, 1
      %s401 = scalar_lea.vmem %s12, %s400
      %p402 = scmp.lt.s32.totalorder %s23, 1
      %s403 = scalar_select %p402, %s23, 1
      %s404 = smul.addr %s403, 96
      %s405 = smul.addr %s404, 4
      %s406 = scalar_lea.vmem %s0, %s405
      %p407 = scmp.lt.s32.totalorder %s23, 1
      %s408 = scalar_select %p407, %s23, 1
      %s409 = scalar_lea.vmem %s12, %s408
      %v411 = vld [vmem:[%s406] sm:$0xff]
      %v412 = vld [vmem:[%s406 + $0x8] sm:$0xff]
      %v413 = vld [vmem:[%s406 + $0x10] sm:$0xff]
      %v414 = vld [vmem:[%s406 + $0x18] sm:$0xff]
      %v415 = vld [vmem:[%s406 + $0x20] sm:$0xff]
      %v416 = vld [vmem:[%s406 + $0x28] sm:$0xff]
      %v417 = vld [vmem:[%s406 + $0x30] sm:$0xff]
      %v418 = vld [vmem:[%s406 + $0x38] sm:$0xff]
      %v419 = vld [vmem:[%s406 + $0x40] sm:$0xff]
      %v420 = vld [vmem:[%s406 + $0x48] sm:$0xff]
      %v421 = vld [vmem:[%s406 + $0x50] sm:$0xff]
      %v422 = vld [vmem:[%s406 + $0x58] sm:$0xff]
      %v423 = vld [vmem:[%s406 + $0x60] sm:$0xff]
      %v424 = vld [vmem:[%s406 + $0x68] sm:$0xff]
      %v425 = vld [vmem:[%s406 + $0x70] sm:$0xff]
      %v426 = vld [vmem:[%s406 + $0x78] sm:$0xff]
      %v427 = vld [vmem:[%s406 + $0x80] sm:$0xff]
      %v428 = vld [vmem:[%s406 + $0x88] sm:$0xff]
      %v429 = vld [vmem:[%s406 + $0x90] sm:$0xff]
      %v430 = vld [vmem:[%s406 + $0x98] sm:$0xff]
      %v431 = vld [vmem:[%s406 + $0xa0] sm:$0xff]
      %v432 = vld [vmem:[%s406 + $0xa8] sm:$0xff]
      %v433 = vld [vmem:[%s406 + $0xb0] sm:$0xff]
      %v434 = vld [vmem:[%s406 + $0xb8] sm:$0xff]
      %v435 = vld [vmem:[%s406 + $0xc0] sm:$0xff]
      %v436 = vld [vmem:[%s406 + $0xc8] sm:$0xff]
      %v437 = vld [vmem:[%s406 + $0xd0] sm:$0xff]
      %v438 = vld [vmem:[%s406 + $0xd8] sm:$0xff]
      %v439 = vld [vmem:[%s406 + $0xe0] sm:$0xff]
      %v440 = vld [vmem:[%s406 + $0xe8] sm:$0xff]
      %v441 = vld [vmem:[%s406 + $0xf0] sm:$0xff]
      %v442 = vld [vmem:[%s406 + $0xf8] sm:$0xff]
      %v443 = vld [vmem:[%s406 + $0x100] sm:$0xff]
      %v444 = vld [vmem:[%s406 + $0x108] sm:$0xff]
      %v445 = vld [vmem:[%s406 + $0x110] sm:$0xff]
      %v446 = vld [vmem:[%s406 + $0x118] sm:$0xff]
      %v447 = vld [vmem:[%s406 + $0x120] sm:$0xff]
      %v448 = vld [vmem:[%s406 + $0x128] sm:$0xff]
      %v449 = vld [vmem:[%s406 + $0x130] sm:$0xff]
      %v450 = vld [vmem:[%s406 + $0x138] sm:$0xff]
      %v451 = vld [vmem:[%s406 + $0x140] sm:$0xff]
      %v452 = vld [vmem:[%s406 + $0x148] sm:$0xff]
      %v453 = vld [vmem:[%s406 + $0x150] sm:$0xff]
      %v454 = vld [vmem:[%s406 + $0x158] sm:$0xff]
      %v455 = vld [vmem:[%s406 + $0x160] sm:$0xff]
      %v456 = vld [vmem:[%s406 + $0x168] sm:$0xff]
      %v457 = vld [vmem:[%s406 + $0x170] sm:$0xff]
      %v458 = vld [vmem:[%s406 + $0x178] sm:$0xff]
      %v459 = vld [vmem:[%s2] sm:$0xf]
      %v460 = vld [vmem:[%s2 + $0x4] sm:$0xf]
      %v461 = vld [vmem:[%s2 + $0x8] sm:$0xf]
      %v462 = vld [vmem:[%s2 + $0xc] sm:$0xf]
      %v463 = vld [vmem:[%s2 + $0x10] sm:$0xf]
      %v464 = vld [vmem:[%s2 + $0x14] sm:$0xf]
      %v465 = vld [vmem:[%s2 + $0x18] sm:$0xf]
      %v466 = vld [vmem:[%s2 + $0x1c] sm:$0xf]
      %v467 = vld [vmem:[%s2 + $0x20] sm:$0xf]
      %v468 = vld [vmem:[%s2 + $0x24] sm:$0xf]
      %v469 = vld [vmem:[%s2 + $0x28] sm:$0xf]
      %v470 = vld [vmem:[%s2 + $0x2c] sm:$0xf]
      %v471 = vld [vmem:[%s2 + $0x30] sm:$0xf]
      %v472 = vld [vmem:[%s2 + $0x34] sm:$0xf]
      %v473 = vld [vmem:[%s2 + $0x38] sm:$0xf]
      %v474 = vld [vmem:[%s2 + $0x3c] sm:$0xf]
      %v475 = vld [vmem:[%s2 + $0x40] sm:$0xf]
      %v476 = vld [vmem:[%s2 + $0x44] sm:$0xf]
      %v477 = vld [vmem:[%s2 + $0x48] sm:$0xf]
      %v478 = vld [vmem:[%s2 + $0x4c] sm:$0xf]
      %v479 = vld [vmem:[%s2 + $0x50] sm:$0xf]
      %v480 = vld [vmem:[%s2 + $0x54] sm:$0xf]
      %v481 = vld [vmem:[%s2 + $0x58] sm:$0xf]
      %v482 = vld [vmem:[%s2 + $0x5c] sm:$0xf]
      %v531 = vunpack.c.l.b16 %v411
      %v532 = vunpack.c.h.b16 %v411
      %v533 = vunpack.c.l.b16 %v412
      %v534 = vunpack.c.h.b16 %v412
      %v535 = vunpack.c.l.b16 %v413
      %v536 = vunpack.c.h.b16 %v413
      %v537 = vunpack.c.l.b16 %v414
      %v538 = vunpack.c.h.b16 %v414
      %v539 = vunpack.c.l.b16 %v415
      %v540 = vunpack.c.h.b16 %v415
      %v541 = vunpack.c.l.b16 %v416
      %v542 = vunpack.c.h.b16 %v416
      %v543 = vunpack.c.l.b16 %v417
      %v544 = vunpack.c.h.b16 %v417
      %v545 = vunpack.c.l.b16 %v418
      %v546 = vunpack.c.h.b16 %v418
      %v547 = vunpack.c.l.b16 %v419
      %v548 = vunpack.c.h.b16 %v419
      %v549 = vunpack.c.l.b16 %v420
      %v550 = vunpack.c.h.b16 %v420
      %v551 = vunpack.c.l.b16 %v421
      %v552 = vunpack.c.h.b16 %v421
      %v553 = vunpack.c.l.b16 %v422
      %v554 = vunpack.c.h.b16 %v422
      %v555 = vunpack.c.l.b16 %v423
      %v556 = vunpack.c.h.b16 %v423
      %v557 = vunpack.c.l.b16 %v424
      %v558 = vunpack.c.h.b16 %v424
      %v559 = vunpack.c.l.b16 %v425
      %v560 = vunpack.c.h.b16 %v425
      %v561 = vunpack.c.l.b16 %v426
      %v562 = vunpack.c.h.b16 %v426
      %v563 = vunpack.c.l.b16 %v427
      %v564 = vunpack.c.h.b16 %v427
      %v565 = vunpack.c.l.b16 %v428
      %v566 = vunpack.c.h.b16 %v428
      %v567 = vunpack.c.l.b16 %v429
      %v568 = vunpack.c.h.b16 %v429
      %v569 = vunpack.c.l.b16 %v430
      %v570 = vunpack.c.h.b16 %v430
      %v571 = vunpack.c.l.b16 %v431
      %v572 = vunpack.c.h.b16 %v431
      %v573 = vunpack.c.l.b16 %v432
      %v574 = vunpack.c.h.b16 %v432
      %v575 = vunpack.c.l.b16 %v433
      %v576 = vunpack.c.h.b16 %v433
      %v577 = vunpack.c.l.b16 %v434
      %v578 = vunpack.c.h.b16 %v434
      %v579 = vunpack.c.l.b16 %v435
      %v580 = vunpack.c.h.b16 %v435
      %v581 = vunpack.c.l.b16 %v436
      %v582 = vunpack.c.h.b16 %v436
      %v583 = vunpack.c.l.b16 %v437
      %v584 = vunpack.c.h.b16 %v437
      %v585 = vunpack.c.l.b16 %v438
      %v586 = vunpack.c.h.b16 %v438
      %v587 = vunpack.c.l.b16 %v439
      %v588 = vunpack.c.h.b16 %v439
      %v589 = vunpack.c.l.b16 %v440
      %v590 = vunpack.c.h.b16 %v440
      %v591 = vunpack.c.l.b16 %v441
      %v592 = vunpack.c.h.b16 %v441
      %v593 = vunpack.c.l.b16 %v442
      %v594 = vunpack.c.h.b16 %v442
      %v595 = vunpack.c.l.b16 %v443
      %v596 = vunpack.c.h.b16 %v443
      %v597 = vunpack.c.l.b16 %v444
      %v598 = vunpack.c.h.b16 %v444
      %v599 = vunpack.c.l.b16 %v445
      %v600 = vunpack.c.h.b16 %v445
      %v601 = vunpack.c.l.b16 %v446
      %v602 = vunpack.c.h.b16 %v446
      %v603 = vunpack.c.l.b16 %v447
      %v604 = vunpack.c.h.b16 %v447
      %v605 = vunpack.c.l.b16 %v448
      %v606 = vunpack.c.h.b16 %v448
      %v607 = vunpack.c.l.b16 %v449
      %v608 = vunpack.c.h.b16 %v449
      %v609 = vunpack.c.l.b16 %v450
      %v610 = vunpack.c.h.b16 %v450
      %v611 = vunpack.c.l.b16 %v451
      %v612 = vunpack.c.h.b16 %v451
      %v613 = vunpack.c.l.b16 %v452
      %v614 = vunpack.c.h.b16 %v452
      %v615 = vunpack.c.l.b16 %v453
      %v616 = vunpack.c.h.b16 %v453
      %v617 = vunpack.c.l.b16 %v454
      %v618 = vunpack.c.h.b16 %v454
      %v619 = vunpack.c.l.b16 %v455
      %v620 = vunpack.c.h.b16 %v455
      %v621 = vunpack.c.l.b16 %v456
      %v622 = vunpack.c.h.b16 %v456
      %v623 = vunpack.c.l.b16 %v457
      %v624 = vunpack.c.h.b16 %v457
      %v625 = vunpack.c.l.b16 %v458
      %v626 = vunpack.c.h.b16 %v458
      %v627 = vpack.c.b16 %v533, %v531
      %v628 = vpack.c.b16 %v534, %v532
      %v629 = vpack.c.b16 %v537, %v535
      %v630 = vpack.c.b16 %v538, %v536
      %v631 = vpack.c.b16 %v541, %v539
      %v632 = vpack.c.b16 %v542, %v540
      %v633 = vpack.c.b16 %v545, %v543
      %v634 = vpack.c.b16 %v546, %v544
      %v635 = vpack.c.b16 %v549, %v547
      %v636 = vpack.c.b16 %v550, %v548
      %v637 = vpack.c.b16 %v553, %v551
      %v638 = vpack.c.b16 %v554, %v552
      %v639 = vpack.c.b16 %v557, %v555
      %v640 = vpack.c.b16 %v558, %v556
      %v641 = vpack.c.b16 %v561, %v559
      %v642 = vpack.c.b16 %v562, %v560
      %v643 = vpack.c.b16 %v565, %v563
      %v644 = vpack.c.b16 %v566, %v564
      %v645 = vpack.c.b16 %v569, %v567
      %v646 = vpack.c.b16 %v570, %v568
      %v647 = vpack.c.b16 %v573, %v571
      %v648 = vpack.c.b16 %v574, %v572
      %v649 = vpack.c.b16 %v577, %v575
      %v650 = vpack.c.b16 %v578, %v576
      %v651 = vpack.c.b16 %v581, %v579
      %v652 = vpack.c.b16 %v582, %v580
      %v653 = vpack.c.b16 %v585, %v583
      %v654 = vpack.c.b16 %v586, %v584
      %v655 = vpack.c.b16 %v589, %v587
      %v656 = vpack.c.b16 %v590, %v588
      %v657 = vpack.c.b16 %v593, %v591
      %v658 = vpack.c.b16 %v594, %v592
      %v659 = vpack.c.b16 %v597, %v595
      %v660 = vpack.c.b16 %v598, %v596
      %v661 = vpack.c.b16 %v601, %v599
      %v662 = vpack.c.b16 %v602, %v600
      %v663 = vpack.c.b16 %v605, %v603
      %v664 = vpack.c.b16 %v606, %v604
      %v665 = vpack.c.b16 %v609, %v607
      %v666 = vpack.c.b16 %v610, %v608
      %v667 = vpack.c.b16 %v613, %v611
      %v668 = vpack.c.b16 %v614, %v612
      %v669 = vpack.c.b16 %v617, %v615
      %v670 = vpack.c.b16 %v618, %v616
      %v671 = vpack.c.b16 %v621, %v619
      %v672 = vpack.c.b16 %v622, %v620
      %v673 = vpack.c.b16 %v625, %v623
      %v674 = vpack.c.b16 %v626, %v624
      %v723 = vunpack.c.l.b16 %v459
      %v724 = vunpack.c.l.b16 %v460
      %v725 = vunpack.c.l.b16 %v461
      %v726 = vunpack.c.l.b16 %v462
      %v727 = vunpack.c.l.b16 %v463
      %v728 = vunpack.c.l.b16 %v464
      %v729 = vunpack.c.l.b16 %v465
      %v730 = vunpack.c.l.b16 %v466
      %v731 = vunpack.c.l.b16 %v467
      %v732 = vunpack.c.l.b16 %v468
      %v733 = vunpack.c.l.b16 %v469
      %v734 = vunpack.c.l.b16 %v470
      %v735 = vunpack.c.l.b16 %v471
      %v736 = vunpack.c.l.b16 %v472
      %v737 = vunpack.c.l.b16 %v473
      %v738 = vunpack.c.l.b16 %v474
      %v739 = vunpack.c.l.b16 %v475
      %v740 = vunpack.c.l.b16 %v476
      %v741 = vunpack.c.l.b16 %v477
      %v742 = vunpack.c.l.b16 %v478
      %v743 = vunpack.c.l.b16 %v479
      %v744 = vunpack.c.l.b16 %v480
      %v745 = vunpack.c.l.b16 %v481
      %v746 = vunpack.c.l.b16 %v482
      %v747 = vpack.c.b16 %v724, %v723
      %v748 = vpack.c.b16 %v726, %v725
      %v749 = vpack.c.b16 %v728, %v727
      %v750 = vpack.c.b16 %v730, %v729
      %v751 = vpack.c.b16 %v732, %v731
      %v752 = vpack.c.b16 %v734, %v733
      %v753 = vpack.c.b16 %v736, %v735
      %v754 = vpack.c.b16 %v738, %v737
      %v755 = vpack.c.b16 %v740, %v739
      %v756 = vpack.c.b16 %v742, %v741
      %v757 = vpack.c.b16 %v744, %v743
      %v758 = vpack.c.b16 %v746, %v745
      %vm771 = vcmask 523264
      %v773 = vsel %vm771, %v628, 0
      %v776 = vsel %vm771, %v630, 0
      %v779 = vsel %vm771, %v632, 0
      %v782 = vsel %vm771, %v634, 0
      %v785 = vsel %vm771, %v636, 0
      %v788 = vsel %vm771, %v638, 0
      %v791 = vsel %vm771, %v640, 0
      %v794 = vsel %vm771, %v642, 0
      %v797 = vsel %vm771, %v644, 0
      %v800 = vsel %vm771, %v646, 0
      %v803 = vsel %vm771, %v648, 0
      %v806 = vsel %vm771, %v650, 0
      %v809 = vsel %vm771, %v652, 0
      %v812 = vsel %vm771, %v654, 0
      %v815 = vsel %vm771, %v656, 0
      %v818 = vsel %vm771, %v658, 0
      %v821 = vsel %vm771, %v660, 0
      %v824 = vsel %vm771, %v662, 0
      %v827 = vsel %vm771, %v664, 0
      %v830 = vsel %vm771, %v666, 0
      %v833 = vsel %vm771, %v668, 0
      %v836 = vsel %vm771, %v670, 0
      %v839 = vsel %vm771, %v672, 0
      %v842 = vsel %vm771, %v674, 0
      %844 = vmatprep.subr.bf16.mxu0 0
      %845 = vmatpush1.bf16.msra.mxu0 %v747
      %846 = vmatprep.subr.bf16.mxu0 0
      %847 = vmatpush1.bf16.msra.mxu0 %v748
      %848 = vmatprep.subr.bf16.mxu0 0
      %849 = vmatpush1.bf16.msra.mxu0 %v749
      %850 = vmatprep.subr.bf16.mxu0 0
      %851 = vmatpush1.bf16.msra.mxu0 %v750
      %852 = vmatprep.subr.bf16.mxu0 0
      %853 = vmatpush1.bf16.msra.mxu0 %v751
      %854 = vmatprep.subr.bf16.mxu0 0
      %855 = vmatpush1.bf16.msra.mxu0 %v752
      %856 = vmatprep.subr.bf16.mxu0 0
      %857 = vmatpush1.bf16.msra.mxu0 %v753
      %858 = vmatprep.subr.bf16.mxu0 0
      %859 = vmatpush1.bf16.msra.mxu0 %v754
      %860 = vmatprep.subr.bf16.mxu0 0
      %861 = vmatpush1.bf16.msra.mxu0 %v755
      %862 = vmatprep.subr.bf16.mxu0 0
      %863 = vmatpush1.bf16.msra.mxu0 %v756
      %864 = vmatprep.subr.bf16.mxu0 0
      %865 = vmatpush1.bf16.msra.mxu0 %v757
      %866 = vmatprep.subr.bf16.mxu0 0
      %867 = vmatpush1.bf16.msra.mxu0 %v758
      %868 = vmatprep.subr.bf16.mxu0 0
      %869 = vmatpush1.bf16.msra.mxu0 0
      %870 = vmatprep.subr.bf16.mxu0 0
      %871 = vmatpush1.bf16.msra.mxu0 0
      %872 = vmatprep.subr.bf16.mxu0 0
      %873 = vmatpush1.bf16.msra.mxu0 0
      %874 = vmatprep.subr.bf16.mxu0 0
      %875 = vmatpush1.bf16.msra.mxu0 0
      %876 = vmatprep.mubr.bf16.mxu0 %v773
      %877 = vmatmul.mubr.bf16.gmra.mrb[0].mxu0 %v627
      %v878 = vpop.f32.mrb[0].mxu0
      %v879 = vadd.f32 0.0, %v878
      %v880 = vpop.f32.mrb[0].mxu0
      %v881 = vpop.f32.mrb[0].mxu0
      %v882 = vadd.f32 0.0, %v881
      %v883 = vpop.f32.mrb[0].mxu0
      %884 = vmatprep.mubr.bf16.mxu0 %v776
      %885 = vmatmul.mubr.bf16.gmra.mrb[0].mxu0 %v629
      %v886 = vpop.f32.mrb[0].mxu0
      %v887 = vadd.f32 0.0, %v886
      %v888 = vpop.f32.mrb[0].mxu0
      %v889 = vpop.f32.mrb[0].mxu0
      %v890 = vadd.f32 0.0, %v889
      %v891 = vpop.f32.mrb[0].mxu0
      %892 = vmatprep.mubr.bf16.mxu0 %v779
      %893 = vmatmul.mubr.bf16.gmra.mrb[0].mxu0 %v631
      %v894 = vpop.f32.mrb[0].mxu0
      %v895 = vadd.f32 0.0, %v894
      %v896 = vpop.f32.mrb[0].mxu0
      %v897 = vpop.f32.mrb[0].mxu0
      %v898 = vadd.f32 0.0, %v897
      %v899 = vpop.f32.mrb[0].mxu0
      %900 = vmatprep.mubr.bf16.mxu0 %v782
      %901 = vmatmul.mubr.bf16.gmra.mrb[0].mxu0 %v633
      %v902 = vpop.f32.mrb[0].mxu0
      %v903 = vadd.f32 0.0, %v902
      %v904 = vpop.f32.mrb[0].mxu0
      %v905 = vpop.f32.mrb[0].mxu0
      %v906 = vadd.f32 0.0, %v905
      %v907 = vpop.f32.mrb[0].mxu0
      %908 = vmatprep.mubr.bf16.mxu0 %v785
      %909 = vmatmul.mubr.bf16.gmra.mrb[0].mxu0 %v635
      %v910 = vpop.f32.mrb[0].mxu0
      %v911 = vadd.f32 0.0, %v910
      %v912 = vpop.f32.mrb[0].mxu0
      %v913 = vpop.f32.mrb[0].mxu0
      %v914 = vadd.f32 0.0, %v913
      %v915 = vpop.f32.mrb[0].mxu0
      %916 = vmatprep.mubr.bf16.mxu0 %v788
      %917 = vmatmul.mubr.bf16.gmra.mrb[0].mxu0 %v637
      %v918 = vpop.f32.mrb[0].mxu0
      %v919 = vadd.f32 0.0, %v918
      %v920 = vpop.f32.mrb[0].mxu0
      %v921 = vpop.f32.mrb[0].mxu0
      %v922 = vadd.f32 0.0, %v921
      %v923 = vpop.f32.mrb[0].mxu0
      %924 = vmatprep.mubr.bf16.mxu0 %v791
      %925 = vmatmul.mubr.bf16.gmra.mrb[0].mxu0 %v639
      %v926 = vpop.f32.mrb[0].mxu0
      %v927 = vadd.f32 0.0, %v926
      %v928 = vpop.f32.mrb[0].mxu0
      %v929 = vpop.f32.mrb[0].mxu0
      %v930 = vadd.f32 0.0, %v929
      %v931 = vpop.f32.mrb[0].mxu0
      %932 = vmatprep.mubr.bf16.mxu0 %v794
      %933 = vmatmul.mubr.bf16.gmra.mrb[0].mxu0 %v641
      %v934 = vpop.f32.mrb[0].mxu0
      %v935 = vadd.f32 0.0, %v934
      %v936 = vpop.f32.mrb[0].mxu0
      %v937 = vpop.f32.mrb[0].mxu0
      %v938 = vadd.f32 0.0, %v937
      %v939 = vpop.f32.mrb[0].mxu0
      %940 = vmatprep.mubr.bf16.mxu0 %v797
      %941 = vmatmul.mubr.bf16.gmra.mrb[0].mxu0 %v643
      %v942 = vpop.f32.mrb[0].mxu0
      %v943 = vadd.f32 0.0, %v942
      %v944 = vpop.f32.mrb[0].mxu0
      %v945 = vpop.f32.mrb[0].mxu0
      %v946 = vadd.f32 0.0, %v945
      %v947 = vpop.f32.mrb[0].mxu0
      %948 = vmatprep.mubr.bf16.mxu0 %v800
      %949 = vmatmul.mubr.bf16.gmra.mrb[0].mxu0 %v645
      %v950 = vpop.f32.mrb[0].mxu0
      %v951 = vadd.f32 0.0, %v950
      %v952 = vpop.f32.mrb[0].mxu0
      %v953 = vpop.f32.mrb[0].mxu0
      %v954 = vadd.f32 0.0, %v953
      %v955 = vpop.f32.mrb[0].mxu0
      %956 = vmatprep.mubr.bf16.mxu0 %v803
      %957 = vmatmul.mubr.bf16.gmra.mrb[0].mxu0 %v647
      %v958 = vpop.f32.mrb[0].mxu0
      %v959 = vadd.f32 0.0, %v958
      %v960 = vpop.f32.mrb[0].mxu0
      %v961 = vpop.f32.mrb[0].mxu0
      %v962 = vadd.f32 0.0, %v961
      %v963 = vpop.f32.mrb[0].mxu0
      %964 = vmatprep.mubr.bf16.mxu0 %v806
      %965 = vmatmul.mubr.bf16.gmra.mrb[0].mxu0 %v649
      %v966 = vpop.f32.mrb[0].mxu0
      %v967 = vadd.f32 0.0, %v966
      %v968 = vpop.f32.mrb[0].mxu0
      %v969 = vpop.f32.mrb[0].mxu0
      %v970 = vadd.f32 0.0, %v969
      %v971 = vpop.f32.mrb[0].mxu0
      %972 = vmatprep.mubr.bf16.mxu0 %v809
      %973 = vmatmul.mubr.bf16.gmra.mrb[0].mxu0 %v651
      %v974 = vpop.f32.mrb[0].mxu0
      %v975 = vadd.f32 0.0, %v974
      %v976 = vpop.f32.mrb[0].mxu0
      %v977 = vpop.f32.mrb[0].mxu0
      %v978 = vadd.f32 0.0, %v977
      %v979 = vpop.f32.mrb[0].mxu0
      %980 = vmatprep.mubr.bf16.mxu0 %v812
      %981 = vmatmul.mubr.bf16.gmra.mrb[0].mxu0 %v653
      %v982 = vpop.f32.mrb[0].mxu0
      %v983 = vadd.f32 0.0, %v982
      %v984 = vpop.f32.mrb[0].mxu0
      %v985 = vpop.f32.mrb[0].mxu0
      %v986 = vadd.f32 0.0, %v985
      %v987 = vpop.f32.mrb[0].mxu0
      %988 = vmatprep.mubr.bf16.mxu0 %v815
      %989 = vmatmul.mubr.bf16.gmra.mrb[0].mxu0 %v655
      %v990 = vpop.f32.mrb[0].mxu0
      %v991 = vadd.f32 0.0, %v990
      %v992 = vpop.f32.mrb[0].mxu0
      %v993 = vpop.f32.mrb[0].mxu0
      %v994 = vadd.f32 0.0, %v993
      %v995 = vpop.f32.mrb[0].mxu0
      %996 = vmatprep.mubr.bf16.mxu0 %v818
      %997 = vmatmul.mubr.bf16.gmra.mrb[0].mxu0 %v657
      %v998 = vpop.f32.mrb[0].mxu0
      %v999 = vadd.f32 0.0, %v998
      %v1000 = vpop.f32.mrb[0].mxu0
      %v1001 = vpop.f32.mrb[0].mxu0
      %v1002 = vadd.f32 0.0, %v1001
      %v1003 = vpop.f32.mrb[0].mxu0
      %1004 = vmatprep.mubr.bf16.mxu0 %v821
      %1005 = vmatmul.mubr.bf16.gmra.mrb[0].mxu0 %v659
      %v1006 = vpop.f32.mrb[0].mxu0
      %v1007 = vadd.f32 0.0, %v1006
      %v1008 = vpop.f32.mrb[0].mxu0
      %v1009 = vpop.f32.mrb[0].mxu0
      %v1010 = vadd.f32 0.0, %v1009
      %v1011 = vpop.f32.mrb[0].mxu0
      %1012 = vmatprep.mubr.bf16.mxu0 %v824
      %1013 = vmatmul.mubr.bf16.gmra.mrb[0].mxu0 %v661
      %v1014 = vpop.f32.mrb[0].mxu0
      %v1015 = vadd.f32 0.0, %v1014
      %v1016 = vpop.f32.mrb[0].mxu0
      %v1017 = vpop.f32.mrb[0].mxu0
      %v1018 = vadd.f32 0.0, %v1017
      %v1019 = vpop.f32.mrb[0].mxu0
      %1020 = vmatprep.mubr.bf16.mxu0 %v827
      %1021 = vmatmul.mubr.bf16.gmra.mrb[0].mxu0 %v663
      %v1022 = vpop.f32.mrb[0].mxu0
      %v1023 = vadd.f32 0.0, %v1022
      %v1024 = vpop.f32.mrb[0].mxu0
      %v1025 = vpop.f32.mrb[0].mxu0
      %v1026 = vadd.f32 0.0, %v1025
      %v1027 = vpop.f32.mrb[0].mxu0
      %1028 = vmatprep.mubr.bf16.mxu0 %v830
      %1029 = vmatmul.mubr.bf16.gmra.mrb[0].mxu0 %v665
      %v1030 = vpop.f32.mrb[0].mxu0
      %v1031 = vadd.f32 0.0, %v1030
      %v1032 = vpop.f32.mrb[0].mxu0
      %v1033 = vpop.f32.mrb[0].mxu0
      %v1034 = vadd.f32 0.0, %v1033
      %v1035 = vpop.f32.mrb[0].mxu0
      %1036 = vmatprep.mubr.bf16.mxu0 %v833
      %1037 = vmatmul.mubr.bf16.gmra.mrb[0].mxu0 %v667
      %v1038 = vpop.f32.mrb[0].mxu0
      %v1039 = vadd.f32 0.0, %v1038
      %v1040 = vpop.f32.mrb[0].mxu0
      %v1041 = vpop.f32.mrb[0].mxu0
      %v1042 = vadd.f32 0.0, %v1041
      %v1043 = vpop.f32.mrb[0].mxu0
      %1044 = vmatprep.mubr.bf16.mxu0 %v836
      %1045 = vmatmul.mubr.bf16.gmra.mrb[0].mxu0 %v669
      %v1046 = vpop.f32.mrb[0].mxu0
      %v1047 = vadd.f32 0.0, %v1046
      %v1048 = vpop.f32.mrb[0].mxu0
      %v1049 = vpop.f32.mrb[0].mxu0
      %v1050 = vadd.f32 0.0, %v1049
      %v1051 = vpop.f32.mrb[0].mxu0
      %1052 = vmatprep.mubr.bf16.mxu0 %v839
      %1053 = vmatmul.mubr.bf16.gmra.mrb[0].mxu0 %v671
      %v1054 = vpop.f32.mrb[0].mxu0
      %v1055 = vadd.f32 0.0, %v1054
      %v1056 = vpop.f32.mrb[0].mxu0
      %v1057 = vpop.f32.mrb[0].mxu0
      %v1058 = vadd.f32 0.0, %v1057
      %v1059 = vpop.f32.mrb[0].mxu0
      %1060 = vmatprep.mubr.bf16.mxu0 %v842
      %1061 = vmatmul.mubr.bf16.gmra.mrb[0].mxu0 %v673
      %v1062 = vpop.f32.mrb[0].mxu0
      %v1063 = vadd.f32 0.0, %v1062
      %v1064 = vpop.f32.mrb[0].mxu0
      %v1065 = vpop.f32.mrb[0].mxu0
      %v1066 = vadd.f32 0.0, %v1065
      %v1067 = vpop.f32.mrb[0].mxu0
      %1068 = vdwg.mxu0
      %v1069 = vpack.c.bf16 %v882, %v879
      %v1070 = vpack.c.bf16 %v890, %v887
      %v1071 = vpack.c.bf16 %v898, %v895
      %v1072 = vpack.c.bf16 %v906, %v903
      %v1073 = vpack.c.bf16 %v914, %v911
      %v1074 = vpack.c.bf16 %v922, %v919
      %v1075 = vpack.c.bf16 %v930, %v927
      %v1076 = vpack.c.bf16 %v938, %v935
      %v1077 = vpack.c.bf16 %v946, %v943
      %v1078 = vpack.c.bf16 %v954, %v951
      %v1079 = vpack.c.bf16 %v962, %v959
      %v1080 = vpack.c.bf16 %v970, %v967
      %v1081 = vpack.c.bf16 %v978, %v975
      %v1082 = vpack.c.bf16 %v986, %v983
      %v1083 = vpack.c.bf16 %v994, %v991
      %v1084 = vpack.c.bf16 %v1002, %v999
      %v1085 = vpack.c.bf16 %v1010, %v1007
      %v1086 = vpack.c.bf16 %v1018, %v1015
      %v1087 = vpack.c.bf16 %v1026, %v1023
      %v1088 = vpack.c.bf16 %v1034, %v1031
      %v1089 = vpack.c.bf16 %v1042, %v1039
      %v1090 = vpack.c.bf16 %v1050, %v1047
      %v1091 = vpack.c.bf16 %v1058, %v1055
      %v1092 = vpack.c.bf16 %v1066, %v1063
      %v1093 = vld [vmem:[%s1] sm:$0xff]
      %v1094 = vld [vmem:[%s1 + $0x8] sm:$0xf]
      %v1095 = vld [vmem:[%s1 + $0xc] sm:$0xff]
      %v1096 = vld [vmem:[%s1 + $0x14] sm:$0xf]
      %v1097 = vld [vmem:[%s1 + $0x18] sm:$0xff]
      %v1098 = vld [vmem:[%s1 + $0x20] sm:$0xf]
      %v1099 = vld [vmem:[%s1 + $0x24] sm:$0xff]
      %v1100 = vld [vmem:[%s1 + $0x2c] sm:$0xf]
      %v1101 = vld [vmem:[%s1 + $0x30] sm:$0xff]
      %v1102 = vld [vmem:[%s1 + $0x38] sm:$0xf]
      %v1103 = vld [vmem:[%s1 + $0x3c] sm:$0xff]
      %v1104 = vld [vmem:[%s1 + $0x44] sm:$0xf]
      %v1105 = vld [vmem:[%s1 + $0x48] sm:$0xff]
      %v1106 = vld [vmem:[%s1 + $0x50] sm:$0xf]
      %v1107 = vld [vmem:[%s1 + $0x54] sm:$0xff]
      %v1108 = vld [vmem:[%s1 + $0x5c] sm:$0xf]
      %v1109 = vld [vmem:[%s1 + $0x60] sm:$0xff]
      %v1110 = vld [vmem:[%s1 + $0x68] sm:$0xf]
      %v1111 = vld [vmem:[%s1 + $0x6c] sm:$0xff]
      %v1112 = vld [vmem:[%s1 + $0x74] sm:$0xf]
      %v1113 = vld [vmem:[%s1 + $0x78] sm:$0xff]
      %v1114 = vld [vmem:[%s1 + $0x80] sm:$0xf]
      %v1115 = vld [vmem:[%s1 + $0x84] sm:$0xff]
      %v1116 = vld [vmem:[%s1 + $0x8c] sm:$0xf]
      %v1117 = vld [vmem:[%s1 + $0x90] sm:$0xff]
      %v1118 = vld [vmem:[%s1 + $0x98] sm:$0xf]
      %v1119 = vld [vmem:[%s1 + $0x9c] sm:$0xff]
      %v1120 = vld [vmem:[%s1 + $0xa4] sm:$0xf]
      %v1121 = vld [vmem:[%s1 + $0xa8] sm:$0xff]
      %v1122 = vld [vmem:[%s1 + $0xb0] sm:$0xf]
      %v1123 = vld [vmem:[%s1 + $0xb4] sm:$0xff]
      %v1124 = vld [vmem:[%s1 + $0xbc] sm:$0xf]
      %v1125 = vld [vmem:[%s1 + $0xc0] sm:$0xff]
      %v1126 = vld [vmem:[%s1 + $0xc8] sm:$0xf]
      %v1127 = vld [vmem:[%s1 + $0xcc] sm:$0xff]
      %v1128 = vld [vmem:[%s1 + $0xd4] sm:$0xf]
      %v1129 = vld [vmem:[%s1 + $0xd8] sm:$0xff]
      %v1130 = vld [vmem:[%s1 + $0xe0] sm:$0xf]
      %v1131 = vld [vmem:[%s1 + $0xe4] sm:$0xff]
      %v1132 = vld [vmem:[%s1 + $0xec] sm:$0xf]
      %v1133 = vld [vmem:[%s1 + $0xf0] sm:$0xff]
      %v1134 = vld [vmem:[%s1 + $0xf8] sm:$0xf]
      %v1135 = vld [vmem:[%s1 + $0xfc] sm:$0xff]
      %v1136 = vld [vmem:[%s1 + $0x104] sm:$0xf]
      %v1137 = vld [vmem:[%s1 + $0x108] sm:$0xff]
      %v1138 = vld [vmem:[%s1 + $0x110] sm:$0xf]
      %v1139 = vld [vmem:[%s1 + $0x114] sm:$0xff]
      %v1140 = vld [vmem:[%s1 + $0x11c] sm:$0xf]
      %v1141 = vld [vmem:[%s1 + $0x120] sm:$0xff]
      %v1142 = vld [vmem:[%s1 + $0x128] sm:$0xf]
      %v1143 = vld [vmem:[%s1 + $0x12c] sm:$0xff]
      %v1144 = vld [vmem:[%s1 + $0x134] sm:$0xf]
      %v1145 = vld [vmem:[%s1 + $0x138] sm:$0xff]
      %v1146 = vld [vmem:[%s1 + $0x140] sm:$0xf]
      %v1147 = vld [vmem:[%s1 + $0x144] sm:$0xff]
      %v1148 = vld [vmem:[%s1 + $0x14c] sm:$0xf]
      %v1149 = vld [vmem:[%s1 + $0x150] sm:$0xff]
      %v1150 = vld [vmem:[%s1 + $0x158] sm:$0xf]
      %v1151 = vld [vmem:[%s1 + $0x15c] sm:$0xff]
      %v1152 = vld [vmem:[%s1 + $0x164] sm:$0xf]
      %v1153 = vld [vmem:[%s1 + $0x168] sm:$0xff]
      %v1154 = vld [vmem:[%s1 + $0x170] sm:$0xf]
      %v1155 = vld [vmem:[%s1 + $0x174] sm:$0xff]
      %v1156 = vld [vmem:[%s1 + $0x17c] sm:$0xf]
      %s1157 = scalar_lea.vmem %s2, 96
      %v1158 = vld [vmem:[%s1157] sm:$0xf]
      %v1159 = vld [vmem:[%s1157 + $0x4] sm:$0xf]
      %v1160 = vld [vmem:[%s1157 + $0x8] sm:$0xf]
      %v1161 = vld [vmem:[%s1157 + $0xc] sm:$0xf]
      %v1162 = vld [vmem:[%s1157 + $0x10] sm:$0xf]
      %v1163 = vld [vmem:[%s1157 + $0x14] sm:$0xf]
      %v1164 = vld [vmem:[%s1157 + $0x18] sm:$0xf]
      %v1165 = vld [vmem:[%s1157 + $0x1c] sm:$0xf]
      %v1166 = vld [vmem:[%s1157 + $0x20] sm:$0xf]
      %v1167 = vld [vmem:[%s1157 + $0x24] sm:$0xf]
      %v1168 = vld [vmem:[%s1157 + $0x28] sm:$0xf]
      %v1169 = vld [vmem:[%s1157 + $0x2c] sm:$0xf]
      %v1170 = vld [vmem:[%s1157 + $0x30] sm:$0xf]
      %v1171 = vld [vmem:[%s1157 + $0x34] sm:$0xf]
      %v1172 = vld [vmem:[%s1157 + $0x38] sm:$0xf]
      %v1173 = vld [vmem:[%s1157 + $0x3c] sm:$0xf]
      %v1174 = vld [vmem:[%s1157 + $0x40] sm:$0xf]
      %v1175 = vld [vmem:[%s1157 + $0x44] sm:$0xf]
      %v1176 = vld [vmem:[%s1157 + $0x48] sm:$0xf]
      %v1177 = vld [vmem:[%s1157 + $0x4c] sm:$0xf]
      %v1178 = vld [vmem:[%s1157 + $0x50] sm:$0xf]
      %v1179 = vld [vmem:[%s1157 + $0x54] sm:$0xf]
      %v1180 = vld [vmem:[%s1157 + $0x58] sm:$0xf]
      %v1181 = vld [vmem:[%s1157 + $0x5c] sm:$0xf]
      %v1206 = vunpack.c.l.b16 %v1158
      %v1207 = vunpack.c.l.b16 %v1159
      %v1208 = vunpack.c.l.b16 %v1160
      %v1209 = vunpack.c.l.b16 %v1161
      %v1210 = vunpack.c.l.b16 %v1162
      %v1211 = vunpack.c.l.b16 %v1163
      %v1212 = vunpack.c.l.b16 %v1164
      %v1213 = vunpack.c.l.b16 %v1165
      %v1214 = vunpack.c.l.b16 %v1166
      %v1215 = vunpack.c.l.b16 %v1167
      %v1216 = vunpack.c.l.b16 %v1168
      %v1217 = vunpack.c.l.b16 %v1169
      %v1218 = vunpack.c.l.b16 %v1170
      %v1219 = vunpack.c.l.b16 %v1171
      %v1220 = vunpack.c.l.b16 %v1172
      %v1221 = vunpack.c.l.b16 %v1173
      %v1222 = vunpack.c.l.b16 %v1174
      %v1223 = vunpack.c.l.b16 %v1175
      %v1224 = vunpack.c.l.b16 %v1176
      %v1225 = vunpack.c.l.b16 %v1177
      %v1226 = vunpack.c.l.b16 %v1178
      %v1227 = vunpack.c.l.b16 %v1179
      %v1228 = vunpack.c.l.b16 %v1180
      %v1229 = vunpack.c.l.b16 %v1181
      %v1230 = vpack.c.b16 %v1207, %v1206
      %v1231 = vpack.c.b16 %v1209, %v1208
      %v1232 = vpack.c.b16 %v1211, %v1210
      %v1233 = vpack.c.b16 %v1213, %v1212
      %v1234 = vpack.c.b16 %v1215, %v1214
      %v1235 = vpack.c.b16 %v1217, %v1216
      %v1236 = vpack.c.b16 %v1219, %v1218
      %v1237 = vpack.c.b16 %v1221, %v1220
      %v1238 = vpack.c.b16 %v1223, %v1222
      %v1239 = vpack.c.b16 %v1225, %v1224
      %v1240 = vpack.c.b16 %v1227, %v1226
      %v1241 = vpack.c.b16 %v1229, %v1228
      %1254 = vmatprep.subr.bf16.mxu0 0
      %1255 = vmatpush1.bf16.msra.mxu0 %v1230
      %1256 = vmatprep.subr.bf16.mxu0 0
      %1257 = vmatpush1.bf16.msra.mxu0 %v1231
      %1258 = vmatprep.subr.bf16.mxu0 0
      %1259 = vmatpush1.bf16.msra.mxu0 %v1232
      %1260 = vmatprep.subr.bf16.mxu0 0
      %1261 = vmatpush1.bf16.msra.mxu0 %v1233
      %1262 = vmatprep.subr.bf16.mxu0 0
      %1263 = vmatpush1.bf16.msra.mxu0 %v1234
      %1264 = vmatprep.subr.bf16.mxu0 0
      %1265 = vmatpush1.bf16.msra.mxu0 %v1235
      %1266 = vmatprep.subr.bf16.mxu0 0
      %1267 = vmatpush1.bf16.msra.mxu0 %v1236
      %1268 = vmatprep.subr.bf16.mxu0 0
      %1269 = vmatpush1.bf16.msra.mxu0 %v1237
      %1270 = vmatprep.subr.bf16.mxu0 0
      %1271 = vmatpush1.bf16.msra.mxu0 %v1238
      %1272 = vmatprep.subr.bf16.mxu0 0
      %1273 = vmatpush1.bf16.msra.mxu0 %v1239
      %1274 = vmatprep.subr.bf16.mxu0 0
      %1275 = vmatpush1.bf16.msra.mxu0 %v1240
      %1276 = vmatprep.subr.bf16.mxu0 0
      %1277 = vmatpush1.bf16.msra.mxu0 %v1241
      %1278 = vmatprep.subr.bf16.mxu0 0
      %1279 = vmatpush1.bf16.msra.mxu0 0
      %1280 = vmatprep.subr.bf16.mxu0 0
      %1281 = vmatpush1.bf16.msra.mxu0 0
      %1282 = vmatprep.subr.bf16.mxu0 0
      %1283 = vmatpush1.bf16.msra.mxu0 0
      %1284 = vmatprep.subr.bf16.mxu0 0
      %1285 = vmatpush1.bf16.msra.mxu0 0
      %1286 = vmatprep.mubr.bf16.mxu0 %v773
      %1287 = vmatmul.mubr.bf16.gmra.mrb[0].mxu0 %v627
      %v1288 = vpop.f32.mrb[0].mxu0
      %v1289 = vadd.f32 0.0, %v1288
      %v1290 = vpop.f32.mrb[0].mxu0
      %v1291 = vpop.f32.mrb[0].mxu0
      %v1292 = vadd.f32 0.0, %v1291
      %v1293 = vpop.f32.mrb[0].mxu0
      %1294 = vmatprep.mubr.bf16.mxu0 %v776
      %1295 = vmatmul.mubr.bf16.gmra.mrb[0].mxu0 %v629
      %v1296 = vpop.f32.mrb[0].mxu0
      %v1297 = vadd.f32 0.0, %v1296
      %v1298 = vpop.f32.mrb[0].mxu0
      %v1299 = vpop.f32.mrb[0].mxu0
      %v1300 = vadd.f32 0.0, %v1299
      %v1301 = vpop.f32.mrb[0].mxu0
      %1302 = vmatprep.mubr.bf16.mxu0 %v779
      %1303 = vmatmul.mubr.bf16.gmra.mrb[0].mxu0 %v631
      %v1304 = vpop.f32.mrb[0].mxu0
      %v1305 = vadd.f32 0.0, %v1304
      %v1306 = vpop.f32.mrb[0].mxu0
      %v1307 = vpop.f32.mrb[0].mxu0
      %v1308 = vadd.f32 0.0, %v1307
      %v1309 = vpop.f32.mrb[0].mxu0
      %1310 = vmatprep.mubr.bf16.mxu0 %v782
      %1311 = vmatmul.mubr.bf16.gmra.mrb[0].mxu0 %v633
      %v1312 = vpop.f32.mrb[0].mxu0
      %v1313 = vadd.f32 0.0, %v1312
      %v1314 = vpop.f32.mrb[0].mxu0
      %v1315 = vpop.f32.mrb[0].mxu0
      %v1316 = vadd.f32 0.0, %v1315
      %v1317 = vpop.f32.mrb[0].mxu0
      %1318 = vmatprep.mubr.bf16.mxu0 %v785
      %1319 = vmatmul.mubr.bf16.gmra.mrb[0].mxu0 %v635
      %v1320 = vpop.f32.mrb[0].mxu0
      %v1321 = vadd.f32 0.0, %v1320
      %v1322 = vpop.f32.mrb[0].mxu0
      %v1323 = vpop.f32.mrb[0].mxu0
      %v1324 = vadd.f32 0.0, %v1323
      %v1325 = vpop.f32.mrb[0].mxu0
      %1326 = vmatprep.mubr.bf16.mxu0 %v788
      %1327 = vmatmul.mubr.bf16.gmra.mrb[0].mxu0 %v637
      %v1328 = vpop.f32.mrb[0].mxu0
      %v1329 = vadd.f32 0.0, %v1328
      %v1330 = vpop.f32.mrb[0].mxu0
      %v1331 = vpop.f32.mrb[0].mxu0
      %v1332 = vadd.f32 0.0, %v1331
      %v1333 = vpop.f32.mrb[0].mxu0
      %1334 = vmatprep.mubr.bf16.mxu0 %v791
      %1335 = vmatmul.mubr.bf16.gmra.mrb[0].mxu0 %v639
      %v1336 = vpop.f32.mrb[0].mxu0
      %v1337 = vadd.f32 0.0, %v1336
      %v1338 = vpop.f32.mrb[0].mxu0
      %v1339 = vpop.f32.mrb[0].mxu0
      %v1340 = vadd.f32 0.0, %v1339
      %v1341 = vpop.f32.mrb[0].mxu0
      %1342 = vmatprep.mubr.bf16.mxu0 %v794
      %1343 = vmatmul.mubr.bf16.gmra.mrb[0].mxu0 %v641
      %v1344 = vpop.f32.mrb[0].mxu0
      %v1345 = vadd.f32 0.0, %v1344
      %v1346 = vpop.f32.mrb[0].mxu0
      %v1347 = vpop.f32.mrb[0].mxu0
      %v1348 = vadd.f32 0.0, %v1347
      %v1349 = vpop.f32.mrb[0].mxu0
      %1350 = vmatprep.mubr.bf16.mxu0 %v797
      %1351 = vmatmul.mubr.bf16.gmra.mrb[0].mxu0 %v643
      %v1352 = vpop.f32.mrb[0].mxu0
      %v1353 = vadd.f32 0.0, %v1352
      %v1354 = vpop.f32.mrb[0].mxu0
      %v1355 = vpop.f32.mrb[0].mxu0
      %v1356 = vadd.f32 0.0, %v1355
      %v1357 = vpop.f32.mrb[0].mxu0
      %1358 = vmatprep.mubr.bf16.mxu0 %v800
      %1359 = vmatmul.mubr.bf16.gmra.mrb[0].mxu0 %v645
      %v1360 = vpop.f32.mrb[0].mxu0
      %v1361 = vadd.f32 0.0, %v1360
      %v1362 = vpop.f32.mrb[0].mxu0
      %v1363 = vpop.f32.mrb[0].mxu0
      %v1364 = vadd.f32 0.0, %v1363
      %v1365 = vpop.f32.mrb[0].mxu0
      %1366 = vmatprep.mubr.bf16.mxu0 %v803
      %1367 = vmatmul.mubr.bf16.gmra.mrb[0].mxu0 %v647
      %v1368 = vpop.f32.mrb[0].mxu0
      %v1369 = vadd.f32 0.0, %v1368
      %v1370 = vpop.f32.mrb[0].mxu0
      %v1371 = vpop.f32.mrb[0].mxu0
      %v1372 = vadd.f32 0.0, %v1371
      %v1373 = vpop.f32.mrb[0].mxu0
      %1374 = vmatprep.mubr.bf16.mxu0 %v806
      %1375 = vmatmul.mubr.bf16.gmra.mrb[0].mxu0 %v649
      %v1376 = vpop.f32.mrb[0].mxu0
      %v1377 = vadd.f32 0.0, %v1376
      %v1378 = vpop.f32.mrb[0].mxu0
      %v1379 = vpop.f32.mrb[0].mxu0
      %v1380 = vadd.f32 0.0, %v1379
      %v1381 = vpop.f32.mrb[0].mxu0
      %1382 = vmatprep.mubr.bf16.mxu0 %v809
      %1383 = vmatmul.mubr.bf16.gmra.mrb[0].mxu0 %v651
      %v1384 = vpop.f32.mrb[0].mxu0
      %v1385 = vadd.f32 0.0, %v1384
      %v1386 = vpop.f32.mrb[0].mxu0
      %v1387 = vpop.f32.mrb[0].mxu0
      %v1388 = vadd.f32 0.0, %v1387
      %v1389 = vpop.f32.mrb[0].mxu0
      %1390 = vmatprep.mubr.bf16.mxu0 %v812
      %1391 = vmatmul.mubr.bf16.gmra.mrb[0].mxu0 %v653
      %v1392 = vpop.f32.mrb[0].mxu0
      %v1393 = vadd.f32 0.0, %v1392
      %v1394 = vpop.f32.mrb[0].mxu0
      %v1395 = vpop.f32.mrb[0].mxu0
      %v1396 = vadd.f32 0.0, %v1395
      %v1397 = vpop.f32.mrb[0].mxu0
      %1398 = vmatprep.mubr.bf16.mxu0 %v815
      %1399 = vmatmul.mubr.bf16.gmra.mrb[0].mxu0 %v655
      %v1400 = vpop.f32.mrb[0].mxu0
      %v1401 = vadd.f32 0.0, %v1400
      %v1402 = vpop.f32.mrb[0].mxu0
      %v1403 = vpop.f32.mrb[0].mxu0
      %v1404 = vadd.f32 0.0, %v1403
      %v1405 = vpop.f32.mrb[0].mxu0
      %1406 = vmatprep.mubr.bf16.mxu0 %v818
      %1407 = vmatmul.mubr.bf16.gmra.mrb[0].mxu0 %v657
      %v1408 = vpop.f32.mrb[0].mxu0
      %v1409 = vadd.f32 0.0, %v1408
      %v1410 = vpop.f32.mrb[0].mxu0
      %v1411 = vpop.f32.mrb[0].mxu0
      %v1412 = vadd.f32 0.0, %v1411
      %v1413 = vpop.f32.mrb[0].mxu0
      %1414 = vmatprep.mubr.bf16.mxu0 %v821
      %1415 = vmatmul.mubr.bf16.gmra.mrb[0].mxu0 %v659
      %v1416 = vpop.f32.mrb[0].mxu0
      %v1417 = vadd.f32 0.0, %v1416
      %v1418 = vpop.f32.mrb[0].mxu0
      %v1419 = vpop.f32.mrb[0].mxu0
      %v1420 = vadd.f32 0.0, %v1419
      %v1421 = vpop.f32.mrb[0].mxu0
      %1422 = vmatprep.mubr.bf16.mxu0 %v824
      %1423 = vmatmul.mubr.bf16.gmra.mrb[0].mxu0 %v661
      %v1424 = vpop.f32.mrb[0].mxu0
      %v1425 = vadd.f32 0.0, %v1424
      %v1426 = vpop.f32.mrb[0].mxu0
      %v1427 = vpop.f32.mrb[0].mxu0
      %v1428 = vadd.f32 0.0, %v1427
      %v1429 = vpop.f32.mrb[0].mxu0
      %1430 = vmatprep.mubr.bf16.mxu0 %v827
      %1431 = vmatmul.mubr.bf16.gmra.mrb[0].mxu0 %v663
      %v1432 = vpop.f32.mrb[0].mxu0
      %v1433 = vadd.f32 0.0, %v1432
      %v1434 = vpop.f32.mrb[0].mxu0
      %v1435 = vpop.f32.mrb[0].mxu0
      %v1436 = vadd.f32 0.0, %v1435
      %v1437 = vpop.f32.mrb[0].mxu0
      %1438 = vmatprep.mubr.bf16.mxu0 %v830
      %1439 = vmatmul.mubr.bf16.gmra.mrb[0].mxu0 %v665
      %v1440 = vpop.f32.mrb[0].mxu0
      %v1441 = vadd.f32 0.0, %v1440
      %v1442 = vpop.f32.mrb[0].mxu0
      %v1443 = vpop.f32.mrb[0].mxu0
      %v1444 = vadd.f32 0.0, %v1443
      %v1445 = vpop.f32.mrb[0].mxu0
      %1446 = vmatprep.mubr.bf16.mxu0 %v833
      %1447 = vmatmul.mubr.bf16.gmra.mrb[0].mxu0 %v667
      %v1448 = vpop.f32.mrb[0].mxu0
      %v1449 = vadd.f32 0.0, %v1448
      %v1450 = vpop.f32.mrb[0].mxu0
      %v1451 = vpop.f32.mrb[0].mxu0
      %v1452 = vadd.f32 0.0, %v1451
      %v1453 = vpop.f32.mrb[0].mxu0
      %1454 = vmatprep.mubr.bf16.mxu0 %v836
      %1455 = vmatmul.mubr.bf16.gmra.mrb[0].mxu0 %v669
      %v1456 = vpop.f32.mrb[0].mxu0
      %v1457 = vadd.f32 0.0, %v1456
      %v1458 = vpop.f32.mrb[0].mxu0
      %v1459 = vpop.f32.mrb[0].mxu0
      %v1460 = vadd.f32 0.0, %v1459
      %v1461 = vpop.f32.mrb[0].mxu0
      %1462 = vmatprep.mubr.bf16.mxu0 %v839
      %1463 = vmatmul.mubr.bf16.gmra.mrb[0].mxu0 %v671
      %v1464 = vpop.f32.mrb[0].mxu0
      %v1465 = vadd.f32 0.0, %v1464
      %v1466 = vpop.f32.mrb[0].mxu0
      %v1467 = vpop.f32.mrb[0].mxu0
      %v1468 = vadd.f32 0.0, %v1467
      %v1469 = vpop.f32.mrb[0].mxu0
      %1470 = vmatprep.mubr.bf16.mxu0 %v842
      %1471 = vmatmul.mubr.bf16.gmra.mrb[0].mxu0 %v673
      %v1472 = vpop.f32.mrb[0].mxu0
      %v1473 = vadd.f32 0.0, %v1472
      %v1474 = vpop.f32.mrb[0].mxu0
      %v1475 = vpop.f32.mrb[0].mxu0
      %v1476 = vadd.f32 0.0, %v1475
      %v1477 = vpop.f32.mrb[0].mxu0
      %1478 = vdwg.mxu0
      %v1479 = vpack.c.bf16 %v1292, %v1289
      %v1480 = vpack.c.bf16 %v1300, %v1297
      %v1481 = vpack.c.bf16 %v1308, %v1305
      %v1482 = vpack.c.bf16 %v1316, %v1313
      %v1483 = vpack.c.bf16 %v1324, %v1321
      %v1484 = vpack.c.bf16 %v1332, %v1329
      %v1485 = vpack.c.bf16 %v1340, %v1337
      %v1486 = vpack.c.bf16 %v1348, %v1345
      %v1487 = vpack.c.bf16 %v1356, %v1353
      %v1488 = vpack.c.bf16 %v1364, %v1361
      %v1489 = vpack.c.bf16 %v1372, %v1369
      %v1490 = vpack.c.bf16 %v1380, %v1377
      %v1491 = vpack.c.bf16 %v1388, %v1385
      %v1492 = vpack.c.bf16 %v1396, %v1393
      %v1493 = vpack.c.bf16 %v1404, %v1401
      %v1494 = vpack.c.bf16 %v1412, %v1409
      %v1495 = vpack.c.bf16 %v1420, %v1417
      %v1496 = vpack.c.bf16 %v1428, %v1425
      %v1497 = vpack.c.bf16 %v1436, %v1433
      %v1498 = vpack.c.bf16 %v1444, %v1441
      %v1499 = vpack.c.bf16 %v1452, %v1449
      %v1500 = vpack.c.bf16 %v1460, %v1457
      %v1501 = vpack.c.bf16 %v1468, %v1465
      %v1502 = vpack.c.bf16 %v1476, %v1473
      %s1503 = scalar_lea.vmem %s1, 384
      %v1504 = vld [vmem:[%s1503] sm:$0xff]
      %v1505 = vld [vmem:[%s1503 + $0x8] sm:$0xf]
      %v1506 = vld [vmem:[%s1503 + $0xc] sm:$0xff]
      %v1507 = vld [vmem:[%s1503 + $0x14] sm:$0xf]
      %v1508 = vld [vmem:[%s1503 + $0x18] sm:$0xff]
      %v1509 = vld [vmem:[%s1503 + $0x20] sm:$0xf]
      %v1510 = vld [vmem:[%s1503 + $0x24] sm:$0xff]
      %v1511 = vld [vmem:[%s1503 + $0x2c] sm:$0xf]
      %v1512 = vld [vmem:[%s1503 + $0x30] sm:$0xff]
      %v1513 = vld [vmem:[%s1503 + $0x38] sm:$0xf]
      %v1514 = vld [vmem:[%s1503 + $0x3c] sm:$0xff]
      %v1515 = vld [vmem:[%s1503 + $0x44] sm:$0xf]
      %v1516 = vld [vmem:[%s1503 + $0x48] sm:$0xff]
      %v1517 = vld [vmem:[%s1503 + $0x50] sm:$0xf]
      %v1518 = vld [vmem:[%s1503 + $0x54] sm:$0xff]
      %v1519 = vld [vmem:[%s1503 + $0x5c] sm:$0xf]
      %v1520 = vld [vmem:[%s1503 + $0x60] sm:$0xff]
      %v1521 = vld [vmem:[%s1503 + $0x68] sm:$0xf]
      %v1522 = vld [vmem:[%s1503 + $0x6c] sm:$0xff]
      %v1523 = vld [vmem:[%s1503 + $0x74] sm:$0xf]
      %v1524 = vld [vmem:[%s1503 + $0x78] sm:$0xff]
      %v1525 = vld [vmem:[%s1503 + $0x80] sm:$0xf]
      %v1526 = vld [vmem:[%s1503 + $0x84] sm:$0xff]
      %v1527 = vld [vmem:[%s1503 + $0x8c] sm:$0xf]
      %v1528 = vld [vmem:[%s1503 + $0x90] sm:$0xff]
      %v1529 = vld [vmem:[%s1503 + $0x98] sm:$0xf]
      %v1530 = vld [vmem:[%s1503 + $0x9c] sm:$0xff]
      %v1531 = vld [vmem:[%s1503 + $0xa4] sm:$0xf]
      %v1532 = vld [vmem:[%s1503 + $0xa8] sm:$0xff]
      %v1533 = vld [vmem:[%s1503 + $0xb0] sm:$0xf]
      %v1534 = vld [vmem:[%s1503 + $0xb4] sm:$0xff]
      %v1535 = vld [vmem:[%s1503 + $0xbc] sm:$0xf]
      %v1536 = vld [vmem:[%s1503 + $0xc0] sm:$0xff]
      %v1537 = vld [vmem:[%s1503 + $0xc8] sm:$0xf]
      %v1538 = vld [vmem:[%s1503 + $0xcc] sm:$0xff]
      %v1539 = vld [vmem:[%s1503 + $0xd4] sm:$0xf]
      %v1540 = vld [vmem:[%s1503 + $0xd8] sm:$0xff]
      %v1541 = vld [vmem:[%s1503 + $0xe0] sm:$0xf]
      %v1542 = vld [vmem:[%s1503 + $0xe4] sm:$0xff]
      %v1543 = vld [vmem:[%s1503 + $0xec] sm:$0xf]
      %v1544 = vld [vmem:[%s1503 + $0xf0] sm:$0xff]
      %v1545 = vld [vmem:[%s1503 + $0xf8] sm:$0xf]
      %v1546 = vld [vmem:[%s1503 + $0xfc] sm:$0xff]
      %v1547 = vld [vmem:[%s1503 + $0x104] sm:$0xf]
      %v1548 = vld [vmem:[%s1503 + $0x108] sm:$0xff]
      %v1549 = vld [vmem:[%s1503 + $0x110] sm:$0xf]
      %v1550 = vld [vmem:[%s1503 + $0x114] sm:$0xff]
      %v1551 = vld [vmem:[%s1503 + $0x11c] sm:$0xf]
      %v1552 = vld [vmem:[%s1503 + $0x120] sm:$0xff]
      %v1553 = vld [vmem:[%s1503 + $0x128] sm:$0xf]
      %v1554 = vld [vmem:[%s1503 + $0x12c] sm:$0xff]
      %v1555 = vld [vmem:[%s1503 + $0x134] sm:$0xf]
      %v1556 = vld [vmem:[%s1503 + $0x138] sm:$0xff]
      %v1557 = vld [vmem:[%s1503 + $0x140] sm:$0xf]
      %v1558 = vld [vmem:[%s1503 + $0x144] sm:$0xff]
      %v1559 = vld [vmem:[%s1503 + $0x14c] sm:$0xf]
      %v1560 = vld [vmem:[%s1503 + $0x150] sm:$0xff]
      %v1561 = vld [vmem:[%s1503 + $0x158] sm:$0xf]
      %v1562 = vld [vmem:[%s1503 + $0x15c] sm:$0xff]
      %v1563 = vld [vmem:[%s1503 + $0x164] sm:$0xf]
      %v1564 = vld [vmem:[%s1503 + $0x168] sm:$0xff]
      %v1565 = vld [vmem:[%s1503 + $0x170] sm:$0xf]
      %v1566 = vld [vmem:[%s1503 + $0x174] sm:$0xff]
      %v1567 = vld [vmem:[%s1503 + $0x17c] sm:$0xf]
      %v1632 = vunpack.c.l.b16 %v1504
      %v1633 = vunpack.c.h.b16 %v1504
      %v1634 = vunpack.c.l.b16 %v1505
      %v1635 = vunpack.c.l.b16 %v1506
      %v1636 = vunpack.c.h.b16 %v1506
      %v1637 = vunpack.c.l.b16 %v1507
      %v1638 = vunpack.c.l.b16 %v1508
      %v1639 = vunpack.c.h.b16 %v1508
      %v1640 = vunpack.c.l.b16 %v1509
      %v1641 = vunpack.c.l.b16 %v1510
      %v1642 = vunpack.c.h.b16 %v1510
      %v1643 = vunpack.c.l.b16 %v1511
      %v1644 = vunpack.c.l.b16 %v1512
      %v1645 = vunpack.c.h.b16 %v1512
      %v1646 = vunpack.c.l.b16 %v1513
      %v1647 = vunpack.c.l.b16 %v1514
      %v1648 = vunpack.c.h.b16 %v1514
      %v1649 = vunpack.c.l.b16 %v1515
      %v1650 = vunpack.c.l.b16 %v1516
      %v1651 = vunpack.c.h.b16 %v1516
      %v1652 = vunpack.c.l.b16 %v1517
      %v1653 = vunpack.c.l.b16 %v1518
      %v1654 = vunpack.c.h.b16 %v1518
      %v1655 = vunpack.c.l.b16 %v1519
      %v1656 = vunpack.c.l.b16 %v1520
      %v1657 = vunpack.c.h.b16 %v1520
      %v1658 = vunpack.c.l.b16 %v1521
      %v1659 = vunpack.c.l.b16 %v1522
      %v1660 = vunpack.c.h.b16 %v1522
      %v1661 = vunpack.c.l.b16 %v1523
      %v1662 = vunpack.c.l.b16 %v1524
      %v1663 = vunpack.c.h.b16 %v1524
      %v1664 = vunpack.c.l.b16 %v1525
      %v1665 = vunpack.c.l.b16 %v1526
      %v1666 = vunpack.c.h.b16 %v1526
      %v1667 = vunpack.c.l.b16 %v1527
      %v1668 = vunpack.c.l.b16 %v1528
      %v1669 = vunpack.c.h.b16 %v1528
      %v1670 = vunpack.c.l.b16 %v1529
      %v1671 = vunpack.c.l.b16 %v1530
      %v1672 = vunpack.c.h.b16 %v1530
      %v1673 = vunpack.c.l.b16 %v1531
      %v1674 = vunpack.c.l.b16 %v1532
      %v1675 = vunpack.c.h.b16 %v1532
      %v1676 = vunpack.c.l.b16 %v1533
      %v1677 = vunpack.c.l.b16 %v1534
      %v1678 = vunpack.c.h.b16 %v1534
      %v1679 = vunpack.c.l.b16 %v1535
      %v1680 = vunpack.c.l.b16 %v1536
      %v1681 = vunpack.c.h.b16 %v1536
      %v1682 = vunpack.c.l.b16 %v1537
      %v1683 = vunpack.c.l.b16 %v1538
      %v1684 = vunpack.c.h.b16 %v1538
      %v1685 = vunpack.c.l.b16 %v1539
      %v1686 = vunpack.c.l.b16 %v1540
      %v1687 = vunpack.c.h.b16 %v1540
      %v1688 = vunpack.c.l.b16 %v1541
      %v1689 = vunpack.c.l.b16 %v1542
      %v1690 = vunpack.c.h.b16 %v1542
      %v1691 = vunpack.c.l.b16 %v1543
      %v1692 = vunpack.c.l.b16 %v1544
      %v1693 = vunpack.c.h.b16 %v1544
      %v1694 = vunpack.c.l.b16 %v1545
      %v1695 = vunpack.c.l.b16 %v1546
      %v1696 = vunpack.c.h.b16 %v1546
      %v1697 = vunpack.c.l.b16 %v1547
      %v1698 = vunpack.c.l.b16 %v1548
      %v1699 = vunpack.c.h.b16 %v1548
      %v1700 = vunpack.c.l.b16 %v1549
      %v1701 = vunpack.c.l.b16 %v1550
      %v1702 = vunpack.c.h.b16 %v1550
      %v1703 = vunpack.c.l.b16 %v1551
      %v1704 = vunpack.c.l.b16 %v1552
      %v1705 = vunpack.c.h.b16 %v1552
      %v1706 = vunpack.c.l.b16 %v1553
      %v1707 = vunpack.c.l.b16 %v1554
      %v1708 = vunpack.c.h.b16 %v1554
      %v1709 = vunpack.c.l.b16 %v1555
      %v1710 = vunpack.c.l.b16 %v1556
      %v1711 = vunpack.c.h.b16 %v1556
      %v1712 = vunpack.c.l.b16 %v1557
      %v1713 = vunpack.c.l.b16 %v1558
      %v1714 = vunpack.c.h.b16 %v1558
      %v1715 = vunpack.c.l.b16 %v1559
      %v1716 = vunpack.c.l.b16 %v1560
      %v1717 = vunpack.c.h.b16 %v1560
      %v1718 = vunpack.c.l.b16 %v1561
      %v1719 = vunpack.c.l.b16 %v1562
      %v1720 = vunpack.c.h.b16 %v1562
      %v1721 = vunpack.c.l.b16 %v1563
      %v1722 = vunpack.c.l.b16 %v1564
      %v1723 = vunpack.c.h.b16 %v1564
      %v1724 = vunpack.c.l.b16 %v1565
      %v1725 = vunpack.c.l.b16 %v1566
      %v1726 = vunpack.c.h.b16 %v1566
      %v1727 = vunpack.c.l.b16 %v1567
      %v1728 = vpack.c.b16 %v1635, %v1632
      %v1729 = vpack.c.b16 %v1636, %v1633
      %v1730 = vpack.c.b16 %v1637, %v1634
      %v1731 = vpack.c.b16 %v1641, %v1638
      %v1732 = vpack.c.b16 %v1642, %v1639
      %v1733 = vpack.c.b16 %v1643, %v1640
      %v1734 = vpack.c.b16 %v1647, %v1644
      %v1735 = vpack.c.b16 %v1648, %v1645
      %v1736 = vpack.c.b16 %v1649, %v1646
      %v1737 = vpack.c.b16 %v1653, %v1650
      %v1738 = vpack.c.b16 %v1654, %v1651
      %v1739 = vpack.c.b16 %v1655, %v1652
      %v1740 = vpack.c.b16 %v1659, %v1656
      %v1741 = vpack.c.b16 %v1660, %v1657
      %v1742 = vpack.c.b16 %v1661, %v1658
      %v1743 = vpack.c.b16 %v1665, %v1662
      %v1744 = vpack.c.b16 %v1666, %v1663
      %v1745 = vpack.c.b16 %v1667, %v1664
      %v1746 = vpack.c.b16 %v1671, %v1668
      %v1747 = vpack.c.b16 %v1672, %v1669
      %v1748 = vpack.c.b16 %v1673, %v1670
      %v1749 = vpack.c.b16 %v1677, %v1674
      %v1750 = vpack.c.b16 %v1678, %v1675
      %v1751 = vpack.c.b16 %v1679, %v1676
      %v1752 = vpack.c.b16 %v1683, %v1680
      %v1753 = vpack.c.b16 %v1684, %v1681
      %v1754 = vpack.c.b16 %v1685, %v1682
      %v1755 = vpack.c.b16 %v1689, %v1686
      %v1756 = vpack.c.b16 %v1690, %v1687
      %v1757 = vpack.c.b16 %v1691, %v1688
      %v1758 = vpack.c.b16 %v1695, %v1692
      %v1759 = vpack.c.b16 %v1696, %v1693
      %v1760 = vpack.c.b16 %v1697, %v1694
      %v1761 = vpack.c.b16 %v1701, %v1698
      %v1762 = vpack.c.b16 %v1702, %v1699
      %v1763 = vpack.c.b16 %v1703, %v1700
      %v1764 = vpack.c.b16 %v1707, %v1704
      %v1765 = vpack.c.b16 %v1708, %v1705
      %v1766 = vpack.c.b16 %v1709, %v1706
      %v1767 = vpack.c.b16 %v1713, %v1710
      %v1768 = vpack.c.b16 %v1714, %v1711
      %v1769 = vpack.c.b16 %v1715, %v1712
      %v1770 = vpack.c.b16 %v1719, %v1716
      %v1771 = vpack.c.b16 %v1720, %v1717
      %v1772 = vpack.c.b16 %v1721, %v1718
      %v1773 = vpack.c.b16 %v1725, %v1722
      %v1774 = vpack.c.b16 %v1726, %v1723
      %v1775 = vpack.c.b16 %v1727, %v1724
      %1824 = vmatprep.subr.bf16.mxu0 0
      %1825 = vmatpush1.bf16.msra.mxu0 %v1479
      %1826 = vmatprep.subr.bf16.mxu0 0
      %1827 = vmatpush1.bf16.msra.mxu0 %v1480
      %1828 = vmatprep.subr.bf16.mxu0 0
      %1829 = vmatpush1.bf16.msra.mxu0 %v1481
      %1830 = vmatprep.subr.bf16.mxu0 0
      %1831 = vmatpush1.bf16.msra.mxu0 %v1482
      %1832 = vmatprep.subr.bf16.mxu0 0
      %1833 = vmatpush1.bf16.msra.mxu0 %v1483
      %1834 = vmatprep.subr.bf16.mxu0 0
      %1835 = vmatpush1.bf16.msra.mxu0 %v1484
      %1836 = vmatprep.subr.bf16.mxu0 0
      %1837 = vmatpush1.bf16.msra.mxu0 %v1485
      %1838 = vmatprep.subr.bf16.mxu0 0
      %1839 = vmatpush1.bf16.msra.mxu0 %v1486
      %1840 = vmatprep.subr.bf16.mxu0 0
      %1841 = vmatpush1.bf16.msra.mxu0 %v1487
      %1842 = vmatprep.subr.bf16.mxu0 0
      %1843 = vmatpush1.bf16.msra.mxu0 %v1488
      %1844 = vmatprep.subr.bf16.mxu0 0
      %1845 = vmatpush1.bf16.msra.mxu0 %v1489
      %1846 = vmatprep.subr.bf16.mxu0 0
      %1847 = vmatpush1.bf16.msra.mxu0 %v1490
      %1848 = vmatprep.subr.bf16.mxu0 0
      %1849 = vmatpush1.bf16.msra.mxu0 %v1491
      %1850 = vmatprep.subr.bf16.mxu0 0
      %1851 = vmatpush1.bf16.msra.mxu0 %v1492
      %1852 = vmatprep.subr.bf16.mxu0 0
      %1853 = vmatpush1.bf16.msra.mxu0 %v1493
      %1854 = vmatprep.subr.bf16.mxu0 0
      %1855 = vmatpush1.bf16.msra.mxu0 %v1494
      %1856 = vmatprep.mubr.bf16.mxu0 %v1729
      %1857 = vmatmul.mubr.bf16.gmra.mrb[0].mxu0 %v1728
      %v1858 = vpop.f32.mrb[0].mxu0
      %v1859 = vadd.f32 0.0, %v1858
      %v1860 = vpop.f32.mrb[0].mxu0
      %v1861 = vpop.f32.mrb[0].mxu0
      %v1862 = vadd.f32 0.0, %v1861
      %v1863 = vpop.f32.mrb[0].mxu0
      %1864 = vmatprep.mubr.bf16.mxu0 %v1732
      %1865 = vmatmul.mubr.bf16.gmra.mrb[0].mxu0 %v1731
      %v1866 = vpop.f32.mrb[0].mxu0
      %v1867 = vadd.f32 0.0, %v1866
      %v1868 = vpop.f32.mrb[0].mxu0
      %v1869 = vpop.f32.mrb[0].mxu0
      %v1870 = vadd.f32 0.0, %v1869
      %v1871 = vpop.f32.mrb[0].mxu0
      %1872 = vmatprep.mubr.bf16.mxu0 %v1735
      %1873 = vmatmul.mubr.bf16.gmra.mrb[0].mxu0 %v1734
      %v1874 = vpop.f32.mrb[0].mxu0
      %v1875 = vadd.f32 0.0, %v1874
      %v1876 = vpop.f32.mrb[0].mxu0
      %v1877 = vpop.f32.mrb[0].mxu0
      %v1878 = vadd.f32 0.0, %v1877
      %v1879 = vpop.f32.mrb[0].mxu0
      %1880 = vmatprep.mubr.bf16.mxu0 %v1738
      %1881 = vmatmul.mubr.bf16.gmra.mrb[0].mxu0 %v1737
      %v1882 = vpop.f32.mrb[0].mxu0
      %v1883 = vadd.f32 0.0, %v1882
      %v1884 = vpop.f32.mrb[0].mxu0
      %v1885 = vpop.f32.mrb[0].mxu0
      %v1886 = vadd.f32 0.0, %v1885
      %v1887 = vpop.f32.mrb[0].mxu0
      %1888 = vmatprep.mubr.bf16.mxu0 %v1741
      %1889 = vmatmul.mubr.bf16.gmra.mrb[0].mxu0 %v1740
      %v1890 = vpop.f32.mrb[0].mxu0
      %v1891 = vadd.f32 0.0, %v1890
      %v1892 = vpop.f32.mrb[0].mxu0
      %v1893 = vpop.f32.mrb[0].mxu0
      %v1894 = vadd.f32 0.0, %v1893
      %v1895 = vpop.f32.mrb[0].mxu0
      %1896 = vmatprep.mubr.bf16.mxu0 %v1744
      %1897 = vmatmul.mubr.bf16.gmra.mrb[0].mxu0 %v1743
      %v1898 = vpop.f32.mrb[0].mxu0
      %v1899 = vadd.f32 0.0, %v1898
      %v1900 = vpop.f32.mrb[0].mxu0
      %v1901 = vpop.f32.mrb[0].mxu0
      %v1902 = vadd.f32 0.0, %v1901
      %v1903 = vpop.f32.mrb[0].mxu0
      %1904 = vmatprep.mubr.bf16.mxu0 %v1747
      %1905 = vmatmul.mubr.bf16.gmra.mrb[0].mxu0 %v1746
      %v1906 = vpop.f32.mrb[0].mxu0
      %v1907 = vadd.f32 0.0, %v1906
      %v1908 = vpop.f32.mrb[0].mxu0
      %v1909 = vpop.f32.mrb[0].mxu0
      %v1910 = vadd.f32 0.0, %v1909
      %v1911 = vpop.f32.mrb[0].mxu0
      %1912 = vmatprep.mubr.bf16.mxu0 %v1750
      %1913 = vmatmul.mubr.bf16.gmra.mrb[0].mxu0 %v1749
      %v1914 = vpop.f32.mrb[0].mxu0
      %v1915 = vadd.f32 0.0, %v1914
      %v1916 = vpop.f32.mrb[0].mxu0
      %v1917 = vpop.f32.mrb[0].mxu0
      %v1918 = vadd.f32 0.0, %v1917
      %v1919 = vpop.f32.mrb[0].mxu0
      %1920 = vmatprep.mubr.bf16.mxu0 %v1753
      %1921 = vmatmul.mubr.bf16.gmra.mrb[0].mxu0 %v1752
      %v1922 = vpop.f32.mrb[0].mxu0
      %v1923 = vadd.f32 0.0, %v1922
      %v1924 = vpop.f32.mrb[0].mxu0
      %v1925 = vpop.f32.mrb[0].mxu0
      %v1926 = vadd.f32 0.0, %v1925
      %v1927 = vpop.f32.mrb[0].mxu0
      %1928 = vmatprep.mubr.bf16.mxu0 %v1756
      %1929 = vmatmul.mubr.bf16.gmra.mrb[0].mxu0 %v1755
      %v1930 = vpop.f32.mrb[0].mxu0
      %v1931 = vadd.f32 0.0, %v1930
      %v1932 = vpop.f32.mrb[0].mxu0
      %v1933 = vpop.f32.mrb[0].mxu0
      %v1934 = vadd.f32 0.0, %v1933
      %v1935 = vpop.f32.mrb[0].mxu0
      %1936 = vmatprep.mubr.bf16.mxu0 %v1759
      %1937 = vmatmul.mubr.bf16.gmra.mrb[0].mxu0 %v1758
      %v1938 = vpop.f32.mrb[0].mxu0
      %v1939 = vadd.f32 0.0, %v1938
      %v1940 = vpop.f32.mrb[0].mxu0
      %v1941 = vpop.f32.mrb[0].mxu0
      %v1942 = vadd.f32 0.0, %v1941
      %v1943 = vpop.f32.mrb[0].mxu0
      %1944 = vmatprep.mubr.bf16.mxu0 %v1762
      %1945 = vmatmul.mubr.bf16.gmra.mrb[0].mxu0 %v1761
      %v1946 = vpop.f32.mrb[0].mxu0
      %v1947 = vadd.f32 0.0, %v1946
      %v1948 = vpop.f32.mrb[0].mxu0
      %v1949 = vpop.f32.mrb[0].mxu0
      %v1950 = vadd.f32 0.0, %v1949
      %v1951 = vpop.f32.mrb[0].mxu0
      %1952 = vmatprep.mubr.bf16.mxu0 %v1765
      %1953 = vmatmul.mubr.bf16.gmra.mrb[0].mxu0 %v1764
      %v1954 = vpop.f32.mrb[0].mxu0
      %v1955 = vadd.f32 0.0, %v1954
      %v1956 = vpop.f32.mrb[0].mxu0
      %v1957 = vpop.f32.mrb[0].mxu0
      %v1958 = vadd.f32 0.0, %v1957
      %v1959 = vpop.f32.mrb[0].mxu0
      %1960 = vmatprep.mubr.bf16.mxu0 %v1768
      %1961 = vmatmul.mubr.bf16.gmra.mrb[0].mxu0 %v1767
      %v1962 = vpop.f32.mrb[0].mxu0
      %v1963 = vadd.f32 0.0, %v1962
      %v1964 = vpop.f32.mrb[0].mxu0
      %v1965 = vpop.f32.mrb[0].mxu0
      %v1966 = vadd.f32 0.0, %v1965
      %v1967 = vpop.f32.mrb[0].mxu0
      %1968 = vmatprep.mubr.bf16.mxu0 %v1771
      %1969 = vmatmul.mubr.bf16.gmra.mrb[0].mxu0 %v1770
      %v1970 = vpop.f32.mrb[0].mxu0
      %v1971 = vadd.f32 0.0, %v1970
      %v1972 = vpop.f32.mrb[0].mxu0
      %v1973 = vpop.f32.mrb[0].mxu0
      %v1974 = vadd.f32 0.0, %v1973
      %v1975 = vpop.f32.mrb[0].mxu0
      %1976 = vmatprep.mubr.bf16.mxu0 %v1774
      %1977 = vmatmul.mubr.bf16.gmra.mrb[0].mxu0 %v1773
      %v1978 = vpop.f32.mrb[0].mxu0
      %v1979 = vadd.f32 0.0, %v1978
      %v1980 = vpop.f32.mrb[0].mxu0
      %v1981 = vpop.f32.mrb[0].mxu0
      %v1982 = vadd.f32 0.0, %v1981
      %v1983 = vpop.f32.mrb[0].mxu0
      %1984 = vdwg.mxu0
      %1985 = vmatprep.subr.bf16.mxu0 0
      %1986 = vmatpush1.bf16.msra.mxu0 %v1495
      %1987 = vmatprep.subr.bf16.mxu0 0
      %1988 = vmatpush1.bf16.msra.mxu0 %v1496
      %1989 = vmatprep.subr.bf16.mxu0 0
      %1990 = vmatpush1.bf16.msra.mxu0 %v1497
      %1991 = vmatprep.subr.bf16.mxu0 0
      %1992 = vmatpush1.bf16.msra.mxu0 %v1498
      %1993 = vmatprep.subr.bf16.mxu0 0
      %1994 = vmatpush1.bf16.msra.mxu0 %v1499
      %1995 = vmatprep.subr.bf16.mxu0 0
      %1996 = vmatpush1.bf16.msra.mxu0 %v1500
      %1997 = vmatprep.subr.bf16.mxu0 0
      %1998 = vmatpush1.bf16.msra.mxu0 %v1501
      %1999 = vmatprep.subr.bf16.mxu0 0
      %2000 = vmatpush1.bf16.msra.mxu0 %v1502
      %2001 = vmatprep.subr.bf16.mxu0 0
      %2002 = vmatpush1.bf16.msra.mxu0 0
      %2003 = vmatprep.subr.bf16.mxu0 0
      %2004 = vmatpush1.bf16.msra.mxu0 0
      %2005 = vmatprep.subr.bf16.mxu0 0
      %2006 = vmatpush1.bf16.msra.mxu0 0
      %2007 = vmatprep.subr.bf16.mxu0 0
      %2008 = vmatpush1.bf16.msra.mxu0 0
      %2009 = vmatprep.subr.bf16.mxu0 0
      %2010 = vmatpush1.bf16.msra.mxu0 0
      %2011 = vmatprep.subr.bf16.mxu0 0
      %2012 = vmatpush1.bf16.msra.mxu0 0
      %2013 = vmatprep.subr.bf16.mxu0 0
      %2014 = vmatpush1.bf16.msra.mxu0 0
      %2015 = vmatprep.subr.bf16.mxu0 0
      %2016 = vmatpush1.bf16.msra.mxu0 0
      %2017 = vmatprep.mubr.bf16.mxu0 0
      %2018 = vmatmul.mubr.bf16.gmra.mrb[0].mxu0 %v1730
      %v2019 = vpop.f32.mrb[0].mxu0
      %v2020 = vadd.f32 %v1859, %v2019
      %v2021 = vpop.f32.mrb[0].mxu0
      %v2022 = vpop.f32.mrb[0].mxu0
      %v2023 = vadd.f32 %v1862, %v2022
      %v2024 = vpop.f32.mrb[0].mxu0
      %2025 = vmatprep.mubr.bf16.mxu0 0
      %2026 = vmatmul.mubr.bf16.gmra.mrb[0].mxu0 %v1733
      %v2027 = vpop.f32.mrb[0].mxu0
      %v2028 = vadd.f32 %v1867, %v2027
      %v2029 = vpop.f32.mrb[0].mxu0
      %v2030 = vpop.f32.mrb[0].mxu0
      %v2031 = vadd.f32 %v1870, %v2030
      %v2032 = vpop.f32.mrb[0].mxu0
      %2033 = vmatprep.mubr.bf16.mxu0 0
      %2034 = vmatmul.mubr.bf16.gmra.mrb[0].mxu0 %v1736
      %v2035 = vpop.f32.mrb[0].mxu0
      %v2036 = vadd.f32 %v1875, %v2035
      %v2037 = vpop.f32.mrb[0].mxu0
      %v2038 = vpop.f32.mrb[0].mxu0
      %v2039 = vadd.f32 %v1878, %v2038
      %v2040 = vpop.f32.mrb[0].mxu0
      %2041 = vmatprep.mubr.bf16.mxu0 0
      %2042 = vmatmul.mubr.bf16.gmra.mrb[0].mxu0 %v1739
      %v2043 = vpop.f32.mrb[0].mxu0
      %v2044 = vadd.f32 %v1883, %v2043
      %v2045 = vpop.f32.mrb[0].mxu0
      %v2046 = vpop.f32.mrb[0].mxu0
      %v2047 = vadd.f32 %v1886, %v2046
      %v2048 = vpop.f32.mrb[0].mxu0
      %2049 = vmatprep.mubr.bf16.mxu0 0
      %2050 = vmatmul.mubr.bf16.gmra.mrb[0].mxu0 %v1742
      %v2051 = vpop.f32.mrb[0].mxu0
      %v2052 = vadd.f32 %v1891, %v2051
      %v2053 = vpop.f32.mrb[0].mxu0
      %v2054 = vpop.f32.mrb[0].mxu0
      %v2055 = vadd.f32 %v1894, %v2054
      %v2056 = vpop.f32.mrb[0].mxu0
      %2057 = vmatprep.mubr.bf16.mxu0 0
      %2058 = vmatmul.mubr.bf16.gmra.mrb[0].mxu0 %v1745
      %v2059 = vpop.f32.mrb[0].mxu0
      %v2060 = vadd.f32 %v1899, %v2059
      %v2061 = vpop.f32.mrb[0].mxu0
      %v2062 = vpop.f32.mrb[0].mxu0
      %v2063 = vadd.f32 %v1902, %v2062
      %v2064 = vpop.f32.mrb[0].mxu0
      %2065 = vmatprep.mubr.bf16.mxu0 0
      %2066 = vmatmul.mubr.bf16.gmra.mrb[0].mxu0 %v1748
      %v2067 = vpop.f32.mrb[0].mxu0
      %v2068 = vadd.f32 %v1907, %v2067
      %v2069 = vpop.f32.mrb[0].mxu0
      %v2070 = vpop.f32.mrb[0].mxu0
      %v2071 = vadd.f32 %v1910, %v2070
      %v2072 = vpop.f32.mrb[0].mxu0
      %2073 = vmatprep.mubr.bf16.mxu0 0
      %2074 = vmatmul.mubr.bf16.gmra.mrb[0].mxu0 %v1751
      %v2075 = vpop.f32.mrb[0].mxu0
      %v2076 = vadd.f32 %v1915, %v2075
      %v2077 = vpop.f32.mrb[0].mxu0
      %v2078 = vpop.f32.mrb[0].mxu0
      %v2079 = vadd.f32 %v1918, %v2078
      %v2080 = vpop.f32.mrb[0].mxu0
      %2081 = vmatprep.mubr.bf16.mxu0 0
      %2082 = vmatmul.mubr.bf16.gmra.mrb[0].mxu0 %v1754
      %v2083 = vpop.f32.mrb[0].mxu0
      %v2084 = vadd.f32 %v1923, %v2083
      %v2085 = vpop.f32.mrb[0].mxu0
      %v2086 = vpop.f32.mrb[0].mxu0
      %v2087 = vadd.f32 %v1926, %v2086
      %v2088 = vpop.f32.mrb[0].mxu0
      %2089 = vmatprep.mubr.bf16.mxu0 0
      %2090 = vmatmul.mubr.bf16.gmra.mrb[0].mxu0 %v1757
      %v2091 = vpop.f32.mrb[0].mxu0
      %v2092 = vadd.f32 %v1931, %v2091
      %v2093 = vpop.f32.mrb[0].mxu0
      %v2094 = vpop.f32.mrb[0].mxu0
      %v2095 = vadd.f32 %v1934, %v2094
      %v2096 = vpop.f32.mrb[0].mxu0
      %2097 = vmatprep.mubr.bf16.mxu0 0
      %2098 = vmatmul.mubr.bf16.gmra.mrb[0].mxu0 %v1760
      %v2099 = vpop.f32.mrb[0].mxu0
      %v2100 = vadd.f32 %v1939, %v2099
      %v2101 = vpop.f32.mrb[0].mxu0
      %v2102 = vpop.f32.mrb[0].mxu0
      %v2103 = vadd.f32 %v1942, %v2102
      %v2104 = vpop.f32.mrb[0].mxu0
      %2105 = vmatprep.mubr.bf16.mxu0 0
      %2106 = vmatmul.mubr.bf16.gmra.mrb[0].mxu0 %v1763
      %v2107 = vpop.f32.mrb[0].mxu0
      %v2108 = vadd.f32 %v1947, %v2107
      %v2109 = vpop.f32.mrb[0].mxu0
      %v2110 = vpop.f32.mrb[0].mxu0
      %v2111 = vadd.f32 %v1950, %v2110
      %v2112 = vpop.f32.mrb[0].mxu0
      %2113 = vmatprep.mubr.bf16.mxu0 0
      %2114 = vmatmul.mubr.bf16.gmra.mrb[0].mxu0 %v1766
      %v2115 = vpop.f32.mrb[0].mxu0
      %v2116 = vadd.f32 %v1955, %v2115
      %v2117 = vpop.f32.mrb[0].mxu0
      %v2118 = vpop.f32.mrb[0].mxu0
      %v2119 = vadd.f32 %v1958, %v2118
      %v2120 = vpop.f32.mrb[0].mxu0
      %2121 = vmatprep.mubr.bf16.mxu0 0
      %2122 = vmatmul.mubr.bf16.gmra.mrb[0].mxu0 %v1769
      %v2123 = vpop.f32.mrb[0].mxu0
      %v2124 = vadd.f32 %v1963, %v2123
      %v2125 = vpop.f32.mrb[0].mxu0
      %v2126 = vpop.f32.mrb[0].mxu0
      %v2127 = vadd.f32 %v1966, %v2126
      %v2128 = vpop.f32.mrb[0].mxu0
      %2129 = vmatprep.mubr.bf16.mxu0 0
      %2130 = vmatmul.mubr.bf16.gmra.mrb[0].mxu0 %v1772
      %v2131 = vpop.f32.mrb[0].mxu0
      %v2132 = vadd.f32 %v1971, %v2131
      %v2133 = vpop.f32.mrb[0].mxu0
      %v2134 = vpop.f32.mrb[0].mxu0
      %v2135 = vadd.f32 %v1974, %v2134
      %v2136 = vpop.f32.mrb[0].mxu0
      %2137 = vmatprep.mubr.bf16.mxu0 0
      %2138 = vmatmul.mubr.bf16.gmra.mrb[0].mxu0 %v1775
      %v2139 = vpop.f32.mrb[0].mxu0
      %v2140 = vadd.f32 %v1979, %v2139
      %v2141 = vpop.f32.mrb[0].mxu0
      %v2142 = vpop.f32.mrb[0].mxu0
      %v2143 = vadd.f32 %v1982, %v2142
      %v2144 = vpop.f32.mrb[0].mxu0
      %2145 = vdwg.mxu0
      %v2210 = vunpack.c.l.b16 %v1093
      %v2211 = vunpack.c.h.b16 %v1093
      %v2212 = vunpack.c.l.b16 %v1094
      %v2213 = vunpack.c.l.b16 %v1095
      %v2214 = vunpack.c.h.b16 %v1095
      %v2215 = vunpack.c.l.b16 %v1096
      %v2216 = vunpack.c.l.b16 %v1097
      %v2217 = vunpack.c.h.b16 %v1097
      %v2218 = vunpack.c.l.b16 %v1098
      %v2219 = vunpack.c.l.b16 %v1099
      %v2220 = vunpack.c.h.b16 %v1099
      %v2221 = vunpack.c.l.b16 %v1100
      %v2222 = vunpack.c.l.b16 %v1101
      %v2223 = vunpack.c.h.b16 %v1101
      %v2224 = vunpack.c.l.b16 %v1102
      %v2225 = vunpack.c.l.b16 %v1103
      %v2226 = vunpack.c.h.b16 %v1103
      %v2227 = vunpack.c.l.b16 %v1104
      %v2228 = vunpack.c.l.b16 %v1105
      %v2229 = vunpack.c.h.b16 %v1105
      %v2230 = vunpack.c.l.b16 %v1106
      %v2231 = vunpack.c.l.b16 %v1107
      %v2232 = vunpack.c.h.b16 %v1107
      %v2233 = vunpack.c.l.b16 %v1108
      %v2234 = vunpack.c.l.b16 %v1109
      %v2235 = vunpack.c.h.b16 %v1109
      %v2236 = vunpack.c.l.b16 %v1110
      %v2237 = vunpack.c.l.b16 %v1111
      %v2238 = vunpack.c.h.b16 %v1111
      %v2239 = vunpack.c.l.b16 %v1112
      %v2240 = vunpack.c.l.b16 %v1113
      %v2241 = vunpack.c.h.b16 %v1113
      %v2242 = vunpack.c.l.b16 %v1114
      %v2243 = vunpack.c.l.b16 %v1115
      %v2244 = vunpack.c.h.b16 %v1115
      %v2245 = vunpack.c.l.b16 %v1116
      %v2246 = vunpack.c.l.b16 %v1117
      %v2247 = vunpack.c.h.b16 %v1117
      %v2248 = vunpack.c.l.b16 %v1118
      %v2249 = vunpack.c.l.b16 %v1119
      %v2250 = vunpack.c.h.b16 %v1119
      %v2251 = vunpack.c.l.b16 %v1120
      %v2252 = vunpack.c.l.b16 %v1121
      %v2253 = vunpack.c.h.b16 %v1121
      %v2254 = vunpack.c.l.b16 %v1122
      %v2255 = vunpack.c.l.b16 %v1123
      %v2256 = vunpack.c.h.b16 %v1123
      %v2257 = vunpack.c.l.b16 %v1124
      %v2258 = vunpack.c.l.b16 %v1125
      %v2259 = vunpack.c.h.b16 %v1125
      %v2260 = vunpack.c.l.b16 %v1126
      %v2261 = vunpack.c.l.b16 %v1127
      %v2262 = vunpack.c.h.b16 %v1127
      %v2263 = vunpack.c.l.b16 %v1128
      %v2264 = vunpack.c.l.b16 %v1129
      %v2265 = vunpack.c.h.b16 %v1129
      %v2266 = vunpack.c.l.b16 %v1130
      %v2267 = vunpack.c.l.b16 %v1131
      %v2268 = vunpack.c.h.b16 %v1131
      %v2269 = vunpack.c.l.b16 %v1132
      %v2270 = vunpack.c.l.b16 %v1133
      %v2271 = vunpack.c.h.b16 %v1133
      %v2272 = vunpack.c.l.b16 %v1134
      %v2273 = vunpack.c.l.b16 %v1135
      %v2274 = vunpack.c.h.b16 %v1135
      %v2275 = vunpack.c.l.b16 %v1136
      %v2276 = vunpack.c.l.b16 %v1137
      %v2277 = vunpack.c.h.b16 %v1137
      %v2278 = vunpack.c.l.b16 %v1138
      %v2279 = vunpack.c.l.b16 %v1139
      %v2280 = vunpack.c.h.b16 %v1139
      %v2281 = vunpack.c.l.b16 %v1140
      %v2282 = vunpack.c.l.b16 %v1141
      %v2283 = vunpack.c.h.b16 %v1141
      %v2284 = vunpack.c.l.b16 %v1142
      %v2285 = vunpack.c.l.b16 %v1143
      %v2286 = vunpack.c.h.b16 %v1143
      %v2287 = vunpack.c.l.b16 %v1144
      %v2288 = vunpack.c.l.b16 %v1145
      %v2289 = vunpack.c.h.b16 %v1145
      %v2290 = vunpack.c.l.b16 %v1146
      %v2291 = vunpack.c.l.b16 %v1147
      %v2292 = vunpack.c.h.b16 %v1147
      %v2293 = vunpack.c.l.b16 %v1148
      %v2294 = vunpack.c.l.b16 %v1149
      %v2295 = vunpack.c.h.b16 %v1149
      %v2296 = vunpack.c.l.b16 %v1150
      %v2297 = vunpack.c.l.b16 %v1151
      %v2298 = vunpack.c.h.b16 %v1151
      %v2299 = vunpack.c.l.b16 %v1152
      %v2300 = vunpack.c.l.b16 %v1153
      %v2301 = vunpack.c.h.b16 %v1153
      %v2302 = vunpack.c.l.b16 %v1154
      %v2303 = vunpack.c.l.b16 %v1155
      %v2304 = vunpack.c.h.b16 %v1155
      %v2305 = vunpack.c.l.b16 %v1156
      %v2306 = vpack.c.b16 %v2213, %v2210
      %v2307 = vpack.c.b16 %v2214, %v2211
      %v2308 = vpack.c.b16 %v2215, %v2212
      %v2309 = vpack.c.b16 %v2219, %v2216
      %v2310 = vpack.c.b16 %v2220, %v2217
      %v2311 = vpack.c.b16 %v2221, %v2218
      %v2312 = vpack.c.b16 %v2225, %v2222
      %v2313 = vpack.c.b16 %v2226, %v2223
      %v2314 = vpack.c.b16 %v2227, %v2224
      %v2315 = vpack.c.b16 %v2231, %v2228
      %v2316 = vpack.c.b16 %v2232, %v2229
      %v2317 = vpack.c.b16 %v2233, %v2230
      %v2318 = vpack.c.b16 %v2237, %v2234
      %v2319 = vpack.c.b16 %v2238, %v2235
      %v2320 = vpack.c.b16 %v2239, %v2236
      %v2321 = vpack.c.b16 %v2243, %v2240
      %v2322 = vpack.c.b16 %v2244, %v2241
      %v2323 = vpack.c.b16 %v2245, %v2242
      %v2324 = vpack.c.b16 %v2249, %v2246
      %v2325 = vpack.c.b16 %v2250, %v2247
      %v2326 = vpack.c.b16 %v2251, %v2248
      %v2327 = vpack.c.b16 %v2255, %v2252
      %v2328 = vpack.c.b16 %v2256, %v2253
      %v2329 = vpack.c.b16 %v2257, %v2254
      %v2330 = vpack.c.b16 %v2261, %v2258
      %v2331 = vpack.c.b16 %v2262, %v2259
      %v2332 = vpack.c.b16 %v2263, %v2260
      %v2333 = vpack.c.b16 %v2267, %v2264
      %v2334 = vpack.c.b16 %v2268, %v2265
      %v2335 = vpack.c.b16 %v2269, %v2266
      %v2336 = vpack.c.b16 %v2273, %v2270
      %v2337 = vpack.c.b16 %v2274, %v2271
      %v2338 = vpack.c.b16 %v2275, %v2272
      %v2339 = vpack.c.b16 %v2279, %v2276
      %v2340 = vpack.c.b16 %v2280, %v2277
      %v2341 = vpack.c.b16 %v2281, %v2278
      %v2342 = vpack.c.b16 %v2285, %v2282
      %v2343 = vpack.c.b16 %v2286, %v2283
      %v2344 = vpack.c.b16 %v2287, %v2284
      %v2345 = vpack.c.b16 %v2291, %v2288
      %v2346 = vpack.c.b16 %v2292, %v2289
      %v2347 = vpack.c.b16 %v2293, %v2290
      %v2348 = vpack.c.b16 %v2297, %v2294
      %v2349 = vpack.c.b16 %v2298, %v2295
      %v2350 = vpack.c.b16 %v2299, %v2296
      %v2351 = vpack.c.b16 %v2303, %v2300
      %v2352 = vpack.c.b16 %v2304, %v2301
      %v2353 = vpack.c.b16 %v2305, %v2302
      %2402 = vmatprep.subr.bf16.mxu0 0
      %2403 = vmatpush1.bf16.msra.mxu0 %v1069
      %2404 = vmatprep.subr.bf16.mxu0 0
      %2405 = vmatpush1.bf16.msra.mxu0 %v1070
      %2406 = vmatprep.subr.bf16.mxu0 0
      %2407 = vmatpush1.bf16.msra.mxu0 %v1071
      %2408 = vmatprep.subr.bf16.mxu0 0
      %2409 = vmatpush1.bf16.msra.mxu0 %v1072
      %2410 = vmatprep.subr.bf16.mxu0 0
      %2411 = vmatpush1.bf16.msra.mxu0 %v1073
      %2412 = vmatprep.subr.bf16.mxu0 0
      %2413 = vmatpush1.bf16.msra.mxu0 %v1074
      %2414 = vmatprep.subr.bf16.mxu0 0
      %2415 = vmatpush1.bf16.msra.mxu0 %v1075
      %2416 = vmatprep.subr.bf16.mxu0 0
      %2417 = vmatpush1.bf16.msra.mxu0 %v1076
      %2418 = vmatprep.subr.bf16.mxu0 0
      %2419 = vmatpush1.bf16.msra.mxu0 %v1077
      %2420 = vmatprep.subr.bf16.mxu0 0
      %2421 = vmatpush1.bf16.msra.mxu0 %v1078
      %2422 = vmatprep.subr.bf16.mxu0 0
      %2423 = vmatpush1.bf16.msra.mxu0 %v1079
      %2424 = vmatprep.subr.bf16.mxu0 0
      %2425 = vmatpush1.bf16.msra.mxu0 %v1080
      %2426 = vmatprep.subr.bf16.mxu0 0
      %2427 = vmatpush1.bf16.msra.mxu0 %v1081
      %2428 = vmatprep.subr.bf16.mxu0 0
      %2429 = vmatpush1.bf16.msra.mxu0 %v1082
      %2430 = vmatprep.subr.bf16.mxu0 0
      %2431 = vmatpush1.bf16.msra.mxu0 %v1083
      %2432 = vmatprep.subr.bf16.mxu0 0
      %2433 = vmatpush1.bf16.msra.mxu0 %v1084
      %2434 = vmatprep.mubr.bf16.mxu0 %v2307
      %2435 = vmatmul.mubr.bf16.gmra.mrb[0].mxu0 %v2306
      %v2436 = vpop.f32.mrb[0].mxu0
      %v2437 = vadd.f32 %v2020, %v2436
      %v2438 = vpop.f32.mrb[0].mxu0
      %v2439 = vpop.f32.mrb[0].mxu0
      %v2440 = vadd.f32 %v2023, %v2439
      %v2441 = vpop.f32.mrb[0].mxu0
      %2442 = vmatprep.mubr.bf16.mxu0 %v2310
      %2443 = vmatmul.mubr.bf16.gmra.mrb[0].mxu0 %v2309
      %v2444 = vpop.f32.mrb[0].mxu0
      %v2445 = vadd.f32 %v2028, %v2444
      %v2446 = vpop.f32.mrb[0].mxu0
      %v2447 = vpop.f32.mrb[0].mxu0
      %v2448 = vadd.f32 %v2031, %v2447
      %v2449 = vpop.f32.mrb[0].mxu0
      %2450 = vmatprep.mubr.bf16.mxu0 %v2313
      %2451 = vmatmul.mubr.bf16.gmra.mrb[0].mxu0 %v2312
      %v2452 = vpop.f32.mrb[0].mxu0
      %v2453 = vadd.f32 %v2036, %v2452
      %v2454 = vpop.f32.mrb[0].mxu0
      %v2455 = vpop.f32.mrb[0].mxu0
      %v2456 = vadd.f32 %v2039, %v2455
      %v2457 = vpop.f32.mrb[0].mxu0
      %2458 = vmatprep.mubr.bf16.mxu0 %v2316
      %2459 = vmatmul.mubr.bf16.gmra.mrb[0].mxu0 %v2315
      %v2460 = vpop.f32.mrb[0].mxu0
      %v2461 = vadd.f32 %v2044, %v2460
      %v2462 = vpop.f32.mrb[0].mxu0
      %v2463 = vpop.f32.mrb[0].mxu0
      %v2464 = vadd.f32 %v2047, %v2463
      %v2465 = vpop.f32.mrb[0].mxu0
      %2466 = vmatprep.mubr.bf16.mxu0 %v2319
      %2467 = vmatmul.mubr.bf16.gmra.mrb[0].mxu0 %v2318
      %v2468 = vpop.f32.mrb[0].mxu0
      %v2469 = vadd.f32 %v2052, %v2468
      %v2470 = vpop.f32.mrb[0].mxu0
      %v2471 = vpop.f32.mrb[0].mxu0
      %v2472 = vadd.f32 %v2055, %v2471
      %v2473 = vpop.f32.mrb[0].mxu0
      %2474 = vmatprep.mubr.bf16.mxu0 %v2322
      %2475 = vmatmul.mubr.bf16.gmra.mrb[0].mxu0 %v2321
      %v2476 = vpop.f32.mrb[0].mxu0
      %v2477 = vadd.f32 %v2060, %v2476
      %v2478 = vpop.f32.mrb[0].mxu0
      %v2479 = vpop.f32.mrb[0].mxu0
      %v2480 = vadd.f32 %v2063, %v2479
      %v2481 = vpop.f32.mrb[0].mxu0
      %2482 = vmatprep.mubr.bf16.mxu0 %v2325
      %2483 = vmatmul.mubr.bf16.gmra.mrb[0].mxu0 %v2324
      %v2484 = vpop.f32.mrb[0].mxu0
      %v2485 = vadd.f32 %v2068, %v2484
      %v2486 = vpop.f32.mrb[0].mxu0
      %v2487 = vpop.f32.mrb[0].mxu0
      %v2488 = vadd.f32 %v2071, %v2487
      %v2489 = vpop.f32.mrb[0].mxu0
      %2490 = vmatprep.mubr.bf16.mxu0 %v2328
      %2491 = vmatmul.mubr.bf16.gmra.mrb[0].mxu0 %v2327
      %v2492 = vpop.f32.mrb[0].mxu0
      %v2493 = vadd.f32 %v2076, %v2492
      %v2494 = vpop.f32.mrb[0].mxu0
      %v2495 = vpop.f32.mrb[0].mxu0
      %v2496 = vadd.f32 %v2079, %v2495
      %v2497 = vpop.f32.mrb[0].mxu0
      %2498 = vmatprep.mubr.bf16.mxu0 %v2331
      %2499 = vmatmul.mubr.bf16.gmra.mrb[0].mxu0 %v2330
      %v2500 = vpop.f32.mrb[0].mxu0
      %v2501 = vadd.f32 %v2084, %v2500
      %v2502 = vpop.f32.mrb[0].mxu0
      %v2503 = vpop.f32.mrb[0].mxu0
      %v2504 = vadd.f32 %v2087, %v2503
      %v2505 = vpop.f32.mrb[0].mxu0
      %2506 = vmatprep.mubr.bf16.mxu0 %v2334
      %2507 = vmatmul.mubr.bf16.gmra.mrb[0].mxu0 %v2333
      %v2508 = vpop.f32.mrb[0].mxu0
      %v2509 = vadd.f32 %v2092, %v2508
      %v2510 = vpop.f32.mrb[0].mxu0
      %v2511 = vpop.f32.mrb[0].mxu0
      %v2512 = vadd.f32 %v2095, %v2511
      %v2513 = vpop.f32.mrb[0].mxu0
      %2514 = vmatprep.mubr.bf16.mxu0 %v2337
      %2515 = vmatmul.mubr.bf16.gmra.mrb[0].mxu0 %v2336
      %v2516 = vpop.f32.mrb[0].mxu0
      %v2517 = vadd.f32 %v2100, %v2516
      %v2518 = vpop.f32.mrb[0].mxu0
      %v2519 = vpop.f32.mrb[0].mxu0
      %v2520 = vadd.f32 %v2103, %v2519
      %v2521 = vpop.f32.mrb[0].mxu0
      %2522 = vmatprep.mubr.bf16.mxu0 %v2340
      %2523 = vmatmul.mubr.bf16.gmra.mrb[0].mxu0 %v2339
      %v2524 = vpop.f32.mrb[0].mxu0
      %v2525 = vadd.f32 %v2108, %v2524
      %v2526 = vpop.f32.mrb[0].mxu0
      %v2527 = vpop.f32.mrb[0].mxu0
      %v2528 = vadd.f32 %v2111, %v2527
      %v2529 = vpop.f32.mrb[0].mxu0
      %2530 = vmatprep.mubr.bf16.mxu0 %v2343
      %2531 = vmatmul.mubr.bf16.gmra.mrb[0].mxu0 %v2342
      %v2532 = vpop.f32.mrb[0].mxu0
      %v2533 = vadd.f32 %v2116, %v2532
      %v2534 = vpop.f32.mrb[0].mxu0
      %v2535 = vpop.f32.mrb[0].mxu0
      %v2536 = vadd.f32 %v2119, %v2535
      %v2537 = vpop.f32.mrb[0].mxu0
      %2538 = vmatprep.mubr.bf16.mxu0 %v2346
      %2539 = vmatmul.mubr.bf16.gmra.mrb[0].mxu0 %v2345
      %v2540 = vpop.f32.mrb[0].mxu0
      %v2541 = vadd.f32 %v2124, %v2540
      %v2542 = vpop.f32.mrb[0].mxu0
      %v2543 = vpop.f32.mrb[0].mxu0
      %v2544 = vadd.f32 %v2127, %v2543
      %v2545 = vpop.f32.mrb[0].mxu0
      %2546 = vmatprep.mubr.bf16.mxu0 %v2349
      %2547 = vmatmul.mubr.bf16.gmra.mrb[0].mxu0 %v2348
      %v2548 = vpop.f32.mrb[0].mxu0
      %v2549 = vadd.f32 %v2132, %v2548
      %v2550 = vpop.f32.mrb[0].mxu0
      %v2551 = vpop.f32.mrb[0].mxu0
      %v2552 = vadd.f32 %v2135, %v2551
      %v2553 = vpop.f32.mrb[0].mxu0
      %2554 = vmatprep.mubr.bf16.mxu0 %v2352
      %2555 = vmatmul.mubr.bf16.gmra.mrb[0].mxu0 %v2351
      %v2556 = vpop.f32.mrb[0].mxu0
      %v2557 = vadd.f32 %v2140, %v2556
      %v2558 = vpop.f32.mrb[0].mxu0
      %v2559 = vpop.f32.mrb[0].mxu0
      %v2560 = vadd.f32 %v2143, %v2559
      %v2561 = vpop.f32.mrb[0].mxu0
      %2562 = vdwg.mxu0
      %2563 = vmatprep.subr.bf16.mxu0 0
      %2564 = vmatpush1.bf16.msra.mxu0 %v1085
      %2565 = vmatprep.subr.bf16.mxu0 0
      %2566 = vmatpush1.bf16.msra.mxu0 %v1086
      %2567 = vmatprep.subr.bf16.mxu0 0
      %2568 = vmatpush1.bf16.msra.mxu0 %v1087
      %2569 = vmatprep.subr.bf16.mxu0 0
      %2570 = vmatpush1.bf16.msra.mxu0 %v1088
      %2571 = vmatprep.subr.bf16.mxu0 0
      %2572 = vmatpush1.bf16.msra.mxu0 %v1089
      %2573 = vmatprep.subr.bf16.mxu0 0
      %2574 = vmatpush1.bf16.msra.mxu0 %v1090
      %2575 = vmatprep.subr.bf16.mxu0 0
      %2576 = vmatpush1.bf16.msra.mxu0 %v1091
      %2577 = vmatprep.subr.bf16.mxu0 0
      %2578 = vmatpush1.bf16.msra.mxu0 %v1092
      %2579 = vmatprep.subr.bf16.mxu0 0
      %2580 = vmatpush1.bf16.msra.mxu0 0
      %2581 = vmatprep.subr.bf16.mxu0 0
      %2582 = vmatpush1.bf16.msra.mxu0 0
      %2583 = vmatprep.subr.bf16.mxu0 0
      %2584 = vmatpush1.bf16.msra.mxu0 0
      %2585 = vmatprep.subr.bf16.mxu0 0
      %2586 = vmatpush1.bf16.msra.mxu0 0
      %2587 = vmatprep.subr.bf16.mxu0 0
      %2588 = vmatpush1.bf16.msra.mxu0 0
      %2589 = vmatprep.subr.bf16.mxu0 0
      %2590 = vmatpush1.bf16.msra.mxu0 0
      %2591 = vmatprep.subr.bf16.mxu0 0
      %2592 = vmatpush1.bf16.msra.mxu0 0
      %2593 = vmatprep.subr.bf16.mxu0 0
      %2594 = vmatpush1.bf16.msra.mxu0 0
      %2595 = vmatprep.mubr.bf16.mxu0 0
      %2596 = vmatmul.mubr.bf16.gmra.mrb[0].mxu0 %v2308
      %v2597 = vpop.f32.mrb[0].mxu0
      %v2598 = vadd.f32 %v2437, %v2597
      %v2599 = vpop.f32.mrb[0].mxu0
      %v2600 = vpop.f32.mrb[0].mxu0
      %v2601 = vadd.f32 %v2440, %v2600
      %v2602 = vpop.f32.mrb[0].mxu0
      %2603 = vmatprep.mubr.bf16.mxu0 0
      %2604 = vmatmul.mubr.bf16.gmra.mrb[0].mxu0 %v2311
      %v2605 = vpop.f32.mrb[0].mxu0
      %v2606 = vadd.f32 %v2445, %v2605
      %v2607 = vpop.f32.mrb[0].mxu0
      %v2608 = vpop.f32.mrb[0].mxu0
      %v2609 = vadd.f32 %v2448, %v2608
      %v2610 = vpop.f32.mrb[0].mxu0
      %2611 = vmatprep.mubr.bf16.mxu0 0
      %2612 = vmatmul.mubr.bf16.gmra.mrb[0].mxu0 %v2314
      %v2613 = vpop.f32.mrb[0].mxu0
      %v2614 = vadd.f32 %v2453, %v2613
      %v2615 = vpop.f32.mrb[0].mxu0
      %v2616 = vpop.f32.mrb[0].mxu0
      %v2617 = vadd.f32 %v2456, %v2616
      %v2618 = vpop.f32.mrb[0].mxu0
      %2619 = vmatprep.mubr.bf16.mxu0 0
      %2620 = vmatmul.mubr.bf16.gmra.mrb[0].mxu0 %v2317
      %v2621 = vpop.f32.mrb[0].mxu0
      %v2622 = vadd.f32 %v2461, %v2621
      %v2623 = vpop.f32.mrb[0].mxu0
      %v2624 = vpop.f32.mrb[0].mxu0
      %v2625 = vadd.f32 %v2464, %v2624
      %v2626 = vpop.f32.mrb[0].mxu0
      %2627 = vmatprep.mubr.bf16.mxu0 0
      %2628 = vmatmul.mubr.bf16.gmra.mrb[0].mxu0 %v2320
      %v2629 = vpop.f32.mrb[0].mxu0
      %v2630 = vadd.f32 %v2469, %v2629
      %v2631 = vpop.f32.mrb[0].mxu0
      %v2632 = vpop.f32.mrb[0].mxu0
      %v2633 = vadd.f32 %v2472, %v2632
      %v2634 = vpop.f32.mrb[0].mxu0
      %2635 = vmatprep.mubr.bf16.mxu0 0
      %2636 = vmatmul.mubr.bf16.gmra.mrb[0].mxu0 %v2323
      %v2637 = vpop.f32.mrb[0].mxu0
      %v2638 = vadd.f32 %v2477, %v2637
      %v2639 = vpop.f32.mrb[0].mxu0
      %v2640 = vpop.f32.mrb[0].mxu0
      %v2641 = vadd.f32 %v2480, %v2640
      %v2642 = vpop.f32.mrb[0].mxu0
      %2643 = vmatprep.mubr.bf16.mxu0 0
      %2644 = vmatmul.mubr.bf16.gmra.mrb[0].mxu0 %v2326
      %v2645 = vpop.f32.mrb[0].mxu0
      %v2646 = vadd.f32 %v2485, %v2645
      %v2647 = vpop.f32.mrb[0].mxu0
      %v2648 = vpop.f32.mrb[0].mxu0
      %v2649 = vadd.f32 %v2488, %v2648
      %v2650 = vpop.f32.mrb[0].mxu0
      %2651 = vmatprep.mubr.bf16.mxu0 0
      %2652 = vmatmul.mubr.bf16.gmra.mrb[0].mxu0 %v2329
      %v2653 = vpop.f32.mrb[0].mxu0
      %v2654 = vadd.f32 %v2493, %v2653
      %v2655 = vpop.f32.mrb[0].mxu0
      %v2656 = vpop.f32.mrb[0].mxu0
      %v2657 = vadd.f32 %v2496, %v2656
      %v2658 = vpop.f32.mrb[0].mxu0
      %2659 = vmatprep.mubr.bf16.mxu0 0
      %2660 = vmatmul.mubr.bf16.gmra.mrb[0].mxu0 %v2332
      %v2661 = vpop.f32.mrb[0].mxu0
      %v2662 = vadd.f32 %v2501, %v2661
      %v2663 = vpop.f32.mrb[0].mxu0
      %v2664 = vpop.f32.mrb[0].mxu0
      %v2665 = vadd.f32 %v2504, %v2664
      %v2666 = vpop.f32.mrb[0].mxu0
      %2667 = vmatprep.mubr.bf16.mxu0 0
      %2668 = vmatmul.mubr.bf16.gmra.mrb[0].mxu0 %v2335
      %v2669 = vpop.f32.mrb[0].mxu0
      %v2670 = vadd.f32 %v2509, %v2669
      %v2671 = vpop.f32.mrb[0].mxu0
      %v2672 = vpop.f32.mrb[0].mxu0
      %v2673 = vadd.f32 %v2512, %v2672
      %v2674 = vpop.f32.mrb[0].mxu0
      %2675 = vmatprep.mubr.bf16.mxu0 0
      %2676 = vmatmul.mubr.bf16.gmra.mrb[0].mxu0 %v2338
      %v2677 = vpop.f32.mrb[0].mxu0
      %v2678 = vadd.f32 %v2517, %v2677
      %v2679 = vpop.f32.mrb[0].mxu0
      %v2680 = vpop.f32.mrb[0].mxu0
      %v2681 = vadd.f32 %v2520, %v2680
      %v2682 = vpop.f32.mrb[0].mxu0
      %2683 = vmatprep.mubr.bf16.mxu0 0
      %2684 = vmatmul.mubr.bf16.gmra.mrb[0].mxu0 %v2341
      %v2685 = vpop.f32.mrb[0].mxu0
      %v2686 = vadd.f32 %v2525, %v2685
      %v2687 = vpop.f32.mrb[0].mxu0
      %v2688 = vpop.f32.mrb[0].mxu0
      %v2689 = vadd.f32 %v2528, %v2688
      %v2690 = vpop.f32.mrb[0].mxu0
      %2691 = vmatprep.mubr.bf16.mxu0 0
      %2692 = vmatmul.mubr.bf16.gmra.mrb[0].mxu0 %v2344
      %v2693 = vpop.f32.mrb[0].mxu0
      %v2694 = vadd.f32 %v2533, %v2693
      %v2695 = vpop.f32.mrb[0].mxu0
      %v2696 = vpop.f32.mrb[0].mxu0
      %v2697 = vadd.f32 %v2536, %v2696
      %v2698 = vpop.f32.mrb[0].mxu0
      %2699 = vmatprep.mubr.bf16.mxu0 0
      %2700 = vmatmul.mubr.bf16.gmra.mrb[0].mxu0 %v2347
      %v2701 = vpop.f32.mrb[0].mxu0
      %v2702 = vadd.f32 %v2541, %v2701
      %v2703 = vpop.f32.mrb[0].mxu0
      %v2704 = vpop.f32.mrb[0].mxu0
      %v2705 = vadd.f32 %v2544, %v2704
      %v2706 = vpop.f32.mrb[0].mxu0
      %2707 = vmatprep.mubr.bf16.mxu0 0
      %2708 = vmatmul.mubr.bf16.gmra.mrb[0].mxu0 %v2350
      %v2709 = vpop.f32.mrb[0].mxu0
      %v2710 = vadd.f32 %v2549, %v2709
      %v2711 = vpop.f32.mrb[0].mxu0
      %v2712 = vpop.f32.mrb[0].mxu0
      %v2713 = vadd.f32 %v2552, %v2712
      %v2714 = vpop.f32.mrb[0].mxu0
      %2715 = vmatprep.mubr.bf16.mxu0 0
      %2716 = vmatmul.mubr.bf16.gmra.mrb[0].mxu0 %v2353
      %v2717 = vpop.f32.mrb[0].mxu0
      %v2718 = vadd.f32 %v2557, %v2717
      %v2719 = vpop.f32.mrb[0].mxu0
      %v2720 = vpop.f32.mrb[0].mxu0
      %v2721 = vadd.f32 %v2560, %v2720
      %v2722 = vpop.f32.mrb[0].mxu0
      %2723 = vdwg.mxu0
      %s2724 = scalar_lea.vmem %s2, 192
      %v2725 = vld [vmem:[%s2724] sm:$0xf]
      %v2726 = vld [vmem:[%s2724 + $0x4] sm:$0xf]
      %v2727 = vld [vmem:[%s2724 + $0x8] sm:$0xf]
      %v2728 = vld [vmem:[%s2724 + $0xc] sm:$0xf]
      %v2729 = vld [vmem:[%s2724 + $0x10] sm:$0xf]
      %v2730 = vld [vmem:[%s2724 + $0x14] sm:$0xf]
      %v2731 = vld [vmem:[%s2724 + $0x18] sm:$0xf]
      %v2732 = vld [vmem:[%s2724 + $0x1c] sm:$0xf]
      %v2733 = vld [vmem:[%s2724 + $0x20] sm:$0xf]
      %v2734 = vld [vmem:[%s2724 + $0x24] sm:$0xf]
      %v2735 = vld [vmem:[%s2724 + $0x28] sm:$0xf]
      %v2736 = vld [vmem:[%s2724 + $0x2c] sm:$0xf]
      %v2737 = vld [vmem:[%s2724 + $0x30] sm:$0xf]
      %v2738 = vld [vmem:[%s2724 + $0x34] sm:$0xf]
      %v2739 = vld [vmem:[%s2724 + $0x38] sm:$0xf]
      %v2740 = vld [vmem:[%s2724 + $0x3c] sm:$0xf]
      %v2741 = vld [vmem:[%s2724 + $0x40] sm:$0xf]
      %v2742 = vld [vmem:[%s2724 + $0x44] sm:$0xf]
      %v2743 = vld [vmem:[%s2724 + $0x48] sm:$0xf]
      %v2744 = vld [vmem:[%s2724 + $0x4c] sm:$0xf]
      %v2745 = vld [vmem:[%s2724 + $0x50] sm:$0xf]
      %v2746 = vld [vmem:[%s2724 + $0x54] sm:$0xf]
      %v2747 = vld [vmem:[%s2724 + $0x58] sm:$0xf]
      %v2748 = vld [vmem:[%s2724 + $0x5c] sm:$0xf]
      %v2773 = vunpack.c.l.b16 %v2725
      %v2774 = vunpack.c.l.b16 %v2726
      %v2775 = vunpack.c.l.b16 %v2727
      %v2776 = vunpack.c.l.b16 %v2728
      %v2777 = vunpack.c.l.b16 %v2729
      %v2778 = vunpack.c.l.b16 %v2730
      %v2779 = vunpack.c.l.b16 %v2731
      %v2780 = vunpack.c.l.b16 %v2732
      %v2781 = vunpack.c.l.b16 %v2733
      %v2782 = vunpack.c.l.b16 %v2734
      %v2783 = vunpack.c.l.b16 %v2735
      %v2784 = vunpack.c.l.b16 %v2736
      %v2785 = vunpack.c.l.b16 %v2737
      %v2786 = vunpack.c.l.b16 %v2738
      %v2787 = vunpack.c.l.b16 %v2739
      %v2788 = vunpack.c.l.b16 %v2740
      %v2789 = vunpack.c.l.b16 %v2741
      %v2790 = vunpack.c.l.b16 %v2742
      %v2791 = vunpack.c.l.b16 %v2743
      %v2792 = vunpack.c.l.b16 %v2744
      %v2793 = vunpack.c.l.b16 %v2745
      %v2794 = vunpack.c.l.b16 %v2746
      %v2795 = vunpack.c.l.b16 %v2747
      %v2796 = vunpack.c.l.b16 %v2748
      %v2797 = vpack.c.b16 %v2774, %v2773
      %v2798 = vpack.c.b16 %v2776, %v2775
      %v2799 = vpack.c.b16 %v2778, %v2777
      %v2800 = vpack.c.b16 %v2780, %v2779
      %v2801 = vpack.c.b16 %v2782, %v2781
      %v2802 = vpack.c.b16 %v2784, %v2783
      %v2803 = vpack.c.b16 %v2786, %v2785
      %v2804 = vpack.c.b16 %v2788, %v2787
      %v2805 = vpack.c.b16 %v2790, %v2789
      %v2806 = vpack.c.b16 %v2792, %v2791
      %v2807 = vpack.c.b16 %v2794, %v2793
      %v2808 = vpack.c.b16 %v2796, %v2795
      %2821 = vmatprep.subr.bf16.mxu0 0
      %2822 = vmatpush1.bf16.msra.mxu0 %v2797
      %2823 = vmatprep.subr.bf16.mxu0 0
      %2824 = vmatpush1.bf16.msra.mxu0 %v2798
      %2825 = vmatprep.subr.bf16.mxu0 0
      %2826 = vmatpush1.bf16.msra.mxu0 %v2799
      %2827 = vmatprep.subr.bf16.mxu0 0
      %2828 = vmatpush1.bf16.msra.mxu0 %v2800
      %2829 = vmatprep.subr.bf16.mxu0 0
      %2830 = vmatpush1.bf16.msra.mxu0 %v2801
      %2831 = vmatprep.subr.bf16.mxu0 0
      %2832 = vmatpush1.bf16.msra.mxu0 %v2802
      %2833 = vmatprep.subr.bf16.mxu0 0
      %2834 = vmatpush1.bf16.msra.mxu0 %v2803
      %2835 = vmatprep.subr.bf16.mxu0 0
      %2836 = vmatpush1.bf16.msra.mxu0 %v2804
      %2837 = vmatprep.subr.bf16.mxu0 0
      %2838 = vmatpush1.bf16.msra.mxu0 %v2805
      %2839 = vmatprep.subr.bf16.mxu0 0
      %2840 = vmatpush1.bf16.msra.mxu0 %v2806
      %2841 = vmatprep.subr.bf16.mxu0 0
      %2842 = vmatpush1.bf16.msra.mxu0 %v2807
      %2843 = vmatprep.subr.bf16.mxu0 0
      %2844 = vmatpush1.bf16.msra.mxu0 %v2808
      %2845 = vmatprep.subr.bf16.mxu0 0
      %2846 = vmatpush1.bf16.msra.mxu0 0
      %2847 = vmatprep.subr.bf16.mxu0 0
      %2848 = vmatpush1.bf16.msra.mxu0 0
      %2849 = vmatprep.subr.bf16.mxu0 0
      %2850 = vmatpush1.bf16.msra.mxu0 0
      %2851 = vmatprep.subr.bf16.mxu0 0
      %2852 = vmatpush1.bf16.msra.mxu0 0
      %2853 = vmatprep.mubr.bf16.mxu0 %v773
      %2854 = vmatmul.mubr.bf16.gmra.mrb[0].mxu0 %v627
      %v2855 = vpop.f32.mrb[0].mxu0
      %v2856 = vadd.f32 0.0, %v2855
      %v2857 = vpop.f32.mrb[0].mxu0
      %v2858 = vpop.f32.mrb[0].mxu0
      %v2859 = vadd.f32 0.0, %v2858
      %v2860 = vpop.f32.mrb[0].mxu0
      %2861 = vmatprep.mubr.bf16.mxu0 %v776
      %2862 = vmatmul.mubr.bf16.gmra.mrb[0].mxu0 %v629
      %v2863 = vpop.f32.mrb[0].mxu0
      %v2864 = vadd.f32 0.0, %v2863
      %v2865 = vpop.f32.mrb[0].mxu0
      %v2866 = vpop.f32.mrb[0].mxu0
      %v2867 = vadd.f32 0.0, %v2866
      %v2868 = vpop.f32.mrb[0].mxu0
      %2869 = vmatprep.mubr.bf16.mxu0 %v779
      %2870 = vmatmul.mubr.bf16.gmra.mrb[0].mxu0 %v631
      %v2871 = vpop.f32.mrb[0].mxu0
      %v2872 = vadd.f32 0.0, %v2871
      %v2873 = vpop.f32.mrb[0].mxu0
      %v2874 = vpop.f32.mrb[0].mxu0
      %v2875 = vadd.f32 0.0, %v2874
      %v2876 = vpop.f32.mrb[0].mxu0
      %2877 = vmatprep.mubr.bf16.mxu0 %v782
      %2878 = vmatmul.mubr.bf16.gmra.mrb[0].mxu0 %v633
      %v2879 = vpop.f32.mrb[0].mxu0
      %v2880 = vadd.f32 0.0, %v2879
      %v2881 = vpop.f32.mrb[0].mxu0
      %v2882 = vpop.f32.mrb[0].mxu0
      %v2883 = vadd.f32 0.0, %v2882
      %v2884 = vpop.f32.mrb[0].mxu0
      %2885 = vmatprep.mubr.bf16.mxu0 %v785
      %2886 = vmatmul.mubr.bf16.gmra.mrb[0].mxu0 %v635
      %v2887 = vpop.f32.mrb[0].mxu0
      %v2888 = vadd.f32 0.0, %v2887
      %v2889 = vpop.f32.mrb[0].mxu0
      %v2890 = vpop.f32.mrb[0].mxu0
      %v2891 = vadd.f32 0.0, %v2890
      %v2892 = vpop.f32.mrb[0].mxu0
      %2893 = vmatprep.mubr.bf16.mxu0 %v788
      %2894 = vmatmul.mubr.bf16.gmra.mrb[0].mxu0 %v637
      %v2895 = vpop.f32.mrb[0].mxu0
      %v2896 = vadd.f32 0.0, %v2895
      %v2897 = vpop.f32.mrb[0].mxu0
      %v2898 = vpop.f32.mrb[0].mxu0
      %v2899 = vadd.f32 0.0, %v2898
      %v2900 = vpop.f32.mrb[0].mxu0
      %2901 = vmatprep.mubr.bf16.mxu0 %v791
      %2902 = vmatmul.mubr.bf16.gmra.mrb[0].mxu0 %v639
      %v2903 = vpop.f32.mrb[0].mxu0
      %v2904 = vadd.f32 0.0, %v2903
      %v2905 = vpop.f32.mrb[0].mxu0
      %v2906 = vpop.f32.mrb[0].mxu0
      %v2907 = vadd.f32 0.0, %v2906
      %v2908 = vpop.f32.mrb[0].mxu0
      %2909 = vmatprep.mubr.bf16.mxu0 %v794
      %2910 = vmatmul.mubr.bf16.gmra.mrb[0].mxu0 %v641
      %v2911 = vpop.f32.mrb[0].mxu0
      %v2912 = vadd.f32 0.0, %v2911
      %v2913 = vpop.f32.mrb[0].mxu0
      %v2914 = vpop.f32.mrb[0].mxu0
      %v2915 = vadd.f32 0.0, %v2914
      %v2916 = vpop.f32.mrb[0].mxu0
      %2917 = vmatprep.mubr.bf16.mxu0 %v797
      %2918 = vmatmul.mubr.bf16.gmra.mrb[0].mxu0 %v643
      %v2919 = vpop.f32.mrb[0].mxu0
      %v2920 = vadd.f32 0.0, %v2919
      %v2921 = vpop.f32.mrb[0].mxu0
      %v2922 = vpop.f32.mrb[0].mxu0
      %v2923 = vadd.f32 0.0, %v2922
      %v2924 = vpop.f32.mrb[0].mxu0
      %2925 = vmatprep.mubr.bf16.mxu0 %v800
      %2926 = vmatmul.mubr.bf16.gmra.mrb[0].mxu0 %v645
      %v2927 = vpop.f32.mrb[0].mxu0
      %v2928 = vadd.f32 0.0, %v2927
      %v2929 = vpop.f32.mrb[0].mxu0
      %v2930 = vpop.f32.mrb[0].mxu0
      %v2931 = vadd.f32 0.0, %v2930
      %v2932 = vpop.f32.mrb[0].mxu0
      %2933 = vmatprep.mubr.bf16.mxu0 %v803
      %2934 = vmatmul.mubr.bf16.gmra.mrb[0].mxu0 %v647
      %v2935 = vpop.f32.mrb[0].mxu0
      %v2936 = vadd.f32 0.0, %v2935
      %v2937 = vpop.f32.mrb[0].mxu0
      %v2938 = vpop.f32.mrb[0].mxu0
      %v2939 = vadd.f32 0.0, %v2938
      %v2940 = vpop.f32.mrb[0].mxu0
      %2941 = vmatprep.mubr.bf16.mxu0 %v806
      %2942 = vmatmul.mubr.bf16.gmra.mrb[0].mxu0 %v649
      %v2943 = vpop.f32.mrb[0].mxu0
      %v2944 = vadd.f32 0.0, %v2943
      %v2945 = vpop.f32.mrb[0].mxu0
      %v2946 = vpop.f32.mrb[0].mxu0
      %v2947 = vadd.f32 0.0, %v2946
      %v2948 = vpop.f32.mrb[0].mxu0
      %2949 = vmatprep.mubr.bf16.mxu0 %v809
      %2950 = vmatmul.mubr.bf16.gmra.mrb[0].mxu0 %v651
      %v2951 = vpop.f32.mrb[0].mxu0
      %v2952 = vadd.f32 0.0, %v2951
      %v2953 = vpop.f32.mrb[0].mxu0
      %v2954 = vpop.f32.mrb[0].mxu0
      %v2955 = vadd.f32 0.0, %v2954
      %v2956 = vpop.f32.mrb[0].mxu0
      %2957 = vmatprep.mubr.bf16.mxu0 %v812
      %2958 = vmatmul.mubr.bf16.gmra.mrb[0].mxu0 %v653
      %v2959 = vpop.f32.mrb[0].mxu0
      %v2960 = vadd.f32 0.0, %v2959
      %v2961 = vpop.f32.mrb[0].mxu0
      %v2962 = vpop.f32.mrb[0].mxu0
      %v2963 = vadd.f32 0.0, %v2962
      %v2964 = vpop.f32.mrb[0].mxu0
      %2965 = vmatprep.mubr.bf16.mxu0 %v815
      %2966 = vmatmul.mubr.bf16.gmra.mrb[0].mxu0 %v655
      %v2967 = vpop.f32.mrb[0].mxu0
      %v2968 = vadd.f32 0.0, %v2967
      %v2969 = vpop.f32.mrb[0].mxu0
      %v2970 = vpop.f32.mrb[0].mxu0
      %v2971 = vadd.f32 0.0, %v2970
      %v2972 = vpop.f32.mrb[0].mxu0
      %2973 = vmatprep.mubr.bf16.mxu0 %v818
      %2974 = vmatmul.mubr.bf16.gmra.mrb[0].mxu0 %v657
      %v2975 = vpop.f32.mrb[0].mxu0
      %v2976 = vadd.f32 0.0, %v2975
      %v2977 = vpop.f32.mrb[0].mxu0
      %v2978 = vpop.f32.mrb[0].mxu0
      %v2979 = vadd.f32 0.0, %v2978
      %v2980 = vpop.f32.mrb[0].mxu0
      %2981 = vmatprep.mubr.bf16.mxu0 %v821
      %2982 = vmatmul.mubr.bf16.gmra.mrb[0].mxu0 %v659
      %v2983 = vpop.f32.mrb[0].mxu0
      %v2984 = vadd.f32 0.0, %v2983
      %v2985 = vpop.f32.mrb[0].mxu0
      %v2986 = vpop.f32.mrb[0].mxu0
      %v2987 = vadd.f32 0.0, %v2986
      %v2988 = vpop.f32.mrb[0].mxu0
      %2989 = vmatprep.mubr.bf16.mxu0 %v824
      %2990 = vmatmul.mubr.bf16.gmra.mrb[0].mxu0 %v661
      %v2991 = vpop.f32.mrb[0].mxu0
      %v2992 = vadd.f32 0.0, %v2991
      %v2993 = vpop.f32.mrb[0].mxu0
      %v2994 = vpop.f32.mrb[0].mxu0
      %v2995 = vadd.f32 0.0, %v2994
      %v2996 = vpop.f32.mrb[0].mxu0
      %2997 = vmatprep.mubr.bf16.mxu0 %v827
      %2998 = vmatmul.mubr.bf16.gmra.mrb[0].mxu0 %v663
      %v2999 = vpop.f32.mrb[0].mxu0
      %v3000 = vadd.f32 0.0, %v2999
      %v3001 = vpop.f32.mrb[0].mxu0
      %v3002 = vpop.f32.mrb[0].mxu0
      %v3003 = vadd.f32 0.0, %v3002
      %v3004 = vpop.f32.mrb[0].mxu0
      %3005 = vmatprep.mubr.bf16.mxu0 %v830
      %3006 = vmatmul.mubr.bf16.gmra.mrb[0].mxu0 %v665
      %v3007 = vpop.f32.mrb[0].mxu0
      %v3008 = vadd.f32 0.0, %v3007
      %v3009 = vpop.f32.mrb[0].mxu0
      %v3010 = vpop.f32.mrb[0].mxu0
      %v3011 = vadd.f32 0.0, %v3010
      %v3012 = vpop.f32.mrb[0].mxu0
      %3013 = vmatprep.mubr.bf16.mxu0 %v833
      %3014 = vmatmul.mubr.bf16.gmra.mrb[0].mxu0 %v667
      %v3015 = vpop.f32.mrb[0].mxu0
      %v3016 = vadd.f32 0.0, %v3015
      %v3017 = vpop.f32.mrb[0].mxu0
      %v3018 = vpop.f32.mrb[0].mxu0
      %v3019 = vadd.f32 0.0, %v3018
      %v3020 = vpop.f32.mrb[0].mxu0
      %3021 = vmatprep.mubr.bf16.mxu0 %v836
      %3022 = vmatmul.mubr.bf16.gmra.mrb[0].mxu0 %v669
      %v3023 = vpop.f32.mrb[0].mxu0
      %v3024 = vadd.f32 0.0, %v3023
      %v3025 = vpop.f32.mrb[0].mxu0
      %v3026 = vpop.f32.mrb[0].mxu0
      %v3027 = vadd.f32 0.0, %v3026
      %v3028 = vpop.f32.mrb[0].mxu0
      %3029 = vmatprep.mubr.bf16.mxu0 %v839
      %3030 = vmatmul.mubr.bf16.gmra.mrb[0].mxu0 %v671
      %v3031 = vpop.f32.mrb[0].mxu0
      %v3032 = vadd.f32 0.0, %v3031
      %v3033 = vpop.f32.mrb[0].mxu0
      %v3034 = vpop.f32.mrb[0].mxu0
      %v3035 = vadd.f32 0.0, %v3034
      %v3036 = vpop.f32.mrb[0].mxu0
      %3037 = vmatprep.mubr.bf16.mxu0 %v842
      %3038 = vmatmul.mubr.bf16.gmra.mrb[0].mxu0 %v673
      %v3039 = vpop.f32.mrb[0].mxu0
      %v3040 = vadd.f32 0.0, %v3039
      %v3041 = vpop.f32.mrb[0].mxu0
      %v3042 = vpop.f32.mrb[0].mxu0
      %v3043 = vadd.f32 0.0, %v3042
      %v3044 = vpop.f32.mrb[0].mxu0
      %3045 = vdwg.mxu0
      %v3046 = vpack.c.bf16 %v2859, %v2856
      %v3047 = vpack.c.bf16 %v2867, %v2864
      %v3048 = vpack.c.bf16 %v2875, %v2872
      %v3049 = vpack.c.bf16 %v2883, %v2880
      %v3050 = vpack.c.bf16 %v2891, %v2888
      %v3051 = vpack.c.bf16 %v2899, %v2896
      %v3052 = vpack.c.bf16 %v2907, %v2904
      %v3053 = vpack.c.bf16 %v2915, %v2912
      %v3054 = vpack.c.bf16 %v2923, %v2920
      %v3055 = vpack.c.bf16 %v2931, %v2928
      %v3056 = vpack.c.bf16 %v2939, %v2936
      %v3057 = vpack.c.bf16 %v2947, %v2944
      %v3058 = vpack.c.bf16 %v2955, %v2952
      %v3059 = vpack.c.bf16 %v2963, %v2960
      %v3060 = vpack.c.bf16 %v2971, %v2968
      %v3061 = vpack.c.bf16 %v2979, %v2976
      %v3062 = vpack.c.bf16 %v2987, %v2984
      %v3063 = vpack.c.bf16 %v2995, %v2992
      %v3064 = vpack.c.bf16 %v3003, %v3000
      %v3065 = vpack.c.bf16 %v3011, %v3008
      %v3066 = vpack.c.bf16 %v3019, %v3016
      %v3067 = vpack.c.bf16 %v3027, %v3024
      %v3068 = vpack.c.bf16 %v3035, %v3032
      %v3069 = vpack.c.bf16 %v3043, %v3040
      %s3070 = scalar_lea.vmem %s1, 768
      %v3071 = vld [vmem:[%s3070] sm:$0xff]
      %v3072 = vld [vmem:[%s3070 + $0x8] sm:$0xf]
      %v3073 = vld [vmem:[%s3070 + $0xc] sm:$0xff]
      %v3074 = vld [vmem:[%s3070 + $0x14] sm:$0xf]
      %v3075 = vld [vmem:[%s3070 + $0x18] sm:$0xff]
      %v3076 = vld [vmem:[%s3070 + $0x20] sm:$0xf]
      %v3077 = vld [vmem:[%s3070 + $0x24] sm:$0xff]
      %v3078 = vld [vmem:[%s3070 + $0x2c] sm:$0xf]
      %v3079 = vld [vmem:[%s3070 + $0x30] sm:$0xff]
      %v3080 = vld [vmem:[%s3070 + $0x38] sm:$0xf]
      %v3081 = vld [vmem:[%s3070 + $0x3c] sm:$0xff]
      %v3082 = vld [vmem:[%s3070 + $0x44] sm:$0xf]
      %v3083 = vld [vmem:[%s3070 + $0x48] sm:$0xff]
      %v3084 = vld [vmem:[%s3070 + $0x50] sm:$0xf]
      %v3085 = vld [vmem:[%s3070 + $0x54] sm:$0xff]
      %v3086 = vld [vmem:[%s3070 + $0x5c] sm:$0xf]
      %v3087 = vld [vmem:[%s3070 + $0x60] sm:$0xff]
      %v3088 = vld [vmem:[%s3070 + $0x68] sm:$0xf]
      %v3089 = vld [vmem:[%s3070 + $0x6c] sm:$0xff]
      %v3090 = vld [vmem:[%s3070 + $0x74] sm:$0xf]
      %v3091 = vld [vmem:[%s3070 + $0x78] sm:$0xff]
      %v3092 = vld [vmem:[%s3070 + $0x80] sm:$0xf]
      %v3093 = vld [vmem:[%s3070 + $0x84] sm:$0xff]
      %v3094 = vld [vmem:[%s3070 + $0x8c] sm:$0xf]
      %v3095 = vld [vmem:[%s3070 + $0x90] sm:$0xff]
      %v3096 = vld [vmem:[%s3070 + $0x98] sm:$0xf]
      %v3097 = vld [vmem:[%s3070 + $0x9c] sm:$0xff]
      %v3098 = vld [vmem:[%s3070 + $0xa4] sm:$0xf]
      %v3099 = vld [vmem:[%s3070 + $0xa8] sm:$0xff]
      %v3100 = vld [vmem:[%s3070 + $0xb0] sm:$0xf]
      %v3101 = vld [vmem:[%s3070 + $0xb4] sm:$0xff]
      %v3102 = vld [vmem:[%s3070 + $0xbc] sm:$0xf]
      %v3103 = vld [vmem:[%s3070 + $0xc0] sm:$0xff]
      %v3104 = vld [vmem:[%s3070 + $0xc8] sm:$0xf]
      %v3105 = vld [vmem:[%s3070 + $0xcc] sm:$0xff]
      %v3106 = vld [vmem:[%s3070 + $0xd4] sm:$0xf]
      %v3107 = vld [vmem:[%s3070 + $0xd8] sm:$0xff]
      %v3108 = vld [vmem:[%s3070 + $0xe0] sm:$0xf]
      %v3109 = vld [vmem:[%s3070 + $0xe4] sm:$0xff]
      %v3110 = vld [vmem:[%s3070 + $0xec] sm:$0xf]
      %v3111 = vld [vmem:[%s3070 + $0xf0] sm:$0xff]
      %v3112 = vld [vmem:[%s3070 + $0xf8] sm:$0xf]
      %v3113 = vld [vmem:[%s3070 + $0xfc] sm:$0xff]
      %v3114 = vld [vmem:[%s3070 + $0x104] sm:$0xf]
      %v3115 = vld [vmem:[%s3070 + $0x108] sm:$0xff]
      %v3116 = vld [vmem:[%s3070 + $0x110] sm:$0xf]
      %v3117 = vld [vmem:[%s3070 + $0x114] sm:$0xff]
      %v3118 = vld [vmem:[%s3070 + $0x11c] sm:$0xf]
      %v3119 = vld [vmem:[%s3070 + $0x120] sm:$0xff]
      %v3120 = vld [vmem:[%s3070 + $0x128] sm:$0xf]
      %v3121 = vld [vmem:[%s3070 + $0x12c] sm:$0xff]
      %v3122 = vld [vmem:[%s3070 + $0x134] sm:$0xf]
      %v3123 = vld [vmem:[%s3070 + $0x138] sm:$0xff]
      %v3124 = vld [vmem:[%s3070 + $0x140] sm:$0xf]
      %v3125 = vld [vmem:[%s3070 + $0x144] sm:$0xff]
      %v3126 = vld [vmem:[%s3070 + $0x14c] sm:$0xf]
      %v3127 = vld [vmem:[%s3070 + $0x150] sm:$0xff]
      %v3128 = vld [vmem:[%s3070 + $0x158] sm:$0xf]
      %v3129 = vld [vmem:[%s3070 + $0x15c] sm:$0xff]
      %v3130 = vld [vmem:[%s3070 + $0x164] sm:$0xf]
      %v3131 = vld [vmem:[%s3070 + $0x168] sm:$0xff]
      %v3132 = vld [vmem:[%s3070 + $0x170] sm:$0xf]
      %v3133 = vld [vmem:[%s3070 + $0x174] sm:$0xff]
      %v3134 = vld [vmem:[%s3070 + $0x17c] sm:$0xf]
      %v3199 = vunpack.c.l.b16 %v3071
      %v3200 = vunpack.c.h.b16 %v3071
      %v3201 = vunpack.c.l.b16 %v3072
      %v3202 = vunpack.c.l.b16 %v3073
      %v3203 = vunpack.c.h.b16 %v3073
      %v3204 = vunpack.c.l.b16 %v3074
      %v3205 = vunpack.c.l.b16 %v3075
      %v3206 = vunpack.c.h.b16 %v3075
      %v3207 = vunpack.c.l.b16 %v3076
      %v3208 = vunpack.c.l.b16 %v3077
      %v3209 = vunpack.c.h.b16 %v3077
      %v3210 = vunpack.c.l.b16 %v3078
      %v3211 = vunpack.c.l.b16 %v3079
      %v3212 = vunpack.c.h.b16 %v3079
      %v3213 = vunpack.c.l.b16 %v3080
      %v3214 = vunpack.c.l.b16 %v3081
      %v3215 = vunpack.c.h.b16 %v3081
      %v3216 = vunpack.c.l.b16 %v3082
      %v3217 = vunpack.c.l.b16 %v3083
      %v3218 = vunpack.c.h.b16 %v3083
      %v3219 = vunpack.c.l.b16 %v3084
      %v3220 = vunpack.c.l.b16 %v3085
      %v3221 = vunpack.c.h.b16 %v3085
      %v3222 = vunpack.c.l.b16 %v3086
      %v3223 = vunpack.c.l.b16 %v3087
      %v3224 = vunpack.c.h.b16 %v3087
      %v3225 = vunpack.c.l.b16 %v3088
      %v3226 = vunpack.c.l.b16 %v3089
      %v3227 = vunpack.c.h.b16 %v3089
      %v3228 = vunpack.c.l.b16 %v3090
      %v3229 = vunpack.c.l.b16 %v3091
      %v3230 = vunpack.c.h.b16 %v3091
      %v3231 = vunpack.c.l.b16 %v3092
      %v3232 = vunpack.c.l.b16 %v3093
      %v3233 = vunpack.c.h.b16 %v3093
      %v3234 = vunpack.c.l.b16 %v3094
      %v3235 = vunpack.c.l.b16 %v3095
      %v3236 = vunpack.c.h.b16 %v3095
      %v3237 = vunpack.c.l.b16 %v3096
      %v3238 = vunpack.c.l.b16 %v3097
      %v3239 = vunpack.c.h.b16 %v3097
      %v3240 = vunpack.c.l.b16 %v3098
      %v3241 = vunpack.c.l.b16 %v3099
      %v3242 = vunpack.c.h.b16 %v3099
      %v3243 = vunpack.c.l.b16 %v3100
      %v3244 = vunpack.c.l.b16 %v3101
      %v3245 = vunpack.c.h.b16 %v3101
      %v3246 = vunpack.c.l.b16 %v3102
      %v3247 = vunpack.c.l.b16 %v3103
      %v3248 = vunpack.c.h.b16 %v3103
      %v3249 = vunpack.c.l.b16 %v3104
      %v3250 = vunpack.c.l.b16 %v3105
      %v3251 = vunpack.c.h.b16 %v3105
      %v3252 = vunpack.c.l.b16 %v3106
      %v3253 = vunpack.c.l.b16 %v3107
      %v3254 = vunpack.c.h.b16 %v3107
      %v3255 = vunpack.c.l.b16 %v3108
      %v3256 = vunpack.c.l.b16 %v3109
      %v3257 = vunpack.c.h.b16 %v3109
      %v3258 = vunpack.c.l.b16 %v3110
      %v3259 = vunpack.c.l.b16 %v3111
      %v3260 = vunpack.c.h.b16 %v3111
      %v3261 = vunpack.c.l.b16 %v3112
      %v3262 = vunpack.c.l.b16 %v3113
      %v3263 = vunpack.c.h.b16 %v3113
      %v3264 = vunpack.c.l.b16 %v3114
      %v3265 = vunpack.c.l.b16 %v3115
      %v3266 = vunpack.c.h.b16 %v3115
      %v3267 = vunpack.c.l.b16 %v3116
      %v3268 = vunpack.c.l.b16 %v3117
      %v3269 = vunpack.c.h.b16 %v3117
      %v3270 = vunpack.c.l.b16 %v3118
      %v3271 = vunpack.c.l.b16 %v3119
      %v3272 = vunpack.c.h.b16 %v3119
      %v3273 = vunpack.c.l.b16 %v3120
      %v3274 = vunpack.c.l.b16 %v3121
      %v3275 = vunpack.c.h.b16 %v3121
      %v3276 = vunpack.c.l.b16 %v3122
      %v3277 = vunpack.c.l.b16 %v3123
      %v3278 = vunpack.c.h.b16 %v3123
      %v3279 = vunpack.c.l.b16 %v3124
      %v3280 = vunpack.c.l.b16 %v3125
      %v3281 = vunpack.c.h.b16 %v3125
      %v3282 = vunpack.c.l.b16 %v3126
      %v3283 = vunpack.c.l.b16 %v3127
      %v3284 = vunpack.c.h.b16 %v3127
      %v3285 = vunpack.c.l.b16 %v3128
      %v3286 = vunpack.c.l.b16 %v3129
      %v3287 = vunpack.c.h.b16 %v3129
      %v3288 = vunpack.c.l.b16 %v3130
      %v3289 = vunpack.c.l.b16 %v3131
      %v3290 = vunpack.c.h.b16 %v3131
      %v3291 = vunpack.c.l.b16 %v3132
      %v3292 = vunpack.c.l.b16 %v3133
      %v3293 = vunpack.c.h.b16 %v3133
      %v3294 = vunpack.c.l.b16 %v3134
      %v3295 = vpack.c.b16 %v3202, %v3199
      %v3296 = vpack.c.b16 %v3203, %v3200
      %v3297 = vpack.c.b16 %v3204, %v3201
      %v3298 = vpack.c.b16 %v3208, %v3205
      %v3299 = vpack.c.b16 %v3209, %v3206
      %v3300 = vpack.c.b16 %v3210, %v3207
      %v3301 = vpack.c.b16 %v3214, %v3211
      %v3302 = vpack.c.b16 %v3215, %v3212
      %v3303 = vpack.c.b16 %v3216, %v3213
      %v3304 = vpack.c.b16 %v3220, %v3217
      %v3305 = vpack.c.b16 %v3221, %v3218
      %v3306 = vpack.c.b16 %v3222, %v3219
      %v3307 = vpack.c.b16 %v3226, %v3223
      %v3308 = vpack.c.b16 %v3227, %v3224
      %v3309 = vpack.c.b16 %v3228, %v3225
      %v3310 = vpack.c.b16 %v3232, %v3229
      %v3311 = vpack.c.b16 %v3233, %v3230
      %v3312 = vpack.c.b16 %v3234, %v3231
      %v3313 = vpack.c.b16 %v3238, %v3235
      %v3314 = vpack.c.b16 %v3239, %v3236
      %v3315 = vpack.c.b16 %v3240, %v3237
      %v3316 = vpack.c.b16 %v3244, %v3241
      %v3317 = vpack.c.b16 %v3245, %v3242
      %v3318 = vpack.c.b16 %v3246, %v3243
      %v3319 = vpack.c.b16 %v3250, %v3247
      %v3320 = vpack.c.b16 %v3251, %v3248
      %v3321 = vpack.c.b16 %v3252, %v3249
      %v3322 = vpack.c.b16 %v3256, %v3253
      %v3323 = vpack.c.b16 %v3257, %v3254
      %v3324 = vpack.c.b16 %v3258, %v3255
      %v3325 = vpack.c.b16 %v3262, %v3259
      %v3326 = vpack.c.b16 %v3263, %v3260
      %v3327 = vpack.c.b16 %v3264, %v3261
      %v3328 = vpack.c.b16 %v3268, %v3265
      %v3329 = vpack.c.b16 %v3269, %v3266
      %v3330 = vpack.c.b16 %v3270, %v3267
      %v3331 = vpack.c.b16 %v3274, %v3271
      %v3332 = vpack.c.b16 %v3275, %v3272
      %v3333 = vpack.c.b16 %v3276, %v3273
      %v3334 = vpack.c.b16 %v3280, %v3277
      %v3335 = vpack.c.b16 %v3281, %v3278
      %v3336 = vpack.c.b16 %v3282, %v3279
      %v3337 = vpack.c.b16 %v3286, %v3283
      %v3338 = vpack.c.b16 %v3287, %v3284
      %v3339 = vpack.c.b16 %v3288, %v3285
      %v3340 = vpack.c.b16 %v3292, %v3289
      %v3341 = vpack.c.b16 %v3293, %v3290
      %v3342 = vpack.c.b16 %v3294, %v3291
      %3391 = vmatprep.subr.bf16.mxu0 0
      %3392 = vmatpush1.bf16.msra.mxu0 %v3046
      %3393 = vmatprep.subr.bf16.mxu0 0
      %3394 = vmatpush1.bf16.msra.mxu0 %v3047
      %3395 = vmatprep.subr.bf16.mxu0 0
      %3396 = vmatpush1.bf16.msra.mxu0 %v3048
      %3397 = vmatprep.subr.bf16.mxu0 0
      %3398 = vmatpush1.bf16.msra.mxu0 %v3049
      %3399 = vmatprep.subr.bf16.mxu0 0
      %3400 = vmatpush1.bf16.msra.mxu0 %v3050
      %3401 = vmatprep.subr.bf16.mxu0 0
      %3402 = vmatpush1.bf16.msra.mxu0 %v3051
      %3403 = vmatprep.subr.bf16.mxu0 0
      %3404 = vmatpush1.bf16.msra.mxu0 %v3052
      %3405 = vmatprep.subr.bf16.mxu0 0
      %3406 = vmatpush1.bf16.msra.mxu0 %v3053
      %3407 = vmatprep.subr.bf16.mxu0 0
      %3408 = vmatpush1.bf16.msra.mxu0 %v3054
      %3409 = vmatprep.subr.bf16.mxu0 0
      %3410 = vmatpush1.bf16.msra.mxu0 %v3055
      %3411 = vmatprep.subr.bf16.mxu0 0
      %3412 = vmatpush1.bf16.msra.mxu0 %v3056
      %3413 = vmatprep.subr.bf16.mxu0 0
      %3414 = vmatpush1.bf16.msra.mxu0 %v3057
      %3415 = vmatprep.subr.bf16.mxu0 0
      %3416 = vmatpush1.bf16.msra.mxu0 %v3058
      %3417 = vmatprep.subr.bf16.mxu0 0
      %3418 = vmatpush1.bf16.msra.mxu0 %v3059
      %3419 = vmatprep.subr.bf16.mxu0 0
      %3420 = vmatpush1.bf16.msra.mxu0 %v3060
      %3421 = vmatprep.subr.bf16.mxu0 0
      %3422 = vmatpush1.bf16.msra.mxu0 %v3061
      %3423 = vmatprep.mubr.bf16.mxu0 %v3296
      %3424 = vmatmul.mubr.bf16.gmra.mrb[0].mxu0 %v3295
      %v3425 = vpop.f32.mrb[0].mxu0
      %v3426 = vadd.f32 0.0, %v3425
      %v3427 = vpop.f32.mrb[0].mxu0
      %v3428 = vpop.f32.mrb[0].mxu0
      %v3429 = vadd.f32 0.0, %v3428
      %v3430 = vpop.f32.mrb[0].mxu0
      %3431 = vmatprep.mubr.bf16.mxu0 %v3299
      %3432 = vmatmul.mubr.bf16.gmra.mrb[0].mxu0 %v3298
      %v3433 = vpop.f32.mrb[0].mxu0
      %v3434 = vadd.f32 0.0, %v3433
      %v3435 = vpop.f32.mrb[0].mxu0
      %v3436 = vpop.f32.mrb[0].mxu0
      %v3437 = vadd.f32 0.0, %v3436
      %v3438 = vpop.f32.mrb[0].mxu0
      %3439 = vmatprep.mubr.bf16.mxu0 %v3302
      %3440 = vmatmul.mubr.bf16.gmra.mrb[0].mxu0 %v3301
      %v3441 = vpop.f32.mrb[0].mxu0
      %v3442 = vadd.f32 0.0, %v3441
      %v3443 = vpop.f32.mrb[0].mxu0
      %v3444 = vpop.f32.mrb[0].mxu0
      %v3445 = vadd.f32 0.0, %v3444
      %v3446 = vpop.f32.mrb[0].mxu0
      %3447 = vmatprep.mubr.bf16.mxu0 %v3305
      %3448 = vmatmul.mubr.bf16.gmra.mrb[0].mxu0 %v3304
      %v3449 = vpop.f32.mrb[0].mxu0
      %v3450 = vadd.f32 0.0, %v3449
      %v3451 = vpop.f32.mrb[0].mxu0
      %v3452 = vpop.f32.mrb[0].mxu0
      %v3453 = vadd.f32 0.0, %v3452
      %v3454 = vpop.f32.mrb[0].mxu0
      %3455 = vmatprep.mubr.bf16.mxu0 %v3308
      %3456 = vmatmul.mubr.bf16.gmra.mrb[0].mxu0 %v3307
      %v3457 = vpop.f32.mrb[0].mxu0
      %v3458 = vadd.f32 0.0, %v3457
      %v3459 = vpop.f32.mrb[0].mxu0
      %v3460 = vpop.f32.mrb[0].mxu0
      %v3461 = vadd.f32 0.0, %v3460
      %v3462 = vpop.f32.mrb[0].mxu0
      %3463 = vmatprep.mubr.bf16.mxu0 %v3311
      %3464 = vmatmul.mubr.bf16.gmra.mrb[0].mxu0 %v3310
      %v3465 = vpop.f32.mrb[0].mxu0
      %v3466 = vadd.f32 0.0, %v3465
      %v3467 = vpop.f32.mrb[0].mxu0
      %v3468 = vpop.f32.mrb[0].mxu0
      %v3469 = vadd.f32 0.0, %v3468
      %v3470 = vpop.f32.mrb[0].mxu0
      %3471 = vmatprep.mubr.bf16.mxu0 %v3314
      %3472 = vmatmul.mubr.bf16.gmra.mrb[0].mxu0 %v3313
      %v3473 = vpop.f32.mrb[0].mxu0
      %v3474 = vadd.f32 0.0, %v3473
      %v3475 = vpop.f32.mrb[0].mxu0
      %v3476 = vpop.f32.mrb[0].mxu0
      %v3477 = vadd.f32 0.0, %v3476
      %v3478 = vpop.f32.mrb[0].mxu0
      %3479 = vmatprep.mubr.bf16.mxu0 %v3317
      %3480 = vmatmul.mubr.bf16.gmra.mrb[0].mxu0 %v3316
      %v3481 = vpop.f32.mrb[0].mxu0
      %v3482 = vadd.f32 0.0, %v3481
      %v3483 = vpop.f32.mrb[0].mxu0
      %v3484 = vpop.f32.mrb[0].mxu0
      %v3485 = vadd.f32 0.0, %v3484
      %v3486 = vpop.f32.mrb[0].mxu0
      %3487 = vmatprep.mubr.bf16.mxu0 %v3320
      %3488 = vmatmul.mubr.bf16.gmra.mrb[0].mxu0 %v3319
      %v3489 = vpop.f32.mrb[0].mxu0
      %v3490 = vadd.f32 0.0, %v3489
      %v3491 = vpop.f32.mrb[0].mxu0
      %v3492 = vpop.f32.mrb[0].mxu0
      %v3493 = vadd.f32 0.0, %v3492
      %v3494 = vpop.f32.mrb[0].mxu0
      %3495 = vmatprep.mubr.bf16.mxu0 %v3323
      %3496 = vmatmul.mubr.bf16.gmra.mrb[0].mxu0 %v3322
      %v3497 = vpop.f32.mrb[0].mxu0
      %v3498 = vadd.f32 0.0, %v3497
      %v3499 = vpop.f32.mrb[0].mxu0
      %v3500 = vpop.f32.mrb[0].mxu0
      %v3501 = vadd.f32 0.0, %v3500
      %v3502 = vpop.f32.mrb[0].mxu0
      %3503 = vmatprep.mubr.bf16.mxu0 %v3326
      %3504 = vmatmul.mubr.bf16.gmra.mrb[0].mxu0 %v3325
      %v3505 = vpop.f32.mrb[0].mxu0
      %v3506 = vadd.f32 0.0, %v3505
      %v3507 = vpop.f32.mrb[0].mxu0
      %v3508 = vpop.f32.mrb[0].mxu0
      %v3509 = vadd.f32 0.0, %v3508
      %v3510 = vpop.f32.mrb[0].mxu0
      %3511 = vmatprep.mubr.bf16.mxu0 %v3329
      %3512 = vmatmul.mubr.bf16.gmra.mrb[0].mxu0 %v3328
      %v3513 = vpop.f32.mrb[0].mxu0
      %v3514 = vadd.f32 0.0, %v3513
      %v3515 = vpop.f32.mrb[0].mxu0
      %v3516 = vpop.f32.mrb[0].mxu0
      %v3517 = vadd.f32 0.0, %v3516
      %v3518 = vpop.f32.mrb[0].mxu0
      %3519 = vmatprep.mubr.bf16.mxu0 %v3332
      %3520 = vmatmul.mubr.bf16.gmra.mrb[0].mxu0 %v3331
      %v3521 = vpop.f32.mrb[0].mxu0
      %v3522 = vadd.f32 0.0, %v3521
      %v3523 = vpop.f32.mrb[0].mxu0
      %v3524 = vpop.f32.mrb[0].mxu0
      %v3525 = vadd.f32 0.0, %v3524
      %v3526 = vpop.f32.mrb[0].mxu0
      %3527 = vmatprep.mubr.bf16.mxu0 %v3335
      %3528 = vmatmul.mubr.bf16.gmra.mrb[0].mxu0 %v3334
      %v3529 = vpop.f32.mrb[0].mxu0
      %v3530 = vadd.f32 0.0, %v3529
      %v3531 = vpop.f32.mrb[0].mxu0
      %v3532 = vpop.f32.mrb[0].mxu0
      %v3533 = vadd.f32 0.0, %v3532
      %v3534 = vpop.f32.mrb[0].mxu0
      %3535 = vmatprep.mubr.bf16.mxu0 %v3338
      %3536 = vmatmul.mubr.bf16.gmra.mrb[0].mxu0 %v3337
      %v3537 = vpop.f32.mrb[0].mxu0
      %v3538 = vadd.f32 0.0, %v3537
      %v3539 = vpop.f32.mrb[0].mxu0
      %v3540 = vpop.f32.mrb[0].mxu0
      %v3541 = vadd.f32 0.0, %v3540
      %v3542 = vpop.f32.mrb[0].mxu0
      %3543 = vmatprep.mubr.bf16.mxu0 %v3341
      %3544 = vmatmul.mubr.bf16.gmra.mrb[0].mxu0 %v3340
      %v3545 = vpop.f32.mrb[0].mxu0
      %v3546 = vadd.f32 0.0, %v3545
      %v3547 = vpop.f32.mrb[0].mxu0
      %v3548 = vpop.f32.mrb[0].mxu0
      %v3549 = vadd.f32 0.0, %v3548
      %v3550 = vpop.f32.mrb[0].mxu0
      %3551 = vdwg.mxu0
      %3552 = vmatprep.subr.bf16.mxu0 0
      %3553 = vmatpush1.bf16.msra.mxu0 %v3062
      %3554 = vmatprep.subr.bf16.mxu0 0
      %3555 = vmatpush1.bf16.msra.mxu0 %v3063
      %3556 = vmatprep.subr.bf16.mxu0 0
      %3557 = vmatpush1.bf16.msra.mxu0 %v3064
      %3558 = vmatprep.subr.bf16.mxu0 0
      %3559 = vmatpush1.bf16.msra.mxu0 %v3065
      %3560 = vmatprep.subr.bf16.mxu0 0
      %3561 = vmatpush1.bf16.msra.mxu0 %v3066
      %3562 = vmatprep.subr.bf16.mxu0 0
      %3563 = vmatpush1.bf16.msra.mxu0 %v3067
      %3564 = vmatprep.subr.bf16.mxu0 0
      %3565 = vmatpush1.bf16.msra.mxu0 %v3068
      %3566 = vmatprep.subr.bf16.mxu0 0
      %3567 = vmatpush1.bf16.msra.mxu0 %v3069
      %3568 = vmatprep.subr.bf16.mxu0 0
      %3569 = vmatpush1.bf16.msra.mxu0 0
      %3570 = vmatprep.subr.bf16.mxu0 0
      %3571 = vmatpush1.bf16.msra.mxu0 0
      %3572 = vmatprep.subr.bf16.mxu0 0
      %3573 = vmatpush1.bf16.msra.mxu0 0
      %3574 = vmatprep.subr.bf16.mxu0 0
      %3575 = vmatpush1.bf16.msra.mxu0 0
      %3576 = vmatprep.subr.bf16.mxu0 0
      %3577 = vmatpush1.bf16.msra.mxu0 0
      %3578 = vmatprep.subr.bf16.mxu0 0
      %3579 = vmatpush1.bf16.msra.mxu0 0
      %3580 = vmatprep.subr.bf16.mxu0 0
      %3581 = vmatpush1.bf16.msra.mxu0 0
      %3582 = vmatprep.subr.bf16.mxu0 0
      %3583 = vmatpush1.bf16.msra.mxu0 0
      %3584 = vmatprep.mubr.bf16.mxu0 0
      %3585 = vmatmul.mubr.bf16.gmra.mrb[0].mxu0 %v3297
      %v3586 = vpop.f32.mrb[0].mxu0
      %v3587 = vadd.f32 %v3426, %v3586
      %v3588 = vpop.f32.mrb[0].mxu0
      %v3589 = vpop.f32.mrb[0].mxu0
      %v3590 = vadd.f32 %v3429, %v3589
      %v3591 = vpop.f32.mrb[0].mxu0
      %3592 = vmatprep.mubr.bf16.mxu0 0
      %3593 = vmatmul.mubr.bf16.gmra.mrb[0].mxu0 %v3300
      %v3594 = vpop.f32.mrb[0].mxu0
      %v3595 = vadd.f32 %v3434, %v3594
      %v3596 = vpop.f32.mrb[0].mxu0
      %v3597 = vpop.f32.mrb[0].mxu0
      %v3598 = vadd.f32 %v3437, %v3597
      %v3599 = vpop.f32.mrb[0].mxu0
      %3600 = vmatprep.mubr.bf16.mxu0 0
      %3601 = vmatmul.mubr.bf16.gmra.mrb[0].mxu0 %v3303
      %v3602 = vpop.f32.mrb[0].mxu0
      %v3603 = vadd.f32 %v3442, %v3602
      %v3604 = vpop.f32.mrb[0].mxu0
      %v3605 = vpop.f32.mrb[0].mxu0
      %v3606 = vadd.f32 %v3445, %v3605
      %v3607 = vpop.f32.mrb[0].mxu0
      %3608 = vmatprep.mubr.bf16.mxu0 0
      %3609 = vmatmul.mubr.bf16.gmra.mrb[0].mxu0 %v3306
      %v3610 = vpop.f32.mrb[0].mxu0
      %v3611 = vadd.f32 %v3450, %v3610
      %v3612 = vpop.f32.mrb[0].mxu0
      %v3613 = vpop.f32.mrb[0].mxu0
      %v3614 = vadd.f32 %v3453, %v3613
      %v3615 = vpop.f32.mrb[0].mxu0
      %3616 = vmatprep.mubr.bf16.mxu0 0
      %3617 = vmatmul.mubr.bf16.gmra.mrb[0].mxu0 %v3309
      %v3618 = vpop.f32.mrb[0].mxu0
      %v3619 = vadd.f32 %v3458, %v3618
      %v3620 = vpop.f32.mrb[0].mxu0
      %v3621 = vpop.f32.mrb[0].mxu0
      %v3622 = vadd.f32 %v3461, %v3621
      %v3623 = vpop.f32.mrb[0].mxu0
      %3624 = vmatprep.mubr.bf16.mxu0 0
      %3625 = vmatmul.mubr.bf16.gmra.mrb[0].mxu0 %v3312
      %v3626 = vpop.f32.mrb[0].mxu0
      %v3627 = vadd.f32 %v3466, %v3626
      %v3628 = vpop.f32.mrb[0].mxu0
      %v3629 = vpop.f32.mrb[0].mxu0
      %v3630 = vadd.f32 %v3469, %v3629
      %v3631 = vpop.f32.mrb[0].mxu0
      %3632 = vmatprep.mubr.bf16.mxu0 0
      %3633 = vmatmul.mubr.bf16.gmra.mrb[0].mxu0 %v3315
      %v3634 = vpop.f32.mrb[0].mxu0
      %v3635 = vadd.f32 %v3474, %v3634
      %v3636 = vpop.f32.mrb[0].mxu0
      %v3637 = vpop.f32.mrb[0].mxu0
      %v3638 = vadd.f32 %v3477, %v3637
      %v3639 = vpop.f32.mrb[0].mxu0
      %3640 = vmatprep.mubr.bf16.mxu0 0
      %3641 = vmatmul.mubr.bf16.gmra.mrb[0].mxu0 %v3318
      %v3642 = vpop.f32.mrb[0].mxu0
      %v3643 = vadd.f32 %v3482, %v3642
      %v3644 = vpop.f32.mrb[0].mxu0
      %v3645 = vpop.f32.mrb[0].mxu0
      %v3646 = vadd.f32 %v3485, %v3645
      %v3647 = vpop.f32.mrb[0].mxu0
      %3648 = vmatprep.mubr.bf16.mxu0 0
      %3649 = vmatmul.mubr.bf16.gmra.mrb[0].mxu0 %v3321
      %v3650 = vpop.f32.mrb[0].mxu0
      %v3651 = vadd.f32 %v3490, %v3650
      %v3652 = vpop.f32.mrb[0].mxu0
      %v3653 = vpop.f32.mrb[0].mxu0
      %v3654 = vadd.f32 %v3493, %v3653
      %v3655 = vpop.f32.mrb[0].mxu0
      %3656 = vmatprep.mubr.bf16.mxu0 0
      %3657 = vmatmul.mubr.bf16.gmra.mrb[0].mxu0 %v3324
      %v3658 = vpop.f32.mrb[0].mxu0
      %v3659 = vadd.f32 %v3498, %v3658
      %v3660 = vpop.f32.mrb[0].mxu0
      %v3661 = vpop.f32.mrb[0].mxu0
      %v3662 = vadd.f32 %v3501, %v3661
      %v3663 = vpop.f32.mrb[0].mxu0
      %3664 = vmatprep.mubr.bf16.mxu0 0
      %3665 = vmatmul.mubr.bf16.gmra.mrb[0].mxu0 %v3327
      %v3666 = vpop.f32.mrb[0].mxu0
      %v3667 = vadd.f32 %v3506, %v3666
      %v3668 = vpop.f32.mrb[0].mxu0
      %v3669 = vpop.f32.mrb[0].mxu0
      %v3670 = vadd.f32 %v3509, %v3669
      %v3671 = vpop.f32.mrb[0].mxu0
      %3672 = vmatprep.mubr.bf16.mxu0 0
      %3673 = vmatmul.mubr.bf16.gmra.mrb[0].mxu0 %v3330
      %v3674 = vpop.f32.mrb[0].mxu0
      %v3675 = vadd.f32 %v3514, %v3674
      %v3676 = vpop.f32.mrb[0].mxu0
      %v3677 = vpop.f32.mrb[0].mxu0
      %v3678 = vadd.f32 %v3517, %v3677
      %v3679 = vpop.f32.mrb[0].mxu0
      %3680 = vmatprep.mubr.bf16.mxu0 0
      %3681 = vmatmul.mubr.bf16.gmra.mrb[0].mxu0 %v3333
      %v3682 = vpop.f32.mrb[0].mxu0
      %v3683 = vadd.f32 %v3522, %v3682
      %v3684 = vpop.f32.mrb[0].mxu0
      %v3685 = vpop.f32.mrb[0].mxu0
      %v3686 = vadd.f32 %v3525, %v3685
      %v3687 = vpop.f32.mrb[0].mxu0
      %3688 = vmatprep.mubr.bf16.mxu0 0
      %3689 = vmatmul.mubr.bf16.gmra.mrb[0].mxu0 %v3336
      %v3690 = vpop.f32.mrb[0].mxu0
      %v3691 = vadd.f32 %v3530, %v3690
      %v3692 = vpop.f32.mrb[0].mxu0
      %v3693 = vpop.f32.mrb[0].mxu0
      %v3694 = vadd.f32 %v3533, %v3693
      %v3695 = vpop.f32.mrb[0].mxu0
      %3696 = vmatprep.mubr.bf16.mxu0 0
      %3697 = vmatmul.mubr.bf16.gmra.mrb[0].mxu0 %v3339
      %v3698 = vpop.f32.mrb[0].mxu0
      %v3699 = vadd.f32 %v3538, %v3698
      %v3700 = vpop.f32.mrb[0].mxu0
      %v3701 = vpop.f32.mrb[0].mxu0
      %v3702 = vadd.f32 %v3541, %v3701
      %v3703 = vpop.f32.mrb[0].mxu0
      %3704 = vmatprep.mubr.bf16.mxu0 0
      %3705 = vmatmul.mubr.bf16.gmra.mrb[0].mxu0 %v3342
      %v3706 = vpop.f32.mrb[0].mxu0
      %v3707 = vadd.f32 %v3546, %v3706
      %v3708 = vpop.f32.mrb[0].mxu0
      %v3709 = vpop.f32.mrb[0].mxu0
      %v3710 = vadd.f32 %v3549, %v3709
      %v3711 = vpop.f32.mrb[0].mxu0
      %3712 = vdwg.mxu0
      %v3713 = vadd.f32 %v2598, %v3587
      %v3714 = vadd.f32 %v2601, %v3590
      %v3715 = vadd.f32 %v2606, %v3595
      %v3716 = vadd.f32 %v2609, %v3598
      %v3717 = vadd.f32 %v2614, %v3603
      %v3718 = vadd.f32 %v2617, %v3606
      %v3719 = vadd.f32 %v2622, %v3611
      %v3720 = vadd.f32 %v2625, %v3614
      %v3721 = vadd.f32 %v2630, %v3619
      %v3722 = vadd.f32 %v2633, %v3622
      %v3723 = vadd.f32 %v2638, %v3627
      %v3724 = vadd.f32 %v2641, %v3630
      %v3725 = vadd.f32 %v2646, %v3635
      %v3726 = vadd.f32 %v2649, %v3638
      %v3727 = vadd.f32 %v2654, %v3643
      %v3728 = vadd.f32 %v2657, %v3646
      %v3729 = vadd.f32 %v2662, %v3651
      %v3730 = vadd.f32 %v2665, %v3654
      %v3731 = vadd.f32 %v2670, %v3659
      %v3732 = vadd.f32 %v2673, %v3662
      %v3733 = vadd.f32 %v2678, %v3667
      %v3734 = vadd.f32 %v2681, %v3670
      %v3735 = vadd.f32 %v2686, %v3675
      %v3736 = vadd.f32 %v2689, %v3678
      %v3737 = vadd.f32 %v2694, %v3683
      %v3738 = vadd.f32 %v2697, %v3686
      %v3739 = vadd.f32 %v2702, %v3691
      %v3740 = vadd.f32 %v2705, %v3694
      %v3741 = vadd.f32 %v2710, %v3699
      %v3742 = vadd.f32 %v2713, %v3702
      %v3743 = vadd.f32 %v2718, %v3707
      %v3744 = vadd.f32 %v2721, %v3710
      %s3745 = scalar_lea.vmem %s2, 288
      %v3746 = vld [vmem:[%s3745] sm:$0xf]
      %v3747 = vld [vmem:[%s3745 + $0x4] sm:$0xf]
      %v3748 = vld [vmem:[%s3745 + $0x8] sm:$0xf]
      %v3749 = vld [vmem:[%s3745 + $0xc] sm:$0xf]
      %v3750 = vld [vmem:[%s3745 + $0x10] sm:$0xf]
      %v3751 = vld [vmem:[%s3745 + $0x14] sm:$0xf]
      %v3752 = vld [vmem:[%s3745 + $0x18] sm:$0xf]
      %v3753 = vld [vmem:[%s3745 + $0x1c] sm:$0xf]
      %v3754 = vld [vmem:[%s3745 + $0x20] sm:$0xf]
      %v3755 = vld [vmem:[%s3745 + $0x24] sm:$0xf]
      %v3756 = vld [vmem:[%s3745 + $0x28] sm:$0xf]
      %v3757 = vld [vmem:[%s3745 + $0x2c] sm:$0xf]
      %v3758 = vld [vmem:[%s3745 + $0x30] sm:$0xf]
      %v3759 = vld [vmem:[%s3745 + $0x34] sm:$0xf]
      %v3760 = vld [vmem:[%s3745 + $0x38] sm:$0xf]
      %v3761 = vld [vmem:[%s3745 + $0x3c] sm:$0xf]
      %v3762 = vld [vmem:[%s3745 + $0x40] sm:$0xf]
      %v3763 = vld [vmem:[%s3745 + $0x44] sm:$0xf]
      %v3764 = vld [vmem:[%s3745 + $0x48] sm:$0xf]
      %v3765 = vld [vmem:[%s3745 + $0x4c] sm:$0xf]
      %v3766 = vld [vmem:[%s3745 + $0x50] sm:$0xf]
      %v3767 = vld [vmem:[%s3745 + $0x54] sm:$0xf]
      %v3768 = vld [vmem:[%s3745 + $0x58] sm:$0xf]
      %v3769 = vld [vmem:[%s3745 + $0x5c] sm:$0xf]
      %v3794 = vunpack.c.l.b16 %v3746
      %v3795 = vunpack.c.l.b16 %v3747
      %v3796 = vunpack.c.l.b16 %v3748
      %v3797 = vunpack.c.l.b16 %v3749
      %v3798 = vunpack.c.l.b16 %v3750
      %v3799 = vunpack.c.l.b16 %v3751
      %v3800 = vunpack.c.l.b16 %v3752
      %v3801 = vunpack.c.l.b16 %v3753
      %v3802 = vunpack.c.l.b16 %v3754
      %v3803 = vunpack.c.l.b16 %v3755
      %v3804 = vunpack.c.l.b16 %v3756
      %v3805 = vunpack.c.l.b16 %v3757
      %v3806 = vunpack.c.l.b16 %v3758
      %v3807 = vunpack.c.l.b16 %v3759
      %v3808 = vunpack.c.l.b16 %v3760
      %v3809 = vunpack.c.l.b16 %v3761
      %v3810 = vunpack.c.l.b16 %v3762
      %v3811 = vunpack.c.l.b16 %v3763
      %v3812 = vunpack.c.l.b16 %v3764
      %v3813 = vunpack.c.l.b16 %v3765
      %v3814 = vunpack.c.l.b16 %v3766
      %v3815 = vunpack.c.l.b16 %v3767
      %v3816 = vunpack.c.l.b16 %v3768
      %v3817 = vunpack.c.l.b16 %v3769
      %v3818 = vpack.c.b16 %v3795, %v3794
      %v3819 = vpack.c.b16 %v3797, %v3796
      %v3820 = vpack.c.b16 %v3799, %v3798
      %v3821 = vpack.c.b16 %v3801, %v3800
      %v3822 = vpack.c.b16 %v3803, %v3802
      %v3823 = vpack.c.b16 %v3805, %v3804
      %v3824 = vpack.c.b16 %v3807, %v3806
      %v3825 = vpack.c.b16 %v3809, %v3808
      %v3826 = vpack.c.b16 %v3811, %v3810
      %v3827 = vpack.c.b16 %v3813, %v3812
      %v3828 = vpack.c.b16 %v3815, %v3814
      %v3829 = vpack.c.b16 %v3817, %v3816
      %3842 = vmatprep.subr.bf16.mxu0 0
      %3843 = vmatpush1.bf16.msra.mxu0 %v3818
      %3844 = vmatprep.subr.bf16.mxu0 0
      %3845 = vmatpush1.bf16.msra.mxu0 %v3819
      %3846 = vmatprep.subr.bf16.mxu0 0
      %3847 = vmatpush1.bf16.msra.mxu0 %v3820
      %3848 = vmatprep.subr.bf16.mxu0 0
      %3849 = vmatpush1.bf16.msra.mxu0 %v3821
      %3850 = vmatprep.subr.bf16.mxu0 0
      %3851 = vmatpush1.bf16.msra.mxu0 %v3822
      %3852 = vmatprep.subr.bf16.mxu0 0
      %3853 = vmatpush1.bf16.msra.mxu0 %v3823
      %3854 = vmatprep.subr.bf16.mxu0 0
      %3855 = vmatpush1.bf16.msra.mxu0 %v3824
      %3856 = vmatprep.subr.bf16.mxu0 0
      %3857 = vmatpush1.bf16.msra.mxu0 %v3825
      %3858 = vmatprep.subr.bf16.mxu0 0
      %3859 = vmatpush1.bf16.msra.mxu0 %v3826
      %3860 = vmatprep.subr.bf16.mxu0 0
      %3861 = vmatpush1.bf16.msra.mxu0 %v3827
      %3862 = vmatprep.subr.bf16.mxu0 0
      %3863 = vmatpush1.bf16.msra.mxu0 %v3828
      %3864 = vmatprep.subr.bf16.mxu0 0
      %3865 = vmatpush1.bf16.msra.mxu0 %v3829
      %3866 = vmatprep.subr.bf16.mxu0 0
      %3867 = vmatpush1.bf16.msra.mxu0 0
      %3868 = vmatprep.subr.bf16.mxu0 0
      %3869 = vmatpush1.bf16.msra.mxu0 0
      %3870 = vmatprep.subr.bf16.mxu0 0
      %3871 = vmatpush1.bf16.msra.mxu0 0
      %3872 = vmatprep.subr.bf16.mxu0 0
      %3873 = vmatpush1.bf16.msra.mxu0 0
      %3874 = vmatprep.mubr.bf16.mxu0 %v773
      %3875 = vmatmul.mubr.bf16.gmra.mrb[0].mxu0 %v627
      %v3876 = vpop.f32.mrb[0].mxu0
      %v3877 = vadd.f32 0.0, %v3876
      %v3878 = vpop.f32.mrb[0].mxu0
      %v3879 = vpop.f32.mrb[0].mxu0
      %v3880 = vadd.f32 0.0, %v3879
      %v3881 = vpop.f32.mrb[0].mxu0
      %3882 = vmatprep.mubr.bf16.mxu0 %v776
      %3883 = vmatmul.mubr.bf16.gmra.mrb[0].mxu0 %v629
      %v3884 = vpop.f32.mrb[0].mxu0
      %v3885 = vadd.f32 0.0, %v3884
      %v3886 = vpop.f32.mrb[0].mxu0
      %v3887 = vpop.f32.mrb[0].mxu0
      %v3888 = vadd.f32 0.0, %v3887
      %v3889 = vpop.f32.mrb[0].mxu0
      %3890 = vmatprep.mubr.bf16.mxu0 %v779
      %3891 = vmatmul.mubr.bf16.gmra.mrb[0].mxu0 %v631
      %v3892 = vpop.f32.mrb[0].mxu0
      %v3893 = vadd.f32 0.0, %v3892
      %v3894 = vpop.f32.mrb[0].mxu0
      %v3895 = vpop.f32.mrb[0].mxu0
      %v3896 = vadd.f32 0.0, %v3895
      %v3897 = vpop.f32.mrb[0].mxu0
      %3898 = vmatprep.mubr.bf16.mxu0 %v782
      %3899 = vmatmul.mubr.bf16.gmra.mrb[0].mxu0 %v633
      %v3900 = vpop.f32.mrb[0].mxu0
      %v3901 = vadd.f32 0.0, %v3900
      %v3902 = vpop.f32.mrb[0].mxu0
      %v3903 = vpop.f32.mrb[0].mxu0
      %v3904 = vadd.f32 0.0, %v3903
      %v3905 = vpop.f32.mrb[0].mxu0
      %3906 = vmatprep.mubr.bf16.mxu0 %v785
      %3907 = vmatmul.mubr.bf16.gmra.mrb[0].mxu0 %v635
      %v3908 = vpop.f32.mrb[0].mxu0
      %v3909 = vadd.f32 0.0, %v3908
      %v3910 = vpop.f32.mrb[0].mxu0
      %v3911 = vpop.f32.mrb[0].mxu0
      %v3912 = vadd.f32 0.0, %v3911
      %v3913 = vpop.f32.mrb[0].mxu0
      %3914 = vmatprep.mubr.bf16.mxu0 %v788
      %3915 = vmatmul.mubr.bf16.gmra.mrb[0].mxu0 %v637
      %v3916 = vpop.f32.mrb[0].mxu0
      %v3917 = vadd.f32 0.0, %v3916
      %v3918 = vpop.f32.mrb[0].mxu0
      %v3919 = vpop.f32.mrb[0].mxu0
      %v3920 = vadd.f32 0.0, %v3919
      %v3921 = vpop.f32.mrb[0].mxu0
      %3922 = vmatprep.mubr.bf16.mxu0 %v791
      %3923 = vmatmul.mubr.bf16.gmra.mrb[0].mxu0 %v639
      %v3924 = vpop.f32.mrb[0].mxu0
      %v3925 = vadd.f32 0.0, %v3924
      %v3926 = vpop.f32.mrb[0].mxu0
      %v3927 = vpop.f32.mrb[0].mxu0
      %v3928 = vadd.f32 0.0, %v3927
      %v3929 = vpop.f32.mrb[0].mxu0
      %3930 = vmatprep.mubr.bf16.mxu0 %v794
      %3931 = vmatmul.mubr.bf16.gmra.mrb[0].mxu0 %v641
      %v3932 = vpop.f32.mrb[0].mxu0
      %v3933 = vadd.f32 0.0, %v3932
      %v3934 = vpop.f32.mrb[0].mxu0
      %v3935 = vpop.f32.mrb[0].mxu0
      %v3936 = vadd.f32 0.0, %v3935
      %v3937 = vpop.f32.mrb[0].mxu0
      %3938 = vmatprep.mubr.bf16.mxu0 %v797
      %3939 = vmatmul.mubr.bf16.gmra.mrb[0].mxu0 %v643
      %v3940 = vpop.f32.mrb[0].mxu0
      %v3941 = vadd.f32 0.0, %v3940
      %v3942 = vpop.f32.mrb[0].mxu0
      %v3943 = vpop.f32.mrb[0].mxu0
      %v3944 = vadd.f32 0.0, %v3943
      %v3945 = vpop.f32.mrb[0].mxu0
      %3946 = vmatprep.mubr.bf16.mxu0 %v800
      %3947 = vmatmul.mubr.bf16.gmra.mrb[0].mxu0 %v645
      %v3948 = vpop.f32.mrb[0].mxu0
      %v3949 = vadd.f32 0.0, %v3948
      %v3950 = vpop.f32.mrb[0].mxu0
      %v3951 = vpop.f32.mrb[0].mxu0
      %v3952 = vadd.f32 0.0, %v3951
      %v3953 = vpop.f32.mrb[0].mxu0
      %3954 = vmatprep.mubr.bf16.mxu0 %v803
      %3955 = vmatmul.mubr.bf16.gmra.mrb[0].mxu0 %v647
      %v3956 = vpop.f32.mrb[0].mxu0
      %v3957 = vadd.f32 0.0, %v3956
      %v3958 = vpop.f32.mrb[0].mxu0
      %v3959 = vpop.f32.mrb[0].mxu0
      %v3960 = vadd.f32 0.0, %v3959
      %v3961 = vpop.f32.mrb[0].mxu0
      %3962 = vmatprep.mubr.bf16.mxu0 %v806
      %3963 = vmatmul.mubr.bf16.gmra.mrb[0].mxu0 %v649
      %v3964 = vpop.f32.mrb[0].mxu0
      %v3965 = vadd.f32 0.0, %v3964
      %v3966 = vpop.f32.mrb[0].mxu0
      %v3967 = vpop.f32.mrb[0].mxu0
      %v3968 = vadd.f32 0.0, %v3967
      %v3969 = vpop.f32.mrb[0].mxu0
      %3970 = vmatprep.mubr.bf16.mxu0 %v809
      %3971 = vmatmul.mubr.bf16.gmra.mrb[0].mxu0 %v651
      %v3972 = vpop.f32.mrb[0].mxu0
      %v3973 = vadd.f32 0.0, %v3972
      %v3974 = vpop.f32.mrb[0].mxu0
      %v3975 = vpop.f32.mrb[0].mxu0
      %v3976 = vadd.f32 0.0, %v3975
      %v3977 = vpop.f32.mrb[0].mxu0
      %3978 = vmatprep.mubr.bf16.mxu0 %v812
      %3979 = vmatmul.mubr.bf16.gmra.mrb[0].mxu0 %v653
      %v3980 = vpop.f32.mrb[0].mxu0
      %v3981 = vadd.f32 0.0, %v3980
      %v3982 = vpop.f32.mrb[0].mxu0
      %v3983 = vpop.f32.mrb[0].mxu0
      %v3984 = vadd.f32 0.0, %v3983
      %v3985 = vpop.f32.mrb[0].mxu0
      %3986 = vmatprep.mubr.bf16.mxu0 %v815
      %3987 = vmatmul.mubr.bf16.gmra.mrb[0].mxu0 %v655
      %v3988 = vpop.f32.mrb[0].mxu0
      %v3989 = vadd.f32 0.0, %v3988
      %v3990 = vpop.f32.mrb[0].mxu0
      %v3991 = vpop.f32.mrb[0].mxu0
      %v3992 = vadd.f32 0.0, %v3991
      %v3993 = vpop.f32.mrb[0].mxu0
      %3994 = vmatprep.mubr.bf16.mxu0 %v818
      %3995 = vmatmul.mubr.bf16.gmra.mrb[0].mxu0 %v657
      %v3996 = vpop.f32.mrb[0].mxu0
      %v3997 = vadd.f32 0.0, %v3996
      %v3998 = vpop.f32.mrb[0].mxu0
      %v3999 = vpop.f32.mrb[0].mxu0
      %v4000 = vadd.f32 0.0, %v3999
      %v4001 = vpop.f32.mrb[0].mxu0
      %4002 = vmatprep.mubr.bf16.mxu0 %v821
      %4003 = vmatmul.mubr.bf16.gmra.mrb[0].mxu0 %v659
      %v4004 = vpop.f32.mrb[0].mxu0
      %v4005 = vadd.f32 0.0, %v4004
      %v4006 = vpop.f32.mrb[0].mxu0
      %v4007 = vpop.f32.mrb[0].mxu0
      %v4008 = vadd.f32 0.0, %v4007
      %v4009 = vpop.f32.mrb[0].mxu0
      %4010 = vmatprep.mubr.bf16.mxu0 %v824
      %4011 = vmatmul.mubr.bf16.gmra.mrb[0].mxu0 %v661
      %v4012 = vpop.f32.mrb[0].mxu0
      %v4013 = vadd.f32 0.0, %v4012
      %v4014 = vpop.f32.mrb[0].mxu0
      %v4015 = vpop.f32.mrb[0].mxu0
      %v4016 = vadd.f32 0.0, %v4015
      %v4017 = vpop.f32.mrb[0].mxu0
      %4018 = vmatprep.mubr.bf16.mxu0 %v827
      %4019 = vmatmul.mubr.bf16.gmra.mrb[0].mxu0 %v663
      %v4020 = vpop.f32.mrb[0].mxu0
      %v4021 = vadd.f32 0.0, %v4020
      %v4022 = vpop.f32.mrb[0].mxu0
      %v4023 = vpop.f32.mrb[0].mxu0
      %v4024 = vadd.f32 0.0, %v4023
      %v4025 = vpop.f32.mrb[0].mxu0
      %4026 = vmatprep.mubr.bf16.mxu0 %v830
      %4027 = vmatmul.mubr.bf16.gmra.mrb[0].mxu0 %v665
      %v4028 = vpop.f32.mrb[0].mxu0
      %v4029 = vadd.f32 0.0, %v4028
      %v4030 = vpop.f32.mrb[0].mxu0
      %v4031 = vpop.f32.mrb[0].mxu0
      %v4032 = vadd.f32 0.0, %v4031
      %v4033 = vpop.f32.mrb[0].mxu0
      %4034 = vmatprep.mubr.bf16.mxu0 %v833
      %4035 = vmatmul.mubr.bf16.gmra.mrb[0].mxu0 %v667
      %v4036 = vpop.f32.mrb[0].mxu0
      %v4037 = vadd.f32 0.0, %v4036
      %v4038 = vpop.f32.mrb[0].mxu0
      %v4039 = vpop.f32.mrb[0].mxu0
      %v4040 = vadd.f32 0.0, %v4039
      %v4041 = vpop.f32.mrb[0].mxu0
      %4042 = vmatprep.mubr.bf16.mxu0 %v836
      %4043 = vmatmul.mubr.bf16.gmra.mrb[0].mxu0 %v669
      %v4044 = vpop.f32.mrb[0].mxu0
      %v4045 = vadd.f32 0.0, %v4044
      %v4046 = vpop.f32.mrb[0].mxu0
      %v4047 = vpop.f32.mrb[0].mxu0
      %v4048 = vadd.f32 0.0, %v4047
      %v4049 = vpop.f32.mrb[0].mxu0
      %4050 = vmatprep.mubr.bf16.mxu0 %v839
      %4051 = vmatmul.mubr.bf16.gmra.mrb[0].mxu0 %v671
      %v4052 = vpop.f32.mrb[0].mxu0
      %v4053 = vadd.f32 0.0, %v4052
      %v4054 = vpop.f32.mrb[0].mxu0
      %v4055 = vpop.f32.mrb[0].mxu0
      %v4056 = vadd.f32 0.0, %v4055
      %v4057 = vpop.f32.mrb[0].mxu0
      %4058 = vmatprep.mubr.bf16.mxu0 %v842
      %4059 = vmatmul.mubr.bf16.gmra.mrb[0].mxu0 %v673
      %v4060 = vpop.f32.mrb[0].mxu0
      %v4061 = vadd.f32 0.0, %v4060
      %v4062 = vpop.f32.mrb[0].mxu0
      %v4063 = vpop.f32.mrb[0].mxu0
      %v4064 = vadd.f32 0.0, %v4063
      %v4065 = vpop.f32.mrb[0].mxu0
      %4066 = vdwg.mxu0
      %v4067 = vpack.c.bf16 %v3880, %v3877
      %v4068 = vpack.c.bf16 %v3888, %v3885
      %v4069 = vpack.c.bf16 %v3896, %v3893
      %v4070 = vpack.c.bf16 %v3904, %v3901
      %v4071 = vpack.c.bf16 %v3912, %v3909
      %v4072 = vpack.c.bf16 %v3920, %v3917
      %v4073 = vpack.c.bf16 %v3928, %v3925
      %v4074 = vpack.c.bf16 %v3936, %v3933
      %v4075 = vpack.c.bf16 %v3944, %v3941
      %v4076 = vpack.c.bf16 %v3952, %v3949
      %v4077 = vpack.c.bf16 %v3960, %v3957
      %v4078 = vpack.c.bf16 %v3968, %v3965
      %v4079 = vpack.c.bf16 %v3976, %v3973
      %v4080 = vpack.c.bf16 %v3984, %v3981
      %v4081 = vpack.c.bf16 %v3992, %v3989
      %v4082 = vpack.c.bf16 %v4000, %v3997
      %v4083 = vpack.c.bf16 %v4008, %v4005
      %v4084 = vpack.c.bf16 %v4016, %v4013
      %v4085 = vpack.c.bf16 %v4024, %v4021
      %v4086 = vpack.c.bf16 %v4032, %v4029
      %v4087 = vpack.c.bf16 %v4040, %v4037
      %v4088 = vpack.c.bf16 %v4048, %v4045
      %v4089 = vpack.c.bf16 %v4056, %v4053
      %v4090 = vpack.c.bf16 %v4064, %v4061
      %s4091 = scalar_lea.vmem %s1, 1152
      %v4092 = vld [vmem:[%s4091] sm:$0xff]
      %v4093 = vld [vmem:[%s4091 + $0x8] sm:$0xf]
      %v4094 = vld [vmem:[%s4091 + $0xc] sm:$0xff]
      %v4095 = vld [vmem:[%s4091 + $0x14] sm:$0xf]
      %v4096 = vld [vmem:[%s4091 + $0x18] sm:$0xff]
      %v4097 = vld [vmem:[%s4091 + $0x20] sm:$0xf]
      %v4098 = vld [vmem:[%s4091 + $0x24] sm:$0xff]
      %v4099 = vld [vmem:[%s4091 + $0x2c] sm:$0xf]
      %v4100 = vld [vmem:[%s4091 + $0x30] sm:$0xff]
      %v4101 = vld [vmem:[%s4091 + $0x38] sm:$0xf]
      %v4102 = vld [vmem:[%s4091 + $0x3c] sm:$0xff]
      %v4103 = vld [vmem:[%s4091 + $0x44] sm:$0xf]
      %v4104 = vld [vmem:[%s4091 + $0x48] sm:$0xff]
      %v4105 = vld [vmem:[%s4091 + $0x50] sm:$0xf]
      %v4106 = vld [vmem:[%s4091 + $0x54] sm:$0xff]
      %v4107 = vld [vmem:[%s4091 + $0x5c] sm:$0xf]
      %v4108 = vld [vmem:[%s4091 + $0x60] sm:$0xff]
      %v4109 = vld [vmem:[%s4091 + $0x68] sm:$0xf]
      %v4110 = vld [vmem:[%s4091 + $0x6c] sm:$0xff]
      %v4111 = vld [vmem:[%s4091 + $0x74] sm:$0xf]
      %v4112 = vld [vmem:[%s4091 + $0x78] sm:$0xff]
      %v4113 = vld [vmem:[%s4091 + $0x80] sm:$0xf]
      %v4114 = vld [vmem:[%s4091 + $0x84] sm:$0xff]
      %v4115 = vld [vmem:[%s4091 + $0x8c] sm:$0xf]
      %v4116 = vld [vmem:[%s4091 + $0x90] sm:$0xff]
      %v4117 = vld [vmem:[%s4091 + $0x98] sm:$0xf]
      %v4118 = vld [vmem:[%s4091 + $0x9c] sm:$0xff]
      %v4119 = vld [vmem:[%s4091 + $0xa4] sm:$0xf]
      %v4120 = vld [vmem:[%s4091 + $0xa8] sm:$0xff]
      %v4121 = vld [vmem:[%s4091 + $0xb0] sm:$0xf]
      %v4122 = vld [vmem:[%s4091 + $0xb4] sm:$0xff]
      %v4123 = vld [vmem:[%s4091 + $0xbc] sm:$0xf]
      %v4124 = vld [vmem:[%s4091 + $0xc0] sm:$0xff]
      %v4125 = vld [vmem:[%s4091 + $0xc8] sm:$0xf]
      %v4126 = vld [vmem:[%s4091 + $0xcc] sm:$0xff]
      %v4127 = vld [vmem:[%s4091 + $0xd4] sm:$0xf]
      %v4128 = vld [vmem:[%s4091 + $0xd8] sm:$0xff]
      %v4129 = vld [vmem:[%s4091 + $0xe0] sm:$0xf]
      %v4130 = vld [vmem:[%s4091 + $0xe4] sm:$0xff]
      %v4131 = vld [vmem:[%s4091 + $0xec] sm:$0xf]
      %v4132 = vld [vmem:[%s4091 + $0xf0] sm:$0xff]
      %v4133 = vld [vmem:[%s4091 + $0xf8] sm:$0xf]
      %v4134 = vld [vmem:[%s4091 + $0xfc] sm:$0xff]
      %v4135 = vld [vmem:[%s4091 + $0x104] sm:$0xf]
      %v4136 = vld [vmem:[%s4091 + $0x108] sm:$0xff]
      %v4137 = vld [vmem:[%s4091 + $0x110] sm:$0xf]
      %v4138 = vld [vmem:[%s4091 + $0x114] sm:$0xff]
      %v4139 = vld [vmem:[%s4091 + $0x11c] sm:$0xf]
      %v4140 = vld [vmem:[%s4091 + $0x120] sm:$0xff]
      %v4141 = vld [vmem:[%s4091 + $0x128] sm:$0xf]
      %v4142 = vld [vmem:[%s4091 + $0x12c] sm:$0xff]
      %v4143 = vld [vmem:[%s4091 + $0x134] sm:$0xf]
      %v4144 = vld [vmem:[%s4091 + $0x138] sm:$0xff]
      %v4145 = vld [vmem:[%s4091 + $0x140] sm:$0xf]
      %v4146 = vld [vmem:[%s4091 + $0x144] sm:$0xff]
      %v4147 = vld [vmem:[%s4091 + $0x14c] sm:$0xf]
      %v4148 = vld [vmem:[%s4091 + $0x150] sm:$0xff]
      %v4149 = vld [vmem:[%s4091 + $0x158] sm:$0xf]
      %v4150 = vld [vmem:[%s4091 + $0x15c] sm:$0xff]
      %v4151 = vld [vmem:[%s4091 + $0x164] sm:$0xf]
      %v4152 = vld [vmem:[%s4091 + $0x168] sm:$0xff]
      %v4153 = vld [vmem:[%s4091 + $0x170] sm:$0xf]
      %v4154 = vld [vmem:[%s4091 + $0x174] sm:$0xff]
      %v4155 = vld [vmem:[%s4091 + $0x17c] sm:$0xf]
      %v4220 = vunpack.c.l.b16 %v4092
      %v4221 = vunpack.c.h.b16 %v4092
      %v4222 = vunpack.c.l.b16 %v4093
      %v4223 = vunpack.c.l.b16 %v4094
      %v4224 = vunpack.c.h.b16 %v4094
      %v4225 = vunpack.c.l.b16 %v4095
      %v4226 = vunpack.c.l.b16 %v4096
      %v4227 = vunpack.c.h.b16 %v4096
      %v4228 = vunpack.c.l.b16 %v4097
      %v4229 = vunpack.c.l.b16 %v4098
      %v4230 = vunpack.c.h.b16 %v4098
      %v4231 = vunpack.c.l.b16 %v4099
      %v4232 = vunpack.c.l.b16 %v4100
      %v4233 = vunpack.c.h.b16 %v4100
      %v4234 = vunpack.c.l.b16 %v4101
      %v4235 = vunpack.c.l.b16 %v4102
      %v4236 = vunpack.c.h.b16 %v4102
      %v4237 = vunpack.c.l.b16 %v4103
      %v4238 = vunpack.c.l.b16 %v4104
      %v4239 = vunpack.c.h.b16 %v4104
      %v4240 = vunpack.c.l.b16 %v4105
      %v4241 = vunpack.c.l.b16 %v4106
      %v4242 = vunpack.c.h.b16 %v4106
      %v4243 = vunpack.c.l.b16 %v4107
      %v4244 = vunpack.c.l.b16 %v4108
      %v4245 = vunpack.c.h.b16 %v4108
      %v4246 = vunpack.c.l.b16 %v4109
      %v4247 = vunpack.c.l.b16 %v4110
      %v4248 = vunpack.c.h.b16 %v4110
      %v4249 = vunpack.c.l.b16 %v4111
      %v4250 = vunpack.c.l.b16 %v4112
      %v4251 = vunpack.c.h.b16 %v4112
      %v4252 = vunpack.c.l.b16 %v4113
      %v4253 = vunpack.c.l.b16 %v4114
      %v4254 = vunpack.c.h.b16 %v4114
      %v4255 = vunpack.c.l.b16 %v4115
      %v4256 = vunpack.c.l.b16 %v4116
      %v4257 = vunpack.c.h.b16 %v4116
      %v4258 = vunpack.c.l.b16 %v4117
      %v4259 = vunpack.c.l.b16 %v4118
      %v4260 = vunpack.c.h.b16 %v4118
      %v4261 = vunpack.c.l.b16 %v4119
      %v4262 = vunpack.c.l.b16 %v4120
      %v4263 = vunpack.c.h.b16 %v4120
      %v4264 = vunpack.c.l.b16 %v4121
      %v4265 = vunpack.c.l.b16 %v4122
      %v4266 = vunpack.c.h.b16 %v4122
      %v4267 = vunpack.c.l.b16 %v4123
      %v4268 = vunpack.c.l.b16 %v4124
      %v4269 = vunpack.c.h.b16 %v4124
      %v4270 = vunpack.c.l.b16 %v4125
      %v4271 = vunpack.c.l.b16 %v4126
      %v4272 = vunpack.c.h.b16 %v4126
      %v4273 = vunpack.c.l.b16 %v4127
      %v4274 = vunpack.c.l.b16 %v4128
      %v4275 = vunpack.c.h.b16 %v4128
      %v4276 = vunpack.c.l.b16 %v4129
      %v4277 = vunpack.c.l.b16 %v4130
      %v4278 = vunpack.c.h.b16 %v4130
      %v4279 = vunpack.c.l.b16 %v4131
      %v4280 = vunpack.c.l.b16 %v4132
      %v4281 = vunpack.c.h.b16 %v4132
      %v4282 = vunpack.c.l.b16 %v4133
      %v4283 = vunpack.c.l.b16 %v4134
      %v4284 = vunpack.c.h.b16 %v4134
      %v4285 = vunpack.c.l.b16 %v4135
      %v4286 = vunpack.c.l.b16 %v4136
      %v4287 = vunpack.c.h.b16 %v4136
      %v4288 = vunpack.c.l.b16 %v4137
      %v4289 = vunpack.c.l.b16 %v4138
      %v4290 = vunpack.c.h.b16 %v4138
      %v4291 = vunpack.c.l.b16 %v4139
      %v4292 = vunpack.c.l.b16 %v4140
      %v4293 = vunpack.c.h.b16 %v4140
      %v4294 = vunpack.c.l.b16 %v4141
      %v4295 = vunpack.c.l.b16 %v4142
      %v4296 = vunpack.c.h.b16 %v4142
      %v4297 = vunpack.c.l.b16 %v4143
      %v4298 = vunpack.c.l.b16 %v4144
      %v4299 = vunpack.c.h.b16 %v4144
      %v4300 = vunpack.c.l.b16 %v4145
      %v4301 = vunpack.c.l.b16 %v4146
      %v4302 = vunpack.c.h.b16 %v4146
      %v4303 = vunpack.c.l.b16 %v4147
      %v4304 = vunpack.c.l.b16 %v4148
      %v4305 = vunpack.c.h.b16 %v4148
      %v4306 = vunpack.c.l.b16 %v4149
      %v4307 = vunpack.c.l.b16 %v4150
      %v4308 = vunpack.c.h.b16 %v4150
      %v4309 = vunpack.c.l.b16 %v4151
      %v4310 = vunpack.c.l.b16 %v4152
      %v4311 = vunpack.c.h.b16 %v4152
      %v4312 = vunpack.c.l.b16 %v4153
      %v4313 = vunpack.c.l.b16 %v4154
      %v4314 = vunpack.c.h.b16 %v4154
      %v4315 = vunpack.c.l.b16 %v4155
      %v4316 = vpack.c.b16 %v4223, %v4220
      %v4317 = vpack.c.b16 %v4224, %v4221
      %v4318 = vpack.c.b16 %v4225, %v4222
      %v4319 = vpack.c.b16 %v4229, %v4226
      %v4320 = vpack.c.b16 %v4230, %v4227
      %v4321 = vpack.c.b16 %v4231, %v4228
      %v4322 = vpack.c.b16 %v4235, %v4232
      %v4323 = vpack.c.b16 %v4236, %v4233
      %v4324 = vpack.c.b16 %v4237, %v4234
      %v4325 = vpack.c.b16 %v4241, %v4238
      %v4326 = vpack.c.b16 %v4242, %v4239
      %v4327 = vpack.c.b16 %v4243, %v4240
      %v4328 = vpack.c.b16 %v4247, %v4244
      %v4329 = vpack.c.b16 %v4248, %v4245
      %v4330 = vpack.c.b16 %v4249, %v4246
      %v4331 = vpack.c.b16 %v4253, %v4250
      %v4332 = vpack.c.b16 %v4254, %v4251
      %v4333 = vpack.c.b16 %v4255, %v4252
      %v4334 = vpack.c.b16 %v4259, %v4256
      %v4335 = vpack.c.b16 %v4260, %v4257
      %v4336 = vpack.c.b16 %v4261, %v4258
      %v4337 = vpack.c.b16 %v4265, %v4262
      %v4338 = vpack.c.b16 %v4266, %v4263
      %v4339 = vpack.c.b16 %v4267, %v4264
      %v4340 = vpack.c.b16 %v4271, %v4268
      %v4341 = vpack.c.b16 %v4272, %v4269
      %v4342 = vpack.c.b16 %v4273, %v4270
      %v4343 = vpack.c.b16 %v4277, %v4274
      %v4344 = vpack.c.b16 %v4278, %v4275
      %v4345 = vpack.c.b16 %v4279, %v4276
      %v4346 = vpack.c.b16 %v4283, %v4280
      %v4347 = vpack.c.b16 %v4284, %v4281
      %v4348 = vpack.c.b16 %v4285, %v4282
      %v4349 = vpack.c.b16 %v4289, %v4286
      %v4350 = vpack.c.b16 %v4290, %v4287
      %v4351 = vpack.c.b16 %v4291, %v4288
      %v4352 = vpack.c.b16 %v4295, %v4292
      %v4353 = vpack.c.b16 %v4296, %v4293
      %v4354 = vpack.c.b16 %v4297, %v4294
      %v4355 = vpack.c.b16 %v4301, %v4298
      %v4356 = vpack.c.b16 %v4302, %v4299
      %v4357 = vpack.c.b16 %v4303, %v4300
      %v4358 = vpack.c.b16 %v4307, %v4304
      %v4359 = vpack.c.b16 %v4308, %v4305
      %v4360 = vpack.c.b16 %v4309, %v4306
      %v4361 = vpack.c.b16 %v4313, %v4310
      %v4362 = vpack.c.b16 %v4314, %v4311
      %v4363 = vpack.c.b16 %v4315, %v4312
      %4412 = vmatprep.subr.bf16.mxu0 0
      %4413 = vmatpush1.bf16.msra.mxu0 %v4067
      %4414 = vmatprep.subr.bf16.mxu0 0
      %4415 = vmatpush1.bf16.msra.mxu0 %v4068
      %4416 = vmatprep.subr.bf16.mxu0 0
      %4417 = vmatpush1.bf16.msra.mxu0 %v4069
      %4418 = vmatprep.subr.bf16.mxu0 0
      %4419 = vmatpush1.bf16.msra.mxu0 %v4070
      %4420 = vmatprep.subr.bf16.mxu0 0
      %4421 = vmatpush1.bf16.msra.mxu0 %v4071
      %4422 = vmatprep.subr.bf16.mxu0 0
      %4423 = vmatpush1.bf16.msra.mxu0 %v4072
      %4424 = vmatprep.subr.bf16.mxu0 0
      %4425 = vmatpush1.bf16.msra.mxu0 %v4073
      %4426 = vmatprep.subr.bf16.mxu0 0
      %4427 = vmatpush1.bf16.msra.mxu0 %v4074
      %4428 = vmatprep.subr.bf16.mxu0 0
      %4429 = vmatpush1.bf16.msra.mxu0 %v4075
      %4430 = vmatprep.subr.bf16.mxu0 0
      %4431 = vmatpush1.bf16.msra.mxu0 %v4076
      %4432 = vmatprep.subr.bf16.mxu0 0
      %4433 = vmatpush1.bf16.msra.mxu0 %v4077
      %4434 = vmatprep.subr.bf16.mxu0 0
      %4435 = vmatpush1.bf16.msra.mxu0 %v4078
      %4436 = vmatprep.subr.bf16.mxu0 0
      %4437 = vmatpush1.bf16.msra.mxu0 %v4079
      %4438 = vmatprep.subr.bf16.mxu0 0
      %4439 = vmatpush1.bf16.msra.mxu0 %v4080
      %4440 = vmatprep.subr.bf16.mxu0 0
      %4441 = vmatpush1.bf16.msra.mxu0 %v4081
      %4442 = vmatprep.subr.bf16.mxu0 0
      %4443 = vmatpush1.bf16.msra.mxu0 %v4082
      %4444 = vmatprep.mubr.bf16.mxu0 %v4317
      %4445 = vmatmul.mubr.bf16.gmra.mrb[0].mxu0 %v4316
      %v4446 = vpop.f32.mrb[0].mxu0
      %v4447 = vadd.f32 0.0, %v4446
      %v4448 = vpop.f32.mrb[0].mxu0
      %v4449 = vpop.f32.mrb[0].mxu0
      %v4450 = vadd.f32 0.0, %v4449
      %v4451 = vpop.f32.mrb[0].mxu0
      %4452 = vmatprep.mubr.bf16.mxu0 %v4320
      %4453 = vmatmul.mubr.bf16.gmra.mrb[0].mxu0 %v4319
      %v4454 = vpop.f32.mrb[0].mxu0
      %v4455 = vadd.f32 0.0, %v4454
      %v4456 = vpop.f32.mrb[0].mxu0
      %v4457 = vpop.f32.mrb[0].mxu0
      %v4458 = vadd.f32 0.0, %v4457
      %v4459 = vpop.f32.mrb[0].mxu0
      %4460 = vmatprep.mubr.bf16.mxu0 %v4323
      %4461 = vmatmul.mubr.bf16.gmra.mrb[0].mxu0 %v4322
      %v4462 = vpop.f32.mrb[0].mxu0
      %v4463 = vadd.f32 0.0, %v4462
      %v4464 = vpop.f32.mrb[0].mxu0
      %v4465 = vpop.f32.mrb[0].mxu0
      %v4466 = vadd.f32 0.0, %v4465
      %v4467 = vpop.f32.mrb[0].mxu0
      %4468 = vmatprep.mubr.bf16.mxu0 %v4326
      %4469 = vmatmul.mubr.bf16.gmra.mrb[0].mxu0 %v4325
      %v4470 = vpop.f32.mrb[0].mxu0
      %v4471 = vadd.f32 0.0, %v4470
      %v4472 = vpop.f32.mrb[0].mxu0
      %v4473 = vpop.f32.mrb[0].mxu0
      %v4474 = vadd.f32 0.0, %v4473
      %v4475 = vpop.f32.mrb[0].mxu0
      %4476 = vmatprep.mubr.bf16.mxu0 %v4329
      %4477 = vmatmul.mubr.bf16.gmra.mrb[0].mxu0 %v4328
      %v4478 = vpop.f32.mrb[0].mxu0
      %v4479 = vadd.f32 0.0, %v4478
      %v4480 = vpop.f32.mrb[0].mxu0
      %v4481 = vpop.f32.mrb[0].mxu0
      %v4482 = vadd.f32 0.0, %v4481
      %v4483 = vpop.f32.mrb[0].mxu0
      %4484 = vmatprep.mubr.bf16.mxu0 %v4332
      %4485 = vmatmul.mubr.bf16.gmra.mrb[0].mxu0 %v4331
      %v4486 = vpop.f32.mrb[0].mxu0
      %v4487 = vadd.f32 0.0, %v4486
      %v4488 = vpop.f32.mrb[0].mxu0
      %v4489 = vpop.f32.mrb[0].mxu0
      %v4490 = vadd.f32 0.0, %v4489
      %v4491 = vpop.f32.mrb[0].mxu0
      %4492 = vmatprep.mubr.bf16.mxu0 %v4335
      %4493 = vmatmul.mubr.bf16.gmra.mrb[0].mxu0 %v4334
      %v4494 = vpop.f32.mrb[0].mxu0
      %v4495 = vadd.f32 0.0, %v4494
      %v4496 = vpop.f32.mrb[0].mxu0
      %v4497 = vpop.f32.mrb[0].mxu0
      %v4498 = vadd.f32 0.0, %v4497
      %v4499 = vpop.f32.mrb[0].mxu0
      %4500 = vmatprep.mubr.bf16.mxu0 %v4338
      %4501 = vmatmul.mubr.bf16.gmra.mrb[0].mxu0 %v4337
      %v4502 = vpop.f32.mrb[0].mxu0
      %v4503 = vadd.f32 0.0, %v4502
      %v4504 = vpop.f32.mrb[0].mxu0
      %v4505 = vpop.f32.mrb[0].mxu0
      %v4506 = vadd.f32 0.0, %v4505
      %v4507 = vpop.f32.mrb[0].mxu0
      %4508 = vmatprep.mubr.bf16.mxu0 %v4341
      %4509 = vmatmul.mubr.bf16.gmra.mrb[0].mxu0 %v4340
      %v4510 = vpop.f32.mrb[0].mxu0
      %v4511 = vadd.f32 0.0, %v4510
      %v4512 = vpop.f32.mrb[0].mxu0
      %v4513 = vpop.f32.mrb[0].mxu0
      %v4514 = vadd.f32 0.0, %v4513
      %v4515 = vpop.f32.mrb[0].mxu0
      %4516 = vmatprep.mubr.bf16.mxu0 %v4344
      %4517 = vmatmul.mubr.bf16.gmra.mrb[0].mxu0 %v4343
      %v4518 = vpop.f32.mrb[0].mxu0
      %v4519 = vadd.f32 0.0, %v4518
      %v4520 = vpop.f32.mrb[0].mxu0
      %v4521 = vpop.f32.mrb[0].mxu0
      %v4522 = vadd.f32 0.0, %v4521
      %v4523 = vpop.f32.mrb[0].mxu0
      %4524 = vmatprep.mubr.bf16.mxu0 %v4347
      %4525 = vmatmul.mubr.bf16.gmra.mrb[0].mxu0 %v4346
      %v4526 = vpop.f32.mrb[0].mxu0
      %v4527 = vadd.f32 0.0, %v4526
      %v4528 = vpop.f32.mrb[0].mxu0
      %v4529 = vpop.f32.mrb[0].mxu0
      %v4530 = vadd.f32 0.0, %v4529
      %v4531 = vpop.f32.mrb[0].mxu0
      %4532 = vmatprep.mubr.bf16.mxu0 %v4350
      %4533 = vmatmul.mubr.bf16.gmra.mrb[0].mxu0 %v4349
      %v4534 = vpop.f32.mrb[0].mxu0
      %v4535 = vadd.f32 0.0, %v4534
      %v4536 = vpop.f32.mrb[0].mxu0
      %v4537 = vpop.f32.mrb[0].mxu0
      %v4538 = vadd.f32 0.0, %v4537
      %v4539 = vpop.f32.mrb[0].mxu0
      %4540 = vmatprep.mubr.bf16.mxu0 %v4353
      %4541 = vmatmul.mubr.bf16.gmra.mrb[0].mxu0 %v4352
      %v4542 = vpop.f32.mrb[0].mxu0
      %v4543 = vadd.f32 0.0, %v4542
      %v4544 = vpop.f32.mrb[0].mxu0
      %v4545 = vpop.f32.mrb[0].mxu0
      %v4546 = vadd.f32 0.0, %v4545
      %v4547 = vpop.f32.mrb[0].mxu0
      %4548 = vmatprep.mubr.bf16.mxu0 %v4356
      %4549 = vmatmul.mubr.bf16.gmra.mrb[0].mxu0 %v4355
      %v4550 = vpop.f32.mrb[0].mxu0
      %v4551 = vadd.f32 0.0, %v4550
      %v4552 = vpop.f32.mrb[0].mxu0
      %v4553 = vpop.f32.mrb[0].mxu0
      %v4554 = vadd.f32 0.0, %v4553
      %v4555 = vpop.f32.mrb[0].mxu0
      %4556 = vmatprep.mubr.bf16.mxu0 %v4359
      %4557 = vmatmul.mubr.bf16.gmra.mrb[0].mxu0 %v4358
      %v4558 = vpop.f32.mrb[0].mxu0
      %v4559 = vadd.f32 0.0, %v4558
      %v4560 = vpop.f32.mrb[0].mxu0
      %v4561 = vpop.f32.mrb[0].mxu0
      %v4562 = vadd.f32 0.0, %v4561
      %v4563 = vpop.f32.mrb[0].mxu0
      %4564 = vmatprep.mubr.bf16.mxu0 %v4362
      %4565 = vmatmul.mubr.bf16.gmra.mrb[0].mxu0 %v4361
      %v4566 = vpop.f32.mrb[0].mxu0
      %v4567 = vadd.f32 0.0, %v4566
      %v4568 = vpop.f32.mrb[0].mxu0
      %v4569 = vpop.f32.mrb[0].mxu0
      %v4570 = vadd.f32 0.0, %v4569
      %v4571 = vpop.f32.mrb[0].mxu0
      %4572 = vdwg.mxu0
      %4573 = vmatprep.subr.bf16.mxu0 0
      %4574 = vmatpush1.bf16.msra.mxu0 %v4083
      %4575 = vmatprep.subr.bf16.mxu0 0
      %4576 = vmatpush1.bf16.msra.mxu0 %v4084
      %4577 = vmatprep.subr.bf16.mxu0 0
      %4578 = vmatpush1.bf16.msra.mxu0 %v4085
      %4579 = vmatprep.subr.bf16.mxu0 0
      %4580 = vmatpush1.bf16.msra.mxu0 %v4086
      %4581 = vmatprep.subr.bf16.mxu0 0
      %4582 = vmatpush1.bf16.msra.mxu0 %v4087
      %4583 = vmatprep.subr.bf16.mxu0 0
      %4584 = vmatpush1.bf16.msra.mxu0 %v4088
      %4585 = vmatprep.subr.bf16.mxu0 0
      %4586 = vmatpush1.bf16.msra.mxu0 %v4089
      %4587 = vmatprep.subr.bf16.mxu0 0
      %4588 = vmatpush1.bf16.msra.mxu0 %v4090
      %4589 = vmatprep.subr.bf16.mxu0 0
      %4590 = vmatpush1.bf16.msra.mxu0 0
      %4591 = vmatprep.subr.bf16.mxu0 0
      %4592 = vmatpush1.bf16.msra.mxu0 0
      %4593 = vmatprep.subr.bf16.mxu0 0
      %4594 = vmatpush1.bf16.msra.mxu0 0
      %4595 = vmatprep.subr.bf16.mxu0 0
      %4596 = vmatpush1.bf16.msra.mxu0 0
      %4597 = vmatprep.subr.bf16.mxu0 0
      %4598 = vmatpush1.bf16.msra.mxu0 0
      %4599 = vmatprep.subr.bf16.mxu0 0
      %4600 = vmatpush1.bf16.msra.mxu0 0
      %4601 = vmatprep.subr.bf16.mxu0 0
      %4602 = vmatpush1.bf16.msra.mxu0 0
      %4603 = vmatprep.subr.bf16.mxu0 0
      %4604 = vmatpush1.bf16.msra.mxu0 0
      %4605 = vmatprep.mubr.bf16.mxu0 0
      %4606 = vmatmul.mubr.bf16.gmra.mrb[0].mxu0 %v4318
      %v4607 = vpop.f32.mrb[0].mxu0
      %v4608 = vadd.f32 %v4447, %v4607
      %v4609 = vpop.f32.mrb[0].mxu0
      %v4610 = vpop.f32.mrb[0].mxu0
      %v4611 = vadd.f32 %v4450, %v4610
      %v4612 = vpop.f32.mrb[0].mxu0
      %4613 = vmatprep.mubr.bf16.mxu0 0
      %4614 = vmatmul.mubr.bf16.gmra.mrb[0].mxu0 %v4321
      %v4615 = vpop.f32.mrb[0].mxu0
      %v4616 = vadd.f32 %v4455, %v4615
      %v4617 = vpop.f32.mrb[0].mxu0
      %v4618 = vpop.f32.mrb[0].mxu0
      %v4619 = vadd.f32 %v4458, %v4618
      %v4620 = vpop.f32.mrb[0].mxu0
      %4621 = vmatprep.mubr.bf16.mxu0 0
      %4622 = vmatmul.mubr.bf16.gmra.mrb[0].mxu0 %v4324
      %v4623 = vpop.f32.mrb[0].mxu0
      %v4624 = vadd.f32 %v4463, %v4623
      %v4625 = vpop.f32.mrb[0].mxu0
      %v4626 = vpop.f32.mrb[0].mxu0
      %v4627 = vadd.f32 %v4466, %v4626
      %v4628 = vpop.f32.mrb[0].mxu0
      %4629 = vmatprep.mubr.bf16.mxu0 0
      %4630 = vmatmul.mubr.bf16.gmra.mrb[0].mxu0 %v4327
      %v4631 = vpop.f32.mrb[0].mxu0
      %v4632 = vadd.f32 %v4471, %v4631
      %v4633 = vpop.f32.mrb[0].mxu0
      %v4634 = vpop.f32.mrb[0].mxu0
      %v4635 = vadd.f32 %v4474, %v4634
      %v4636 = vpop.f32.mrb[0].mxu0
      %4637 = vmatprep.mubr.bf16.mxu0 0
      %4638 = vmatmul.mubr.bf16.gmra.mrb[0].mxu0 %v4330
      %v4639 = vpop.f32.mrb[0].mxu0
      %v4640 = vadd.f32 %v4479, %v4639
      %v4641 = vpop.f32.mrb[0].mxu0
      %v4642 = vpop.f32.mrb[0].mxu0
      %v4643 = vadd.f32 %v4482, %v4642
      %v4644 = vpop.f32.mrb[0].mxu0
      %4645 = vmatprep.mubr.bf16.mxu0 0
      %4646 = vmatmul.mubr.bf16.gmra.mrb[0].mxu0 %v4333
      %v4647 = vpop.f32.mrb[0].mxu0
      %v4648 = vadd.f32 %v4487, %v4647
      %v4649 = vpop.f32.mrb[0].mxu0
      %v4650 = vpop.f32.mrb[0].mxu0
      %v4651 = vadd.f32 %v4490, %v4650
      %v4652 = vpop.f32.mrb[0].mxu0
      %4653 = vmatprep.mubr.bf16.mxu0 0
      %4654 = vmatmul.mubr.bf16.gmra.mrb[0].mxu0 %v4336
      %v4655 = vpop.f32.mrb[0].mxu0
      %v4656 = vadd.f32 %v4495, %v4655
      %v4657 = vpop.f32.mrb[0].mxu0
      %v4658 = vpop.f32.mrb[0].mxu0
      %v4659 = vadd.f32 %v4498, %v4658
      %v4660 = vpop.f32.mrb[0].mxu0
      %4661 = vmatprep.mubr.bf16.mxu0 0
      %4662 = vmatmul.mubr.bf16.gmra.mrb[0].mxu0 %v4339
      %v4663 = vpop.f32.mrb[0].mxu0
      %v4664 = vadd.f32 %v4503, %v4663
      %v4665 = vpop.f32.mrb[0].mxu0
      %v4666 = vpop.f32.mrb[0].mxu0
      %v4667 = vadd.f32 %v4506, %v4666
      %v4668 = vpop.f32.mrb[0].mxu0
      %4669 = vmatprep.mubr.bf16.mxu0 0
      %4670 = vmatmul.mubr.bf16.gmra.mrb[0].mxu0 %v4342
      %v4671 = vpop.f32.mrb[0].mxu0
      %v4672 = vadd.f32 %v4511, %v4671
      %v4673 = vpop.f32.mrb[0].mxu0
      %v4674 = vpop.f32.mrb[0].mxu0
      %v4675 = vadd.f32 %v4514, %v4674
      %v4676 = vpop.f32.mrb[0].mxu0
      %4677 = vmatprep.mubr.bf16.mxu0 0
      %4678 = vmatmul.mubr.bf16.gmra.mrb[0].mxu0 %v4345
      %v4679 = vpop.f32.mrb[0].mxu0
      %v4680 = vadd.f32 %v4519, %v4679
      %v4681 = vpop.f32.mrb[0].mxu0
      %v4682 = vpop.f32.mrb[0].mxu0
      %v4683 = vadd.f32 %v4522, %v4682
      %v4684 = vpop.f32.mrb[0].mxu0
      %4685 = vmatprep.mubr.bf16.mxu0 0
      %4686 = vmatmul.mubr.bf16.gmra.mrb[0].mxu0 %v4348
      %v4687 = vpop.f32.mrb[0].mxu0
      %v4688 = vadd.f32 %v4527, %v4687
      %v4689 = vpop.f32.mrb[0].mxu0
      %v4690 = vpop.f32.mrb[0].mxu0
      %v4691 = vadd.f32 %v4530, %v4690
      %v4692 = vpop.f32.mrb[0].mxu0
      %4693 = vmatprep.mubr.bf16.mxu0 0
      %4694 = vmatmul.mubr.bf16.gmra.mrb[0].mxu0 %v4351
      %v4695 = vpop.f32.mrb[0].mxu0
      %v4696 = vadd.f32 %v4535, %v4695
      %v4697 = vpop.f32.mrb[0].mxu0
      %v4698 = vpop.f32.mrb[0].mxu0
      %v4699 = vadd.f32 %v4538, %v4698
      %v4700 = vpop.f32.mrb[0].mxu0
      %4701 = vmatprep.mubr.bf16.mxu0 0
      %4702 = vmatmul.mubr.bf16.gmra.mrb[0].mxu0 %v4354
      %v4703 = vpop.f32.mrb[0].mxu0
      %v4704 = vadd.f32 %v4543, %v4703
      %v4705 = vpop.f32.mrb[0].mxu0
      %v4706 = vpop.f32.mrb[0].mxu0
      %v4707 = vadd.f32 %v4546, %v4706
      %v4708 = vpop.f32.mrb[0].mxu0
      %4709 = vmatprep.mubr.bf16.mxu0 0
      %4710 = vmatmul.mubr.bf16.gmra.mrb[0].mxu0 %v4357
      %v4711 = vpop.f32.mrb[0].mxu0
      %v4712 = vadd.f32 %v4551, %v4711
      %v4713 = vpop.f32.mrb[0].mxu0
      %v4714 = vpop.f32.mrb[0].mxu0
      %v4715 = vadd.f32 %v4554, %v4714
      %v4716 = vpop.f32.mrb[0].mxu0
      %4717 = vmatprep.mubr.bf16.mxu0 0
      %4718 = vmatmul.mubr.bf16.gmra.mrb[0].mxu0 %v4360
      %v4719 = vpop.f32.mrb[0].mxu0
      %v4720 = vadd.f32 %v4559, %v4719
      %v4721 = vpop.f32.mrb[0].mxu0
      %v4722 = vpop.f32.mrb[0].mxu0
      %v4723 = vadd.f32 %v4562, %v4722
      %v4724 = vpop.f32.mrb[0].mxu0
      %4725 = vmatprep.mubr.bf16.mxu0 0
      %4726 = vmatmul.mubr.bf16.gmra.mrb[0].mxu0 %v4363
      %v4727 = vpop.f32.mrb[0].mxu0
      %v4728 = vadd.f32 %v4567, %v4727
      %v4729 = vpop.f32.mrb[0].mxu0
      %v4730 = vpop.f32.mrb[0].mxu0
      %v4731 = vadd.f32 %v4570, %v4730
      %v4732 = vpop.f32.mrb[0].mxu0
      %4733 = vdwg.mxu0
      %v4734 = vadd.f32 %v3713, %v4608
      %v4735 = vadd.f32 %v3714, %v4611
      %v4736 = vadd.f32 %v3715, %v4616
      %v4737 = vadd.f32 %v3716, %v4619
      %v4738 = vadd.f32 %v3717, %v4624
      %v4739 = vadd.f32 %v3718, %v4627
      %v4740 = vadd.f32 %v3719, %v4632
      %v4741 = vadd.f32 %v3720, %v4635
      %v4742 = vadd.f32 %v3721, %v4640
      %v4743 = vadd.f32 %v3722, %v4643
      %v4744 = vadd.f32 %v3723, %v4648
      %v4745 = vadd.f32 %v3724, %v4651
      %v4746 = vadd.f32 %v3725, %v4656
      %v4747 = vadd.f32 %v3726, %v4659
      %v4748 = vadd.f32 %v3727, %v4664
      %v4749 = vadd.f32 %v3728, %v4667
      %v4750 = vadd.f32 %v3729, %v4672
      %v4751 = vadd.f32 %v3730, %v4675
      %v4752 = vadd.f32 %v3731, %v4680
      %v4753 = vadd.f32 %v3732, %v4683
      %v4754 = vadd.f32 %v3733, %v4688
      %v4755 = vadd.f32 %v3734, %v4691
      %v4756 = vadd.f32 %v3735, %v4696
      %v4757 = vadd.f32 %v3736, %v4699
      %v4758 = vadd.f32 %v3737, %v4704
      %v4759 = vadd.f32 %v3738, %v4707
      %v4760 = vadd.f32 %v3739, %v4712
      %v4761 = vadd.f32 %v3740, %v4715
      %v4762 = vadd.f32 %v3741, %v4720
      %v4763 = vadd.f32 %v3742, %v4723
      %v4764 = vadd.f32 %v3743, %v4728
      %v4765 = vadd.f32 %v3744, %v4731
      %v4766 = vmul.f32 %v4734, 0.2
      %v4767 = vmul.f32 %v4735, 0.2
      %v4768 = vmul.f32 %v4736, 0.2
      %v4769 = vmul.f32 %v4737, 0.2
      %v4770 = vmul.f32 %v4738, 0.2
      %v4771 = vmul.f32 %v4739, 0.2
      %v4772 = vmul.f32 %v4740, 0.2
      %v4773 = vmul.f32 %v4741, 0.2
      %v4774 = vmul.f32 %v4742, 0.2
      %v4775 = vmul.f32 %v4743, 0.2
      %v4776 = vmul.f32 %v4744, 0.2
      %v4777 = vmul.f32 %v4745, 0.2
      %v4778 = vmul.f32 %v4746, 0.2
      %v4779 = vmul.f32 %v4747, 0.2
      %v4780 = vmul.f32 %v4748, 0.2
      %v4781 = vmul.f32 %v4749, 0.2
      %v4782 = vmul.f32 %v4750, 0.2
      %v4783 = vmul.f32 %v4751, 0.2
      %v4784 = vmul.f32 %v4752, 0.2
      %v4785 = vmul.f32 %v4753, 0.2
      %v4786 = vmul.f32 %v4754, 0.2
      %v4787 = vmul.f32 %v4755, 0.2
      %v4788 = vmul.f32 %v4756, 0.2
      %v4789 = vmul.f32 %v4757, 0.2
      %v4790 = vmul.f32 %v4758, 0.2
      %v4791 = vmul.f32 %v4759, 0.2
      %v4792 = vmul.f32 %v4760, 0.2
      %v4793 = vmul.f32 %v4761, 0.2
      %v4794 = vmul.f32 %v4762, 0.2
      %v4795 = vmul.f32 %v4763, 0.2
      %v4796 = vmul.f32 %v4764, 0.2
      %v4797 = vmul.f32 %v4765, 0.2
      %v4798 = vmax.f32 %v4734, %v4766
      %v4799 = vmax.f32 %v4735, %v4767
      %v4800 = vmax.f32 %v4736, %v4768
      %v4801 = vmax.f32 %v4737, %v4769
      %v4802 = vmax.f32 %v4738, %v4770
      %v4803 = vmax.f32 %v4739, %v4771
      %v4804 = vmax.f32 %v4740, %v4772
      %v4805 = vmax.f32 %v4741, %v4773
      %v4806 = vmax.f32 %v4742, %v4774
      %v4807 = vmax.f32 %v4743, %v4775
      %v4808 = vmax.f32 %v4744, %v4776
      %v4809 = vmax.f32 %v4745, %v4777
      %v4810 = vmax.f32 %v4746, %v4778
      %v4811 = vmax.f32 %v4747, %v4779
      %v4812 = vmax.f32 %v4748, %v4780
      %v4813 = vmax.f32 %v4749, %v4781
      %v4814 = vmax.f32 %v4750, %v4782
      %v4815 = vmax.f32 %v4751, %v4783
      %v4816 = vmax.f32 %v4752, %v4784
      %v4817 = vmax.f32 %v4753, %v4785
      %v4818 = vmax.f32 %v4754, %v4786
      %v4819 = vmax.f32 %v4755, %v4787
      %v4820 = vmax.f32 %v4756, %v4788
      %v4821 = vmax.f32 %v4757, %v4789
      %v4822 = vmax.f32 %v4758, %v4790
      %v4823 = vmax.f32 %v4759, %v4791
      %v4824 = vmax.f32 %v4760, %v4792
      %v4825 = vmax.f32 %v4761, %v4793
      %v4826 = vmax.f32 %v4762, %v4794
      %v4827 = vmax.f32 %v4763, %v4795
      %v4828 = vmax.f32 %v4764, %v4796
      %v4829 = vmax.f32 %v4765, %v4797
      %v4830 = vpack.c.bf16 %v4799, %v4798
      %v4831 = vpack.c.bf16 %v4801, %v4800
      %v4832 = vpack.c.bf16 %v4803, %v4802
      %v4833 = vpack.c.bf16 %v4805, %v4804
      %v4834 = vpack.c.bf16 %v4807, %v4806
      %v4835 = vpack.c.bf16 %v4809, %v4808
      %v4836 = vpack.c.bf16 %v4811, %v4810
      %v4837 = vpack.c.bf16 %v4813, %v4812
      %v4838 = vpack.c.bf16 %v4815, %v4814
      %v4839 = vpack.c.bf16 %v4817, %v4816
      %v4840 = vpack.c.bf16 %v4819, %v4818
      %v4841 = vpack.c.bf16 %v4821, %v4820
      %v4842 = vpack.c.bf16 %v4823, %v4822
      %v4843 = vpack.c.bf16 %v4825, %v4824
      %v4844 = vpack.c.bf16 %v4827, %v4826
      %v4845 = vpack.c.bf16 %v4829, %v4828
      %v4846 = vld [vmem:[%s4] sm:$0xf]
      %v4847 = vld [vmem:[%s4 + $0x4] sm:$0xf]
      %v4848 = vld [vmem:[%s4 + $0x8] sm:$0xf]
      %v4849 = vld [vmem:[%s4 + $0xc] sm:$0xf]
      %v4850 = vld [vmem:[%s4 + $0x10] sm:$0xf]
      %v4851 = vld [vmem:[%s4 + $0x14] sm:$0xf]
      %v4852 = vld [vmem:[%s4 + $0x18] sm:$0xf]
      %v4853 = vld [vmem:[%s4 + $0x1c] sm:$0xf]
      %v4854 = vld [vmem:[%s4 + $0x20] sm:$0xf]
      %v4855 = vld [vmem:[%s4 + $0x24] sm:$0xf]
      %v4856 = vld [vmem:[%s4 + $0x28] sm:$0xf]
      %v4857 = vld [vmem:[%s4 + $0x2c] sm:$0xf]
      %v4870 = vunpack.c.l.b16 %v4846
      %v4871 = vunpack.c.l.b16 %v4847
      %v4872 = vunpack.c.l.b16 %v4848
      %v4873 = vunpack.c.l.b16 %v4849
      %v4874 = vunpack.c.l.b16 %v4850
      %v4875 = vunpack.c.l.b16 %v4851
      %v4876 = vunpack.c.l.b16 %v4852
      %v4877 = vunpack.c.l.b16 %v4853
      %v4878 = vunpack.c.l.b16 %v4854
      %v4879 = vunpack.c.l.b16 %v4855
      %v4880 = vunpack.c.l.b16 %v4856
      %v4881 = vunpack.c.l.b16 %v4857
      %v4882 = vpack.c.b16 %v4871, %v4870
      %v4883 = vpack.c.b16 %v4873, %v4872
      %v4884 = vpack.c.b16 %v4875, %v4874
      %v4885 = vpack.c.b16 %v4877, %v4876
      %v4886 = vpack.c.b16 %v4879, %v4878
      %v4887 = vpack.c.b16 %v4881, %v4880
      %vm4894 = vcmask 785408
      %v4896 = vsel %vm4894, %v4830, 0
      %v4899 = vsel %vm4894, %v4831, 0
      %v4902 = vsel %vm4894, %v4832, 0
      %v4905 = vsel %vm4894, %v4833, 0
      %v4908 = vsel %vm4894, %v4834, 0
      %v4911 = vsel %vm4894, %v4835, 0
      %v4914 = vsel %vm4894, %v4836, 0
      %v4917 = vsel %vm4894, %v4837, 0
      %v4920 = vsel %vm4894, %v4838, 0
      %v4923 = vsel %vm4894, %v4839, 0
      %v4926 = vsel %vm4894, %v4840, 0
      %v4929 = vsel %vm4894, %v4841, 0
      %v4932 = vsel %vm4894, %v4842, 0
      %v4935 = vsel %vm4894, %v4843, 0
      %v4938 = vsel %vm4894, %v4844, 0
      %v4941 = vsel %vm4894, %v4845, 0
      %4943 = vmatprep.subr.bf16.mxu0 0
      %4944 = vmatpush1.bf16.msra.mxu0 %v4882
      %4945 = vmatprep.subr.bf16.mxu0 0
      %4946 = vmatpush1.bf16.msra.mxu0 %v4883
      %4947 = vmatprep.subr.bf16.mxu0 0
      %4948 = vmatpush1.bf16.msra.mxu0 %v4884
      %4949 = vmatprep.subr.bf16.mxu0 0
      %4950 = vmatpush1.bf16.msra.mxu0 %v4885
      %4951 = vmatprep.subr.bf16.mxu0 0
      %4952 = vmatpush1.bf16.msra.mxu0 %v4886
      %4953 = vmatprep.subr.bf16.mxu0 0
      %4954 = vmatpush1.bf16.msra.mxu0 %v4887
      %4955 = vmatprep.subr.bf16.mxu0 0
      %4956 = vmatpush1.bf16.msra.mxu0 0
      %4957 = vmatprep.subr.bf16.mxu0 0
      %4958 = vmatpush1.bf16.msra.mxu0 0
      %4959 = vmatprep.subr.bf16.mxu0 0
      %4960 = vmatpush1.bf16.msra.mxu0 0
      %4961 = vmatprep.subr.bf16.mxu0 0
      %4962 = vmatpush1.bf16.msra.mxu0 0
      %4963 = vmatprep.subr.bf16.mxu0 0
      %4964 = vmatpush1.bf16.msra.mxu0 0
      %4965 = vmatprep.subr.bf16.mxu0 0
      %4966 = vmatpush1.bf16.msra.mxu0 0
      %4967 = vmatprep.subr.bf16.mxu0 0
      %4968 = vmatpush1.bf16.msra.mxu0 0
      %4969 = vmatprep.subr.bf16.mxu0 0
      %4970 = vmatpush1.bf16.msra.mxu0 0
      %4971 = vmatprep.subr.bf16.mxu0 0
      %4972 = vmatpush1.bf16.msra.mxu0 0
      %4973 = vmatprep.subr.bf16.mxu0 0
      %4974 = vmatpush1.bf16.msra.mxu0 0
      %4975 = vmatprep.mubr.bf16.mxu0 0
      %4976 = vmatmul.mubr.bf16.gmra.mrb[0].mxu0 %v4896
      %v4977 = vpop.f32.mrb[0].mxu0
      %v4978 = vadd.f32 0.0, %v4977
      %v4979 = vpop.f32.mrb[0].mxu0
      %v4980 = vpop.f32.mrb[0].mxu0
      %v4981 = vadd.f32 0.0, %v4980
      %v4982 = vpop.f32.mrb[0].mxu0
      %4983 = vmatprep.mubr.bf16.mxu0 0
      %4984 = vmatmul.mubr.bf16.gmra.mrb[0].mxu0 %v4899
      %v4985 = vpop.f32.mrb[0].mxu0
      %v4986 = vadd.f32 0.0, %v4985
      %v4987 = vpop.f32.mrb[0].mxu0
      %v4988 = vpop.f32.mrb[0].mxu0
      %v4989 = vadd.f32 0.0, %v4988
      %v4990 = vpop.f32.mrb[0].mxu0
      %4991 = vmatprep.mubr.bf16.mxu0 0
      %4992 = vmatmul.mubr.bf16.gmra.mrb[0].mxu0 %v4902
      %v4993 = vpop.f32.mrb[0].mxu0
      %v4994 = vadd.f32 0.0, %v4993
      %v4995 = vpop.f32.mrb[0].mxu0
      %v4996 = vpop.f32.mrb[0].mxu0
      %v4997 = vadd.f32 0.0, %v4996
      %v4998 = vpop.f32.mrb[0].mxu0
      %4999 = vmatprep.mubr.bf16.mxu0 0
      %5000 = vmatmul.mubr.bf16.gmra.mrb[0].mxu0 %v4905
      %v5001 = vpop.f32.mrb[0].mxu0
      %v5002 = vadd.f32 0.0, %v5001
      %v5003 = vpop.f32.mrb[0].mxu0
      %v5004 = vpop.f32.mrb[0].mxu0
      %v5005 = vadd.f32 0.0, %v5004
      %v5006 = vpop.f32.mrb[0].mxu0
      %5007 = vmatprep.mubr.bf16.mxu0 0
      %5008 = vmatmul.mubr.bf16.gmra.mrb[0].mxu0 %v4908
      %v5009 = vpop.f32.mrb[0].mxu0
      %v5010 = vadd.f32 0.0, %v5009
      %v5011 = vpop.f32.mrb[0].mxu0
      %v5012 = vpop.f32.mrb[0].mxu0
      %v5013 = vadd.f32 0.0, %v5012
      %v5014 = vpop.f32.mrb[0].mxu0
      %5015 = vmatprep.mubr.bf16.mxu0 0
      %5016 = vmatmul.mubr.bf16.gmra.mrb[0].mxu0 %v4911
      %v5017 = vpop.f32.mrb[0].mxu0
      %v5018 = vadd.f32 0.0, %v5017
      %v5019 = vpop.f32.mrb[0].mxu0
      %v5020 = vpop.f32.mrb[0].mxu0
      %v5021 = vadd.f32 0.0, %v5020
      %v5022 = vpop.f32.mrb[0].mxu0
      %5023 = vmatprep.mubr.bf16.mxu0 0
      %5024 = vmatmul.mubr.bf16.gmra.mrb[0].mxu0 %v4914
      %v5025 = vpop.f32.mrb[0].mxu0
      %v5026 = vadd.f32 0.0, %v5025
      %v5027 = vpop.f32.mrb[0].mxu0
      %v5028 = vpop.f32.mrb[0].mxu0
      %v5029 = vadd.f32 0.0, %v5028
      %v5030 = vpop.f32.mrb[0].mxu0
      %5031 = vmatprep.mubr.bf16.mxu0 0
      %5032 = vmatmul.mubr.bf16.gmra.mrb[0].mxu0 %v4917
      %v5033 = vpop.f32.mrb[0].mxu0
      %v5034 = vadd.f32 0.0, %v5033
      %v5035 = vpop.f32.mrb[0].mxu0
      %v5036 = vpop.f32.mrb[0].mxu0
      %v5037 = vadd.f32 0.0, %v5036
      %v5038 = vpop.f32.mrb[0].mxu0
      %5039 = vmatprep.mubr.bf16.mxu0 0
      %5040 = vmatmul.mubr.bf16.gmra.mrb[0].mxu0 %v4920
      %v5041 = vpop.f32.mrb[0].mxu0
      %v5042 = vadd.f32 0.0, %v5041
      %v5043 = vpop.f32.mrb[0].mxu0
      %v5044 = vpop.f32.mrb[0].mxu0
      %v5045 = vadd.f32 0.0, %v5044
      %v5046 = vpop.f32.mrb[0].mxu0
      %5047 = vmatprep.mubr.bf16.mxu0 0
      %5048 = vmatmul.mubr.bf16.gmra.mrb[0].mxu0 %v4923
      %v5049 = vpop.f32.mrb[0].mxu0
      %v5050 = vadd.f32 0.0, %v5049
      %v5051 = vpop.f32.mrb[0].mxu0
      %v5052 = vpop.f32.mrb[0].mxu0
      %v5053 = vadd.f32 0.0, %v5052
      %v5054 = vpop.f32.mrb[0].mxu0
      %5055 = vmatprep.mubr.bf16.mxu0 0
      %5056 = vmatmul.mubr.bf16.gmra.mrb[0].mxu0 %v4926
      %v5057 = vpop.f32.mrb[0].mxu0
      %v5058 = vadd.f32 0.0, %v5057
      %v5059 = vpop.f32.mrb[0].mxu0
      %v5060 = vpop.f32.mrb[0].mxu0
      %v5061 = vadd.f32 0.0, %v5060
      %v5062 = vpop.f32.mrb[0].mxu0
      %5063 = vmatprep.mubr.bf16.mxu0 0
      %5064 = vmatmul.mubr.bf16.gmra.mrb[0].mxu0 %v4929
      %v5065 = vpop.f32.mrb[0].mxu0
      %v5066 = vadd.f32 0.0, %v5065
      %v5067 = vpop.f32.mrb[0].mxu0
      %v5068 = vpop.f32.mrb[0].mxu0
      %v5069 = vadd.f32 0.0, %v5068
      %v5070 = vpop.f32.mrb[0].mxu0
      %5071 = vmatprep.mubr.bf16.mxu0 0
      %5072 = vmatmul.mubr.bf16.gmra.mrb[0].mxu0 %v4932
      %v5073 = vpop.f32.mrb[0].mxu0
      %v5074 = vadd.f32 0.0, %v5073
      %v5075 = vpop.f32.mrb[0].mxu0
      %v5076 = vpop.f32.mrb[0].mxu0
      %v5077 = vadd.f32 0.0, %v5076
      %v5078 = vpop.f32.mrb[0].mxu0
      %5079 = vmatprep.mubr.bf16.mxu0 0
      %5080 = vmatmul.mubr.bf16.gmra.mrb[0].mxu0 %v4935
      %v5081 = vpop.f32.mrb[0].mxu0
      %v5082 = vadd.f32 0.0, %v5081
      %v5083 = vpop.f32.mrb[0].mxu0
      %v5084 = vpop.f32.mrb[0].mxu0
      %v5085 = vadd.f32 0.0, %v5084
      %v5086 = vpop.f32.mrb[0].mxu0
      %5087 = vmatprep.mubr.bf16.mxu0 0
      %5088 = vmatmul.mubr.bf16.gmra.mrb[0].mxu0 %v4938
      %v5089 = vpop.f32.mrb[0].mxu0
      %v5090 = vadd.f32 0.0, %v5089
      %v5091 = vpop.f32.mrb[0].mxu0
      %v5092 = vpop.f32.mrb[0].mxu0
      %v5093 = vadd.f32 0.0, %v5092
      %v5094 = vpop.f32.mrb[0].mxu0
      %5095 = vmatprep.mubr.bf16.mxu0 0
      %5096 = vmatmul.mubr.bf16.gmra.mrb[0].mxu0 %v4941
      %v5097 = vpop.f32.mrb[0].mxu0
      %v5098 = vadd.f32 0.0, %v5097
      %v5099 = vpop.f32.mrb[0].mxu0
      %v5100 = vpop.f32.mrb[0].mxu0
      %v5101 = vadd.f32 0.0, %v5100
      %v5102 = vpop.f32.mrb[0].mxu0
      %5103 = vdwg.mxu0
      %v5104 = vpack.c.bf16 %v4981, %v4978
      %v5105 = vpack.c.bf16 %v4989, %v4986
      %v5106 = vpack.c.bf16 %v4997, %v4994
      %v5107 = vpack.c.bf16 %v5005, %v5002
      %v5108 = vpack.c.bf16 %v5013, %v5010
      %v5109 = vpack.c.bf16 %v5021, %v5018
      %v5110 = vpack.c.bf16 %v5029, %v5026
      %v5111 = vpack.c.bf16 %v5037, %v5034
      %v5112 = vpack.c.bf16 %v5045, %v5042
      %v5113 = vpack.c.bf16 %v5053, %v5050
      %v5114 = vpack.c.bf16 %v5061, %v5058
      %v5115 = vpack.c.bf16 %v5069, %v5066
      %v5116 = vpack.c.bf16 %v5077, %v5074
      %v5117 = vpack.c.bf16 %v5085, %v5082
      %v5118 = vpack.c.bf16 %v5093, %v5090
      %v5119 = vpack.c.bf16 %v5101, %v5098
      %v5120 = vld [vmem:[%s3] sm:$0xff]
      %v5121 = vld [vmem:[%s3 + $0x8] sm:$0xff]
      %v5122 = vld [vmem:[%s3 + $0x10] sm:$0xff]
      %v5123 = vld [vmem:[%s3 + $0x18] sm:$0xff]
      %v5124 = vld [vmem:[%s3 + $0x20] sm:$0xff]
      %v5125 = vld [vmem:[%s3 + $0x28] sm:$0xff]
      %v5126 = vld [vmem:[%s3 + $0x30] sm:$0xff]
      %v5127 = vld [vmem:[%s3 + $0x38] sm:$0xff]
      %v5128 = vld [vmem:[%s3 + $0x40] sm:$0xff]
      %v5129 = vld [vmem:[%s3 + $0x48] sm:$0xff]
      %v5130 = vld [vmem:[%s3 + $0x50] sm:$0xff]
      %v5131 = vld [vmem:[%s3 + $0x58] sm:$0xff]
      %v5132 = vld [vmem:[%s3 + $0x60] sm:$0xff]
      %v5133 = vld [vmem:[%s3 + $0x68] sm:$0xff]
      %v5134 = vld [vmem:[%s3 + $0x70] sm:$0xff]
      %v5135 = vld [vmem:[%s3 + $0x78] sm:$0xff]
      %s5136 = scalar_lea.vmem %s4, 48
      %v5137 = vld [vmem:[%s5136] sm:$0xf]
      %v5138 = vld [vmem:[%s5136 + $0x4] sm:$0xf]
      %v5139 = vld [vmem:[%s5136 + $0x8] sm:$0xf]
      %v5140 = vld [vmem:[%s5136 + $0xc] sm:$0xf]
      %v5141 = vld [vmem:[%s5136 + $0x10] sm:$0xf]
      %v5142 = vld [vmem:[%s5136 + $0x14] sm:$0xf]
      %v5143 = vld [vmem:[%s5136 + $0x18] sm:$0xf]
      %v5144 = vld [vmem:[%s5136 + $0x1c] sm:$0xf]
      %v5145 = vld [vmem:[%s5136 + $0x20] sm:$0xf]
      %v5146 = vld [vmem:[%s5136 + $0x24] sm:$0xf]
      %v5147 = vld [vmem:[%s5136 + $0x28] sm:$0xf]
      %v5148 = vld [vmem:[%s5136 + $0x2c] sm:$0xf]
      %v5161 = vunpack.c.l.b16 %v5137
      %v5162 = vunpack.c.l.b16 %v5138
      %v5163 = vunpack.c.l.b16 %v5139
      %v5164 = vunpack.c.l.b16 %v5140
      %v5165 = vunpack.c.l.b16 %v5141
      %v5166 = vunpack.c.l.b16 %v5142
      %v5167 = vunpack.c.l.b16 %v5143
      %v5168 = vunpack.c.l.b16 %v5144
      %v5169 = vunpack.c.l.b16 %v5145
      %v5170 = vunpack.c.l.b16 %v5146
      %v5171 = vunpack.c.l.b16 %v5147
      %v5172 = vunpack.c.l.b16 %v5148
      %v5173 = vpack.c.b16 %v5162, %v5161
      %v5174 = vpack.c.b16 %v5164, %v5163
      %v5175 = vpack.c.b16 %v5166, %v5165
      %v5176 = vpack.c.b16 %v5168, %v5167
      %v5177 = vpack.c.b16 %v5170, %v5169
      %v5178 = vpack.c.b16 %v5172, %v5171
      %5185 = vmatprep.subr.bf16.mxu0 0
      %5186 = vmatpush1.bf16.msra.mxu0 %v5173
      %5187 = vmatprep.subr.bf16.mxu0 0
      %5188 = vmatpush1.bf16.msra.mxu0 %v5174
      %5189 = vmatprep.subr.bf16.mxu0 0
      %5190 = vmatpush1.bf16.msra.mxu0 %v5175
      %5191 = vmatprep.subr.bf16.mxu0 0
      %5192 = vmatpush1.bf16.msra.mxu0 %v5176
      %5193 = vmatprep.subr.bf16.mxu0 0
      %5194 = vmatpush1.bf16.msra.mxu0 %v5177
      %5195 = vmatprep.subr.bf16.mxu0 0
      %5196 = vmatpush1.bf16.msra.mxu0 %v5178
      %5197 = vmatprep.subr.bf16.mxu0 0
      %5198 = vmatpush1.bf16.msra.mxu0 0
      %5199 = vmatprep.subr.bf16.mxu0 0
      %5200 = vmatpush1.bf16.msra.mxu0 0
      %5201 = vmatprep.subr.bf16.mxu0 0
      %5202 = vmatpush1.bf16.msra.mxu0 0
      %5203 = vmatprep.subr.bf16.mxu0 0
      %5204 = vmatpush1.bf16.msra.mxu0 0
      %5205 = vmatprep.subr.bf16.mxu0 0
      %5206 = vmatpush1.bf16.msra.mxu0 0
      %5207 = vmatprep.subr.bf16.mxu0 0
      %5208 = vmatpush1.bf16.msra.mxu0 0
      %5209 = vmatprep.subr.bf16.mxu0 0
      %5210 = vmatpush1.bf16.msra.mxu0 0
      %5211 = vmatprep.subr.bf16.mxu0 0
      %5212 = vmatpush1.bf16.msra.mxu0 0
      %5213 = vmatprep.subr.bf16.mxu0 0
      %5214 = vmatpush1.bf16.msra.mxu0 0
      %5215 = vmatprep.subr.bf16.mxu0 0
      %5216 = vmatpush1.bf16.msra.mxu0 0
      %5217 = vmatprep.mubr.bf16.mxu0 0
      %5218 = vmatmul.mubr.bf16.gmra.mrb[0].mxu0 %v4896
      %v5219 = vpop.f32.mrb[0].mxu0
      %v5220 = vadd.f32 0.0, %v5219
      %v5221 = vpop.f32.mrb[0].mxu0
      %v5222 = vpop.f32.mrb[0].mxu0
      %v5223 = vadd.f32 0.0, %v5222
      %v5224 = vpop.f32.mrb[0].mxu0
      %5225 = vmatprep.mubr.bf16.mxu0 0
      %5226 = vmatmul.mubr.bf16.gmra.mrb[0].mxu0 %v4899
      %v5227 = vpop.f32.mrb[0].mxu0
      %v5228 = vadd.f32 0.0, %v5227
      %v5229 = vpop.f32.mrb[0].mxu0
      %v5230 = vpop.f32.mrb[0].mxu0
      %v5231 = vadd.f32 0.0, %v5230
      %v5232 = vpop.f32.mrb[0].mxu0
      %5233 = vmatprep.mubr.bf16.mxu0 0
      %5234 = vmatmul.mubr.bf16.gmra.mrb[0].mxu0 %v4902
      %v5235 = vpop.f32.mrb[0].mxu0
      %v5236 = vadd.f32 0.0, %v5235
      %v5237 = vpop.f32.mrb[0].mxu0
      %v5238 = vpop.f32.mrb[0].mxu0
      %v5239 = vadd.f32 0.0, %v5238
      %v5240 = vpop.f32.mrb[0].mxu0
      %5241 = vmatprep.mubr.bf16.mxu0 0
      %5242 = vmatmul.mubr.bf16.gmra.mrb[0].mxu0 %v4905
      %v5243 = vpop.f32.mrb[0].mxu0
      %v5244 = vadd.f32 0.0, %v5243
      %v5245 = vpop.f32.mrb[0].mxu0
      %v5246 = vpop.f32.mrb[0].mxu0
      %v5247 = vadd.f32 0.0, %v5246
      %v5248 = vpop.f32.mrb[0].mxu0
      %5249 = vmatprep.mubr.bf16.mxu0 0
      %5250 = vmatmul.mubr.bf16.gmra.mrb[0].mxu0 %v4908
      %v5251 = vpop.f32.mrb[0].mxu0
      %v5252 = vadd.f32 0.0, %v5251
      %v5253 = vpop.f32.mrb[0].mxu0
      %v5254 = vpop.f32.mrb[0].mxu0
      %v5255 = vadd.f32 0.0, %v5254
      %v5256 = vpop.f32.mrb[0].mxu0
      %5257 = vmatprep.mubr.bf16.mxu0 0
      %5258 = vmatmul.mubr.bf16.gmra.mrb[0].mxu0 %v4911
      %v5259 = vpop.f32.mrb[0].mxu0
      %v5260 = vadd.f32 0.0, %v5259
      %v5261 = vpop.f32.mrb[0].mxu0
      %v5262 = vpop.f32.mrb[0].mxu0
      %v5263 = vadd.f32 0.0, %v5262
      %v5264 = vpop.f32.mrb[0].mxu0
      %5265 = vmatprep.mubr.bf16.mxu0 0
      %5266 = vmatmul.mubr.bf16.gmra.mrb[0].mxu0 %v4914
      %v5267 = vpop.f32.mrb[0].mxu0
      %v5268 = vadd.f32 0.0, %v5267
      %v5269 = vpop.f32.mrb[0].mxu0
      %v5270 = vpop.f32.mrb[0].mxu0
      %v5271 = vadd.f32 0.0, %v5270
      %v5272 = vpop.f32.mrb[0].mxu0
      %5273 = vmatprep.mubr.bf16.mxu0 0
      %5274 = vmatmul.mubr.bf16.gmra.mrb[0].mxu0 %v4917
      %v5275 = vpop.f32.mrb[0].mxu0
      %v5276 = vadd.f32 0.0, %v5275
      %v5277 = vpop.f32.mrb[0].mxu0
      %v5278 = vpop.f32.mrb[0].mxu0
      %v5279 = vadd.f32 0.0, %v5278
      %v5280 = vpop.f32.mrb[0].mxu0
      %5281 = vmatprep.mubr.bf16.mxu0 0
      %5282 = vmatmul.mubr.bf16.gmra.mrb[0].mxu0 %v4920
      %v5283 = vpop.f32.mrb[0].mxu0
      %v5284 = vadd.f32 0.0, %v5283
      %v5285 = vpop.f32.mrb[0].mxu0
      %v5286 = vpop.f32.mrb[0].mxu0
      %v5287 = vadd.f32 0.0, %v5286
      %v5288 = vpop.f32.mrb[0].mxu0
      %5289 = vmatprep.mubr.bf16.mxu0 0
      %5290 = vmatmul.mubr.bf16.gmra.mrb[0].mxu0 %v4923
      %v5291 = vpop.f32.mrb[0].mxu0
      %v5292 = vadd.f32 0.0, %v5291
      %v5293 = vpop.f32.mrb[0].mxu0
      %v5294 = vpop.f32.mrb[0].mxu0
      %v5295 = vadd.f32 0.0, %v5294
      %v5296 = vpop.f32.mrb[0].mxu0
      %5297 = vmatprep.mubr.bf16.mxu0 0
      %5298 = vmatmul.mubr.bf16.gmra.mrb[0].mxu0 %v4926
      %v5299 = vpop.f32.mrb[0].mxu0
      %v5300 = vadd.f32 0.0, %v5299
      %v5301 = vpop.f32.mrb[0].mxu0
      %v5302 = vpop.f32.mrb[0].mxu0
      %v5303 = vadd.f32 0.0, %v5302
      %v5304 = vpop.f32.mrb[0].mxu0
      %5305 = vmatprep.mubr.bf16.mxu0 0
      %5306 = vmatmul.mubr.bf16.gmra.mrb[0].mxu0 %v4929
      %v5307 = vpop.f32.mrb[0].mxu0
      %v5308 = vadd.f32 0.0, %v5307
      %v5309 = vpop.f32.mrb[0].mxu0
      %v5310 = vpop.f32.mrb[0].mxu0
      %v5311 = vadd.f32 0.0, %v5310
      %v5312 = vpop.f32.mrb[0].mxu0
      %5313 = vmatprep.mubr.bf16.mxu0 0
      %5314 = vmatmul.mubr.bf16.gmra.mrb[0].mxu0 %v4932
      %v5315 = vpop.f32.mrb[0].mxu0
      %v5316 = vadd.f32 0.0, %v5315
      %v5317 = vpop.f32.mrb[0].mxu0
      %v5318 = vpop.f32.mrb[0].mxu0
      %v5319 = vadd.f32 0.0, %v5318
      %v5320 = vpop.f32.mrb[0].mxu0
      %5321 = vmatprep.mubr.bf16.mxu0 0
      %5322 = vmatmul.mubr.bf16.gmra.mrb[0].mxu0 %v4935
      %v5323 = vpop.f32.mrb[0].mxu0
      %v5324 = vadd.f32 0.0, %v5323
      %v5325 = vpop.f32.mrb[0].mxu0
      %v5326 = vpop.f32.mrb[0].mxu0
      %v5327 = vadd.f32 0.0, %v5326
      %v5328 = vpop.f32.mrb[0].mxu0
      %5329 = vmatprep.mubr.bf16.mxu0 0
      %5330 = vmatmul.mubr.bf16.gmra.mrb[0].mxu0 %v4938
      %v5331 = vpop.f32.mrb[0].mxu0
      %v5332 = vadd.f32 0.0, %v5331
      %v5333 = vpop.f32.mrb[0].mxu0
      %v5334 = vpop.f32.mrb[0].mxu0
      %v5335 = vadd.f32 0.0, %v5334
      %v5336 = vpop.f32.mrb[0].mxu0
      %5337 = vmatprep.mubr.bf16.mxu0 0
      %5338 = vmatmul.mubr.bf16.gmra.mrb[0].mxu0 %v4941
      %v5339 = vpop.f32.mrb[0].mxu0
      %v5340 = vadd.f32 0.0, %v5339
      %v5341 = vpop.f32.mrb[0].mxu0
      %v5342 = vpop.f32.mrb[0].mxu0
      %v5343 = vadd.f32 0.0, %v5342
      %v5344 = vpop.f32.mrb[0].mxu0
      %5345 = vdwg.mxu0
      %v5346 = vpack.c.bf16 %v5223, %v5220
      %v5347 = vpack.c.bf16 %v5231, %v5228
      %v5348 = vpack.c.bf16 %v5239, %v5236
      %v5349 = vpack.c.bf16 %v5247, %v5244
      %v5350 = vpack.c.bf16 %v5255, %v5252
      %v5351 = vpack.c.bf16 %v5263, %v5260
      %v5352 = vpack.c.bf16 %v5271, %v5268
      %v5353 = vpack.c.bf16 %v5279, %v5276
      %v5354 = vpack.c.bf16 %v5287, %v5284
      %v5355 = vpack.c.bf16 %v5295, %v5292
      %v5356 = vpack.c.bf16 %v5303, %v5300
      %v5357 = vpack.c.bf16 %v5311, %v5308
      %v5358 = vpack.c.bf16 %v5319, %v5316
      %v5359 = vpack.c.bf16 %v5327, %v5324
      %v5360 = vpack.c.bf16 %v5335, %v5332
      %v5361 = vpack.c.bf16 %v5343, %v5340
      %s5362 = scalar_lea.vmem %s3, 128
      %v5363 = vld [vmem:[%s5362] sm:$0xff]
      %v5364 = vld [vmem:[%s5362 + $0x8] sm:$0xff]
      %v5365 = vld [vmem:[%s5362 + $0x10] sm:$0xff]
      %v5366 = vld [vmem:[%s5362 + $0x18] sm:$0xff]
      %v5367 = vld [vmem:[%s5362 + $0x20] sm:$0xff]
      %v5368 = vld [vmem:[%s5362 + $0x28] sm:$0xff]
      %v5369 = vld [vmem:[%s5362 + $0x30] sm:$0xff]
      %v5370 = vld [vmem:[%s5362 + $0x38] sm:$0xff]
      %v5371 = vld [vmem:[%s5362 + $0x40] sm:$0xff]
      %v5372 = vld [vmem:[%s5362 + $0x48] sm:$0xff]
      %v5373 = vld [vmem:[%s5362 + $0x50] sm:$0xff]
      %v5374 = vld [vmem:[%s5362 + $0x58] sm:$0xff]
      %v5375 = vld [vmem:[%s5362 + $0x60] sm:$0xff]
      %v5376 = vld [vmem:[%s5362 + $0x68] sm:$0xff]
      %v5377 = vld [vmem:[%s5362 + $0x70] sm:$0xff]
      %v5378 = vld [vmem:[%s5362 + $0x78] sm:$0xff]
      %v5395 = vunpack.c.l.b16 %v5363
      %v5396 = vunpack.c.h.b16 %v5363
      %v5397 = vunpack.c.l.b16 %v5364
      %v5398 = vunpack.c.h.b16 %v5364
      %v5399 = vunpack.c.l.b16 %v5365
      %v5400 = vunpack.c.h.b16 %v5365
      %v5401 = vunpack.c.l.b16 %v5366
      %v5402 = vunpack.c.h.b16 %v5366
      %v5403 = vunpack.c.l.b16 %v5367
      %v5404 = vunpack.c.h.b16 %v5367
      %v5405 = vunpack.c.l.b16 %v5368
      %v5406 = vunpack.c.h.b16 %v5368
      %v5407 = vunpack.c.l.b16 %v5369
      %v5408 = vunpack.c.h.b16 %v5369
      %v5409 = vunpack.c.l.b16 %v5370
      %v5410 = vunpack.c.h.b16 %v5370
      %v5411 = vunpack.c.l.b16 %v5371
      %v5412 = vunpack.c.h.b16 %v5371
      %v5413 = vunpack.c.l.b16 %v5372
      %v5414 = vunpack.c.h.b16 %v5372
      %v5415 = vunpack.c.l.b16 %v5373
      %v5416 = vunpack.c.h.b16 %v5373
      %v5417 = vunpack.c.l.b16 %v5374
      %v5418 = vunpack.c.h.b16 %v5374
      %v5419 = vunpack.c.l.b16 %v5375
      %v5420 = vunpack.c.h.b16 %v5375
      %v5421 = vunpack.c.l.b16 %v5376
      %v5422 = vunpack.c.h.b16 %v5376
      %v5423 = vunpack.c.l.b16 %v5377
      %v5424 = vunpack.c.h.b16 %v5377
      %v5425 = vunpack.c.l.b16 %v5378
      %v5426 = vunpack.c.h.b16 %v5378
      %v5427 = vpack.c.b16 %v5397, %v5395
      %v5428 = vpack.c.b16 %v5398, %v5396
      %v5429 = vpack.c.b16 %v5401, %v5399
      %v5430 = vpack.c.b16 %v5402, %v5400
      %v5431 = vpack.c.b16 %v5405, %v5403
      %v5432 = vpack.c.b16 %v5406, %v5404
      %v5433 = vpack.c.b16 %v5409, %v5407
      %v5434 = vpack.c.b16 %v5410, %v5408
      %v5435 = vpack.c.b16 %v5413, %v5411
      %v5436 = vpack.c.b16 %v5414, %v5412
      %v5437 = vpack.c.b16 %v5417, %v5415
      %v5438 = vpack.c.b16 %v5418, %v5416
      %v5439 = vpack.c.b16 %v5421, %v5419
      %v5440 = vpack.c.b16 %v5422, %v5420
      %v5441 = vpack.c.b16 %v5425, %v5423
      %v5442 = vpack.c.b16 %v5426, %v5424
      %5459 = vmatprep.subr.bf16.mxu0 0
      %5460 = vmatpush1.bf16.msra.mxu0 %v5346
      %5461 = vmatprep.subr.bf16.mxu0 0
      %5462 = vmatpush1.bf16.msra.mxu0 %v5347
      %5463 = vmatprep.subr.bf16.mxu0 0
      %5464 = vmatpush1.bf16.msra.mxu0 %v5348
      %5465 = vmatprep.subr.bf16.mxu0 0
      %5466 = vmatpush1.bf16.msra.mxu0 %v5349
      %5467 = vmatprep.subr.bf16.mxu0 0
      %5468 = vmatpush1.bf16.msra.mxu0 %v5350
      %5469 = vmatprep.subr.bf16.mxu0 0
      %5470 = vmatpush1.bf16.msra.mxu0 %v5351
      %5471 = vmatprep.subr.bf16.mxu0 0
      %5472 = vmatpush1.bf16.msra.mxu0 %v5352
      %5473 = vmatprep.subr.bf16.mxu0 0
      %5474 = vmatpush1.bf16.msra.mxu0 %v5353
      %5475 = vmatprep.subr.bf16.mxu0 0
      %5476 = vmatpush1.bf16.msra.mxu0 %v5354
      %5477 = vmatprep.subr.bf16.mxu0 0
      %5478 = vmatpush1.bf16.msra.mxu0 %v5355
      %5479 = vmatprep.subr.bf16.mxu0 0
      %5480 = vmatpush1.bf16.msra.mxu0 %v5356
      %5481 = vmatprep.subr.bf16.mxu0 0
      %5482 = vmatpush1.bf16.msra.mxu0 %v5357
      %5483 = vmatprep.subr.bf16.mxu0 0
      %5484 = vmatpush1.bf16.msra.mxu0 %v5358
      %5485 = vmatprep.subr.bf16.mxu0 0
      %5486 = vmatpush1.bf16.msra.mxu0 %v5359
      %5487 = vmatprep.subr.bf16.mxu0 0
      %5488 = vmatpush1.bf16.msra.mxu0 %v5360
      %5489 = vmatprep.subr.bf16.mxu0 0
      %5490 = vmatpush1.bf16.msra.mxu0 %v5361
      %5491 = vmatprep.mubr.bf16.mxu0 %v5428
      %5492 = vmatmul.mubr.bf16.gmra.mrb[0].mxu0 %v5427
      %v5493 = vpop.f32.mrb[0].mxu0
      %v5494 = vadd.f32 0.0, %v5493
      %v5495 = vpop.f32.mrb[0].mxu0
      %v5496 = vpop.f32.mrb[0].mxu0
      %v5497 = vadd.f32 0.0, %v5496
      %v5498 = vpop.f32.mrb[0].mxu0
      %5499 = vmatprep.mubr.bf16.mxu0 %v5430
      %5500 = vmatmul.mubr.bf16.gmra.mrb[0].mxu0 %v5429
      %v5501 = vpop.f32.mrb[0].mxu0
      %v5502 = vadd.f32 0.0, %v5501
      %v5503 = vpop.f32.mrb[0].mxu0
      %v5504 = vpop.f32.mrb[0].mxu0
      %v5505 = vadd.f32 0.0, %v5504
      %v5506 = vpop.f32.mrb[0].mxu0
      %5507 = vmatprep.mubr.bf16.mxu0 %v5432
      %5508 = vmatmul.mubr.bf16.gmra.mrb[0].mxu0 %v5431
      %v5509 = vpop.f32.mrb[0].mxu0
      %v5510 = vadd.f32 0.0, %v5509
      %v5511 = vpop.f32.mrb[0].mxu0
      %v5512 = vpop.f32.mrb[0].mxu0
      %v5513 = vadd.f32 0.0, %v5512
      %v5514 = vpop.f32.mrb[0].mxu0
      %5515 = vmatprep.mubr.bf16.mxu0 %v5434
      %5516 = vmatmul.mubr.bf16.gmra.mrb[0].mxu0 %v5433
      %v5517 = vpop.f32.mrb[0].mxu0
      %v5518 = vadd.f32 0.0, %v5517
      %v5519 = vpop.f32.mrb[0].mxu0
      %v5520 = vpop.f32.mrb[0].mxu0
      %v5521 = vadd.f32 0.0, %v5520
      %v5522 = vpop.f32.mrb[0].mxu0
      %5523 = vmatprep.mubr.bf16.mxu0 %v5436
      %5524 = vmatmul.mubr.bf16.gmra.mrb[0].mxu0 %v5435
      %v5525 = vpop.f32.mrb[0].mxu0
      %v5526 = vadd.f32 0.0, %v5525
      %v5527 = vpop.f32.mrb[0].mxu0
      %v5528 = vpop.f32.mrb[0].mxu0
      %v5529 = vadd.f32 0.0, %v5528
      %v5530 = vpop.f32.mrb[0].mxu0
      %5531 = vmatprep.mubr.bf16.mxu0 %v5438
      %5532 = vmatmul.mubr.bf16.gmra.mrb[0].mxu0 %v5437
      %v5533 = vpop.f32.mrb[0].mxu0
      %v5534 = vadd.f32 0.0, %v5533
      %v5535 = vpop.f32.mrb[0].mxu0
      %v5536 = vpop.f32.mrb[0].mxu0
      %v5537 = vadd.f32 0.0, %v5536
      %v5538 = vpop.f32.mrb[0].mxu0
      %5539 = vmatprep.mubr.bf16.mxu0 %v5440
      %5540 = vmatmul.mubr.bf16.gmra.mrb[0].mxu0 %v5439
      %v5541 = vpop.f32.mrb[0].mxu0
      %v5542 = vadd.f32 0.0, %v5541
      %v5543 = vpop.f32.mrb[0].mxu0
      %v5544 = vpop.f32.mrb[0].mxu0
      %v5545 = vadd.f32 0.0, %v5544
      %v5546 = vpop.f32.mrb[0].mxu0
      %5547 = vmatprep.mubr.bf16.mxu0 %v5442
      %5548 = vmatmul.mubr.bf16.gmra.mrb[0].mxu0 %v5441
      %v5549 = vpop.f32.mrb[0].mxu0
      %v5550 = vadd.f32 0.0, %v5549
      %v5551 = vpop.f32.mrb[0].mxu0
      %v5552 = vpop.f32.mrb[0].mxu0
      %v5553 = vadd.f32 0.0, %v5552
      %v5554 = vpop.f32.mrb[0].mxu0
      %5555 = vdwg.mxu0
      %v5572 = vunpack.c.l.b16 %v5120
      %v5573 = vunpack.c.h.b16 %v5120
      %v5574 = vunpack.c.l.b16 %v5121
      %v5575 = vunpack.c.h.b16 %v5121
      %v5576 = vunpack.c.l.b16 %v5122
      %v5577 = vunpack.c.h.b16 %v5122
      %v5578 = vunpack.c.l.b16 %v5123
      %v5579 = vunpack.c.h.b16 %v5123
      %v5580 = vunpack.c.l.b16 %v5124
      %v5581 = vunpack.c.h.b16 %v5124
      %v5582 = vunpack.c.l.b16 %v5125
      %v5583 = vunpack.c.h.b16 %v5125
      %v5584 = vunpack.c.l.b16 %v5126
      %v5585 = vunpack.c.h.b16 %v5126
      %v5586 = vunpack.c.l.b16 %v5127
      %v5587 = vunpack.c.h.b16 %v5127
      %v5588 = vunpack.c.l.b16 %v5128
      %v5589 = vunpack.c.h.b16 %v5128
      %v5590 = vunpack.c.l.b16 %v5129
      %v5591 = vunpack.c.h.b16 %v5129
      %v5592 = vunpack.c.l.b16 %v5130
      %v5593 = vunpack.c.h.b16 %v5130
      %v5594 = vunpack.c.l.b16 %v5131
      %v5595 = vunpack.c.h.b16 %v5131
      %v5596 = vunpack.c.l.b16 %v5132
      %v5597 = vunpack.c.h.b16 %v5132
      %v5598 = vunpack.c.l.b16 %v5133
      %v5599 = vunpack.c.h.b16 %v5133
      %v5600 = vunpack.c.l.b16 %v5134
      %v5601 = vunpack.c.h.b16 %v5134
      %v5602 = vunpack.c.l.b16 %v5135
      %v5603 = vunpack.c.h.b16 %v5135
      %v5604 = vpack.c.b16 %v5574, %v5572
      %v5605 = vpack.c.b16 %v5575, %v5573
      %v5606 = vpack.c.b16 %v5578, %v5576
      %v5607 = vpack.c.b16 %v5579, %v5577
      %v5608 = vpack.c.b16 %v5582, %v5580
      %v5609 = vpack.c.b16 %v5583, %v5581
      %v5610 = vpack.c.b16 %v5586, %v5584
      %v5611 = vpack.c.b16 %v5587, %v5585
      %v5612 = vpack.c.b16 %v5590, %v5588
      %v5613 = vpack.c.b16 %v5591, %v5589
      %v5614 = vpack.c.b16 %v5594, %v5592
      %v5615 = vpack.c.b16 %v5595, %v5593
      %v5616 = vpack.c.b16 %v5598, %v5596
      %v5617 = vpack.c.b16 %v5599, %v5597
      %v5618 = vpack.c.b16 %v5602, %v5600
      %v5619 = vpack.c.b16 %v5603, %v5601
      %5636 = vmatprep.subr.bf16.mxu0 0
      %5637 = vmatpush1.bf16.msra.mxu0 %v5104
      %5638 = vmatprep.subr.bf16.mxu0 0
      %5639 = vmatpush1.bf16.msra.mxu0 %v5105
      %5640 = vmatprep.subr.bf16.mxu0 0
      %5641 = vmatpush1.bf16.msra.mxu0 %v5106
      %5642 = vmatprep.subr.bf16.mxu0 0
      %5643 = vmatpush1.bf16.msra.mxu0 %v5107
      %5644 = vmatprep.subr.bf16.mxu0 0
      %5645 = vmatpush1.bf16.msra.mxu0 %v5108
      %5646 = vmatprep.subr.bf16.mxu0 0
      %5647 = vmatpush1.bf16.msra.mxu0 %v5109
      %5648 = vmatprep.subr.bf16.mxu0 0
      %5649 = vmatpush1.bf16.msra.mxu0 %v5110
      %5650 = vmatprep.subr.bf16.mxu0 0
      %5651 = vmatpush1.bf16.msra.mxu0 %v5111
      %5652 = vmatprep.subr.bf16.mxu0 0
      %5653 = vmatpush1.bf16.msra.mxu0 %v5112
      %5654 = vmatprep.subr.bf16.mxu0 0
      %5655 = vmatpush1.bf16.msra.mxu0 %v5113
      %5656 = vmatprep.subr.bf16.mxu0 0
      %5657 = vmatpush1.bf16.msra.mxu0 %v5114
      %5658 = vmatprep.subr.bf16.mxu0 0
      %5659 = vmatpush1.bf16.msra.mxu0 %v5115
      %5660 = vmatprep.subr.bf16.mxu0 0
      %5661 = vmatpush1.bf16.msra.mxu0 %v5116
      %5662 = vmatprep.subr.bf16.mxu0 0
      %5663 = vmatpush1.bf16.msra.mxu0 %v5117
      %5664 = vmatprep.subr.bf16.mxu0 0
      %5665 = vmatpush1.bf16.msra.mxu0 %v5118
      %5666 = vmatprep.subr.bf16.mxu0 0
      %5667 = vmatpush1.bf16.msra.mxu0 %v5119
      %5668 = vmatprep.mubr.bf16.mxu0 %v5605
      %5669 = vmatmul.mubr.bf16.gmra.mrb[0].mxu0 %v5604
      %v5670 = vpop.f32.mrb[0].mxu0
      %v5671 = vadd.f32 %v5494, %v5670
      %v5672 = vpop.f32.mrb[0].mxu0
      %v5673 = vpop.f32.mrb[0].mxu0
      %v5674 = vadd.f32 %v5497, %v5673
      %v5675 = vpop.f32.mrb[0].mxu0
      %5676 = vmatprep.mubr.bf16.mxu0 %v5607
      %5677 = vmatmul.mubr.bf16.gmra.mrb[0].mxu0 %v5606
      %v5678 = vpop.f32.mrb[0].mxu0
      %v5679 = vadd.f32 %v5502, %v5678
      %v5680 = vpop.f32.mrb[0].mxu0
      %v5681 = vpop.f32.mrb[0].mxu0
      %v5682 = vadd.f32 %v5505, %v5681
      %v5683 = vpop.f32.mrb[0].mxu0
      %5684 = vmatprep.mubr.bf16.mxu0 %v5609
      %5685 = vmatmul.mubr.bf16.gmra.mrb[0].mxu0 %v5608
      %v5686 = vpop.f32.mrb[0].mxu0
      %v5687 = vadd.f32 %v5510, %v5686
      %v5688 = vpop.f32.mrb[0].mxu0
      %v5689 = vpop.f32.mrb[0].mxu0
      %v5690 = vadd.f32 %v5513, %v5689
      %v5691 = vpop.f32.mrb[0].mxu0
      %5692 = vmatprep.mubr.bf16.mxu0 %v5611
      %5693 = vmatmul.mubr.bf16.gmra.mrb[0].mxu0 %v5610
      %v5694 = vpop.f32.mrb[0].mxu0
      %v5695 = vadd.f32 %v5518, %v5694
      %v5696 = vpop.f32.mrb[0].mxu0
      %v5697 = vpop.f32.mrb[0].mxu0
      %v5698 = vadd.f32 %v5521, %v5697
      %v5699 = vpop.f32.mrb[0].mxu0
      %5700 = vmatprep.mubr.bf16.mxu0 %v5613
      %5701 = vmatmul.mubr.bf16.gmra.mrb[0].mxu0 %v5612
      %v5702 = vpop.f32.mrb[0].mxu0
      %v5703 = vadd.f32 %v5526, %v5702
      %v5704 = vpop.f32.mrb[0].mxu0
      %v5705 = vpop.f32.mrb[0].mxu0
      %v5706 = vadd.f32 %v5529, %v5705
      %v5707 = vpop.f32.mrb[0].mxu0
      %5708 = vmatprep.mubr.bf16.mxu0 %v5615
      %5709 = vmatmul.mubr.bf16.gmra.mrb[0].mxu0 %v5614
      %v5710 = vpop.f32.mrb[0].mxu0
      %v5711 = vadd.f32 %v5534, %v5710
      %v5712 = vpop.f32.mrb[0].mxu0
      %v5713 = vpop.f32.mrb[0].mxu0
      %v5714 = vadd.f32 %v5537, %v5713
      %v5715 = vpop.f32.mrb[0].mxu0
      %5716 = vmatprep.mubr.bf16.mxu0 %v5617
      %5717 = vmatmul.mubr.bf16.gmra.mrb[0].mxu0 %v5616
      %v5718 = vpop.f32.mrb[0].mxu0
      %v5719 = vadd.f32 %v5542, %v5718
      %v5720 = vpop.f32.mrb[0].mxu0
      %v5721 = vpop.f32.mrb[0].mxu0
      %v5722 = vadd.f32 %v5545, %v5721
      %v5723 = vpop.f32.mrb[0].mxu0
      %5724 = vmatprep.mubr.bf16.mxu0 %v5619
      %5725 = vmatmul.mubr.bf16.gmra.mrb[0].mxu0 %v5618
      %v5726 = vpop.f32.mrb[0].mxu0
      %v5727 = vadd.f32 %v5550, %v5726
      %v5728 = vpop.f32.mrb[0].mxu0
      %v5729 = vpop.f32.mrb[0].mxu0
      %v5730 = vadd.f32 %v5553, %v5729
      %v5731 = vpop.f32.mrb[0].mxu0
      %5732 = vdwg.mxu0
      %s5733 = scalar_lea.vmem %s4, 96
      %v5734 = vld [vmem:[%s5733] sm:$0xf]
      %v5735 = vld [vmem:[%s5733 + $0x4] sm:$0xf]
      %v5736 = vld [vmem:[%s5733 + $0x8] sm:$0xf]
      %v5737 = vld [vmem:[%s5733 + $0xc] sm:$0xf]
      %v5738 = vld [vmem:[%s5733 + $0x10] sm:$0xf]
      %v5739 = vld [vmem:[%s5733 + $0x14] sm:$0xf]
      %v5740 = vld [vmem:[%s5733 + $0x18] sm:$0xf]
      %v5741 = vld [vmem:[%s5733 + $0x1c] sm:$0xf]
      %v5742 = vld [vmem:[%s5733 + $0x20] sm:$0xf]
      %v5743 = vld [vmem:[%s5733 + $0x24] sm:$0xf]
      %v5744 = vld [vmem:[%s5733 + $0x28] sm:$0xf]
      %v5745 = vld [vmem:[%s5733 + $0x2c] sm:$0xf]
      %v5758 = vunpack.c.l.b16 %v5734
      %v5759 = vunpack.c.l.b16 %v5735
      %v5760 = vunpack.c.l.b16 %v5736
      %v5761 = vunpack.c.l.b16 %v5737
      %v5762 = vunpack.c.l.b16 %v5738
      %v5763 = vunpack.c.l.b16 %v5739
      %v5764 = vunpack.c.l.b16 %v5740
      %v5765 = vunpack.c.l.b16 %v5741
      %v5766 = vunpack.c.l.b16 %v5742
      %v5767 = vunpack.c.l.b16 %v5743
      %v5768 = vunpack.c.l.b16 %v5744
      %v5769 = vunpack.c.l.b16 %v5745
      %v5770 = vpack.c.b16 %v5759, %v5758
      %v5771 = vpack.c.b16 %v5761, %v5760
      %v5772 = vpack.c.b16 %v5763, %v5762
      %v5773 = vpack.c.b16 %v5765, %v5764
      %v5774 = vpack.c.b16 %v5767, %v5766
      %v5775 = vpack.c.b16 %v5769, %v5768
      %5782 = vmatprep.subr.bf16.mxu0 0
      %5783 = vmatpush1.bf16.msra.mxu0 %v5770
      %5784 = vmatprep.subr.bf16.mxu0 0
      %5785 = vmatpush1.bf16.msra.mxu0 %v5771
      %5786 = vmatprep.subr.bf16.mxu0 0
      %5787 = vmatpush1.bf16.msra.mxu0 %v5772
      %5788 = vmatprep.subr.bf16.mxu0 0
      %5789 = vmatpush1.bf16.msra.mxu0 %v5773
      %5790 = vmatprep.subr.bf16.mxu0 0
      %5791 = vmatpush1.bf16.msra.mxu0 %v5774
      %5792 = vmatprep.subr.bf16.mxu0 0
      %5793 = vmatpush1.bf16.msra.mxu0 %v5775
      %5794 = vmatprep.subr.bf16.mxu0 0
      %5795 = vmatpush1.bf16.msra.mxu0 0
      %5796 = vmatprep.subr.bf16.mxu0 0
      %5797 = vmatpush1.bf16.msra.mxu0 0
      %5798 = vmatprep.subr.bf16.mxu0 0
      %5799 = vmatpush1.bf16.msra.mxu0 0
      %5800 = vmatprep.subr.bf16.mxu0 0
      %5801 = vmatpush1.bf16.msra.mxu0 0
      %5802 = vmatprep.subr.bf16.mxu0 0
      %5803 = vmatpush1.bf16.msra.mxu0 0
      %5804 = vmatprep.subr.bf16.mxu0 0
      %5805 = vmatpush1.bf16.msra.mxu0 0
      %5806 = vmatprep.subr.bf16.mxu0 0
      %5807 = vmatpush1.bf16.msra.mxu0 0
      %5808 = vmatprep.subr.bf16.mxu0 0
      %5809 = vmatpush1.bf16.msra.mxu0 0
      %5810 = vmatprep.subr.bf16.mxu0 0
      %5811 = vmatpush1.bf16.msra.mxu0 0
      %5812 = vmatprep.subr.bf16.mxu0 0
      %5813 = vmatpush1.bf16.msra.mxu0 0
      %5814 = vmatprep.mubr.bf16.mxu0 0
      %5815 = vmatmul.mubr.bf16.gmra.mrb[0].mxu0 %v4896
      %v5816 = vpop.f32.mrb[0].mxu0
      %v5817 = vadd.f32 0.0, %v5816
      %v5818 = vpop.f32.mrb[0].mxu0
      %v5819 = vpop.f32.mrb[0].mxu0
      %v5820 = vadd.f32 0.0, %v5819
      %v5821 = vpop.f32.mrb[0].mxu0
      %5822 = vmatprep.mubr.bf16.mxu0 0
      %5823 = vmatmul.mubr.bf16.gmra.mrb[0].mxu0 %v4899
      %v5824 = vpop.f32.mrb[0].mxu0
      %v5825 = vadd.f32 0.0, %v5824
      %v5826 = vpop.f32.mrb[0].mxu0
      %v5827 = vpop.f32.mrb[0].mxu0
      %v5828 = vadd.f32 0.0, %v5827
      %v5829 = vpop.f32.mrb[0].mxu0
      %5830 = vmatprep.mubr.bf16.mxu0 0
      %5831 = vmatmul.mubr.bf16.gmra.mrb[0].mxu0 %v4902
      %v5832 = vpop.f32.mrb[0].mxu0
      %v5833 = vadd.f32 0.0, %v5832
      %v5834 = vpop.f32.mrb[0].mxu0
      %v5835 = vpop.f32.mrb[0].mxu0
      %v5836 = vadd.f32 0.0, %v5835
      %v5837 = vpop.f32.mrb[0].mxu0
      %5838 = vmatprep.mubr.bf16.mxu0 0
      %5839 = vmatmul.mubr.bf16.gmra.mrb[0].mxu0 %v4905
      %v5840 = vpop.f32.mrb[0].mxu0
      %v5841 = vadd.f32 0.0, %v5840
      %v5842 = vpop.f32.mrb[0].mxu0
      %v5843 = vpop.f32.mrb[0].mxu0
      %v5844 = vadd.f32 0.0, %v5843
      %v5845 = vpop.f32.mrb[0].mxu0
      %5846 = vmatprep.mubr.bf16.mxu0 0
      %5847 = vmatmul.mubr.bf16.gmra.mrb[0].mxu0 %v4908
      %v5848 = vpop.f32.mrb[0].mxu0
      %v5849 = vadd.f32 0.0, %v5848
      %v5850 = vpop.f32.mrb[0].mxu0
      %v5851 = vpop.f32.mrb[0].mxu0
      %v5852 = vadd.f32 0.0, %v5851
      %v5853 = vpop.f32.mrb[0].mxu0
      %5854 = vmatprep.mubr.bf16.mxu0 0
      %5855 = vmatmul.mubr.bf16.gmra.mrb[0].mxu0 %v4911
      %v5856 = vpop.f32.mrb[0].mxu0
      %v5857 = vadd.f32 0.0, %v5856
      %v5858 = vpop.f32.mrb[0].mxu0
      %v5859 = vpop.f32.mrb[0].mxu0
      %v5860 = vadd.f32 0.0, %v5859
      %v5861 = vpop.f32.mrb[0].mxu0
      %5862 = vmatprep.mubr.bf16.mxu0 0
      %5863 = vmatmul.mubr.bf16.gmra.mrb[0].mxu0 %v4914
      %v5864 = vpop.f32.mrb[0].mxu0
      %v5865 = vadd.f32 0.0, %v5864
      %v5866 = vpop.f32.mrb[0].mxu0
      %v5867 = vpop.f32.mrb[0].mxu0
      %v5868 = vadd.f32 0.0, %v5867
      %v5869 = vpop.f32.mrb[0].mxu0
      %5870 = vmatprep.mubr.bf16.mxu0 0
      %5871 = vmatmul.mubr.bf16.gmra.mrb[0].mxu0 %v4917
      %v5872 = vpop.f32.mrb[0].mxu0
      %v5873 = vadd.f32 0.0, %v5872
      %v5874 = vpop.f32.mrb[0].mxu0
      %v5875 = vpop.f32.mrb[0].mxu0
      %v5876 = vadd.f32 0.0, %v5875
      %v5877 = vpop.f32.mrb[0].mxu0
      %5878 = vmatprep.mubr.bf16.mxu0 0
      %5879 = vmatmul.mubr.bf16.gmra.mrb[0].mxu0 %v4920
      %v5880 = vpop.f32.mrb[0].mxu0
      %v5881 = vadd.f32 0.0, %v5880
      %v5882 = vpop.f32.mrb[0].mxu0
      %v5883 = vpop.f32.mrb[0].mxu0
      %v5884 = vadd.f32 0.0, %v5883
      %v5885 = vpop.f32.mrb[0].mxu0
      %5886 = vmatprep.mubr.bf16.mxu0 0
      %5887 = vmatmul.mubr.bf16.gmra.mrb[0].mxu0 %v4923
      %v5888 = vpop.f32.mrb[0].mxu0
      %v5889 = vadd.f32 0.0, %v5888
      %v5890 = vpop.f32.mrb[0].mxu0
      %v5891 = vpop.f32.mrb[0].mxu0
      %v5892 = vadd.f32 0.0, %v5891
      %v5893 = vpop.f32.mrb[0].mxu0
      %5894 = vmatprep.mubr.bf16.mxu0 0
      %5895 = vmatmul.mubr.bf16.gmra.mrb[0].mxu0 %v4926
      %v5896 = vpop.f32.mrb[0].mxu0
      %v5897 = vadd.f32 0.0, %v5896
      %v5898 = vpop.f32.mrb[0].mxu0
      %v5899 = vpop.f32.mrb[0].mxu0
      %v5900 = vadd.f32 0.0, %v5899
      %v5901 = vpop.f32.mrb[0].mxu0
      %5902 = vmatprep.mubr.bf16.mxu0 0
      %5903 = vmatmul.mubr.bf16.gmra.mrb[0].mxu0 %v4929
      %v5904 = vpop.f32.mrb[0].mxu0
      %v5905 = vadd.f32 0.0, %v5904
      %v5906 = vpop.f32.mrb[0].mxu0
      %v5907 = vpop.f32.mrb[0].mxu0
      %v5908 = vadd.f32 0.0, %v5907
      %v5909 = vpop.f32.mrb[0].mxu0
      %5910 = vmatprep.mubr.bf16.mxu0 0
      %5911 = vmatmul.mubr.bf16.gmra.mrb[0].mxu0 %v4932
      %v5912 = vpop.f32.mrb[0].mxu0
      %v5913 = vadd.f32 0.0, %v5912
      %v5914 = vpop.f32.mrb[0].mxu0
      %v5915 = vpop.f32.mrb[0].mxu0
      %v5916 = vadd.f32 0.0, %v5915
      %v5917 = vpop.f32.mrb[0].mxu0
      %5918 = vmatprep.mubr.bf16.mxu0 0
      %5919 = vmatmul.mubr.bf16.gmra.mrb[0].mxu0 %v4935
      %v5920 = vpop.f32.mrb[0].mxu0
      %v5921 = vadd.f32 0.0, %v5920
      %v5922 = vpop.f32.mrb[0].mxu0
      %v5923 = vpop.f32.mrb[0].mxu0
      %v5924 = vadd.f32 0.0, %v5923
      %v5925 = vpop.f32.mrb[0].mxu0
      %5926 = vmatprep.mubr.bf16.mxu0 0
      %5927 = vmatmul.mubr.bf16.gmra.mrb[0].mxu0 %v4938
      %v5928 = vpop.f32.mrb[0].mxu0
      %v5929 = vadd.f32 0.0, %v5928
      %v5930 = vpop.f32.mrb[0].mxu0
      %v5931 = vpop.f32.mrb[0].mxu0
      %v5932 = vadd.f32 0.0, %v5931
      %v5933 = vpop.f32.mrb[0].mxu0
      %5934 = vmatprep.mubr.bf16.mxu0 0
      %5935 = vmatmul.mubr.bf16.gmra.mrb[0].mxu0 %v4941
      %v5936 = vpop.f32.mrb[0].mxu0
      %v5937 = vadd.f32 0.0, %v5936
      %v5938 = vpop.f32.mrb[0].mxu0
      %v5939 = vpop.f32.mrb[0].mxu0
      %v5940 = vadd.f32 0.0, %v5939
      %v5941 = vpop.f32.mrb[0].mxu0
      %5942 = vdwg.mxu0
      %v5943 = vpack.c.bf16 %v5820, %v5817
      %v5944 = vpack.c.bf16 %v5828, %v5825
      %v5945 = vpack.c.bf16 %v5836, %v5833
      %v5946 = vpack.c.bf16 %v5844, %v5841
      %v5947 = vpack.c.bf16 %v5852, %v5849
      %v5948 = vpack.c.bf16 %v5860, %v5857
      %v5949 = vpack.c.bf16 %v5868, %v5865
      %v5950 = vpack.c.bf16 %v5876, %v5873
      %v5951 = vpack.c.bf16 %v5884, %v5881
      %v5952 = vpack.c.bf16 %v5892, %v5889
      %v5953 = vpack.c.bf16 %v5900, %v5897
      %v5954 = vpack.c.bf16 %v5908, %v5905
      %v5955 = vpack.c.bf16 %v5916, %v5913
      %v5956 = vpack.c.bf16 %v5924, %v5921
      %v5957 = vpack.c.bf16 %v5932, %v5929
      %v5958 = vpack.c.bf16 %v5940, %v5937
      %s5959 = scalar_lea.vmem %s3, 256
      %v5960 = vld [vmem:[%s5959] sm:$0xff]
      %v5961 = vld [vmem:[%s5959 + $0x8] sm:$0xff]
      %v5962 = vld [vmem:[%s5959 + $0x10] sm:$0xff]
      %v5963 = vld [vmem:[%s5959 + $0x18] sm:$0xff]
      %v5964 = vld [vmem:[%s5959 + $0x20] sm:$0xff]
      %v5965 = vld [vmem:[%s5959 + $0x28] sm:$0xff]
      %v5966 = vld [vmem:[%s5959 + $0x30] sm:$0xff]
      %v5967 = vld [vmem:[%s5959 + $0x38] sm:$0xff]
      %v5968 = vld [vmem:[%s5959 + $0x40] sm:$0xff]
      %v5969 = vld [vmem:[%s5959 + $0x48] sm:$0xff]
      %v5970 = vld [vmem:[%s5959 + $0x50] sm:$0xff]
      %v5971 = vld [vmem:[%s5959 + $0x58] sm:$0xff]
      %v5972 = vld [vmem:[%s5959 + $0x60] sm:$0xff]
      %v5973 = vld [vmem:[%s5959 + $0x68] sm:$0xff]
      %v5974 = vld [vmem:[%s5959 + $0x70] sm:$0xff]
      %v5975 = vld [vmem:[%s5959 + $0x78] sm:$0xff]
      %v5992 = vunpack.c.l.b16 %v5960
      %v5993 = vunpack.c.h.b16 %v5960
      %v5994 = vunpack.c.l.b16 %v5961
      %v5995 = vunpack.c.h.b16 %v5961
      %v5996 = vunpack.c.l.b16 %v5962
      %v5997 = vunpack.c.h.b16 %v5962
      %v5998 = vunpack.c.l.b16 %v5963
      %v5999 = vunpack.c.h.b16 %v5963
      %v6000 = vunpack.c.l.b16 %v5964
      %v6001 = vunpack.c.h.b16 %v5964
      %v6002 = vunpack.c.l.b16 %v5965
      %v6003 = vunpack.c.h.b16 %v5965
      %v6004 = vunpack.c.l.b16 %v5966
      %v6005 = vunpack.c.h.b16 %v5966
      %v6006 = vunpack.c.l.b16 %v5967
      %v6007 = vunpack.c.h.b16 %v5967
      %v6008 = vunpack.c.l.b16 %v5968
      %v6009 = vunpack.c.h.b16 %v5968
      %v6010 = vunpack.c.l.b16 %v5969
      %v6011 = vunpack.c.h.b16 %v5969
      %v6012 = vunpack.c.l.b16 %v5970
      %v6013 = vunpack.c.h.b16 %v5970
      %v6014 = vunpack.c.l.b16 %v5971
      %v6015 = vunpack.c.h.b16 %v5971
      %v6016 = vunpack.c.l.b16 %v5972
      %v6017 = vunpack.c.h.b16 %v5972
      %v6018 = vunpack.c.l.b16 %v5973
      %v6019 = vunpack.c.h.b16 %v5973
      %v6020 = vunpack.c.l.b16 %v5974
      %v6021 = vunpack.c.h.b16 %v5974
      %v6022 = vunpack.c.l.b16 %v5975
      %v6023 = vunpack.c.h.b16 %v5975
      %v6024 = vpack.c.b16 %v5994, %v5992
      %v6025 = vpack.c.b16 %v5995, %v5993
      %v6026 = vpack.c.b16 %v5998, %v5996
      %v6027 = vpack.c.b16 %v5999, %v5997
      %v6028 = vpack.c.b16 %v6002, %v6000
      %v6029 = vpack.c.b16 %v6003, %v6001
      %v6030 = vpack.c.b16 %v6006, %v6004
      %v6031 = vpack.c.b16 %v6007, %v6005
      %v6032 = vpack.c.b16 %v6010, %v6008
      %v6033 = vpack.c.b16 %v6011, %v6009
      %v6034 = vpack.c.b16 %v6014, %v6012
      %v6035 = vpack.c.b16 %v6015, %v6013
      %v6036 = vpack.c.b16 %v6018, %v6016
      %v6037 = vpack.c.b16 %v6019, %v6017
      %v6038 = vpack.c.b16 %v6022, %v6020
      %v6039 = vpack.c.b16 %v6023, %v6021
      %6056 = vmatprep.subr.bf16.mxu0 0
      %6057 = vmatpush1.bf16.msra.mxu0 %v5943
      %6058 = vmatprep.subr.bf16.mxu0 0
      %6059 = vmatpush1.bf16.msra.mxu0 %v5944
      %6060 = vmatprep.subr.bf16.mxu0 0
      %6061 = vmatpush1.bf16.msra.mxu0 %v5945
      %6062 = vmatprep.subr.bf16.mxu0 0
      %6063 = vmatpush1.bf16.msra.mxu0 %v5946
      %6064 = vmatprep.subr.bf16.mxu0 0
      %6065 = vmatpush1.bf16.msra.mxu0 %v5947
      %6066 = vmatprep.subr.bf16.mxu0 0
      %6067 = vmatpush1.bf16.msra.mxu0 %v5948
      %6068 = vmatprep.subr.bf16.mxu0 0
      %6069 = vmatpush1.bf16.msra.mxu0 %v5949
      %6070 = vmatprep.subr.bf16.mxu0 0
      %6071 = vmatpush1.bf16.msra.mxu0 %v5950
      %6072 = vmatprep.subr.bf16.mxu0 0
      %6073 = vmatpush1.bf16.msra.mxu0 %v5951
      %6074 = vmatprep.subr.bf16.mxu0 0
      %6075 = vmatpush1.bf16.msra.mxu0 %v5952
      %6076 = vmatprep.subr.bf16.mxu0 0
      %6077 = vmatpush1.bf16.msra.mxu0 %v5953
      %6078 = vmatprep.subr.bf16.mxu0 0
      %6079 = vmatpush1.bf16.msra.mxu0 %v5954
      %6080 = vmatprep.subr.bf16.mxu0 0
      %6081 = vmatpush1.bf16.msra.mxu0 %v5955
      %6082 = vmatprep.subr.bf16.mxu0 0
      %6083 = vmatpush1.bf16.msra.mxu0 %v5956
      %6084 = vmatprep.subr.bf16.mxu0 0
      %6085 = vmatpush1.bf16.msra.mxu0 %v5957
      %6086 = vmatprep.subr.bf16.mxu0 0
      %6087 = vmatpush1.bf16.msra.mxu0 %v5958
      %6088 = vmatprep.mubr.bf16.mxu0 %v6025
      %6089 = vmatmul.mubr.bf16.gmra.mrb[0].mxu0 %v6024
      %v6090 = vpop.f32.mrb[0].mxu0
      %v6091 = vadd.f32 0.0, %v6090
      %v6092 = vpop.f32.mrb[0].mxu0
      %v6093 = vpop.f32.mrb[0].mxu0
      %v6094 = vadd.f32 0.0, %v6093
      %v6095 = vpop.f32.mrb[0].mxu0
      %6096 = vmatprep.mubr.bf16.mxu0 %v6027
      %6097 = vmatmul.mubr.bf16.gmra.mrb[0].mxu0 %v6026
      %v6098 = vpop.f32.mrb[0].mxu0
      %v6099 = vadd.f32 0.0, %v6098
      %v6100 = vpop.f32.mrb[0].mxu0
      %v6101 = vpop.f32.mrb[0].mxu0
      %v6102 = vadd.f32 0.0, %v6101
      %v6103 = vpop.f32.mrb[0].mxu0
      %6104 = vmatprep.mubr.bf16.mxu0 %v6029
      %6105 = vmatmul.mubr.bf16.gmra.mrb[0].mxu0 %v6028
      %v6106 = vpop.f32.mrb[0].mxu0
      %v6107 = vadd.f32 0.0, %v6106
      %v6108 = vpop.f32.mrb[0].mxu0
      %v6109 = vpop.f32.mrb[0].mxu0
      %v6110 = vadd.f32 0.0, %v6109
      %v6111 = vpop.f32.mrb[0].mxu0
      %6112 = vmatprep.mubr.bf16.mxu0 %v6031
      %6113 = vmatmul.mubr.bf16.gmra.mrb[0].mxu0 %v6030
      %v6114 = vpop.f32.mrb[0].mxu0
      %v6115 = vadd.f32 0.0, %v6114
      %v6116 = vpop.f32.mrb[0].mxu0
      %v6117 = vpop.f32.mrb[0].mxu0
      %v6118 = vadd.f32 0.0, %v6117
      %v6119 = vpop.f32.mrb[0].mxu0
      %6120 = vmatprep.mubr.bf16.mxu0 %v6033
      %6121 = vmatmul.mubr.bf16.gmra.mrb[0].mxu0 %v6032
      %v6122 = vpop.f32.mrb[0].mxu0
      %v6123 = vadd.f32 0.0, %v6122
      %v6124 = vpop.f32.mrb[0].mxu0
      %v6125 = vpop.f32.mrb[0].mxu0
      %v6126 = vadd.f32 0.0, %v6125
      %v6127 = vpop.f32.mrb[0].mxu0
      %6128 = vmatprep.mubr.bf16.mxu0 %v6035
      %6129 = vmatmul.mubr.bf16.gmra.mrb[0].mxu0 %v6034
      %v6130 = vpop.f32.mrb[0].mxu0
      %v6131 = vadd.f32 0.0, %v6130
      %v6132 = vpop.f32.mrb[0].mxu0
      %v6133 = vpop.f32.mrb[0].mxu0
      %v6134 = vadd.f32 0.0, %v6133
      %v6135 = vpop.f32.mrb[0].mxu0
      %6136 = vmatprep.mubr.bf16.mxu0 %v6037
      %6137 = vmatmul.mubr.bf16.gmra.mrb[0].mxu0 %v6036
      %v6138 = vpop.f32.mrb[0].mxu0
      %v6139 = vadd.f32 0.0, %v6138
      %v6140 = vpop.f32.mrb[0].mxu0
      %v6141 = vpop.f32.mrb[0].mxu0
      %v6142 = vadd.f32 0.0, %v6141
      %v6143 = vpop.f32.mrb[0].mxu0
      %6144 = vmatprep.mubr.bf16.mxu0 %v6039
      %6145 = vmatmul.mubr.bf16.gmra.mrb[0].mxu0 %v6038
      %v6146 = vpop.f32.mrb[0].mxu0
      %v6147 = vadd.f32 0.0, %v6146
      %v6148 = vpop.f32.mrb[0].mxu0
      %v6149 = vpop.f32.mrb[0].mxu0
      %v6150 = vadd.f32 0.0, %v6149
      %v6151 = vpop.f32.mrb[0].mxu0
      %6152 = vdwg.mxu0
      %v6153 = vadd.f32 %v5671, %v6091
      %v6154 = vadd.f32 %v5674, %v6094
      %v6155 = vadd.f32 %v5679, %v6099
      %v6156 = vadd.f32 %v5682, %v6102
      %v6157 = vadd.f32 %v5687, %v6107
      %v6158 = vadd.f32 %v5690, %v6110
      %v6159 = vadd.f32 %v5695, %v6115
      %v6160 = vadd.f32 %v5698, %v6118
      %v6161 = vadd.f32 %v5703, %v6123
      %v6162 = vadd.f32 %v5706, %v6126
      %v6163 = vadd.f32 %v5711, %v6131
      %v6164 = vadd.f32 %v5714, %v6134
      %v6165 = vadd.f32 %v5719, %v6139
      %v6166 = vadd.f32 %v5722, %v6142
      %v6167 = vadd.f32 %v5727, %v6147
      %v6168 = vadd.f32 %v5730, %v6150
      %s6169 = scalar_lea.vmem %s4, 144
      %v6170 = vld [vmem:[%s6169] sm:$0xf]
      %v6171 = vld [vmem:[%s6169 + $0x4] sm:$0xf]
      %v6172 = vld [vmem:[%s6169 + $0x8] sm:$0xf]
      %v6173 = vld [vmem:[%s6169 + $0xc] sm:$0xf]
      %v6174 = vld [vmem:[%s6169 + $0x10] sm:$0xf]
      %v6175 = vld [vmem:[%s6169 + $0x14] sm:$0xf]
      %v6176 = vld [vmem:[%s6169 + $0x18] sm:$0xf]
      %v6177 = vld [vmem:[%s6169 + $0x1c] sm:$0xf]
      %v6178 = vld [vmem:[%s6169 + $0x20] sm:$0xf]
      %v6179 = vld [vmem:[%s6169 + $0x24] sm:$0xf]
      %v6180 = vld [vmem:[%s6169 + $0x28] sm:$0xf]
      %v6181 = vld [vmem:[%s6169 + $0x2c] sm:$0xf]
      %v6194 = vunpack.c.l.b16 %v6170
      %v6195 = vunpack.c.l.b16 %v6171
      %v6196 = vunpack.c.l.b16 %v6172
      %v6197 = vunpack.c.l.b16 %v6173
      %v6198 = vunpack.c.l.b16 %v6174
      %v6199 = vunpack.c.l.b16 %v6175
      %v6200 = vunpack.c.l.b16 %v6176
      %v6201 = vunpack.c.l.b16 %v6177
      %v6202 = vunpack.c.l.b16 %v6178
      %v6203 = vunpack.c.l.b16 %v6179
      %v6204 = vunpack.c.l.b16 %v6180
      %v6205 = vunpack.c.l.b16 %v6181
      %v6206 = vpack.c.b16 %v6195, %v6194
      %v6207 = vpack.c.b16 %v6197, %v6196
      %v6208 = vpack.c.b16 %v6199, %v6198
      %v6209 = vpack.c.b16 %v6201, %v6200
      %v6210 = vpack.c.b16 %v6203, %v6202
      %v6211 = vpack.c.b16 %v6205, %v6204
      %6218 = vmatprep.subr.bf16.mxu0 0
      %6219 = vmatpush1.bf16.msra.mxu0 %v6206
      %6220 = vmatprep.subr.bf16.mxu0 0
      %6221 = vmatpush1.bf16.msra.mxu0 %v6207
      %6222 = vmatprep.subr.bf16.mxu0 0
      %6223 = vmatpush1.bf16.msra.mxu0 %v6208
      %6224 = vmatprep.subr.bf16.mxu0 0
      %6225 = vmatpush1.bf16.msra.mxu0 %v6209
      %6226 = vmatprep.subr.bf16.mxu0 0
      %6227 = vmatpush1.bf16.msra.mxu0 %v6210
      %6228 = vmatprep.subr.bf16.mxu0 0
      %6229 = vmatpush1.bf16.msra.mxu0 %v6211
      %6230 = vmatprep.subr.bf16.mxu0 0
      %6231 = vmatpush1.bf16.msra.mxu0 0
      %6232 = vmatprep.subr.bf16.mxu0 0
      %6233 = vmatpush1.bf16.msra.mxu0 0
      %6234 = vmatprep.subr.bf16.mxu0 0
      %6235 = vmatpush1.bf16.msra.mxu0 0
      %6236 = vmatprep.subr.bf16.mxu0 0
      %6237 = vmatpush1.bf16.msra.mxu0 0
      %6238 = vmatprep.subr.bf16.mxu0 0
      %6239 = vmatpush1.bf16.msra.mxu0 0
      %6240 = vmatprep.subr.bf16.mxu0 0
      %6241 = vmatpush1.bf16.msra.mxu0 0
      %6242 = vmatprep.subr.bf16.mxu0 0
      %6243 = vmatpush1.bf16.msra.mxu0 0
      %6244 = vmatprep.subr.bf16.mxu0 0
      %6245 = vmatpush1.bf16.msra.mxu0 0
      %6246 = vmatprep.subr.bf16.mxu0 0
      %6247 = vmatpush1.bf16.msra.mxu0 0
      %6248 = vmatprep.subr.bf16.mxu0 0
      %6249 = vmatpush1.bf16.msra.mxu0 0
      %6250 = vmatprep.mubr.bf16.mxu0 0
      %6251 = vmatmul.mubr.bf16.gmra.mrb[0].mxu0 %v4896
      %v6252 = vpop.f32.mrb[0].mxu0
      %v6253 = vadd.f32 0.0, %v6252
      %v6254 = vpop.f32.mrb[0].mxu0
      %v6255 = vpop.f32.mrb[0].mxu0
      %v6256 = vadd.f32 0.0, %v6255
      %v6257 = vpop.f32.mrb[0].mxu0
      %6258 = vmatprep.mubr.bf16.mxu0 0
      %6259 = vmatmul.mubr.bf16.gmra.mrb[0].mxu0 %v4899
      %v6260 = vpop.f32.mrb[0].mxu0
      %v6261 = vadd.f32 0.0, %v6260
      %v6262 = vpop.f32.mrb[0].mxu0
      %v6263 = vpop.f32.mrb[0].mxu0
      %v6264 = vadd.f32 0.0, %v6263
      %v6265 = vpop.f32.mrb[0].mxu0
      %6266 = vmatprep.mubr.bf16.mxu0 0
      %6267 = vmatmul.mubr.bf16.gmra.mrb[0].mxu0 %v4902
      %v6268 = vpop.f32.mrb[0].mxu0
      %v6269 = vadd.f32 0.0, %v6268
      %v6270 = vpop.f32.mrb[0].mxu0
      %v6271 = vpop.f32.mrb[0].mxu0
      %v6272 = vadd.f32 0.0, %v6271
      %v6273 = vpop.f32.mrb[0].mxu0
      %6274 = vmatprep.mubr.bf16.mxu0 0
      %6275 = vmatmul.mubr.bf16.gmra.mrb[0].mxu0 %v4905
      %v6276 = vpop.f32.mrb[0].mxu0
      %v6277 = vadd.f32 0.0, %v6276
      %v6278 = vpop.f32.mrb[0].mxu0
      %v6279 = vpop.f32.mrb[0].mxu0
      %v6280 = vadd.f32 0.0, %v6279
      %v6281 = vpop.f32.mrb[0].mxu0
      %6282 = vmatprep.mubr.bf16.mxu0 0
      %6283 = vmatmul.mubr.bf16.gmra.mrb[0].mxu0 %v4908
      %v6284 = vpop.f32.mrb[0].mxu0
      %v6285 = vadd.f32 0.0, %v6284
      %v6286 = vpop.f32.mrb[0].mxu0
      %v6287 = vpop.f32.mrb[0].mxu0
      %v6288 = vadd.f32 0.0, %v6287
      %v6289 = vpop.f32.mrb[0].mxu0
      %6290 = vmatprep.mubr.bf16.mxu0 0
      %6291 = vmatmul.mubr.bf16.gmra.mrb[0].mxu0 %v4911
      %v6292 = vpop.f32.mrb[0].mxu0
      %v6293 = vadd.f32 0.0, %v6292
      %v6294 = vpop.f32.mrb[0].mxu0
      %v6295 = vpop.f32.mrb[0].mxu0
      %v6296 = vadd.f32 0.0, %v6295
      %v6297 = vpop.f32.mrb[0].mxu0
      %6298 = vmatprep.mubr.bf16.mxu0 0
      %6299 = vmatmul.mubr.bf16.gmra.mrb[0].mxu0 %v4914
      %v6300 = vpop.f32.mrb[0].mxu0
      %v6301 = vadd.f32 0.0, %v6300
      %v6302 = vpop.f32.mrb[0].mxu0
      %v6303 = vpop.f32.mrb[0].mxu0
      %v6304 = vadd.f32 0.0, %v6303
      %v6305 = vpop.f32.mrb[0].mxu0
      %6306 = vmatprep.mubr.bf16.mxu0 0
      %6307 = vmatmul.mubr.bf16.gmra.mrb[0].mxu0 %v4917
      %v6308 = vpop.f32.mrb[0].mxu0
      %v6309 = vadd.f32 0.0, %v6308
      %v6310 = vpop.f32.mrb[0].mxu0
      %v6311 = vpop.f32.mrb[0].mxu0
      %v6312 = vadd.f32 0.0, %v6311
      %v6313 = vpop.f32.mrb[0].mxu0
      %6314 = vmatprep.mubr.bf16.mxu0 0
      %6315 = vmatmul.mubr.bf16.gmra.mrb[0].mxu0 %v4920
      %v6316 = vpop.f32.mrb[0].mxu0
      %v6317 = vadd.f32 0.0, %v6316
      %v6318 = vpop.f32.mrb[0].mxu0
      %v6319 = vpop.f32.mrb[0].mxu0
      %v6320 = vadd.f32 0.0, %v6319
      %v6321 = vpop.f32.mrb[0].mxu0
      %6322 = vmatprep.mubr.bf16.mxu0 0
      %6323 = vmatmul.mubr.bf16.gmra.mrb[0].mxu0 %v4923
      %v6324 = vpop.f32.mrb[0].mxu0
      %v6325 = vadd.f32 0.0, %v6324
      %v6326 = vpop.f32.mrb[0].mxu0
      %v6327 = vpop.f32.mrb[0].mxu0
      %v6328 = vadd.f32 0.0, %v6327
      %v6329 = vpop.f32.mrb[0].mxu0
      %6330 = vmatprep.mubr.bf16.mxu0 0
      %6331 = vmatmul.mubr.bf16.gmra.mrb[0].mxu0 %v4926
      %v6332 = vpop.f32.mrb[0].mxu0
      %v6333 = vadd.f32 0.0, %v6332
      %v6334 = vpop.f32.mrb[0].mxu0
      %v6335 = vpop.f32.mrb[0].mxu0
      %v6336 = vadd.f32 0.0, %v6335
      %v6337 = vpop.f32.mrb[0].mxu0
      %6338 = vmatprep.mubr.bf16.mxu0 0
      %6339 = vmatmul.mubr.bf16.gmra.mrb[0].mxu0 %v4929
      %v6340 = vpop.f32.mrb[0].mxu0
      %v6341 = vadd.f32 0.0, %v6340
      %v6342 = vpop.f32.mrb[0].mxu0
      %v6343 = vpop.f32.mrb[0].mxu0
      %v6344 = vadd.f32 0.0, %v6343
      %v6345 = vpop.f32.mrb[0].mxu0
      %6346 = vmatprep.mubr.bf16.mxu0 0
      %6347 = vmatmul.mubr.bf16.gmra.mrb[0].mxu0 %v4932
      %v6348 = vpop.f32.mrb[0].mxu0
      %v6349 = vadd.f32 0.0, %v6348
      %v6350 = vpop.f32.mrb[0].mxu0
      %v6351 = vpop.f32.mrb[0].mxu0
      %v6352 = vadd.f32 0.0, %v6351
      %v6353 = vpop.f32.mrb[0].mxu0
      %6354 = vmatprep.mubr.bf16.mxu0 0
      %6355 = vmatmul.mubr.bf16.gmra.mrb[0].mxu0 %v4935
      %v6356 = vpop.f32.mrb[0].mxu0
      %v6357 = vadd.f32 0.0, %v6356
      %v6358 = vpop.f32.mrb[0].mxu0
      %v6359 = vpop.f32.mrb[0].mxu0
      %v6360 = vadd.f32 0.0, %v6359
      %v6361 = vpop.f32.mrb[0].mxu0
      %6362 = vmatprep.mubr.bf16.mxu0 0
      %6363 = vmatmul.mubr.bf16.gmra.mrb[0].mxu0 %v4938
      %v6364 = vpop.f32.mrb[0].mxu0
      %v6365 = vadd.f32 0.0, %v6364
      %v6366 = vpop.f32.mrb[0].mxu0
      %v6367 = vpop.f32.mrb[0].mxu0
      %v6368 = vadd.f32 0.0, %v6367
      %v6369 = vpop.f32.mrb[0].mxu0
      %6370 = vmatprep.mubr.bf16.mxu0 0
      %6371 = vmatmul.mubr.bf16.gmra.mrb[0].mxu0 %v4941
      %v6372 = vpop.f32.mrb[0].mxu0
      %v6373 = vadd.f32 0.0, %v6372
      %v6374 = vpop.f32.mrb[0].mxu0
      %v6375 = vpop.f32.mrb[0].mxu0
      %v6376 = vadd.f32 0.0, %v6375
      %v6377 = vpop.f32.mrb[0].mxu0
      %6378 = vdwg.mxu0
      %v6379 = vpack.c.bf16 %v6256, %v6253
      %v6380 = vpack.c.bf16 %v6264, %v6261
      %v6381 = vpack.c.bf16 %v6272, %v6269
      %v6382 = vpack.c.bf16 %v6280, %v6277
      %v6383 = vpack.c.bf16 %v6288, %v6285
      %v6384 = vpack.c.bf16 %v6296, %v6293
      %v6385 = vpack.c.bf16 %v6304, %v6301
      %v6386 = vpack.c.bf16 %v6312, %v6309
      %v6387 = vpack.c.bf16 %v6320, %v6317
      %v6388 = vpack.c.bf16 %v6328, %v6325
      %v6389 = vpack.c.bf16 %v6336, %v6333
      %v6390 = vpack.c.bf16 %v6344, %v6341
      %v6391 = vpack.c.bf16 %v6352, %v6349
      %v6392 = vpack.c.bf16 %v6360, %v6357
      %v6393 = vpack.c.bf16 %v6368, %v6365
      %v6394 = vpack.c.bf16 %v6376, %v6373
      %s6395 = scalar_lea.vmem %s3, 384
      %v6396 = vld [vmem:[%s6395] sm:$0xff]
      %v6397 = vld [vmem:[%s6395 + $0x8] sm:$0xff]
      %v6398 = vld [vmem:[%s6395 + $0x10] sm:$0xff]
      %v6399 = vld [vmem:[%s6395 + $0x18] sm:$0xff]
      %v6400 = vld [vmem:[%s6395 + $0x20] sm:$0xff]
      %v6401 = vld [vmem:[%s6395 + $0x28] sm:$0xff]
      %v6402 = vld [vmem:[%s6395 + $0x30] sm:$0xff]
      %v6403 = vld [vmem:[%s6395 + $0x38] sm:$0xff]
      %v6404 = vld [vmem:[%s6395 + $0x40] sm:$0xff]
      %v6405 = vld [vmem:[%s6395 + $0x48] sm:$0xff]
      %v6406 = vld [vmem:[%s6395 + $0x50] sm:$0xff]
      %v6407 = vld [vmem:[%s6395 + $0x58] sm:$0xff]
      %v6408 = vld [vmem:[%s6395 + $0x60] sm:$0xff]
      %v6409 = vld [vmem:[%s6395 + $0x68] sm:$0xff]
      %v6410 = vld [vmem:[%s6395 + $0x70] sm:$0xff]
      %v6411 = vld [vmem:[%s6395 + $0x78] sm:$0xff]
      %v6428 = vunpack.c.l.b16 %v6396
      %v6429 = vunpack.c.h.b16 %v6396
      %v6430 = vunpack.c.l.b16 %v6397
      %v6431 = vunpack.c.h.b16 %v6397
      %v6432 = vunpack.c.l.b16 %v6398
      %v6433 = vunpack.c.h.b16 %v6398
      %v6434 = vunpack.c.l.b16 %v6399
      %v6435 = vunpack.c.h.b16 %v6399
      %v6436 = vunpack.c.l.b16 %v6400
      %v6437 = vunpack.c.h.b16 %v6400
      %v6438 = vunpack.c.l.b16 %v6401
      %v6439 = vunpack.c.h.b16 %v6401
      %v6440 = vunpack.c.l.b16 %v6402
      %v6441 = vunpack.c.h.b16 %v6402
      %v6442 = vunpack.c.l.b16 %v6403
      %v6443 = vunpack.c.h.b16 %v6403
      %v6444 = vunpack.c.l.b16 %v6404
      %v6445 = vunpack.c.h.b16 %v6404
      %v6446 = vunpack.c.l.b16 %v6405
      %v6447 = vunpack.c.h.b16 %v6405
      %v6448 = vunpack.c.l.b16 %v6406
      %v6449 = vunpack.c.h.b16 %v6406
      %v6450 = vunpack.c.l.b16 %v6407
      %v6451 = vunpack.c.h.b16 %v6407
      %v6452 = vunpack.c.l.b16 %v6408
      %v6453 = vunpack.c.h.b16 %v6408
      %v6454 = vunpack.c.l.b16 %v6409
      %v6455 = vunpack.c.h.b16 %v6409
      %v6456 = vunpack.c.l.b16 %v6410
      %v6457 = vunpack.c.h.b16 %v6410
      %v6458 = vunpack.c.l.b16 %v6411
      %v6459 = vunpack.c.h.b16 %v6411
      %v6460 = vpack.c.b16 %v6430, %v6428
      %v6461 = vpack.c.b16 %v6431, %v6429
      %v6462 = vpack.c.b16 %v6434, %v6432
      %v6463 = vpack.c.b16 %v6435, %v6433
      %v6464 = vpack.c.b16 %v6438, %v6436
      %v6465 = vpack.c.b16 %v6439, %v6437
      %v6466 = vpack.c.b16 %v6442, %v6440
      %v6467 = vpack.c.b16 %v6443, %v6441
      %v6468 = vpack.c.b16 %v6446, %v6444
      %v6469 = vpack.c.b16 %v6447, %v6445
      %v6470 = vpack.c.b16 %v6450, %v6448
      %v6471 = vpack.c.b16 %v6451, %v6449
      %v6472 = vpack.c.b16 %v6454, %v6452
      %v6473 = vpack.c.b16 %v6455, %v6453
      %v6474 = vpack.c.b16 %v6458, %v6456
      %v6475 = vpack.c.b16 %v6459, %v6457
      %6492 = vmatprep.subr.bf16.mxu0 0
      %6493 = vmatpush1.bf16.msra.mxu0 %v6379
      %6494 = vmatprep.subr.bf16.mxu0 0
      %6495 = vmatpush1.bf16.msra.mxu0 %v6380
      %6496 = vmatprep.subr.bf16.mxu0 0
      %6497 = vmatpush1.bf16.msra.mxu0 %v6381
      %6498 = vmatprep.subr.bf16.mxu0 0
      %6499 = vmatpush1.bf16.msra.mxu0 %v6382
      %6500 = vmatprep.subr.bf16.mxu0 0
      %6501 = vmatpush1.bf16.msra.mxu0 %v6383
      %6502 = vmatprep.subr.bf16.mxu0 0
      %6503 = vmatpush1.bf16.msra.mxu0 %v6384
      %6504 = vmatprep.subr.bf16.mxu0 0
      %6505 = vmatpush1.bf16.msra.mxu0 %v6385
      %6506 = vmatprep.subr.bf16.mxu0 0
      %6507 = vmatpush1.bf16.msra.mxu0 %v6386
      %6508 = vmatprep.subr.bf16.mxu0 0
      %6509 = vmatpush1.bf16.msra.mxu0 %v6387
      %6510 = vmatprep.subr.bf16.mxu0 0
      %6511 = vmatpush1.bf16.msra.mxu0 %v6388
      %6512 = vmatprep.subr.bf16.mxu0 0
      %6513 = vmatpush1.bf16.msra.mxu0 %v6389
      %6514 = vmatprep.subr.bf16.mxu0 0
      %6515 = vmatpush1.bf16.msra.mxu0 %v6390
      %6516 = vmatprep.subr.bf16.mxu0 0
      %6517 = vmatpush1.bf16.msra.mxu0 %v6391
      %6518 = vmatprep.subr.bf16.mxu0 0
      %6519 = vmatpush1.bf16.msra.mxu0 %v6392
      %6520 = vmatprep.subr.bf16.mxu0 0
      %6521 = vmatpush1.bf16.msra.mxu0 %v6393
      %6522 = vmatprep.subr.bf16.mxu0 0
      %6523 = vmatpush1.bf16.msra.mxu0 %v6394
      %6524 = vmatprep.mubr.bf16.mxu0 %v6461
      %6525 = vmatmul.mubr.bf16.gmra.mrb[0].mxu0 %v6460
      %v6526 = vpop.f32.mrb[0].mxu0
      %v6527 = vadd.f32 0.0, %v6526
      %v6528 = vpop.f32.mrb[0].mxu0
      %v6529 = vpop.f32.mrb[0].mxu0
      %v6530 = vadd.f32 0.0, %v6529
      %v6531 = vpop.f32.mrb[0].mxu0
      %6532 = vmatprep.mubr.bf16.mxu0 %v6463
      %6533 = vmatmul.mubr.bf16.gmra.mrb[0].mxu0 %v6462
      %v6534 = vpop.f32.mrb[0].mxu0
      %v6535 = vadd.f32 0.0, %v6534
      %v6536 = vpop.f32.mrb[0].mxu0
      %v6537 = vpop.f32.mrb[0].mxu0
      %v6538 = vadd.f32 0.0, %v6537
      %v6539 = vpop.f32.mrb[0].mxu0
      %6540 = vmatprep.mubr.bf16.mxu0 %v6465
      %6541 = vmatmul.mubr.bf16.gmra.mrb[0].mxu0 %v6464
      %v6542 = vpop.f32.mrb[0].mxu0
      %v6543 = vadd.f32 0.0, %v6542
      %v6544 = vpop.f32.mrb[0].mxu0
      %v6545 = vpop.f32.mrb[0].mxu0
      %v6546 = vadd.f32 0.0, %v6545
      %v6547 = vpop.f32.mrb[0].mxu0
      %6548 = vmatprep.mubr.bf16.mxu0 %v6467
      %6549 = vmatmul.mubr.bf16.gmra.mrb[0].mxu0 %v6466
      %v6550 = vpop.f32.mrb[0].mxu0
      %v6551 = vadd.f32 0.0, %v6550
      %v6552 = vpop.f32.mrb[0].mxu0
      %v6553 = vpop.f32.mrb[0].mxu0
      %v6554 = vadd.f32 0.0, %v6553
      %v6555 = vpop.f32.mrb[0].mxu0
      %6556 = vmatprep.mubr.bf16.mxu0 %v6469
      %6557 = vmatmul.mubr.bf16.gmra.mrb[0].mxu0 %v6468
      %v6558 = vpop.f32.mrb[0].mxu0
      %v6559 = vadd.f32 0.0, %v6558
      %v6560 = vpop.f32.mrb[0].mxu0
      %v6561 = vpop.f32.mrb[0].mxu0
      %v6562 = vadd.f32 0.0, %v6561
      %v6563 = vpop.f32.mrb[0].mxu0
      %6564 = vmatprep.mubr.bf16.mxu0 %v6471
      %6565 = vmatmul.mubr.bf16.gmra.mrb[0].mxu0 %v6470
      %v6566 = vpop.f32.mrb[0].mxu0
      %v6567 = vadd.f32 0.0, %v6566
      %v6568 = vpop.f32.mrb[0].mxu0
      %v6569 = vpop.f32.mrb[0].mxu0
      %v6570 = vadd.f32 0.0, %v6569
      %v6571 = vpop.f32.mrb[0].mxu0
      %6572 = vmatprep.mubr.bf16.mxu0 %v6473
      %6573 = vmatmul.mubr.bf16.gmra.mrb[0].mxu0 %v6472
      %v6574 = vpop.f32.mrb[0].mxu0
      %v6575 = vadd.f32 0.0, %v6574
      %v6576 = vpop.f32.mrb[0].mxu0
      %v6577 = vpop.f32.mrb[0].mxu0
      %v6578 = vadd.f32 0.0, %v6577
      %v6579 = vpop.f32.mrb[0].mxu0
      %6580 = vmatprep.mubr.bf16.mxu0 %v6475
      %6581 = vmatmul.mubr.bf16.gmra.mrb[0].mxu0 %v6474
      %v6582 = vpop.f32.mrb[0].mxu0
      %v6583 = vadd.f32 0.0, %v6582
      %v6584 = vpop.f32.mrb[0].mxu0
      %v6585 = vpop.f32.mrb[0].mxu0
      %v6586 = vadd.f32 0.0, %v6585
      %v6587 = vpop.f32.mrb[0].mxu0
      %6588 = vdwg.mxu0
      %v6589 = vadd.f32 %v6153, %v6527
      %v6590 = vadd.f32 %v6154, %v6530
      %v6591 = vadd.f32 %v6155, %v6535
      %v6592 = vadd.f32 %v6156, %v6538
      %v6593 = vadd.f32 %v6157, %v6543
      %v6594 = vadd.f32 %v6158, %v6546
      %v6595 = vadd.f32 %v6159, %v6551
      %v6596 = vadd.f32 %v6160, %v6554
      %v6597 = vadd.f32 %v6161, %v6559
      %v6598 = vadd.f32 %v6162, %v6562
      %v6599 = vadd.f32 %v6163, %v6567
      %v6600 = vadd.f32 %v6164, %v6570
      %v6601 = vadd.f32 %v6165, %v6575
      %v6602 = vadd.f32 %v6166, %v6578
      %v6603 = vadd.f32 %v6167, %v6583
      %v6604 = vadd.f32 %v6168, %v6586
      %v6605 = vmul.f32 %v6589, 0.2
      %v6606 = vmul.f32 %v6590, 0.2
      %v6607 = vmul.f32 %v6591, 0.2
      %v6608 = vmul.f32 %v6592, 0.2
      %v6609 = vmul.f32 %v6593, 0.2
      %v6610 = vmul.f32 %v6594, 0.2
      %v6611 = vmul.f32 %v6595, 0.2
      %v6612 = vmul.f32 %v6596, 0.2
      %v6613 = vmul.f32 %v6597, 0.2
      %v6614 = vmul.f32 %v6598, 0.2
      %v6615 = vmul.f32 %v6599, 0.2
      %v6616 = vmul.f32 %v6600, 0.2
      %v6617 = vmul.f32 %v6601, 0.2
      %v6618 = vmul.f32 %v6602, 0.2
      %v6619 = vmul.f32 %v6603, 0.2
      %v6620 = vmul.f32 %v6604, 0.2
      %v6621 = vmax.f32 %v6589, %v6605
      %v6622 = vmax.f32 %v6590, %v6606
      %v6623 = vmax.f32 %v6591, %v6607
      %v6624 = vmax.f32 %v6592, %v6608
      %v6625 = vmax.f32 %v6593, %v6609
      %v6626 = vmax.f32 %v6594, %v6610
      %v6627 = vmax.f32 %v6595, %v6611
      %v6628 = vmax.f32 %v6596, %v6612
      %v6629 = vmax.f32 %v6597, %v6613
      %v6630 = vmax.f32 %v6598, %v6614
      %v6631 = vmax.f32 %v6599, %v6615
      %v6632 = vmax.f32 %v6600, %v6616
      %v6633 = vmax.f32 %v6601, %v6617
      %v6634 = vmax.f32 %v6602, %v6618
      %v6635 = vmax.f32 %v6603, %v6619
      %v6636 = vmax.f32 %v6604, %v6620
      %v6637 = vpack.c.bf16 %v6622, %v6621
      %v6638 = vpack.c.bf16 %v6624, %v6623
      %v6639 = vpack.c.bf16 %v6626, %v6625
      %v6640 = vpack.c.bf16 %v6628, %v6627
      %v6641 = vpack.c.bf16 %v6630, %v6629
      %v6642 = vpack.c.bf16 %v6632, %v6631
      %v6643 = vpack.c.bf16 %v6634, %v6633
      %v6644 = vpack.c.bf16 %v6636, %v6635
      %v6645 = vld [vmem:[%s6] sm:$0xf]
      %v6646 = vld [vmem:[%s6 + $0x4] sm:$0xf]
      %v6647 = vld [vmem:[%s6 + $0x8] sm:$0xf]
      %v6648 = vld [vmem:[%s6 + $0xc] sm:$0xf]
      %v6649 = vld [vmem:[%s6 + $0x10] sm:$0xf]
      %v6650 = vld [vmem:[%s6 + $0x14] sm:$0xf]
      %v6657 = vunpack.c.l.b16 %v6645
      %v6658 = vunpack.c.l.b16 %v6646
      %v6659 = vunpack.c.l.b16 %v6647
      %v6660 = vunpack.c.l.b16 %v6648
      %v6661 = vunpack.c.l.b16 %v6649
      %v6662 = vunpack.c.l.b16 %v6650
      %v6663 = vpack.c.b16 %v6658, %v6657
      %v6664 = vpack.c.b16 %v6660, %v6659
      %v6665 = vpack.c.b16 %v6662, %v6661
      %vm6669 = vcmask 392192
      %v6671 = vsel %vm6669, %v6637, 0
      %v6674 = vsel %vm6669, %v6638, 0
      %v6677 = vsel %vm6669, %v6639, 0
      %v6680 = vsel %vm6669, %v6640, 0
      %v6683 = vsel %vm6669, %v6641, 0
      %v6686 = vsel %vm6669, %v6642, 0
      %v6689 = vsel %vm6669, %v6643, 0
      %v6692 = vsel %vm6669, %v6644, 0
      %6694 = vmatprep.subr.bf16.mxu0 0
      %6695 = vmatpush1.bf16.msra.mxu0 %v6663
      %6696 = vmatprep.subr.bf16.mxu0 0
      %6697 = vmatpush1.bf16.msra.mxu0 %v6664
      %6698 = vmatprep.subr.bf16.mxu0 0
      %6699 = vmatpush1.bf16.msra.mxu0 %v6665
      %6700 = vmatprep.subr.bf16.mxu0 0
      %6701 = vmatpush1.bf16.msra.mxu0 0
      %6702 = vmatprep.subr.bf16.mxu0 0
      %6703 = vmatpush1.bf16.msra.mxu0 0
      %6704 = vmatprep.subr.bf16.mxu0 0
      %6705 = vmatpush1.bf16.msra.mxu0 0
      %6706 = vmatprep.subr.bf16.mxu0 0
      %6707 = vmatpush1.bf16.msra.mxu0 0
      %6708 = vmatprep.subr.bf16.mxu0 0
      %6709 = vmatpush1.bf16.msra.mxu0 0
      %6710 = vmatprep.subr.bf16.mxu0 0
      %6711 = vmatpush1.bf16.msra.mxu0 0
      %6712 = vmatprep.subr.bf16.mxu0 0
      %6713 = vmatpush1.bf16.msra.mxu0 0
      %6714 = vmatprep.subr.bf16.mxu0 0
      %6715 = vmatpush1.bf16.msra.mxu0 0
      %6716 = vmatprep.subr.bf16.mxu0 0
      %6717 = vmatpush1.bf16.msra.mxu0 0
      %6718 = vmatprep.subr.bf16.mxu0 0
      %6719 = vmatpush1.bf16.msra.mxu0 0
      %6720 = vmatprep.subr.bf16.mxu0 0
      %6721 = vmatpush1.bf16.msra.mxu0 0
      %6722 = vmatprep.subr.bf16.mxu0 0
      %6723 = vmatpush1.bf16.msra.mxu0 0
      %6724 = vmatprep.subr.bf16.mxu0 0
      %6725 = vmatpush1.bf16.msra.mxu0 0
      %6726 = vmatprep.mubr.bf16.mxu0 0
      %6727 = vmatmul.mubr.bf16.gmra.mrb[0].mxu0 %v6671
      %v6728 = vpop.f32.mrb[0].mxu0
      %v6729 = vadd.f32 0.0, %v6728
      %v6730 = vpop.f32.mrb[0].mxu0
      %v6731 = vpop.f32.mrb[0].mxu0
      %v6732 = vadd.f32 0.0, %v6731
      %v6733 = vpop.f32.mrb[0].mxu0
      %6734 = vmatprep.mubr.bf16.mxu0 0
      %6735 = vmatmul.mubr.bf16.gmra.mrb[0].mxu0 %v6674
      %v6736 = vpop.f32.mrb[0].mxu0
      %v6737 = vadd.f32 0.0, %v6736
      %v6738 = vpop.f32.mrb[0].mxu0
      %v6739 = vpop.f32.mrb[0].mxu0
      %v6740 = vadd.f32 0.0, %v6739
      %v6741 = vpop.f32.mrb[0].mxu0
      %6742 = vmatprep.mubr.bf16.mxu0 0
      %6743 = vmatmul.mubr.bf16.gmra.mrb[0].mxu0 %v6677
      %v6744 = vpop.f32.mrb[0].mxu0
      %v6745 = vadd.f32 0.0, %v6744
      %v6746 = vpop.f32.mrb[0].mxu0
      %v6747 = vpop.f32.mrb[0].mxu0
      %v6748 = vadd.f32 0.0, %v6747
      %v6749 = vpop.f32.mrb[0].mxu0
      %6750 = vmatprep.mubr.bf16.mxu0 0
      %6751 = vmatmul.mubr.bf16.gmra.mrb[0].mxu0 %v6680
      %v6752 = vpop.f32.mrb[0].mxu0
      %v6753 = vadd.f32 0.0, %v6752
      %v6754 = vpop.f32.mrb[0].mxu0
      %v6755 = vpop.f32.mrb[0].mxu0
      %v6756 = vadd.f32 0.0, %v6755
      %v6757 = vpop.f32.mrb[0].mxu0
      %6758 = vmatprep.mubr.bf16.mxu0 0
      %6759 = vmatmul.mubr.bf16.gmra.mrb[0].mxu0 %v6683
      %v6760 = vpop.f32.mrb[0].mxu0
      %v6761 = vadd.f32 0.0, %v6760
      %v6762 = vpop.f32.mrb[0].mxu0
      %v6763 = vpop.f32.mrb[0].mxu0
      %v6764 = vadd.f32 0.0, %v6763
      %v6765 = vpop.f32.mrb[0].mxu0
      %6766 = vmatprep.mubr.bf16.mxu0 0
      %6767 = vmatmul.mubr.bf16.gmra.mrb[0].mxu0 %v6686
      %v6768 = vpop.f32.mrb[0].mxu0
      %v6769 = vadd.f32 0.0, %v6768
      %v6770 = vpop.f32.mrb[0].mxu0
      %v6771 = vpop.f32.mrb[0].mxu0
      %v6772 = vadd.f32 0.0, %v6771
      %v6773 = vpop.f32.mrb[0].mxu0
      %6774 = vmatprep.mubr.bf16.mxu0 0
      %6775 = vmatmul.mubr.bf16.gmra.mrb[0].mxu0 %v6689
      %v6776 = vpop.f32.mrb[0].mxu0
      %v6777 = vadd.f32 0.0, %v6776
      %v6778 = vpop.f32.mrb[0].mxu0
      %v6779 = vpop.f32.mrb[0].mxu0
      %v6780 = vadd.f32 0.0, %v6779
      %v6781 = vpop.f32.mrb[0].mxu0
      %6782 = vmatprep.mubr.bf16.mxu0 0
      %6783 = vmatmul.mubr.bf16.gmra.mrb[0].mxu0 %v6692
      %v6784 = vpop.f32.mrb[0].mxu0
      %v6785 = vadd.f32 0.0, %v6784
      %v6786 = vpop.f32.mrb[0].mxu0
      %v6787 = vpop.f32.mrb[0].mxu0
      %v6788 = vadd.f32 0.0, %v6787
      %v6789 = vpop.f32.mrb[0].mxu0
      %6790 = vdwg.mxu0
      %v6791 = vpack.c.bf16 %v6732, %v6729
      %v6792 = vpack.c.bf16 %v6740, %v6737
      %v6793 = vpack.c.bf16 %v6748, %v6745
      %v6794 = vpack.c.bf16 %v6756, %v6753
      %v6795 = vpack.c.bf16 %v6764, %v6761
      %v6796 = vpack.c.bf16 %v6772, %v6769
      %v6797 = vpack.c.bf16 %v6780, %v6777
      %v6798 = vpack.c.bf16 %v6788, %v6785
      %v6799 = vld [vmem:[%s5] sm:$0xf]
      %v6800 = vld [vmem:[%s5 + $0x4] sm:$0xf]
      %v6801 = vld [vmem:[%s5 + $0x8] sm:$0xf]
      %v6802 = vld [vmem:[%s5 + $0xc] sm:$0xf]
      %v6803 = vld [vmem:[%s5 + $0x10] sm:$0xf]
      %v6804 = vld [vmem:[%s5 + $0x14] sm:$0xf]
      %v6805 = vld [vmem:[%s5 + $0x18] sm:$0xf]
      %v6806 = vld [vmem:[%s5 + $0x1c] sm:$0xf]
      %v6807 = vld [vmem:[%s5 + $0x20] sm:$0xf]
      %v6808 = vld [vmem:[%s5 + $0x24] sm:$0xf]
      %v6809 = vld [vmem:[%s5 + $0x28] sm:$0xf]
      %v6810 = vld [vmem:[%s5 + $0x2c] sm:$0xf]
      %v6811 = vld [vmem:[%s5 + $0x30] sm:$0xf]
      %v6812 = vld [vmem:[%s5 + $0x34] sm:$0xf]
      %v6813 = vld [vmem:[%s5 + $0x38] sm:$0xf]
      %v6814 = vld [vmem:[%s5 + $0x3c] sm:$0xf]
      %s6815 = scalar_lea.vmem %s6, 24
      %v6816 = vld [vmem:[%s6815] sm:$0xf]
      %v6817 = vld [vmem:[%s6815 + $0x4] sm:$0xf]
      %v6818 = vld [vmem:[%s6815 + $0x8] sm:$0xf]
      %v6819 = vld [vmem:[%s6815 + $0xc] sm:$0xf]
      %v6820 = vld [vmem:[%s6815 + $0x10] sm:$0xf]
      %v6821 = vld [vmem:[%s6815 + $0x14] sm:$0xf]
      %v6828 = vunpack.c.l.b16 %v6816
      %v6829 = vunpack.c.l.b16 %v6817
      %v6830 = vunpack.c.l.b16 %v6818
      %v6831 = vunpack.c.l.b16 %v6819
      %v6832 = vunpack.c.l.b16 %v6820
      %v6833 = vunpack.c.l.b16 %v6821
      %v6834 = vpack.c.b16 %v6829, %v6828
      %v6835 = vpack.c.b16 %v6831, %v6830
      %v6836 = vpack.c.b16 %v6833, %v6832
      %6840 = vmatprep.subr.bf16.mxu0 0
      %6841 = vmatpush1.bf16.msra.mxu0 %v6834
      %6842 = vmatprep.subr.bf16.mxu0 0
      %6843 = vmatpush1.bf16.msra.mxu0 %v6835
      %6844 = vmatprep.subr.bf16.mxu0 0
      %6845 = vmatpush1.bf16.msra.mxu0 %v6836
      %6846 = vmatprep.subr.bf16.mxu0 0
      %6847 = vmatpush1.bf16.msra.mxu0 0
      %6848 = vmatprep.subr.bf16.mxu0 0
      %6849 = vmatpush1.bf16.msra.mxu0 0
      %6850 = vmatprep.subr.bf16.mxu0 0
      %6851 = vmatpush1.bf16.msra.mxu0 0
      %6852 = vmatprep.subr.bf16.mxu0 0
      %6853 = vmatpush1.bf16.msra.mxu0 0
      %6854 = vmatprep.subr.bf16.mxu0 0
      %6855 = vmatpush1.bf16.msra.mxu0 0
      %6856 = vmatprep.subr.bf16.mxu0 0
      %6857 = vmatpush1.bf16.msra.mxu0 0
      %6858 = vmatprep.subr.bf16.mxu0 0
      %6859 = vmatpush1.bf16.msra.mxu0 0
      %6860 = vmatprep.subr.bf16.mxu0 0
      %6861 = vmatpush1.bf16.msra.mxu0 0
      %6862 = vmatprep.subr.bf16.mxu0 0
      %6863 = vmatpush1.bf16.msra.mxu0 0
      %6864 = vmatprep.subr.bf16.mxu0 0
      %6865 = vmatpush1.bf16.msra.mxu0 0
      %6866 = vmatprep.subr.bf16.mxu0 0
      %6867 = vmatpush1.bf16.msra.mxu0 0
      %6868 = vmatprep.subr.bf16.mxu0 0
      %6869 = vmatpush1.bf16.msra.mxu0 0
      %6870 = vmatprep.subr.bf16.mxu0 0
      %6871 = vmatpush1.bf16.msra.mxu0 0
      %6872 = vmatprep.mubr.bf16.mxu0 0
      %6873 = vmatmul.mubr.bf16.gmra.mrb[0].mxu0 %v6671
      %v6874 = vpop.f32.mrb[0].mxu0
      %v6875 = vadd.f32 0.0, %v6874
      %v6876 = vpop.f32.mrb[0].mxu0
      %v6877 = vpop.f32.mrb[0].mxu0
      %v6878 = vadd.f32 0.0, %v6877
      %v6879 = vpop.f32.mrb[0].mxu0
      %6880 = vmatprep.mubr.bf16.mxu0 0
      %6881 = vmatmul.mubr.bf16.gmra.mrb[0].mxu0 %v6674
      %v6882 = vpop.f32.mrb[0].mxu0
      %v6883 = vadd.f32 0.0, %v6882
      %v6884 = vpop.f32.mrb[0].mxu0
      %v6885 = vpop.f32.mrb[0].mxu0
      %v6886 = vadd.f32 0.0, %v6885
      %v6887 = vpop.f32.mrb[0].mxu0
      %6888 = vmatprep.mubr.bf16.mxu0 0
      %6889 = vmatmul.mubr.bf16.gmra.mrb[0].mxu0 %v6677
      %v6890 = vpop.f32.mrb[0].mxu0
      %v6891 = vadd.f32 0.0, %v6890
      %v6892 = vpop.f32.mrb[0].mxu0
      %v6893 = vpop.f32.mrb[0].mxu0
      %v6894 = vadd.f32 0.0, %v6893
      %v6895 = vpop.f32.mrb[0].mxu0
      %6896 = vmatprep.mubr.bf16.mxu0 0
      %6897 = vmatmul.mubr.bf16.gmra.mrb[0].mxu0 %v6680
      %v6898 = vpop.f32.mrb[0].mxu0
      %v6899 = vadd.f32 0.0, %v6898
      %v6900 = vpop.f32.mrb[0].mxu0
      %v6901 = vpop.f32.mrb[0].mxu0
      %v6902 = vadd.f32 0.0, %v6901
      %v6903 = vpop.f32.mrb[0].mxu0
      %6904 = vmatprep.mubr.bf16.mxu0 0
      %6905 = vmatmul.mubr.bf16.gmra.mrb[0].mxu0 %v6683
      %v6906 = vpop.f32.mrb[0].mxu0
      %v6907 = vadd.f32 0.0, %v6906
      %v6908 = vpop.f32.mrb[0].mxu0
      %v6909 = vpop.f32.mrb[0].mxu0
      %v6910 = vadd.f32 0.0, %v6909
      %v6911 = vpop.f32.mrb[0].mxu0
      %6912 = vmatprep.mubr.bf16.mxu0 0
      %6913 = vmatmul.mubr.bf16.gmra.mrb[0].mxu0 %v6686
      %v6914 = vpop.f32.mrb[0].mxu0
      %v6915 = vadd.f32 0.0, %v6914
      %v6916 = vpop.f32.mrb[0].mxu0
      %v6917 = vpop.f32.mrb[0].mxu0
      %v6918 = vadd.f32 0.0, %v6917
      %v6919 = vpop.f32.mrb[0].mxu0
      %6920 = vmatprep.mubr.bf16.mxu0 0
      %6921 = vmatmul.mubr.bf16.gmra.mrb[0].mxu0 %v6689
      %v6922 = vpop.f32.mrb[0].mxu0
      %v6923 = vadd.f32 0.0, %v6922
      %v6924 = vpop.f32.mrb[0].mxu0
      %v6925 = vpop.f32.mrb[0].mxu0
      %v6926 = vadd.f32 0.0, %v6925
      %v6927 = vpop.f32.mrb[0].mxu0
      %6928 = vmatprep.mubr.bf16.mxu0 0
      %6929 = vmatmul.mubr.bf16.gmra.mrb[0].mxu0 %v6692
      %v6930 = vpop.f32.mrb[0].mxu0
      %v6931 = vadd.f32 0.0, %v6930
      %v6932 = vpop.f32.mrb[0].mxu0
      %v6933 = vpop.f32.mrb[0].mxu0
      %v6934 = vadd.f32 0.0, %v6933
      %v6935 = vpop.f32.mrb[0].mxu0
      %6936 = vdwg.mxu0
      %v6937 = vpack.c.bf16 %v6878, %v6875
      %v6938 = vpack.c.bf16 %v6886, %v6883
      %v6939 = vpack.c.bf16 %v6894, %v6891
      %v6940 = vpack.c.bf16 %v6902, %v6899
      %v6941 = vpack.c.bf16 %v6910, %v6907
      %v6942 = vpack.c.bf16 %v6918, %v6915
      %v6943 = vpack.c.bf16 %v6926, %v6923
      %v6944 = vpack.c.bf16 %v6934, %v6931
      %s6945 = scalar_lea.vmem %s5, 64
      %v6946 = vld [vmem:[%s6945] sm:$0xf]
      %v6947 = vld [vmem:[%s6945 + $0x4] sm:$0xf]
      %v6948 = vld [vmem:[%s6945 + $0x8] sm:$0xf]
      %v6949 = vld [vmem:[%s6945 + $0xc] sm:$0xf]
      %v6950 = vld [vmem:[%s6945 + $0x10] sm:$0xf]
      %v6951 = vld [vmem:[%s6945 + $0x14] sm:$0xf]
      %v6952 = vld [vmem:[%s6945 + $0x18] sm:$0xf]
      %v6953 = vld [vmem:[%s6945 + $0x1c] sm:$0xf]
      %v6954 = vld [vmem:[%s6945 + $0x20] sm:$0xf]
      %v6955 = vld [vmem:[%s6945 + $0x24] sm:$0xf]
      %v6956 = vld [vmem:[%s6945 + $0x28] sm:$0xf]
      %v6957 = vld [vmem:[%s6945 + $0x2c] sm:$0xf]
      %v6958 = vld [vmem:[%s6945 + $0x30] sm:$0xf]
      %v6959 = vld [vmem:[%s6945 + $0x34] sm:$0xf]
      %v6960 = vld [vmem:[%s6945 + $0x38] sm:$0xf]
      %v6961 = vld [vmem:[%s6945 + $0x3c] sm:$0xf]
      %v6978 = vunpack.c.l.b16 %v6946
      %v6979 = vunpack.c.l.b16 %v6947
      %v6980 = vunpack.c.l.b16 %v6948
      %v6981 = vunpack.c.l.b16 %v6949
      %v6982 = vunpack.c.l.b16 %v6950
      %v6983 = vunpack.c.l.b16 %v6951
      %v6984 = vunpack.c.l.b16 %v6952
      %v6985 = vunpack.c.l.b16 %v6953
      %v6986 = vunpack.c.l.b16 %v6954
      %v6987 = vunpack.c.l.b16 %v6955
      %v6988 = vunpack.c.l.b16 %v6956
      %v6989 = vunpack.c.l.b16 %v6957
      %v6990 = vunpack.c.l.b16 %v6958
      %v6991 = vunpack.c.l.b16 %v6959
      %v6992 = vunpack.c.l.b16 %v6960
      %v6993 = vunpack.c.l.b16 %v6961
      %v6994 = vpack.c.b16 %v6979, %v6978
      %v6995 = vpack.c.b16 %v6981, %v6980
      %v6996 = vpack.c.b16 %v6983, %v6982
      %v6997 = vpack.c.b16 %v6985, %v6984
      %v6998 = vpack.c.b16 %v6987, %v6986
      %v6999 = vpack.c.b16 %v6989, %v6988
      %v7000 = vpack.c.b16 %v6991, %v6990
      %v7001 = vpack.c.b16 %v6993, %v6992
      %7010 = vmatprep.subr.bf16.mxu0 0
      %7011 = vmatpush1.bf16.msra.mxu0 %v6937
      %7012 = vmatprep.subr.bf16.mxu0 0
      %7013 = vmatpush1.bf16.msra.mxu0 %v6938
      %7014 = vmatprep.subr.bf16.mxu0 0
      %7015 = vmatpush1.bf16.msra.mxu0 %v6939
      %7016 = vmatprep.subr.bf16.mxu0 0
      %7017 = vmatpush1.bf16.msra.mxu0 %v6940
      %7018 = vmatprep.subr.bf16.mxu0 0
      %7019 = vmatpush1.bf16.msra.mxu0 %v6941
      %7020 = vmatprep.subr.bf16.mxu0 0
      %7021 = vmatpush1.bf16.msra.mxu0 %v6942
      %7022 = vmatprep.subr.bf16.mxu0 0
      %7023 = vmatpush1.bf16.msra.mxu0 %v6943
      %7024 = vmatprep.subr.bf16.mxu0 0
      %7025 = vmatpush1.bf16.msra.mxu0 %v6944
      %7026 = vmatprep.subr.bf16.mxu0 0
      %7027 = vmatpush1.bf16.msra.mxu0 0
      %7028 = vmatprep.subr.bf16.mxu0 0
      %7029 = vmatpush1.bf16.msra.mxu0 0
      %7030 = vmatprep.subr.bf16.mxu0 0
      %7031 = vmatpush1.bf16.msra.mxu0 0
      %7032 = vmatprep.subr.bf16.mxu0 0
      %7033 = vmatpush1.bf16.msra.mxu0 0
      %7034 = vmatprep.subr.bf16.mxu0 0
      %7035 = vmatpush1.bf16.msra.mxu0 0
      %7036 = vmatprep.subr.bf16.mxu0 0
      %7037 = vmatpush1.bf16.msra.mxu0 0
      %7038 = vmatprep.subr.bf16.mxu0 0
      %7039 = vmatpush1.bf16.msra.mxu0 0
      %7040 = vmatprep.subr.bf16.mxu0 0
      %7041 = vmatpush1.bf16.msra.mxu0 0
      %7042 = vmatprep.mubr.bf16.mxu0 0
      %7043 = vmatmul.mubr.bf16.gmra.mrb[0].mxu0 %v6994
      %v7044 = vpop.f32.mrb[0].mxu0
      %v7045 = vadd.f32 0.0, %v7044
      %v7046 = vpop.f32.mrb[0].mxu0
      %v7047 = vpop.f32.mrb[0].mxu0
      %v7048 = vadd.f32 0.0, %v7047
      %v7049 = vpop.f32.mrb[0].mxu0
      %7050 = vmatprep.mubr.bf16.mxu0 0
      %7051 = vmatmul.mubr.bf16.gmra.mrb[0].mxu0 %v6995
      %v7052 = vpop.f32.mrb[0].mxu0
      %v7053 = vadd.f32 0.0, %v7052
      %v7054 = vpop.f32.mrb[0].mxu0
      %v7055 = vpop.f32.mrb[0].mxu0
      %v7056 = vadd.f32 0.0, %v7055
      %v7057 = vpop.f32.mrb[0].mxu0
      %7058 = vmatprep.mubr.bf16.mxu0 0
      %7059 = vmatmul.mubr.bf16.gmra.mrb[0].mxu0 %v6996
      %v7060 = vpop.f32.mrb[0].mxu0
      %v7061 = vadd.f32 0.0, %v7060
      %v7062 = vpop.f32.mrb[0].mxu0
      %v7063 = vpop.f32.mrb[0].mxu0
      %v7064 = vadd.f32 0.0, %v7063
      %v7065 = vpop.f32.mrb[0].mxu0
      %7066 = vmatprep.mubr.bf16.mxu0 0
      %7067 = vmatmul.mubr.bf16.gmra.mrb[0].mxu0 %v6997
      %v7068 = vpop.f32.mrb[0].mxu0
      %v7069 = vadd.f32 0.0, %v7068
      %v7070 = vpop.f32.mrb[0].mxu0
      %v7071 = vpop.f32.mrb[0].mxu0
      %v7072 = vadd.f32 0.0, %v7071
      %v7073 = vpop.f32.mrb[0].mxu0
      %7074 = vmatprep.mubr.bf16.mxu0 0
      %7075 = vmatmul.mubr.bf16.gmra.mrb[0].mxu0 %v6998
      %v7076 = vpop.f32.mrb[0].mxu0
      %v7077 = vadd.f32 0.0, %v7076
      %v7078 = vpop.f32.mrb[0].mxu0
      %v7079 = vpop.f32.mrb[0].mxu0
      %v7080 = vadd.f32 0.0, %v7079
      %v7081 = vpop.f32.mrb[0].mxu0
      %7082 = vmatprep.mubr.bf16.mxu0 0
      %7083 = vmatmul.mubr.bf16.gmra.mrb[0].mxu0 %v6999
      %v7084 = vpop.f32.mrb[0].mxu0
      %v7085 = vadd.f32 0.0, %v7084
      %v7086 = vpop.f32.mrb[0].mxu0
      %v7087 = vpop.f32.mrb[0].mxu0
      %v7088 = vadd.f32 0.0, %v7087
      %v7089 = vpop.f32.mrb[0].mxu0
      %7090 = vmatprep.mubr.bf16.mxu0 0
      %7091 = vmatmul.mubr.bf16.gmra.mrb[0].mxu0 %v7000
      %v7092 = vpop.f32.mrb[0].mxu0
      %v7093 = vadd.f32 0.0, %v7092
      %v7094 = vpop.f32.mrb[0].mxu0
      %v7095 = vpop.f32.mrb[0].mxu0
      %v7096 = vadd.f32 0.0, %v7095
      %v7097 = vpop.f32.mrb[0].mxu0
      %7098 = vmatprep.mubr.bf16.mxu0 0
      %7099 = vmatmul.mubr.bf16.gmra.mrb[0].mxu0 %v7001
      %v7100 = vpop.f32.mrb[0].mxu0
      %v7101 = vadd.f32 0.0, %v7100
      %v7102 = vpop.f32.mrb[0].mxu0
      %v7103 = vpop.f32.mrb[0].mxu0
      %v7104 = vadd.f32 0.0, %v7103
      %v7105 = vpop.f32.mrb[0].mxu0
      %7106 = vdwg.mxu0
      %v7123 = vunpack.c.l.b16 %v6799
      %v7124 = vunpack.c.l.b16 %v6800
      %v7125 = vunpack.c.l.b16 %v6801
      %v7126 = vunpack.c.l.b16 %v6802
      %v7127 = vunpack.c.l.b16 %v6803
      %v7128 = vunpack.c.l.b16 %v6804
      %v7129 = vunpack.c.l.b16 %v6805
      %v7130 = vunpack.c.l.b16 %v6806
      %v7131 = vunpack.c.l.b16 %v6807
      %v7132 = vunpack.c.l.b16 %v6808
      %v7133 = vunpack.c.l.b16 %v6809
      %v7134 = vunpack.c.l.b16 %v6810
      %v7135 = vunpack.c.l.b16 %v6811
      %v7136 = vunpack.c.l.b16 %v6812
      %v7137 = vunpack.c.l.b16 %v6813
      %v7138 = vunpack.c.l.b16 %v6814
      %v7139 = vpack.c.b16 %v7124, %v7123
      %v7140 = vpack.c.b16 %v7126, %v7125
      %v7141 = vpack.c.b16 %v7128, %v7127
      %v7142 = vpack.c.b16 %v7130, %v7129
      %v7143 = vpack.c.b16 %v7132, %v7131
      %v7144 = vpack.c.b16 %v7134, %v7133
      %v7145 = vpack.c.b16 %v7136, %v7135
      %v7146 = vpack.c.b16 %v7138, %v7137
      %7155 = vmatprep.subr.bf16.mxu0 0
      %7156 = vmatpush1.bf16.msra.mxu0 %v6791
      %7157 = vmatprep.subr.bf16.mxu0 0
      %7158 = vmatpush1.bf16.msra.mxu0 %v6792
      %7159 = vmatprep.subr.bf16.mxu0 0
      %7160 = vmatpush1.bf16.msra.mxu0 %v6793
      %7161 = vmatprep.subr.bf16.mxu0 0
      %7162 = vmatpush1.bf16.msra.mxu0 %v6794
      %7163 = vmatprep.subr.bf16.mxu0 0
      %7164 = vmatpush1.bf16.msra.mxu0 %v6795
      %7165 = vmatprep.subr.bf16.mxu0 0
      %7166 = vmatpush1.bf16.msra.mxu0 %v6796
      %7167 = vmatprep.subr.bf16.mxu0 0
      %7168 = vmatpush1.bf16.msra.mxu0 %v6797
      %7169 = vmatprep.subr.bf16.mxu0 0
      %7170 = vmatpush1.bf16.msra.mxu0 %v6798
      %7171 = vmatprep.subr.bf16.mxu0 0
      %7172 = vmatpush1.bf16.msra.mxu0 0
      %7173 = vmatprep.subr.bf16.mxu0 0
      %7174 = vmatpush1.bf16.msra.mxu0 0
      %7175 = vmatprep.subr.bf16.mxu0 0
      %7176 = vmatpush1.bf16.msra.mxu0 0
      %7177 = vmatprep.subr.bf16.mxu0 0
      %7178 = vmatpush1.bf16.msra.mxu0 0
      %7179 = vmatprep.subr.bf16.mxu0 0
      %7180 = vmatpush1.bf16.msra.mxu0 0
      %7181 = vmatprep.subr.bf16.mxu0 0
      %7182 = vmatpush1.bf16.msra.mxu0 0
      %7183 = vmatprep.subr.bf16.mxu0 0
      %7184 = vmatpush1.bf16.msra.mxu0 0
      %7185 = vmatprep.subr.bf16.mxu0 0
      %7186 = vmatpush1.bf16.msra.mxu0 0
      %7187 = vmatprep.mubr.bf16.mxu0 0
      %7188 = vmatmul.mubr.bf16.gmra.mrb[0].mxu0 %v7139
      %v7189 = vpop.f32.mrb[0].mxu0
      %v7190 = vadd.f32 %v7045, %v7189
      %v7191 = vpop.f32.mrb[0].mxu0
      %v7192 = vpop.f32.mrb[0].mxu0
      %v7193 = vadd.f32 %v7048, %v7192
      %v7194 = vpop.f32.mrb[0].mxu0
      %7195 = vmatprep.mubr.bf16.mxu0 0
      %7196 = vmatmul.mubr.bf16.gmra.mrb[0].mxu0 %v7140
      %v7197 = vpop.f32.mrb[0].mxu0
      %v7198 = vadd.f32 %v7053, %v7197
      %v7199 = vpop.f32.mrb[0].mxu0
      %v7200 = vpop.f32.mrb[0].mxu0
      %v7201 = vadd.f32 %v7056, %v7200
      %v7202 = vpop.f32.mrb[0].mxu0
      %7203 = vmatprep.mubr.bf16.mxu0 0
      %7204 = vmatmul.mubr.bf16.gmra.mrb[0].mxu0 %v7141
      %v7205 = vpop.f32.mrb[0].mxu0
      %v7206 = vadd.f32 %v7061, %v7205
      %v7207 = vpop.f32.mrb[0].mxu0
      %v7208 = vpop.f32.mrb[0].mxu0
      %v7209 = vadd.f32 %v7064, %v7208
      %v7210 = vpop.f32.mrb[0].mxu0
      %7211 = vmatprep.mubr.bf16.mxu0 0
      %7212 = vmatmul.mubr.bf16.gmra.mrb[0].mxu0 %v7142
      %v7213 = vpop.f32.mrb[0].mxu0
      %v7214 = vadd.f32 %v7069, %v7213
      %v7215 = vpop.f32.mrb[0].mxu0
      %v7216 = vpop.f32.mrb[0].mxu0
      %v7217 = vadd.f32 %v7072, %v7216
      %v7218 = vpop.f32.mrb[0].mxu0
      %7219 = vmatprep.mubr.bf16.mxu0 0
      %7220 = vmatmul.mubr.bf16.gmra.mrb[0].mxu0 %v7143
      %v7221 = vpop.f32.mrb[0].mxu0
      %v7222 = vadd.f32 %v7077, %v7221
      %v7223 = vpop.f32.mrb[0].mxu0
      %v7224 = vpop.f32.mrb[0].mxu0
      %v7225 = vadd.f32 %v7080, %v7224
      %v7226 = vpop.f32.mrb[0].mxu0
      %7227 = vmatprep.mubr.bf16.mxu0 0
      %7228 = vmatmul.mubr.bf16.gmra.mrb[0].mxu0 %v7144
      %v7229 = vpop.f32.mrb[0].mxu0
      %v7230 = vadd.f32 %v7085, %v7229
      %v7231 = vpop.f32.mrb[0].mxu0
      %v7232 = vpop.f32.mrb[0].mxu0
      %v7233 = vadd.f32 %v7088, %v7232
      %v7234 = vpop.f32.mrb[0].mxu0
      %7235 = vmatprep.mubr.bf16.mxu0 0
      %7236 = vmatmul.mubr.bf16.gmra.mrb[0].mxu0 %v7145
      %v7237 = vpop.f32.mrb[0].mxu0
      %v7238 = vadd.f32 %v7093, %v7237
      %v7239 = vpop.f32.mrb[0].mxu0
      %v7240 = vpop.f32.mrb[0].mxu0
      %v7241 = vadd.f32 %v7096, %v7240
      %v7242 = vpop.f32.mrb[0].mxu0
      %7243 = vmatprep.mubr.bf16.mxu0 0
      %7244 = vmatmul.mubr.bf16.gmra.mrb[0].mxu0 %v7146
      %v7245 = vpop.f32.mrb[0].mxu0
      %v7246 = vadd.f32 %v7101, %v7245
      %v7247 = vpop.f32.mrb[0].mxu0
      %v7248 = vpop.f32.mrb[0].mxu0
      %v7249 = vadd.f32 %v7104, %v7248
      %v7250 = vpop.f32.mrb[0].mxu0
      %7251 = vdwg.mxu0
      %s7252 = scalar_lea.vmem %s6, 48
      %v7253 = vld [vmem:[%s7252] sm:$0xf]
      %v7254 = vld [vmem:[%s7252 + $0x4] sm:$0xf]
      %v7255 = vld [vmem:[%s7252 + $0x8] sm:$0xf]
      %v7256 = vld [vmem:[%s7252 + $0xc] sm:$0xf]
      %v7257 = vld [vmem:[%s7252 + $0x10] sm:$0xf]
      %v7258 = vld [vmem:[%s7252 + $0x14] sm:$0xf]
      %v7265 = vunpack.c.l.b16 %v7253
      %v7266 = vunpack.c.l.b16 %v7254
      %v7267 = vunpack.c.l.b16 %v7255
      %v7268 = vunpack.c.l.b16 %v7256
      %v7269 = vunpack.c.l.b16 %v7257
      %v7270 = vunpack.c.l.b16 %v7258
      %v7271 = vpack.c.b16 %v7266, %v7265
      %v7272 = vpack.c.b16 %v7268, %v7267
      %v7273 = vpack.c.b16 %v7270, %v7269
      %7277 = vmatprep.subr.bf16.mxu0 0
      %7278 = vmatpush1.bf16.msra.mxu0 %v7271
      %7279 = vmatprep.subr.bf16.mxu0 0
      %7280 = vmatpush1.bf16.msra.mxu0 %v7272
      %7281 = vmatprep.subr.bf16.mxu0 0
      %7282 = vmatpush1.bf16.msra.mxu0 %v7273
      %7283 = vmatprep.subr.bf16.mxu0 0
      %7284 = vmatpush1.bf16.msra.mxu0 0
      %7285 = vmatprep.subr.bf16.mxu0 0
      %7286 = vmatpush1.bf16.msra.mxu0 0
      %7287 = vmatprep.subr.bf16.mxu0 0
      %7288 = vmatpush1.bf16.msra.mxu0 0
      %7289 = vmatprep.subr.bf16.mxu0 0
      %7290 = vmatpush1.bf16.msra.mxu0 0
      %7291 = vmatprep.subr.bf16.mxu0 0
      %7292 = vmatpush1.bf16.msra.mxu0 0
      %7293 = vmatprep.subr.bf16.mxu0 0
      %7294 = vmatpush1.bf16.msra.mxu0 0
      %7295 = vmatprep.subr.bf16.mxu0 0
      %7296 = vmatpush1.bf16.msra.mxu0 0
      %7297 = vmatprep.subr.bf16.mxu0 0
      %7298 = vmatpush1.bf16.msra.mxu0 0
      %7299 = vmatprep.subr.bf16.mxu0 0
      %7300 = vmatpush1.bf16.msra.mxu0 0
      %7301 = vmatprep.subr.bf16.mxu0 0
      %7302 = vmatpush1.bf16.msra.mxu0 0
      %7303 = vmatprep.subr.bf16.mxu0 0
      %7304 = vmatpush1.bf16.msra.mxu0 0
      %7305 = vmatprep.subr.bf16.mxu0 0
      %7306 = vmatpush1.bf16.msra.mxu0 0
      %7307 = vmatprep.subr.bf16.mxu0 0
      %7308 = vmatpush1.bf16.msra.mxu0 0
      %7309 = vmatprep.mubr.bf16.mxu0 0
      %7310 = vmatmul.mubr.bf16.gmra.mrb[0].mxu0 %v6671
      %v7311 = vpop.f32.mrb[0].mxu0
      %v7312 = vadd.f32 0.0, %v7311
      %v7313 = vpop.f32.mrb[0].mxu0
      %v7314 = vpop.f32.mrb[0].mxu0
      %v7315 = vadd.f32 0.0, %v7314
      %v7316 = vpop.f32.mrb[0].mxu0
      %7317 = vmatprep.mubr.bf16.mxu0 0
      %7318 = vmatmul.mubr.bf16.gmra.mrb[0].mxu0 %v6674
      %v7319 = vpop.f32.mrb[0].mxu0
      %v7320 = vadd.f32 0.0, %v7319
      %v7321 = vpop.f32.mrb[0].mxu0
      %v7322 = vpop.f32.mrb[0].mxu0
      %v7323 = vadd.f32 0.0, %v7322
      %v7324 = vpop.f32.mrb[0].mxu0
      %7325 = vmatprep.mubr.bf16.mxu0 0
      %7326 = vmatmul.mubr.bf16.gmra.mrb[0].mxu0 %v6677
      %v7327 = vpop.f32.mrb[0].mxu0
      %v7328 = vadd.f32 0.0, %v7327
      %v7329 = vpop.f32.mrb[0].mxu0
      %v7330 = vpop.f32.mrb[0].mxu0
      %v7331 = vadd.f32 0.0, %v7330
      %v7332 = vpop.f32.mrb[0].mxu0
      %7333 = vmatprep.mubr.bf16.mxu0 0
      %7334 = vmatmul.mubr.bf16.gmra.mrb[0].mxu0 %v6680
      %v7335 = vpop.f32.mrb[0].mxu0
      %v7336 = vadd.f32 0.0, %v7335
      %v7337 = vpop.f32.mrb[0].mxu0
      %v7338 = vpop.f32.mrb[0].mxu0
      %v7339 = vadd.f32 0.0, %v7338
      %v7340 = vpop.f32.mrb[0].mxu0
      %7341 = vmatprep.mubr.bf16.mxu0 0
      %7342 = vmatmul.mubr.bf16.gmra.mrb[0].mxu0 %v6683
      %v7343 = vpop.f32.mrb[0].mxu0
      %v7344 = vadd.f32 0.0, %v7343
      %v7345 = vpop.f32.mrb[0].mxu0
      %v7346 = vpop.f32.mrb[0].mxu0
      %v7347 = vadd.f32 0.0, %v7346
      %v7348 = vpop.f32.mrb[0].mxu0
      %7349 = vmatprep.mubr.bf16.mxu0 0
      %7350 = vmatmul.mubr.bf16.gmra.mrb[0].mxu0 %v6686
      %v7351 = vpop.f32.mrb[0].mxu0
      %v7352 = vadd.f32 0.0, %v7351
      %v7353 = vpop.f32.mrb[0].mxu0
      %v7354 = vpop.f32.mrb[0].mxu0
      %v7355 = vadd.f32 0.0, %v7354
      %v7356 = vpop.f32.mrb[0].mxu0
      %7357 = vmatprep.mubr.bf16.mxu0 0
      %7358 = vmatmul.mubr.bf16.gmra.mrb[0].mxu0 %v6689
      %v7359 = vpop.f32.mrb[0].mxu0
      %v7360 = vadd.f32 0.0, %v7359
      %v7361 = vpop.f32.mrb[0].mxu0
      %v7362 = vpop.f32.mrb[0].mxu0
      %v7363 = vadd.f32 0.0, %v7362
      %v7364 = vpop.f32.mrb[0].mxu0
      %7365 = vmatprep.mubr.bf16.mxu0 0
      %7366 = vmatmul.mubr.bf16.gmra.mrb[0].mxu0 %v6692
      %v7367 = vpop.f32.mrb[0].mxu0
      %v7368 = vadd.f32 0.0, %v7367
      %v7369 = vpop.f32.mrb[0].mxu0
      %v7370 = vpop.f32.mrb[0].mxu0
      %v7371 = vadd.f32 0.0, %v7370
      %v7372 = vpop.f32.mrb[0].mxu0
      %7373 = vdwg.mxu0
      %v7374 = vpack.c.bf16 %v7315, %v7312
      %v7375 = vpack.c.bf16 %v7323, %v7320
      %v7376 = vpack.c.bf16 %v7331, %v7328
      %v7377 = vpack.c.bf16 %v7339, %v7336
      %v7378 = vpack.c.bf16 %v7347, %v7344
      %v7379 = vpack.c.bf16 %v7355, %v7352
      %v7380 = vpack.c.bf16 %v7363, %v7360
      %v7381 = vpack.c.bf16 %v7371, %v7368
      %s7382 = scalar_lea.vmem %s5, 128
      %v7383 = vld [vmem:[%s7382] sm:$0xf]
      %v7384 = vld [vmem:[%s7382 + $0x4] sm:$0xf]
      %v7385 = vld [vmem:[%s7382 + $0x8] sm:$0xf]
      %v7386 = vld [vmem:[%s7382 + $0xc] sm:$0xf]
      %v7387 = vld [vmem:[%s7382 + $0x10] sm:$0xf]
      %v7388 = vld [vmem:[%s7382 + $0x14] sm:$0xf]
      %v7389 = vld [vmem:[%s7382 + $0x18] sm:$0xf]
      %v7390 = vld [vmem:[%s7382 + $0x1c] sm:$0xf]
      %v7391 = vld [vmem:[%s7382 + $0x20] sm:$0xf]
      %v7392 = vld [vmem:[%s7382 + $0x24] sm:$0xf]
      %v7393 = vld [vmem:[%s7382 + $0x28] sm:$0xf]
      %v7394 = vld [vmem:[%s7382 + $0x2c] sm:$0xf]
      %v7395 = vld [vmem:[%s7382 + $0x30] sm:$0xf]
      %v7396 = vld [vmem:[%s7382 + $0x34] sm:$0xf]
      %v7397 = vld [vmem:[%s7382 + $0x38] sm:$0xf]
      %v7398 = vld [vmem:[%s7382 + $0x3c] sm:$0xf]
      %v7415 = vunpack.c.l.b16 %v7383
      %v7416 = vunpack.c.l.b16 %v7384
      %v7417 = vunpack.c.l.b16 %v7385
      %v7418 = vunpack.c.l.b16 %v7386
      %v7419 = vunpack.c.l.b16 %v7387
      %v7420 = vunpack.c.l.b16 %v7388
      %v7421 = vunpack.c.l.b16 %v7389
      %v7422 = vunpack.c.l.b16 %v7390
      %v7423 = vunpack.c.l.b16 %v7391
      %v7424 = vunpack.c.l.b16 %v7392
      %v7425 = vunpack.c.l.b16 %v7393
      %v7426 = vunpack.c.l.b16 %v7394
      %v7427 = vunpack.c.l.b16 %v7395
      %v7428 = vunpack.c.l.b16 %v7396
      %v7429 = vunpack.c.l.b16 %v7397
      %v7430 = vunpack.c.l.b16 %v7398
      %v7431 = vpack.c.b16 %v7416, %v7415
      %v7432 = vpack.c.b16 %v7418, %v7417
      %v7433 = vpack.c.b16 %v7420, %v7419
      %v7434 = vpack.c.b16 %v7422, %v7421
      %v7435 = vpack.c.b16 %v7424, %v7423
      %v7436 = vpack.c.b16 %v7426, %v7425
      %v7437 = vpack.c.b16 %v7428, %v7427
      %v7438 = vpack.c.b16 %v7430, %v7429
      %7447 = vmatprep.subr.bf16.mxu0 0
      %7448 = vmatpush1.bf16.msra.mxu0 %v7374
      %7449 = vmatprep.subr.bf16.mxu0 0
      %7450 = vmatpush1.bf16.msra.mxu0 %v7375
      %7451 = vmatprep.subr.bf16.mxu0 0
      %7452 = vmatpush1.bf16.msra.mxu0 %v7376
      %7453 = vmatprep.subr.bf16.mxu0 0
      %7454 = vmatpush1.bf16.msra.mxu0 %v7377
      %7455 = vmatprep.subr.bf16.mxu0 0
      %7456 = vmatpush1.bf16.msra.mxu0 %v7378
      %7457 = vmatprep.subr.bf16.mxu0 0
      %7458 = vmatpush1.bf16.msra.mxu0 %v7379
      %7459 = vmatprep.subr.bf16.mxu0 0
      %7460 = vmatpush1.bf16.msra.mxu0 %v7380
      %7461 = vmatprep.subr.bf16.mxu0 0
      %7462 = vmatpush1.bf16.msra.mxu0 %v7381
      %7463 = vmatprep.subr.bf16.mxu0 0
      %7464 = vmatpush1.bf16.msra.mxu0 0
      %7465 = vmatprep.subr.bf16.mxu0 0
      %7466 = vmatpush1.bf16.msra.mxu0 0
      %7467 = vmatprep.subr.bf16.mxu0 0
      %7468 = vmatpush1.bf16.msra.mxu0 0
      %7469 = vmatprep.subr.bf16.mxu0 0
      %7470 = vmatpush1.bf16.msra.mxu0 0
      %7471 = vmatprep.subr.bf16.mxu0 0
      %7472 = vmatpush1.bf16.msra.mxu0 0
      %7473 = vmatprep.subr.bf16.mxu0 0
      %7474 = vmatpush1.bf16.msra.mxu0 0
      %7475 = vmatprep.subr.bf16.mxu0 0
      %7476 = vmatpush1.bf16.msra.mxu0 0
      %7477 = vmatprep.subr.bf16.mxu0 0
      %7478 = vmatpush1.bf16.msra.mxu0 0
      %7479 = vmatprep.mubr.bf16.mxu0 0
      %7480 = vmatmul.mubr.bf16.gmra.mrb[0].mxu0 %v7431
      %v7481 = vpop.f32.mrb[0].mxu0
      %v7482 = vadd.f32 0.0, %v7481
      %v7483 = vpop.f32.mrb[0].mxu0
      %v7484 = vpop.f32.mrb[0].mxu0
      %v7485 = vadd.f32 0.0, %v7484
      %v7486 = vpop.f32.mrb[0].mxu0
      %7487 = vmatprep.mubr.bf16.mxu0 0
      %7488 = vmatmul.mubr.bf16.gmra.mrb[0].mxu0 %v7432
      %v7489 = vpop.f32.mrb[0].mxu0
      %v7490 = vadd.f32 0.0, %v7489
      %v7491 = vpop.f32.mrb[0].mxu0
      %v7492 = vpop.f32.mrb[0].mxu0
      %v7493 = vadd.f32 0.0, %v7492
      %v7494 = vpop.f32.mrb[0].mxu0
      %7495 = vmatprep.mubr.bf16.mxu0 0
      %7496 = vmatmul.mubr.bf16.gmra.mrb[0].mxu0 %v7433
      %v7497 = vpop.f32.mrb[0].mxu0
      %v7498 = vadd.f32 0.0, %v7497
      %v7499 = vpop.f32.mrb[0].mxu0
      %v7500 = vpop.f32.mrb[0].mxu0
      %v7501 = vadd.f32 0.0, %v7500
      %v7502 = vpop.f32.mrb[0].mxu0
      %7503 = vmatprep.mubr.bf16.mxu0 0
      %7504 = vmatmul.mubr.bf16.gmra.mrb[0].mxu0 %v7434
      %v7505 = vpop.f32.mrb[0].mxu0
      %v7506 = vadd.f32 0.0, %v7505
      %v7507 = vpop.f32.mrb[0].mxu0
      %v7508 = vpop.f32.mrb[0].mxu0
      %v7509 = vadd.f32 0.0, %v7508
      %v7510 = vpop.f32.mrb[0].mxu0
      %7511 = vmatprep.mubr.bf16.mxu0 0
      %7512 = vmatmul.mubr.bf16.gmra.mrb[0].mxu0 %v7435
      %v7513 = vpop.f32.mrb[0].mxu0
      %v7514 = vadd.f32 0.0, %v7513
      %v7515 = vpop.f32.mrb[0].mxu0
      %v7516 = vpop.f32.mrb[0].mxu0
      %v7517 = vadd.f32 0.0, %v7516
      %v7518 = vpop.f32.mrb[0].mxu0
      %7519 = vmatprep.mubr.bf16.mxu0 0
      %7520 = vmatmul.mubr.bf16.gmra.mrb[0].mxu0 %v7436
      %v7521 = vpop.f32.mrb[0].mxu0
      %v7522 = vadd.f32 0.0, %v7521
      %v7523 = vpop.f32.mrb[0].mxu0
      %v7524 = vpop.f32.mrb[0].mxu0
      %v7525 = vadd.f32 0.0, %v7524
      %v7526 = vpop.f32.mrb[0].mxu0
      %7527 = vmatprep.mubr.bf16.mxu0 0
      %7528 = vmatmul.mubr.bf16.gmra.mrb[0].mxu0 %v7437
      %v7529 = vpop.f32.mrb[0].mxu0
      %v7530 = vadd.f32 0.0, %v7529
      %v7531 = vpop.f32.mrb[0].mxu0
      %v7532 = vpop.f32.mrb[0].mxu0
      %v7533 = vadd.f32 0.0, %v7532
      %v7534 = vpop.f32.mrb[0].mxu0
      %7535 = vmatprep.mubr.bf16.mxu0 0
      %7536 = vmatmul.mubr.bf16.gmra.mrb[0].mxu0 %v7438
      %v7537 = vpop.f32.mrb[0].mxu0
      %v7538 = vadd.f32 0.0, %v7537
      %v7539 = vpop.f32.mrb[0].mxu0
      %v7540 = vpop.f32.mrb[0].mxu0
      %v7541 = vadd.f32 0.0, %v7540
      %v7542 = vpop.f32.mrb[0].mxu0
      %7543 = vdwg.mxu0
      %v7544 = vadd.f32 %v7190, %v7482
      %v7545 = vadd.f32 %v7193, %v7485
      %v7546 = vadd.f32 %v7198, %v7490
      %v7547 = vadd.f32 %v7201, %v7493
      %v7548 = vadd.f32 %v7206, %v7498
      %v7549 = vadd.f32 %v7209, %v7501
      %v7550 = vadd.f32 %v7214, %v7506
      %v7551 = vadd.f32 %v7217, %v7509
      %v7552 = vadd.f32 %v7222, %v7514
      %v7553 = vadd.f32 %v7225, %v7517
      %v7554 = vadd.f32 %v7230, %v7522
      %v7555 = vadd.f32 %v7233, %v7525
      %v7556 = vadd.f32 %v7238, %v7530
      %v7557 = vadd.f32 %v7241, %v7533
      %v7558 = vadd.f32 %v7246, %v7538
      %v7559 = vadd.f32 %v7249, %v7541
      %s7560 = scalar_lea.vmem %s6, 72
      %v7561 = vld [vmem:[%s7560] sm:$0xf]
      %v7562 = vld [vmem:[%s7560 + $0x4] sm:$0xf]
      %v7563 = vld [vmem:[%s7560 + $0x8] sm:$0xf]
      %v7564 = vld [vmem:[%s7560 + $0xc] sm:$0xf]
      %v7565 = vld [vmem:[%s7560 + $0x10] sm:$0xf]
      %v7566 = vld [vmem:[%s7560 + $0x14] sm:$0xf]
      %v7573 = vunpack.c.l.b16 %v7561
      %v7574 = vunpack.c.l.b16 %v7562
      %v7575 = vunpack.c.l.b16 %v7563
      %v7576 = vunpack.c.l.b16 %v7564
      %v7577 = vunpack.c.l.b16 %v7565
      %v7578 = vunpack.c.l.b16 %v7566
      %v7579 = vpack.c.b16 %v7574, %v7573
      %v7580 = vpack.c.b16 %v7576, %v7575
      %v7581 = vpack.c.b16 %v7578, %v7577
      %7585 = vmatprep.subr.bf16.mxu0 0
      %7586 = vmatpush1.bf16.msra.mxu0 %v7579
      %7587 = vmatprep.subr.bf16.mxu0 0
      %7588 = vmatpush1.bf16.msra.mxu0 %v7580
      %7589 = vmatprep.subr.bf16.mxu0 0
      %7590 = vmatpush1.bf16.msra.mxu0 %v7581
      %7591 = vmatprep.subr.bf16.mxu0 0
      %7592 = vmatpush1.bf16.msra.mxu0 0
      %7593 = vmatprep.subr.bf16.mxu0 0
      %7594 = vmatpush1.bf16.msra.mxu0 0
      %7595 = vmatprep.subr.bf16.mxu0 0
      %7596 = vmatpush1.bf16.msra.mxu0 0
      %7597 = vmatprep.subr.bf16.mxu0 0
      %7598 = vmatpush1.bf16.msra.mxu0 0
      %7599 = vmatprep.subr.bf16.mxu0 0
      %7600 = vmatpush1.bf16.msra.mxu0 0
      %7601 = vmatprep.subr.bf16.mxu0 0
      %7602 = vmatpush1.bf16.msra.mxu0 0
      %7603 = vmatprep.subr.bf16.mxu0 0
      %7604 = vmatpush1.bf16.msra.mxu0 0
      %7605 = vmatprep.subr.bf16.mxu0 0
      %7606 = vmatpush1.bf16.msra.mxu0 0
      %7607 = vmatprep.subr.bf16.mxu0 0
      %7608 = vmatpush1.bf16.msra.mxu0 0
      %7609 = vmatprep.subr.bf16.mxu0 0
      %7610 = vmatpush1.bf16.msra.mxu0 0
      %7611 = vmatprep.subr.bf16.mxu0 0
      %7612 = vmatpush1.bf16.msra.mxu0 0
      %7613 = vmatprep.subr.bf16.mxu0 0
      %7614 = vmatpush1.bf16.msra.mxu0 0
      %7615 = vmatprep.subr.bf16.mxu0 0
      %7616 = vmatpush1.bf16.msra.mxu0 0
      %7617 = vmatprep.mubr.bf16.mxu0 0
      %7618 = vmatmul.mubr.bf16.gmra.mrb[0].mxu0 %v6671
      %v7619 = vpop.f32.mrb[0].mxu0
      %v7620 = vadd.f32 0.0, %v7619
      %v7621 = vpop.f32.mrb[0].mxu0
      %v7622 = vpop.f32.mrb[0].mxu0
      %v7623 = vadd.f32 0.0, %v7622
      %v7624 = vpop.f32.mrb[0].mxu0
      %7625 = vmatprep.mubr.bf16.mxu0 0
      %7626 = vmatmul.mubr.bf16.gmra.mrb[0].mxu0 %v6674
      %v7627 = vpop.f32.mrb[0].mxu0
      %v7628 = vadd.f32 0.0, %v7627
      %v7629 = vpop.f32.mrb[0].mxu0
      %v7630 = vpop.f32.mrb[0].mxu0
      %v7631 = vadd.f32 0.0, %v7630
      %v7632 = vpop.f32.mrb[0].mxu0
      %7633 = vmatprep.mubr.bf16.mxu0 0
      %7634 = vmatmul.mubr.bf16.gmra.mrb[0].mxu0 %v6677
      %v7635 = vpop.f32.mrb[0].mxu0
      %v7636 = vadd.f32 0.0, %v7635
      %v7637 = vpop.f32.mrb[0].mxu0
      %v7638 = vpop.f32.mrb[0].mxu0
      %v7639 = vadd.f32 0.0, %v7638
      %v7640 = vpop.f32.mrb[0].mxu0
      %7641 = vmatprep.mubr.bf16.mxu0 0
      %7642 = vmatmul.mubr.bf16.gmra.mrb[0].mxu0 %v6680
      %v7643 = vpop.f32.mrb[0].mxu0
      %v7644 = vadd.f32 0.0, %v7643
      %v7645 = vpop.f32.mrb[0].mxu0
      %v7646 = vpop.f32.mrb[0].mxu0
      %v7647 = vadd.f32 0.0, %v7646
      %v7648 = vpop.f32.mrb[0].mxu0
      %7649 = vmatprep.mubr.bf16.mxu0 0
      %7650 = vmatmul.mubr.bf16.gmra.mrb[0].mxu0 %v6683
      %v7651 = vpop.f32.mrb[0].mxu0
      %v7652 = vadd.f32 0.0, %v7651
      %v7653 = vpop.f32.mrb[0].mxu0
      %v7654 = vpop.f32.mrb[0].mxu0
      %v7655 = vadd.f32 0.0, %v7654
      %v7656 = vpop.f32.mrb[0].mxu0
      %7657 = vmatprep.mubr.bf16.mxu0 0
      %7658 = vmatmul.mubr.bf16.gmra.mrb[0].mxu0 %v6686
      %v7659 = vpop.f32.mrb[0].mxu0
      %v7660 = vadd.f32 0.0, %v7659
      %v7661 = vpop.f32.mrb[0].mxu0
      %v7662 = vpop.f32.mrb[0].mxu0
      %v7663 = vadd.f32 0.0, %v7662
      %v7664 = vpop.f32.mrb[0].mxu0
      %7665 = vmatprep.mubr.bf16.mxu0 0
      %7666 = vmatmul.mubr.bf16.gmra.mrb[0].mxu0 %v6689
      %v7667 = vpop.f32.mrb[0].mxu0
      %v7668 = vadd.f32 0.0, %v7667
      %v7669 = vpop.f32.mrb[0].mxu0
      %v7670 = vpop.f32.mrb[0].mxu0
      %v7671 = vadd.f32 0.0, %v7670
      %v7672 = vpop.f32.mrb[0].mxu0
      %7673 = vmatprep.mubr.bf16.mxu0 0
      %7674 = vmatmul.mubr.bf16.gmra.mrb[0].mxu0 %v6692
      %v7675 = vpop.f32.mrb[0].mxu0
      %v7676 = vadd.f32 0.0, %v7675
      %v7677 = vpop.f32.mrb[0].mxu0
      %v7678 = vpop.f32.mrb[0].mxu0
      %v7679 = vadd.f32 0.0, %v7678
      %v7680 = vpop.f32.mrb[0].mxu0
      %7681 = vdwg.mxu0
      %v7682 = vpack.c.bf16 %v7623, %v7620
      %v7683 = vpack.c.bf16 %v7631, %v7628
      %v7684 = vpack.c.bf16 %v7639, %v7636
      %v7685 = vpack.c.bf16 %v7647, %v7644
      %v7686 = vpack.c.bf16 %v7655, %v7652
      %v7687 = vpack.c.bf16 %v7663, %v7660
      %v7688 = vpack.c.bf16 %v7671, %v7668
      %v7689 = vpack.c.bf16 %v7679, %v7676
      %s7690 = scalar_lea.vmem %s5, 192
      %v7691 = vld [vmem:[%s7690] sm:$0xf]
      %v7692 = vld [vmem:[%s7690 + $0x4] sm:$0xf]
      %v7693 = vld [vmem:[%s7690 + $0x8] sm:$0xf]
      %v7694 = vld [vmem:[%s7690 + $0xc] sm:$0xf]
      %v7695 = vld [vmem:[%s7690 + $0x10] sm:$0xf]
      %v7696 = vld [vmem:[%s7690 + $0x14] sm:$0xf]
      %v7697 = vld [vmem:[%s7690 + $0x18] sm:$0xf]
      %v7698 = vld [vmem:[%s7690 + $0x1c] sm:$0xf]
      %v7699 = vld [vmem:[%s7690 + $0x20] sm:$0xf]
      %v7700 = vld [vmem:[%s7690 + $0x24] sm:$0xf]
      %v7701 = vld [vmem:[%s7690 + $0x28] sm:$0xf]
      %v7702 = vld [vmem:[%s7690 + $0x2c] sm:$0xf]
      %v7703 = vld [vmem:[%s7690 + $0x30] sm:$0xf]
      %v7704 = vld [vmem:[%s7690 + $0x34] sm:$0xf]
      %v7705 = vld [vmem:[%s7690 + $0x38] sm:$0xf]
      %v7706 = vld [vmem:[%s7690 + $0x3c] sm:$0xf]
      %v7723 = vunpack.c.l.b16 %v7691
      %v7724 = vunpack.c.l.b16 %v7692
      %v7725 = vunpack.c.l.b16 %v7693
      %v7726 = vunpack.c.l.b16 %v7694
      %v7727 = vunpack.c.l.b16 %v7695
      %v7728 = vunpack.c.l.b16 %v7696
      %v7729 = vunpack.c.l.b16 %v7697
      %v7730 = vunpack.c.l.b16 %v7698
      %v7731 = vunpack.c.l.b16 %v7699
      %v7732 = vunpack.c.l.b16 %v7700
      %v7733 = vunpack.c.l.b16 %v7701
      %v7734 = vunpack.c.l.b16 %v7702
      %v7735 = vunpack.c.l.b16 %v7703
      %v7736 = vunpack.c.l.b16 %v7704
      %v7737 = vunpack.c.l.b16 %v7705
      %v7738 = vunpack.c.l.b16 %v7706
      %v7739 = vpack.c.b16 %v7724, %v7723
      %v7740 = vpack.c.b16 %v7726, %v7725
      %v7741 = vpack.c.b16 %v7728, %v7727
      %v7742 = vpack.c.b16 %v7730, %v7729
      %v7743 = vpack.c.b16 %v7732, %v7731
      %v7744 = vpack.c.b16 %v7734, %v7733
      %v7745 = vpack.c.b16 %v7736, %v7735
      %v7746 = vpack.c.b16 %v7738, %v7737
      %7755 = vmatprep.subr.bf16.mxu0 0
      %7756 = vmatpush1.bf16.msra.mxu0 %v7682
      %7757 = vmatprep.subr.bf16.mxu0 0
      %7758 = vmatpush1.bf16.msra.mxu0 %v7683
      %7759 = vmatprep.subr.bf16.mxu0 0
      %7760 = vmatpush1.bf16.msra.mxu0 %v7684
      %7761 = vmatprep.subr.bf16.mxu0 0
      %7762 = vmatpush1.bf16.msra.mxu0 %v7685
      %7763 = vmatprep.subr.bf16.mxu0 0
      %7764 = vmatpush1.bf16.msra.mxu0 %v7686
      %7765 = vmatprep.subr.bf16.mxu0 0
      %7766 = vmatpush1.bf16.msra.mxu0 %v7687
      %7767 = vmatprep.subr.bf16.mxu0 0
      %7768 = vmatpush1.bf16.msra.mxu0 %v7688
      %7769 = vmatprep.subr.bf16.mxu0 0
      %7770 = vmatpush1.bf16.msra.mxu0 %v7689
      %7771 = vmatprep.subr.bf16.mxu0 0
      %7772 = vmatpush1.bf16.msra.mxu0 0
      %7773 = vmatprep.subr.bf16.mxu0 0
      %7774 = vmatpush1.bf16.msra.mxu0 0
      %7775 = vmatprep.subr.bf16.mxu0 0
      %7776 = vmatpush1.bf16.msra.mxu0 0
      %7777 = vmatprep.subr.bf16.mxu0 0
      %7778 = vmatpush1.bf16.msra.mxu0 0
      %7779 = vmatprep.subr.bf16.mxu0 0
      %7780 = vmatpush1.bf16.msra.mxu0 0
      %7781 = vmatprep.subr.bf16.mxu0 0
      %7782 = vmatpush1.bf16.msra.mxu0 0
      %7783 = vmatprep.subr.bf16.mxu0 0
      %7784 = vmatpush1.bf16.msra.mxu0 0
      %7785 = vmatprep.subr.bf16.mxu0 0
      %7786 = vmatpush1.bf16.msra.mxu0 0
      %7787 = vmatprep.mubr.bf16.mxu0 0
      %7788 = vmatmul.mubr.bf16.gmra.mrb[0].mxu0 %v7739
      %v7789 = vpop.f32.mrb[0].mxu0
      %v7790 = vadd.f32 0.0, %v7789
      %v7791 = vpop.f32.mrb[0].mxu0
      %v7792 = vpop.f32.mrb[0].mxu0
      %v7793 = vadd.f32 0.0, %v7792
      %v7794 = vpop.f32.mrb[0].mxu0
      %7795 = vmatprep.mubr.bf16.mxu0 0
      %7796 = vmatmul.mubr.bf16.gmra.mrb[0].mxu0 %v7740
      %v7797 = vpop.f32.mrb[0].mxu0
      %v7798 = vadd.f32 0.0, %v7797
      %v7799 = vpop.f32.mrb[0].mxu0
      %v7800 = vpop.f32.mrb[0].mxu0
      %v7801 = vadd.f32 0.0, %v7800
      %v7802 = vpop.f32.mrb[0].mxu0
      %7803 = vmatprep.mubr.bf16.mxu0 0
      %7804 = vmatmul.mubr.bf16.gmra.mrb[0].mxu0 %v7741
      %v7805 = vpop.f32.mrb[0].mxu0
      %v7806 = vadd.f32 0.0, %v7805
      %v7807 = vpop.f32.mrb[0].mxu0
      %v7808 = vpop.f32.mrb[0].mxu0
      %v7809 = vadd.f32 0.0, %v7808
      %v7810 = vpop.f32.mrb[0].mxu0
      %7811 = vmatprep.mubr.bf16.mxu0 0
      %7812 = vmatmul.mubr.bf16.gmra.mrb[0].mxu0 %v7742
      %v7813 = vpop.f32.mrb[0].mxu0
      %v7814 = vadd.f32 0.0, %v7813
      %v7815 = vpop.f32.mrb[0].mxu0
      %v7816 = vpop.f32.mrb[0].mxu0
      %v7817 = vadd.f32 0.0, %v7816
      %v7818 = vpop.f32.mrb[0].mxu0
      %7819 = vmatprep.mubr.bf16.mxu0 0
      %7820 = vmatmul.mubr.bf16.gmra.mrb[0].mxu0 %v7743
      %v7821 = vpop.f32.mrb[0].mxu0
      %v7822 = vadd.f32 0.0, %v7821
      %v7823 = vpop.f32.mrb[0].mxu0
      %v7824 = vpop.f32.mrb[0].mxu0
      %v7825 = vadd.f32 0.0, %v7824
      %v7826 = vpop.f32.mrb[0].mxu0
      %7827 = vmatprep.mubr.bf16.mxu0 0
      %7828 = vmatmul.mubr.bf16.gmra.mrb[0].mxu0 %v7744
      %v7829 = vpop.f32.mrb[0].mxu0
      %v7830 = vadd.f32 0.0, %v7829
      %v7831 = vpop.f32.mrb[0].mxu0
      %v7832 = vpop.f32.mrb[0].mxu0
      %v7833 = vadd.f32 0.0, %v7832
      %v7834 = vpop.f32.mrb[0].mxu0
      %7835 = vmatprep.mubr.bf16.mxu0 0
      %7836 = vmatmul.mubr.bf16.gmra.mrb[0].mxu0 %v7745
      %v7837 = vpop.f32.mrb[0].mxu0
      %v7838 = vadd.f32 0.0, %v7837
      %v7839 = vpop.f32.mrb[0].mxu0
      %v7840 = vpop.f32.mrb[0].mxu0
      %v7841 = vadd.f32 0.0, %v7840
      %v7842 = vpop.f32.mrb[0].mxu0
      %7843 = vmatprep.mubr.bf16.mxu0 0
      %7844 = vmatmul.mubr.bf16.gmra.mrb[0].mxu0 %v7746
      %v7845 = vpop.f32.mrb[0].mxu0
      %v7846 = vadd.f32 0.0, %v7845
      %v7847 = vpop.f32.mrb[0].mxu0
      %v7848 = vpop.f32.mrb[0].mxu0
      %v7849 = vadd.f32 0.0, %v7848
      %v7850 = vpop.f32.mrb[0].mxu0
      %7851 = vdwg.mxu0
      %v7852 = vadd.f32 %v7544, %v7790
      %v7853 = vadd.f32 %v7545, %v7793
      %v7854 = vadd.f32 %v7546, %v7798
      %v7855 = vadd.f32 %v7547, %v7801
      %v7856 = vadd.f32 %v7548, %v7806
      %v7857 = vadd.f32 %v7549, %v7809
      %v7858 = vadd.f32 %v7550, %v7814
      %v7859 = vadd.f32 %v7551, %v7817
      %v7860 = vadd.f32 %v7552, %v7822
      %v7861 = vadd.f32 %v7553, %v7825
      %v7862 = vadd.f32 %v7554, %v7830
      %v7863 = vadd.f32 %v7555, %v7833
      %v7864 = vadd.f32 %v7556, %v7838
      %v7865 = vadd.f32 %v7557, %v7841
      %v7866 = vadd.f32 %v7558, %v7846
      %v7867 = vadd.f32 %v7559, %v7849
      %v7868 = vmul.f32 %v7852, 0.2
      %v7869 = vmul.f32 %v7853, 0.2
      %v7870 = vmul.f32 %v7854, 0.2
      %v7871 = vmul.f32 %v7855, 0.2
      %v7872 = vmul.f32 %v7856, 0.2
      %v7873 = vmul.f32 %v7857, 0.2
      %v7874 = vmul.f32 %v7858, 0.2
      %v7875 = vmul.f32 %v7859, 0.2
      %v7876 = vmul.f32 %v7860, 0.2
      %v7877 = vmul.f32 %v7861, 0.2
      %v7878 = vmul.f32 %v7862, 0.2
      %v7879 = vmul.f32 %v7863, 0.2
      %v7880 = vmul.f32 %v7864, 0.2
      %v7881 = vmul.f32 %v7865, 0.2
      %v7882 = vmul.f32 %v7866, 0.2
      %v7883 = vmul.f32 %v7867, 0.2
      %v7884 = vmax.f32 %v7852, %v7868
      %v7885 = vmax.f32 %v7853, %v7869
      %v7886 = vmax.f32 %v7854, %v7870
      %v7887 = vmax.f32 %v7855, %v7871
      %v7888 = vmax.f32 %v7856, %v7872
      %v7889 = vmax.f32 %v7857, %v7873
      %v7890 = vmax.f32 %v7858, %v7874
      %v7891 = vmax.f32 %v7859, %v7875
      %v7892 = vmax.f32 %v7860, %v7876
      %v7893 = vmax.f32 %v7861, %v7877
      %v7894 = vmax.f32 %v7862, %v7878
      %v7895 = vmax.f32 %v7863, %v7879
      %v7896 = vmax.f32 %v7864, %v7880
      %v7897 = vmax.f32 %v7865, %v7881
      %v7898 = vmax.f32 %v7866, %v7882
      %v7899 = vmax.f32 %v7867, %v7883
      %v7900 = vpack.c.bf16 %v7885, %v7884
      %v7901 = vpack.c.bf16 %v7887, %v7886
      %v7902 = vpack.c.bf16 %v7889, %v7888
      %v7903 = vpack.c.bf16 %v7891, %v7890
      %v7904 = vpack.c.bf16 %v7893, %v7892
      %v7905 = vpack.c.bf16 %v7895, %v7894
      %v7906 = vpack.c.bf16 %v7897, %v7896
      %v7907 = vpack.c.bf16 %v7899, %v7898
      %v7908 = vld [vmem:[%s8] sm:$0xf]
      %v7909 = vld [vmem:[%s8 + $0x4] sm:$0xf]
      %v7910 = vld [vmem:[%s8 + $0x8] sm:$0xf]
      %v7914 = vunpack.c.l.b16 %v7908
      %v7915 = vunpack.c.l.b16 %v7909
      %v7916 = vunpack.c.l.b16 %v7910
      %v7917 = vpack.c.b16 %v7915, %v7914
      %v7918 = vpack.c.b16 %v7916, %v7916
      %vm7920 = vcmask 195584
      %v7922 = vsel %vm7920, %v7900, 0
      %v7925 = vsel %vm7920, %v7901, 0
      %v7928 = vsel %vm7920, %v7902, 0
      %v7931 = vsel %vm7920, %v7903, 0
      %v7934 = vsel %vm7920, %v7904, 0
      %v7937 = vsel %vm7920, %v7905, 0
      %v7940 = vsel %vm7920, %v7906, 0
      %v7943 = vsel %vm7920, %v7907, 0
      %vm7945 = vcmask 1043456
      %v7947 = vsel %vm7945, %v7918, 0
      %7949 = vmatprep.subr.bf16.mxu0 0
      %7950 = vmatpush1.bf16.msra.mxu0 %v7917
      %7951 = vmatprep.subr.bf16.mxu0 0
      %7952 = vmatpush1.bf16.msra.mxu0 %v7947
      %7953 = vmatprep.subr.bf16.mxu0 0
      %7954 = vmatpush1.bf16.msra.mxu0 0
      %7955 = vmatprep.subr.bf16.mxu0 0
      %7956 = vmatpush1.bf16.msra.mxu0 0
      %7957 = vmatprep.subr.bf16.mxu0 0
      %7958 = vmatpush1.bf16.msra.mxu0 0
      %7959 = vmatprep.subr.bf16.mxu0 0
      %7960 = vmatpush1.bf16.msra.mxu0 0
      %7961 = vmatprep.subr.bf16.mxu0 0
      %7962 = vmatpush1.bf16.msra.mxu0 0
      %7963 = vmatprep.subr.bf16.mxu0 0
      %7964 = vmatpush1.bf16.msra.mxu0 0
      %7965 = vmatprep.subr.bf16.mxu0 0
      %7966 = vmatpush1.bf16.msra.mxu0 0
      %7967 = vmatprep.subr.bf16.mxu0 0
      %7968 = vmatpush1.bf16.msra.mxu0 0
      %7969 = vmatprep.subr.bf16.mxu0 0
      %7970 = vmatpush1.bf16.msra.mxu0 0
      %7971 = vmatprep.subr.bf16.mxu0 0
      %7972 = vmatpush1.bf16.msra.mxu0 0
      %7973 = vmatprep.subr.bf16.mxu0 0
      %7974 = vmatpush1.bf16.msra.mxu0 0
      %7975 = vmatprep.subr.bf16.mxu0 0
      %7976 = vmatpush1.bf16.msra.mxu0 0
      %7977 = vmatprep.subr.bf16.mxu0 0
      %7978 = vmatpush1.bf16.msra.mxu0 0
      %7979 = vmatprep.subr.bf16.mxu0 0
      %7980 = vmatpush1.bf16.msra.mxu0 0
      %7981 = vmatprep.mubr.bf16.mxu0 0
      %7982 = vmatmul.mubr.bf16.gmra.mrb[0].mxu0 %v7922
      %v7983 = vpop.f32.mrb[0].mxu0
      %v7984 = vadd.f32 0.0, %v7983
      %v7985 = vpop.f32.mrb[0].mxu0
      %v7986 = vpop.f32.mrb[0].mxu0
      %v7987 = vadd.f32 0.0, %v7986
      %v7988 = vpop.f32.mrb[0].mxu0
      %7989 = vmatprep.mubr.bf16.mxu0 0
      %7990 = vmatmul.mubr.bf16.gmra.mrb[0].mxu0 %v7925
      %v7991 = vpop.f32.mrb[0].mxu0
      %v7992 = vadd.f32 0.0, %v7991
      %v7993 = vpop.f32.mrb[0].mxu0
      %v7994 = vpop.f32.mrb[0].mxu0
      %v7995 = vadd.f32 0.0, %v7994
      %v7996 = vpop.f32.mrb[0].mxu0
      %7997 = vmatprep.mubr.bf16.mxu0 0
      %7998 = vmatmul.mubr.bf16.gmra.mrb[0].mxu0 %v7928
      %v7999 = vpop.f32.mrb[0].mxu0
      %v8000 = vadd.f32 0.0, %v7999
      %v8001 = vpop.f32.mrb[0].mxu0
      %v8002 = vpop.f32.mrb[0].mxu0
      %v8003 = vadd.f32 0.0, %v8002
      %v8004 = vpop.f32.mrb[0].mxu0
      %8005 = vmatprep.mubr.bf16.mxu0 0
      %8006 = vmatmul.mubr.bf16.gmra.mrb[0].mxu0 %v7931
      %v8007 = vpop.f32.mrb[0].mxu0
      %v8008 = vadd.f32 0.0, %v8007
      %v8009 = vpop.f32.mrb[0].mxu0
      %v8010 = vpop.f32.mrb[0].mxu0
      %v8011 = vadd.f32 0.0, %v8010
      %v8012 = vpop.f32.mrb[0].mxu0
      %8013 = vmatprep.mubr.bf16.mxu0 0
      %8014 = vmatmul.mubr.bf16.gmra.mrb[0].mxu0 %v7934
      %v8015 = vpop.f32.mrb[0].mxu0
      %v8016 = vadd.f32 0.0, %v8015
      %v8017 = vpop.f32.mrb[0].mxu0
      %v8018 = vpop.f32.mrb[0].mxu0
      %v8019 = vadd.f32 0.0, %v8018
      %v8020 = vpop.f32.mrb[0].mxu0
      %8021 = vmatprep.mubr.bf16.mxu0 0
      %8022 = vmatmul.mubr.bf16.gmra.mrb[0].mxu0 %v7937
      %v8023 = vpop.f32.mrb[0].mxu0
      %v8024 = vadd.f32 0.0, %v8023
      %v8025 = vpop.f32.mrb[0].mxu0
      %v8026 = vpop.f32.mrb[0].mxu0
      %v8027 = vadd.f32 0.0, %v8026
      %v8028 = vpop.f32.mrb[0].mxu0
      %8029 = vmatprep.mubr.bf16.mxu0 0
      %8030 = vmatmul.mubr.bf16.gmra.mrb[0].mxu0 %v7940
      %v8031 = vpop.f32.mrb[0].mxu0
      %v8032 = vadd.f32 0.0, %v8031
      %v8033 = vpop.f32.mrb[0].mxu0
      %v8034 = vpop.f32.mrb[0].mxu0
      %v8035 = vadd.f32 0.0, %v8034
      %v8036 = vpop.f32.mrb[0].mxu0
      %8037 = vmatprep.mubr.bf16.mxu0 0
      %8038 = vmatmul.mubr.bf16.gmra.mrb[0].mxu0 %v7943
      %v8039 = vpop.f32.mrb[0].mxu0
      %v8040 = vadd.f32 0.0, %v8039
      %v8041 = vpop.f32.mrb[0].mxu0
      %v8042 = vpop.f32.mrb[0].mxu0
      %v8043 = vadd.f32 0.0, %v8042
      %v8044 = vpop.f32.mrb[0].mxu0
      %8045 = vdwg.mxu0
      %v8046 = vpack.c.bf16 %v7987, %v7984
      %v8047 = vpack.c.bf16 %v7995, %v7992
      %v8048 = vpack.c.bf16 %v8003, %v8000
      %v8049 = vpack.c.bf16 %v8011, %v8008
      %v8050 = vpack.c.bf16 %v8019, %v8016
      %v8051 = vpack.c.bf16 %v8027, %v8024
      %v8052 = vpack.c.bf16 %v8035, %v8032
      %v8053 = vpack.c.bf16 %v8043, %v8040
      %v8054 = vld [vmem:[%s7] sm:$0xf]
      %v8055 = vld [vmem:[%s7 + $0x4] sm:$0xf]
      %v8056 = vld [vmem:[%s7 + $0x8] sm:$0xf]
      %v8057 = vld [vmem:[%s7 + $0xc] sm:$0xf]
      %v8058 = vld [vmem:[%s7 + $0x10] sm:$0xf]
      %v8059 = vld [vmem:[%s7 + $0x14] sm:$0xf]
      %v8060 = vld [vmem:[%s7 + $0x18] sm:$0xf]
      %v8061 = vld [vmem:[%s7 + $0x1c] sm:$0xf]
      %v8062 = vld [vmem:[%s7 + $0x20] sm:$0xf]
      %v8063 = vld [vmem:[%s7 + $0x24] sm:$0xf]
      %v8064 = vld [vmem:[%s7 + $0x28] sm:$0xf]
      %v8065 = vld [vmem:[%s7 + $0x2c] sm:$0xf]
      %v8066 = vld [vmem:[%s7 + $0x30] sm:$0xf]
      %v8067 = vld [vmem:[%s7 + $0x34] sm:$0xf]
      %v8068 = vld [vmem:[%s7 + $0x38] sm:$0xf]
      %v8069 = vld [vmem:[%s7 + $0x3c] sm:$0xf]
      %s8070 = scalar_lea.vmem %s8, 12
      %v8071 = vld [vmem:[%s8070] sm:$0xf]
      %v8072 = vld [vmem:[%s8070 + $0x4] sm:$0xf]
      %v8073 = vld [vmem:[%s8070 + $0x8] sm:$0xf]
      %v8077 = vunpack.c.l.b16 %v8071
      %v8078 = vunpack.c.l.b16 %v8072
      %v8079 = vunpack.c.l.b16 %v8073
      %v8080 = vpack.c.b16 %v8078, %v8077
      %v8081 = vpack.c.b16 %v8079, %v8079
      %v8084 = vsel %vm7945, %v8081, 0
      %8086 = vmatprep.subr.bf16.mxu0 0
      %8087 = vmatpush1.bf16.msra.mxu0 %v8080
      %8088 = vmatprep.subr.bf16.mxu0 0
      %8089 = vmatpush1.bf16.msra.mxu0 %v8084
      %8090 = vmatprep.subr.bf16.mxu0 0
      %8091 = vmatpush1.bf16.msra.mxu0 0
      %8092 = vmatprep.subr.bf16.mxu0 0
      %8093 = vmatpush1.bf16.msra.mxu0 0
      %8094 = vmatprep.subr.bf16.mxu0 0
      %8095 = vmatpush1.bf16.msra.mxu0 0
      %8096 = vmatprep.subr.bf16.mxu0 0
      %8097 = vmatpush1.bf16.msra.mxu0 0
      %8098 = vmatprep.subr.bf16.mxu0 0
      %8099 = vmatpush1.bf16.msra.mxu0 0
      %8100 = vmatprep.subr.bf16.mxu0 0
      %8101 = vmatpush1.bf16.msra.mxu0 0
      %8102 = vmatprep.subr.bf16.mxu0 0
      %8103 = vmatpush1.bf16.msra.mxu0 0
      %8104 = vmatprep.subr.bf16.mxu0 0
      %8105 = vmatpush1.bf16.msra.mxu0 0
      %8106 = vmatprep.subr.bf16.mxu0 0
      %8107 = vmatpush1.bf16.msra.mxu0 0
      %8108 = vmatprep.subr.bf16.mxu0 0
      %8109 = vmatpush1.bf16.msra.mxu0 0
      %8110 = vmatprep.subr.bf16.mxu0 0
      %8111 = vmatpush1.bf16.msra.mxu0 0
      %8112 = vmatprep.subr.bf16.mxu0 0
      %8113 = vmatpush1.bf16.msra.mxu0 0
      %8114 = vmatprep.subr.bf16.mxu0 0
      %8115 = vmatpush1.bf16.msra.mxu0 0
      %8116 = vmatprep.subr.bf16.mxu0 0
      %8117 = vmatpush1.bf16.msra.mxu0 0
      %8118 = vmatprep.mubr.bf16.mxu0 0
      %8119 = vmatmul.mubr.bf16.gmra.mrb[0].mxu0 %v7922
      %v8120 = vpop.f32.mrb[0].mxu0
      %v8121 = vadd.f32 0.0, %v8120
      %v8122 = vpop.f32.mrb[0].mxu0
      %v8123 = vpop.f32.mrb[0].mxu0
      %v8124 = vadd.f32 0.0, %v8123
      %v8125 = vpop.f32.mrb[0].mxu0
      %8126 = vmatprep.mubr.bf16.mxu0 0
      %8127 = vmatmul.mubr.bf16.gmra.mrb[0].mxu0 %v7925
      %v8128 = vpop.f32.mrb[0].mxu0
      %v8129 = vadd.f32 0.0, %v8128
      %v8130 = vpop.f32.mrb[0].mxu0
      %v8131 = vpop.f32.mrb[0].mxu0
      %v8132 = vadd.f32 0.0, %v8131
      %v8133 = vpop.f32.mrb[0].mxu0
      %8134 = vmatprep.mubr.bf16.mxu0 0
      %8135 = vmatmul.mubr.bf16.gmra.mrb[0].mxu0 %v7928
      %v8136 = vpop.f32.mrb[0].mxu0
      %v8137 = vadd.f32 0.0, %v8136
      %v8138 = vpop.f32.mrb[0].mxu0
      %v8139 = vpop.f32.mrb[0].mxu0
      %v8140 = vadd.f32 0.0, %v8139
      %v8141 = vpop.f32.mrb[0].mxu0
      %8142 = vmatprep.mubr.bf16.mxu0 0
      %8143 = vmatmul.mubr.bf16.gmra.mrb[0].mxu0 %v7931
      %v8144 = vpop.f32.mrb[0].mxu0
      %v8145 = vadd.f32 0.0, %v8144
      %v8146 = vpop.f32.mrb[0].mxu0
      %v8147 = vpop.f32.mrb[0].mxu0
      %v8148 = vadd.f32 0.0, %v8147
      %v8149 = vpop.f32.mrb[0].mxu0
      %8150 = vmatprep.mubr.bf16.mxu0 0
      %8151 = vmatmul.mubr.bf16.gmra.mrb[0].mxu0 %v7934
      %v8152 = vpop.f32.mrb[0].mxu0
      %v8153 = vadd.f32 0.0, %v8152
      %v8154 = vpop.f32.mrb[0].mxu0
      %v8155 = vpop.f32.mrb[0].mxu0
      %v8156 = vadd.f32 0.0, %v8155
      %v8157 = vpop.f32.mrb[0].mxu0
      %8158 = vmatprep.mubr.bf16.mxu0 0
      %8159 = vmatmul.mubr.bf16.gmra.mrb[0].mxu0 %v7937
      %v8160 = vpop.f32.mrb[0].mxu0
      %v8161 = vadd.f32 0.0, %v8160
      %v8162 = vpop.f32.mrb[0].mxu0
      %v8163 = vpop.f32.mrb[0].mxu0
      %v8164 = vadd.f32 0.0, %v8163
      %v8165 = vpop.f32.mrb[0].mxu0
      %8166 = vmatprep.mubr.bf16.mxu0 0
      %8167 = vmatmul.mubr.bf16.gmra.mrb[0].mxu0 %v7940
      %v8168 = vpop.f32.mrb[0].mxu0
      %v8169 = vadd.f32 0.0, %v8168
      %v8170 = vpop.f32.mrb[0].mxu0
      %v8171 = vpop.f32.mrb[0].mxu0
      %v8172 = vadd.f32 0.0, %v8171
      %v8173 = vpop.f32.mrb[0].mxu0
      %8174 = vmatprep.mubr.bf16.mxu0 0
      %8175 = vmatmul.mubr.bf16.gmra.mrb[0].mxu0 %v7943
      %v8176 = vpop.f32.mrb[0].mxu0
      %v8177 = vadd.f32 0.0, %v8176
      %v8178 = vpop.f32.mrb[0].mxu0
      %v8179 = vpop.f32.mrb[0].mxu0
      %v8180 = vadd.f32 0.0, %v8179
      %v8181 = vpop.f32.mrb[0].mxu0
      %8182 = vdwg.mxu0
      %v8183 = vpack.c.bf16 %v8124, %v8121
      %v8184 = vpack.c.bf16 %v8132, %v8129
      %v8185 = vpack.c.bf16 %v8140, %v8137
      %v8186 = vpack.c.bf16 %v8148, %v8145
      %v8187 = vpack.c.bf16 %v8156, %v8153
      %v8188 = vpack.c.bf16 %v8164, %v8161
      %v8189 = vpack.c.bf16 %v8172, %v8169
      %v8190 = vpack.c.bf16 %v8180, %v8177
      %s8191 = scalar_lea.vmem %s7, 64
      %v8192 = vld [vmem:[%s8191] sm:$0xf]
      %v8193 = vld [vmem:[%s8191 + $0x4] sm:$0xf]
      %v8194 = vld [vmem:[%s8191 + $0x8] sm:$0xf]
      %v8195 = vld [vmem:[%s8191 + $0xc] sm:$0xf]
      %v8196 = vld [vmem:[%s8191 + $0x10] sm:$0xf]
      %v8197 = vld [vmem:[%s8191 + $0x14] sm:$0xf]
      %v8198 = vld [vmem:[%s8191 + $0x18] sm:$0xf]
      %v8199 = vld [vmem:[%s8191 + $0x1c] sm:$0xf]
      %v8200 = vld [vmem:[%s8191 + $0x20] sm:$0xf]
      %v8201 = vld [vmem:[%s8191 + $0x24] sm:$0xf]
      %v8202 = vld [vmem:[%s8191 + $0x28] sm:$0xf]
      %v8203 = vld [vmem:[%s8191 + $0x2c] sm:$0xf]
      %v8204 = vld [vmem:[%s8191 + $0x30] sm:$0xf]
      %v8205 = vld [vmem:[%s8191 + $0x34] sm:$0xf]
      %v8206 = vld [vmem:[%s8191 + $0x38] sm:$0xf]
      %v8207 = vld [vmem:[%s8191 + $0x3c] sm:$0xf]
      %v8224 = vunpack.c.l.b16 %v8192
      %v8225 = vunpack.c.l.b16 %v8193
      %v8226 = vunpack.c.l.b16 %v8194
      %v8227 = vunpack.c.l.b16 %v8195
      %v8228 = vunpack.c.l.b16 %v8196
      %v8229 = vunpack.c.l.b16 %v8197
      %v8230 = vunpack.c.l.b16 %v8198
      %v8231 = vunpack.c.l.b16 %v8199
      %v8232 = vunpack.c.l.b16 %v8200
      %v8233 = vunpack.c.l.b16 %v8201
      %v8234 = vunpack.c.l.b16 %v8202
      %v8235 = vunpack.c.l.b16 %v8203
      %v8236 = vunpack.c.l.b16 %v8204
      %v8237 = vunpack.c.l.b16 %v8205
      %v8238 = vunpack.c.l.b16 %v8206
      %v8239 = vunpack.c.l.b16 %v8207
      %v8240 = vpack.c.b16 %v8225, %v8224
      %v8241 = vpack.c.b16 %v8227, %v8226
      %v8242 = vpack.c.b16 %v8229, %v8228
      %v8243 = vpack.c.b16 %v8231, %v8230
      %v8244 = vpack.c.b16 %v8233, %v8232
      %v8245 = vpack.c.b16 %v8235, %v8234
      %v8246 = vpack.c.b16 %v8237, %v8236
      %v8247 = vpack.c.b16 %v8239, %v8238
      %8256 = vmatprep.subr.bf16.mxu0 0
      %8257 = vmatpush1.bf16.msra.mxu0 %v8183
      %8258 = vmatprep.subr.bf16.mxu0 0
      %8259 = vmatpush1.bf16.msra.mxu0 %v8184
      %8260 = vmatprep.subr.bf16.mxu0 0
      %8261 = vmatpush1.bf16.msra.mxu0 %v8185
      %8262 = vmatprep.subr.bf16.mxu0 0
      %8263 = vmatpush1.bf16.msra.mxu0 %v8186
      %8264 = vmatprep.subr.bf16.mxu0 0
      %8265 = vmatpush1.bf16.msra.mxu0 %v8187
      %8266 = vmatprep.subr.bf16.mxu0 0
      %8267 = vmatpush1.bf16.msra.mxu0 %v8188
      %8268 = vmatprep.subr.bf16.mxu0 0
      %8269 = vmatpush1.bf16.msra.mxu0 %v8189
      %8270 = vmatprep.subr.bf16.mxu0 0
      %8271 = vmatpush1.bf16.msra.mxu0 %v8190
      %8272 = vmatprep.subr.bf16.mxu0 0
      %8273 = vmatpush1.bf16.msra.mxu0 0
      %8274 = vmatprep.subr.bf16.mxu0 0
      %8275 = vmatpush1.bf16.msra.mxu0 0
      %8276 = vmatprep.subr.bf16.mxu0 0
      %8277 = vmatpush1.bf16.msra.mxu0 0
      %8278 = vmatprep.subr.bf16.mxu0 0
      %8279 = vmatpush1.bf16.msra.mxu0 0
      %8280 = vmatprep.subr.bf16.mxu0 0
      %8281 = vmatpush1.bf16.msra.mxu0 0
      %8282 = vmatprep.subr.bf16.mxu0 0
      %8283 = vmatpush1.bf16.msra.mxu0 0
      %8284 = vmatprep.subr.bf16.mxu0 0
      %8285 = vmatpush1.bf16.msra.mxu0 0
      %8286 = vmatprep.subr.bf16.mxu0 0
      %8287 = vmatpush1.bf16.msra.mxu0 0
      %8288 = vmatprep.mubr.bf16.mxu0 0
      %8289 = vmatmul.mubr.bf16.gmra.mrb[0].mxu0 %v8240
      %v8290 = vpop.f32.mrb[0].mxu0
      %v8291 = vadd.f32 0.0, %v8290
      %v8292 = vpop.f32.mrb[0].mxu0
      %v8293 = vpop.f32.mrb[0].mxu0
      %v8294 = vadd.f32 0.0, %v8293
      %v8295 = vpop.f32.mrb[0].mxu0
      %8296 = vmatprep.mubr.bf16.mxu0 0
      %8297 = vmatmul.mubr.bf16.gmra.mrb[0].mxu0 %v8241
      %v8298 = vpop.f32.mrb[0].mxu0
      %v8299 = vadd.f32 0.0, %v8298
      %v8300 = vpop.f32.mrb[0].mxu0
      %v8301 = vpop.f32.mrb[0].mxu0
      %v8302 = vadd.f32 0.0, %v8301
      %v8303 = vpop.f32.mrb[0].mxu0
      %8304 = vmatprep.mubr.bf16.mxu0 0
      %8305 = vmatmul.mubr.bf16.gmra.mrb[0].mxu0 %v8242
      %v8306 = vpop.f32.mrb[0].mxu0
      %v8307 = vadd.f32 0.0, %v8306
      %v8308 = vpop.f32.mrb[0].mxu0
      %v8309 = vpop.f32.mrb[0].mxu0
      %v8310 = vadd.f32 0.0, %v8309
      %v8311 = vpop.f32.mrb[0].mxu0
      %8312 = vmatprep.mubr.bf16.mxu0 0
      %8313 = vmatmul.mubr.bf16.gmra.mrb[0].mxu0 %v8243
      %v8314 = vpop.f32.mrb[0].mxu0
      %v8315 = vadd.f32 0.0, %v8314
      %v8316 = vpop.f32.mrb[0].mxu0
      %v8317 = vpop.f32.mrb[0].mxu0
      %v8318 = vadd.f32 0.0, %v8317
      %v8319 = vpop.f32.mrb[0].mxu0
      %8320 = vmatprep.mubr.bf16.mxu0 0
      %8321 = vmatmul.mubr.bf16.gmra.mrb[0].mxu0 %v8244
      %v8322 = vpop.f32.mrb[0].mxu0
      %v8323 = vadd.f32 0.0, %v8322
      %v8324 = vpop.f32.mrb[0].mxu0
      %v8325 = vpop.f32.mrb[0].mxu0
      %v8326 = vadd.f32 0.0, %v8325
      %v8327 = vpop.f32.mrb[0].mxu0
      %8328 = vmatprep.mubr.bf16.mxu0 0
      %8329 = vmatmul.mubr.bf16.gmra.mrb[0].mxu0 %v8245
      %v8330 = vpop.f32.mrb[0].mxu0
      %v8331 = vadd.f32 0.0, %v8330
      %v8332 = vpop.f32.mrb[0].mxu0
      %v8333 = vpop.f32.mrb[0].mxu0
      %v8334 = vadd.f32 0.0, %v8333
      %v8335 = vpop.f32.mrb[0].mxu0
      %8336 = vmatprep.mubr.bf16.mxu0 0
      %8337 = vmatmul.mubr.bf16.gmra.mrb[0].mxu0 %v8246
      %v8338 = vpop.f32.mrb[0].mxu0
      %v8339 = vadd.f32 0.0, %v8338
      %v8340 = vpop.f32.mrb[0].mxu0
      %v8341 = vpop.f32.mrb[0].mxu0
      %v8342 = vadd.f32 0.0, %v8341
      %v8343 = vpop.f32.mrb[0].mxu0
      %8344 = vmatprep.mubr.bf16.mxu0 0
      %8345 = vmatmul.mubr.bf16.gmra.mrb[0].mxu0 %v8247
      %v8346 = vpop.f32.mrb[0].mxu0
      %v8347 = vadd.f32 0.0, %v8346
      %v8348 = vpop.f32.mrb[0].mxu0
      %v8349 = vpop.f32.mrb[0].mxu0
      %v8350 = vadd.f32 0.0, %v8349
      %v8351 = vpop.f32.mrb[0].mxu0
      %8352 = vdwg.mxu0
      %v8369 = vunpack.c.l.b16 %v8054
      %v8370 = vunpack.c.l.b16 %v8055
      %v8371 = vunpack.c.l.b16 %v8056
      %v8372 = vunpack.c.l.b16 %v8057
      %v8373 = vunpack.c.l.b16 %v8058
      %v8374 = vunpack.c.l.b16 %v8059
      %v8375 = vunpack.c.l.b16 %v8060
      %v8376 = vunpack.c.l.b16 %v8061
      %v8377 = vunpack.c.l.b16 %v8062
      %v8378 = vunpack.c.l.b16 %v8063
      %v8379 = vunpack.c.l.b16 %v8064
      %v8380 = vunpack.c.l.b16 %v8065
      %v8381 = vunpack.c.l.b16 %v8066
      %v8382 = vunpack.c.l.b16 %v8067
      %v8383 = vunpack.c.l.b16 %v8068
      %v8384 = vunpack.c.l.b16 %v8069
      %v8385 = vpack.c.b16 %v8370, %v8369
      %v8386 = vpack.c.b16 %v8372, %v8371
      %v8387 = vpack.c.b16 %v8374, %v8373
      %v8388 = vpack.c.b16 %v8376, %v8375
      %v8389 = vpack.c.b16 %v8378, %v8377
      %v8390 = vpack.c.b16 %v8380, %v8379
      %v8391 = vpack.c.b16 %v8382, %v8381
      %v8392 = vpack.c.b16 %v8384, %v8383
      %8401 = vmatprep.subr.bf16.mxu0 0
      %8402 = vmatpush1.bf16.msra.mxu0 %v8046
      %8403 = vmatprep.subr.bf16.mxu0 0
      %8404 = vmatpush1.bf16.msra.mxu0 %v8047
      %8405 = vmatprep.subr.bf16.mxu0 0
      %8406 = vmatpush1.bf16.msra.mxu0 %v8048
      %8407 = vmatprep.subr.bf16.mxu0 0
      %8408 = vmatpush1.bf16.msra.mxu0 %v8049
      %8409 = vmatprep.subr.bf16.mxu0 0
      %8410 = vmatpush1.bf16.msra.mxu0 %v8050
      %8411 = vmatprep.subr.bf16.mxu0 0
      %8412 = vmatpush1.bf16.msra.mxu0 %v8051
      %8413 = vmatprep.subr.bf16.mxu0 0
      %8414 = vmatpush1.bf16.msra.mxu0 %v8052
      %8415 = vmatprep.subr.bf16.mxu0 0
      %8416 = vmatpush1.bf16.msra.mxu0 %v8053
      %8417 = vmatprep.subr.bf16.mxu0 0
      %8418 = vmatpush1.bf16.msra.mxu0 0
      %8419 = vmatprep.subr.bf16.mxu0 0
      %8420 = vmatpush1.bf16.msra.mxu0 0
      %8421 = vmatprep.subr.bf16.mxu0 0
      %8422 = vmatpush1.bf16.msra.mxu0 0
      %8423 = vmatprep.subr.bf16.mxu0 0
      %8424 = vmatpush1.bf16.msra.mxu0 0
      %8425 = vmatprep.subr.bf16.mxu0 0
      %8426 = vmatpush1.bf16.msra.mxu0 0
      %8427 = vmatprep.subr.bf16.mxu0 0
      %8428 = vmatpush1.bf16.msra.mxu0 0
      %8429 = vmatprep.subr.bf16.mxu0 0
      %8430 = vmatpush1.bf16.msra.mxu0 0
      %8431 = vmatprep.subr.bf16.mxu0 0
      %8432 = vmatpush1.bf16.msra.mxu0 0
      %8433 = vmatprep.mubr.bf16.mxu0 0
      %8434 = vmatmul.mubr.bf16.gmra.mrb[0].mxu0 %v8385
      %v8435 = vpop.f32.mrb[0].mxu0
      %v8436 = vadd.f32 %v8291, %v8435
      %v8437 = vpop.f32.mrb[0].mxu0
      %v8438 = vpop.f32.mrb[0].mxu0
      %v8439 = vadd.f32 %v8294, %v8438
      %v8440 = vpop.f32.mrb[0].mxu0
      %8441 = vmatprep.mubr.bf16.mxu0 0
      %8442 = vmatmul.mubr.bf16.gmra.mrb[0].mxu0 %v8386
      %v8443 = vpop.f32.mrb[0].mxu0
      %v8444 = vadd.f32 %v8299, %v8443
      %v8445 = vpop.f32.mrb[0].mxu0
      %v8446 = vpop.f32.mrb[0].mxu0
      %v8447 = vadd.f32 %v8302, %v8446
      %v8448 = vpop.f32.mrb[0].mxu0
      %8449 = vmatprep.mubr.bf16.mxu0 0
      %8450 = vmatmul.mubr.bf16.gmra.mrb[0].mxu0 %v8387
      %v8451 = vpop.f32.mrb[0].mxu0
      %v8452 = vadd.f32 %v8307, %v8451
      %v8453 = vpop.f32.mrb[0].mxu0
      %v8454 = vpop.f32.mrb[0].mxu0
      %v8455 = vadd.f32 %v8310, %v8454
      %v8456 = vpop.f32.mrb[0].mxu0
      %8457 = vmatprep.mubr.bf16.mxu0 0
      %8458 = vmatmul.mubr.bf16.gmra.mrb[0].mxu0 %v8388
      %v8459 = vpop.f32.mrb[0].mxu0
      %v8460 = vadd.f32 %v8315, %v8459
      %v8461 = vpop.f32.mrb[0].mxu0
      %v8462 = vpop.f32.mrb[0].mxu0
      %v8463 = vadd.f32 %v8318, %v8462
      %v8464 = vpop.f32.mrb[0].mxu0
      %8465 = vmatprep.mubr.bf16.mxu0 0
      %8466 = vmatmul.mubr.bf16.gmra.mrb[0].mxu0 %v8389
      %v8467 = vpop.f32.mrb[0].mxu0
      %v8468 = vadd.f32 %v8323, %v8467
      %v8469 = vpop.f32.mrb[0].mxu0
      %v8470 = vpop.f32.mrb[0].mxu0
      %v8471 = vadd.f32 %v8326, %v8470
      %v8472 = vpop.f32.mrb[0].mxu0
      %8473 = vmatprep.mubr.bf16.mxu0 0
      %8474 = vmatmul.mubr.bf16.gmra.mrb[0].mxu0 %v8390
      %v8475 = vpop.f32.mrb[0].mxu0
      %v8476 = vadd.f32 %v8331, %v8475
      %v8477 = vpop.f32.mrb[0].mxu0
      %v8478 = vpop.f32.mrb[0].mxu0
      %v8479 = vadd.f32 %v8334, %v8478
      %v8480 = vpop.f32.mrb[0].mxu0
      %8481 = vmatprep.mubr.bf16.mxu0 0
      %8482 = vmatmul.mubr.bf16.gmra.mrb[0].mxu0 %v8391
      %v8483 = vpop.f32.mrb[0].mxu0
      %v8484 = vadd.f32 %v8339, %v8483
      %v8485 = vpop.f32.mrb[0].mxu0
      %v8486 = vpop.f32.mrb[0].mxu0
      %v8487 = vadd.f32 %v8342, %v8486
      %v8488 = vpop.f32.mrb[0].mxu0
      %8489 = vmatprep.mubr.bf16.mxu0 0
      %8490 = vmatmul.mubr.bf16.gmra.mrb[0].mxu0 %v8392
      %v8491 = vpop.f32.mrb[0].mxu0
      %v8492 = vadd.f32 %v8347, %v8491
      %v8493 = vpop.f32.mrb[0].mxu0
      %v8494 = vpop.f32.mrb[0].mxu0
      %v8495 = vadd.f32 %v8350, %v8494
      %v8496 = vpop.f32.mrb[0].mxu0
      %8497 = vdwg.mxu0
      %s8498 = scalar_lea.vmem %s8, 24
      %v8499 = vld [vmem:[%s8498] sm:$0xf]
      %v8500 = vld [vmem:[%s8498 + $0x4] sm:$0xf]
      %v8501 = vld [vmem:[%s8498 + $0x8] sm:$0xf]
      %v8505 = vunpack.c.l.b16 %v8499
      %v8506 = vunpack.c.l.b16 %v8500
      %v8507 = vunpack.c.l.b16 %v8501
      %v8508 = vpack.c.b16 %v8506, %v8505
      %v8509 = vpack.c.b16 %v8507, %v8507
      %v8512 = vsel %vm7945, %v8509, 0
      %8514 = vmatprep.subr.bf16.mxu0 0
      %8515 = vmatpush1.bf16.msra.mxu0 %v8508
      %8516 = vmatprep.subr.bf16.mxu0 0
      %8517 = vmatpush1.bf16.msra.mxu0 %v8512
      %8518 = vmatprep.subr.bf16.mxu0 0
      %8519 = vmatpush1.bf16.msra.mxu0 0
      %8520 = vmatprep.subr.bf16.mxu0 0
      %8521 = vmatpush1.bf16.msra.mxu0 0
      %8522 = vmatprep.subr.bf16.mxu0 0
      %8523 = vmatpush1.bf16.msra.mxu0 0
      %8524 = vmatprep.subr.bf16.mxu0 0
      %8525 = vmatpush1.bf16.msra.mxu0 0
      %8526 = vmatprep.subr.bf16.mxu0 0
      %8527 = vmatpush1.bf16.msra.mxu0 0
      %8528 = vmatprep.subr.bf16.mxu0 0
      %8529 = vmatpush1.bf16.msra.mxu0 0
      %8530 = vmatprep.subr.bf16.mxu0 0
      %8531 = vmatpush1.bf16.msra.mxu0 0
      %8532 = vmatprep.subr.bf16.mxu0 0
      %8533 = vmatpush1.bf16.msra.mxu0 0
      %8534 = vmatprep.subr.bf16.mxu0 0
      %8535 = vmatpush1.bf16.msra.mxu0 0
      %8536 = vmatprep.subr.bf16.mxu0 0
      %8537 = vmatpush1.bf16.msra.mxu0 0
      %8538 = vmatprep.subr.bf16.mxu0 0
      %8539 = vmatpush1.bf16.msra.mxu0 0
      %8540 = vmatprep.subr.bf16.mxu0 0
      %8541 = vmatpush1.bf16.msra.mxu0 0
      %8542 = vmatprep.subr.bf16.mxu0 0
      %8543 = vmatpush1.bf16.msra.mxu0 0
      %8544 = vmatprep.subr.bf16.mxu0 0
      %8545 = vmatpush1.bf16.msra.mxu0 0
      %8546 = vmatprep.mubr.bf16.mxu0 0
      %8547 = vmatmul.mubr.bf16.gmra.mrb[0].mxu0 %v7922
      %v8548 = vpop.f32.mrb[0].mxu0
      %v8549 = vadd.f32 0.0, %v8548
      %v8550 = vpop.f32.mrb[0].mxu0
      %v8551 = vpop.f32.mrb[0].mxu0
      %v8552 = vadd.f32 0.0, %v8551
      %v8553 = vpop.f32.mrb[0].mxu0
      %8554 = vmatprep.mubr.bf16.mxu0 0
      %8555 = vmatmul.mubr.bf16.gmra.mrb[0].mxu0 %v7925
      %v8556 = vpop.f32.mrb[0].mxu0
      %v8557 = vadd.f32 0.0, %v8556
      %v8558 = vpop.f32.mrb[0].mxu0
      %v8559 = vpop.f32.mrb[0].mxu0
      %v8560 = vadd.f32 0.0, %v8559
      %v8561 = vpop.f32.mrb[0].mxu0
      %8562 = vmatprep.mubr.bf16.mxu0 0
      %8563 = vmatmul.mubr.bf16.gmra.mrb[0].mxu0 %v7928
      %v8564 = vpop.f32.mrb[0].mxu0
      %v8565 = vadd.f32 0.0, %v8564
      %v8566 = vpop.f32.mrb[0].mxu0
      %v8567 = vpop.f32.mrb[0].mxu0
      %v8568 = vadd.f32 0.0, %v8567
      %v8569 = vpop.f32.mrb[0].mxu0
      %8570 = vmatprep.mubr.bf16.mxu0 0
      %8571 = vmatmul.mubr.bf16.gmra.mrb[0].mxu0 %v7931
      %v8572 = vpop.f32.mrb[0].mxu0
      %v8573 = vadd.f32 0.0, %v8572
      %v8574 = vpop.f32.mrb[0].mxu0
      %v8575 = vpop.f32.mrb[0].mxu0
      %v8576 = vadd.f32 0.0, %v8575
      %v8577 = vpop.f32.mrb[0].mxu0
      %8578 = vmatprep.mubr.bf16.mxu0 0
      %8579 = vmatmul.mubr.bf16.gmra.mrb[0].mxu0 %v7934
      %v8580 = vpop.f32.mrb[0].mxu0
      %v8581 = vadd.f32 0.0, %v8580
      %v8582 = vpop.f32.mrb[0].mxu0
      %v8583 = vpop.f32.mrb[0].mxu0
      %v8584 = vadd.f32 0.0, %v8583
      %v8585 = vpop.f32.mrb[0].mxu0
      %8586 = vmatprep.mubr.bf16.mxu0 0
      %8587 = vmatmul.mubr.bf16.gmra.mrb[0].mxu0 %v7937
      %v8588 = vpop.f32.mrb[0].mxu0
      %v8589 = vadd.f32 0.0, %v8588
      %v8590 = vpop.f32.mrb[0].mxu0
      %v8591 = vpop.f32.mrb[0].mxu0
      %v8592 = vadd.f32 0.0, %v8591
      %v8593 = vpop.f32.mrb[0].mxu0
      %8594 = vmatprep.mubr.bf16.mxu0 0
      %8595 = vmatmul.mubr.bf16.gmra.mrb[0].mxu0 %v7940
      %v8596 = vpop.f32.mrb[0].mxu0
      %v8597 = vadd.f32 0.0, %v8596
      %v8598 = vpop.f32.mrb[0].mxu0
      %v8599 = vpop.f32.mrb[0].mxu0
      %v8600 = vadd.f32 0.0, %v8599
      %v8601 = vpop.f32.mrb[0].mxu0
      %8602 = vmatprep.mubr.bf16.mxu0 0
      %8603 = vmatmul.mubr.bf16.gmra.mrb[0].mxu0 %v7943
      %v8604 = vpop.f32.mrb[0].mxu0
      %v8605 = vadd.f32 0.0, %v8604
      %v8606 = vpop.f32.mrb[0].mxu0
      %v8607 = vpop.f32.mrb[0].mxu0
      %v8608 = vadd.f32 0.0, %v8607
      %v8609 = vpop.f32.mrb[0].mxu0
      %8610 = vdwg.mxu0
      %v8611 = vpack.c.bf16 %v8552, %v8549
      %v8612 = vpack.c.bf16 %v8560, %v8557
      %v8613 = vpack.c.bf16 %v8568, %v8565
      %v8614 = vpack.c.bf16 %v8576, %v8573
      %v8615 = vpack.c.bf16 %v8584, %v8581
      %v8616 = vpack.c.bf16 %v8592, %v8589
      %v8617 = vpack.c.bf16 %v8600, %v8597
      %v8618 = vpack.c.bf16 %v8608, %v8605
      %s8619 = scalar_lea.vmem %s7, 128
      %v8620 = vld [vmem:[%s8619] sm:$0xf]
      %v8621 = vld [vmem:[%s8619 + $0x4] sm:$0xf]
      %v8622 = vld [vmem:[%s8619 + $0x8] sm:$0xf]
      %v8623 = vld [vmem:[%s8619 + $0xc] sm:$0xf]
      %v8624 = vld [vmem:[%s8619 + $0x10] sm:$0xf]
      %v8625 = vld [vmem:[%s8619 + $0x14] sm:$0xf]
      %v8626 = vld [vmem:[%s8619 + $0x18] sm:$0xf]
      %v8627 = vld [vmem:[%s8619 + $0x1c] sm:$0xf]
      %v8628 = vld [vmem:[%s8619 + $0x20] sm:$0xf]
      %v8629 = vld [vmem:[%s8619 + $0x24] sm:$0xf]
      %v8630 = vld [vmem:[%s8619 + $0x28] sm:$0xf]
      %v8631 = vld [vmem:[%s8619 + $0x2c] sm:$0xf]
      %v8632 = vld [vmem:[%s8619 + $0x30] sm:$0xf]
      %v8633 = vld [vmem:[%s8619 + $0x34] sm:$0xf]
      %v8634 = vld [vmem:[%s8619 + $0x38] sm:$0xf]
      %v8635 = vld [vmem:[%s8619 + $0x3c] sm:$0xf]
      %v8652 = vunpack.c.l.b16 %v8620
      %v8653 = vunpack.c.l.b16 %v8621
      %v8654 = vunpack.c.l.b16 %v8622
      %v8655 = vunpack.c.l.b16 %v8623
      %v8656 = vunpack.c.l.b16 %v8624
      %v8657 = vunpack.c.l.b16 %v8625
      %v8658 = vunpack.c.l.b16 %v8626
      %v8659 = vunpack.c.l.b16 %v8627
      %v8660 = vunpack.c.l.b16 %v8628
      %v8661 = vunpack.c.l.b16 %v8629
      %v8662 = vunpack.c.l.b16 %v8630
      %v8663 = vunpack.c.l.b16 %v8631
      %v8664 = vunpack.c.l.b16 %v8632
      %v8665 = vunpack.c.l.b16 %v8633
      %v8666 = vunpack.c.l.b16 %v8634
      %v8667 = vunpack.c.l.b16 %v8635
      %v8668 = vpack.c.b16 %v8653, %v8652
      %v8669 = vpack.c.b16 %v8655, %v8654
      %v8670 = vpack.c.b16 %v8657, %v8656
      %v8671 = vpack.c.b16 %v8659, %v8658
      %v8672 = vpack.c.b16 %v8661, %v8660
      %v8673 = vpack.c.b16 %v8663, %v8662
      %v8674 = vpack.c.b16 %v8665, %v8664
      %v8675 = vpack.c.b16 %v8667, %v8666
      %8684 = vmatprep.subr.bf16.mxu0 0
      %8685 = vmatpush1.bf16.msra.mxu0 %v8611
      %8686 = vmatprep.subr.bf16.mxu0 0
      %8687 = vmatpush1.bf16.msra.mxu0 %v8612
      %8688 = vmatprep.subr.bf16.mxu0 0
      %8689 = vmatpush1.bf16.msra.mxu0 %v8613
      %8690 = vmatprep.subr.bf16.mxu0 0
      %8691 = vmatpush1.bf16.msra.mxu0 %v8614
      %8692 = vmatprep.subr.bf16.mxu0 0
      %8693 = vmatpush1.bf16.msra.mxu0 %v8615
      %8694 = vmatprep.subr.bf16.mxu0 0
      %8695 = vmatpush1.bf16.msra.mxu0 %v8616
      %8696 = vmatprep.subr.bf16.mxu0 0
      %8697 = vmatpush1.bf16.msra.mxu0 %v8617
      %8698 = vmatprep.subr.bf16.mxu0 0
      %8699 = vmatpush1.bf16.msra.mxu0 %v8618
      %8700 = vmatprep.subr.bf16.mxu0 0
      %8701 = vmatpush1.bf16.msra.mxu0 0
      %8702 = vmatprep.subr.bf16.mxu0 0
      %8703 = vmatpush1.bf16.msra.mxu0 0
      %8704 = vmatprep.subr.bf16.mxu0 0
      %8705 = vmatpush1.bf16.msra.mxu0 0
      %8706 = vmatprep.subr.bf16.mxu0 0
      %8707 = vmatpush1.bf16.msra.mxu0 0
      %8708 = vmatprep.subr.bf16.mxu0 0
      %8709 = vmatpush1.bf16.msra.mxu0 0
      %8710 = vmatprep.subr.bf16.mxu0 0
      %8711 = vmatpush1.bf16.msra.mxu0 0
      %8712 = vmatprep.subr.bf16.mxu0 0
      %8713 = vmatpush1.bf16.msra.mxu0 0
      %8714 = vmatprep.subr.bf16.mxu0 0
      %8715 = vmatpush1.bf16.msra.mxu0 0
      %8716 = vmatprep.mubr.bf16.mxu0 0
      %8717 = vmatmul.mubr.bf16.gmra.mrb[0].mxu0 %v8668
      %v8718 = vpop.f32.mrb[0].mxu0
      %v8719 = vadd.f32 0.0, %v8718
      %v8720 = vpop.f32.mrb[0].mxu0
      %v8721 = vpop.f32.mrb[0].mxu0
      %v8722 = vadd.f32 0.0, %v8721
      %v8723 = vpop.f32.mrb[0].mxu0
      %8724 = vmatprep.mubr.bf16.mxu0 0
      %8725 = vmatmul.mubr.bf16.gmra.mrb[0].mxu0 %v8669
      %v8726 = vpop.f32.mrb[0].mxu0
      %v8727 = vadd.f32 0.0, %v8726
      %v8728 = vpop.f32.mrb[0].mxu0
      %v8729 = vpop.f32.mrb[0].mxu0
      %v8730 = vadd.f32 0.0, %v8729
      %v8731 = vpop.f32.mrb[0].mxu0
      %8732 = vmatprep.mubr.bf16.mxu0 0
      %8733 = vmatmul.mubr.bf16.gmra.mrb[0].mxu0 %v8670
      %v8734 = vpop.f32.mrb[0].mxu0
      %v8735 = vadd.f32 0.0, %v8734
      %v8736 = vpop.f32.mrb[0].mxu0
      %v8737 = vpop.f32.mrb[0].mxu0
      %v8738 = vadd.f32 0.0, %v8737
      %v8739 = vpop.f32.mrb[0].mxu0
      %8740 = vmatprep.mubr.bf16.mxu0 0
      %8741 = vmatmul.mubr.bf16.gmra.mrb[0].mxu0 %v8671
      %v8742 = vpop.f32.mrb[0].mxu0
      %v8743 = vadd.f32 0.0, %v8742
      %v8744 = vpop.f32.mrb[0].mxu0
      %v8745 = vpop.f32.mrb[0].mxu0
      %v8746 = vadd.f32 0.0, %v8745
      %v8747 = vpop.f32.mrb[0].mxu0
      %8748 = vmatprep.mubr.bf16.mxu0 0
      %8749 = vmatmul.mubr.bf16.gmra.mrb[0].mxu0 %v8672
      %v8750 = vpop.f32.mrb[0].mxu0
      %v8751 = vadd.f32 0.0, %v8750
      %v8752 = vpop.f32.mrb[0].mxu0
      %v8753 = vpop.f32.mrb[0].mxu0
      %v8754 = vadd.f32 0.0, %v8753
      %v8755 = vpop.f32.mrb[0].mxu0
      %8756 = vmatprep.mubr.bf16.mxu0 0
      %8757 = vmatmul.mubr.bf16.gmra.mrb[0].mxu0 %v8673
      %v8758 = vpop.f32.mrb[0].mxu0
      %v8759 = vadd.f32 0.0, %v8758
      %v8760 = vpop.f32.mrb[0].mxu0
      %v8761 = vpop.f32.mrb[0].mxu0
      %v8762 = vadd.f32 0.0, %v8761
      %v8763 = vpop.f32.mrb[0].mxu0
      %8764 = vmatprep.mubr.bf16.mxu0 0
      %8765 = vmatmul.mubr.bf16.gmra.mrb[0].mxu0 %v8674
      %v8766 = vpop.f32.mrb[0].mxu0
      %v8767 = vadd.f32 0.0, %v8766
      %v8768 = vpop.f32.mrb[0].mxu0
      %v8769 = vpop.f32.mrb[0].mxu0
      %v8770 = vadd.f32 0.0, %v8769
      %v8771 = vpop.f32.mrb[0].mxu0
      %8772 = vmatprep.mubr.bf16.mxu0 0
      %8773 = vmatmul.mubr.bf16.gmra.mrb[0].mxu0 %v8675
      %v8774 = vpop.f32.mrb[0].mxu0
      %v8775 = vadd.f32 0.0, %v8774
      %v8776 = vpop.f32.mrb[0].mxu0
      %v8777 = vpop.f32.mrb[0].mxu0
      %v8778 = vadd.f32 0.0, %v8777
      %v8779 = vpop.f32.mrb[0].mxu0
      %8780 = vdwg.mxu0
      %v8781 = vadd.f32 %v8436, %v8719
      %v8782 = vadd.f32 %v8439, %v8722
      %v8783 = vadd.f32 %v8444, %v8727
      %v8784 = vadd.f32 %v8447, %v8730
      %v8785 = vadd.f32 %v8452, %v8735
      %v8786 = vadd.f32 %v8455, %v8738
      %v8787 = vadd.f32 %v8460, %v8743
      %v8788 = vadd.f32 %v8463, %v8746
      %v8789 = vadd.f32 %v8468, %v8751
      %v8790 = vadd.f32 %v8471, %v8754
      %v8791 = vadd.f32 %v8476, %v8759
      %v8792 = vadd.f32 %v8479, %v8762
      %v8793 = vadd.f32 %v8484, %v8767
      %v8794 = vadd.f32 %v8487, %v8770
      %v8795 = vadd.f32 %v8492, %v8775
      %v8796 = vadd.f32 %v8495, %v8778
      %s8797 = scalar_lea.vmem %s8, 36
      %v8798 = vld [vmem:[%s8797] sm:$0xf]
      %v8799 = vld [vmem:[%s8797 + $0x4] sm:$0xf]
      %v8800 = vld [vmem:[%s8797 + $0x8] sm:$0xf]
      %v8804 = vunpack.c.l.b16 %v8798
      %v8805 = vunpack.c.l.b16 %v8799
      %v8806 = vunpack.c.l.b16 %v8800
      %v8807 = vpack.c.b16 %v8805, %v8804
      %v8808 = vpack.c.b16 %v8806, %v8806
      %v8811 = vsel %vm7945, %v8808, 0
      %8813 = vmatprep.subr.bf16.mxu0 0
      %8814 = vmatpush1.bf16.msra.mxu0 %v8807
      %8815 = vmatprep.subr.bf16.mxu0 0
      %8816 = vmatpush1.bf16.msra.mxu0 %v8811
      %8817 = vmatprep.subr.bf16.mxu0 0
      %8818 = vmatpush1.bf16.msra.mxu0 0
      %8819 = vmatprep.subr.bf16.mxu0 0
      %8820 = vmatpush1.bf16.msra.mxu0 0
      %8821 = vmatprep.subr.bf16.mxu0 0
      %8822 = vmatpush1.bf16.msra.mxu0 0
      %8823 = vmatprep.subr.bf16.mxu0 0
      %8824 = vmatpush1.bf16.msra.mxu0 0
      %8825 = vmatprep.subr.bf16.mxu0 0
      %8826 = vmatpush1.bf16.msra.mxu0 0
      %8827 = vmatprep.subr.bf16.mxu0 0
      %8828 = vmatpush1.bf16.msra.mxu0 0
      %8829 = vmatprep.subr.bf16.mxu0 0
      %8830 = vmatpush1.bf16.msra.mxu0 0
      %8831 = vmatprep.subr.bf16.mxu0 0
      %8832 = vmatpush1.bf16.msra.mxu0 0
      %8833 = vmatprep.subr.bf16.mxu0 0
      %8834 = vmatpush1.bf16.msra.mxu0 0
      %8835 = vmatprep.subr.bf16.mxu0 0
      %8836 = vmatpush1.bf16.msra.mxu0 0
      %8837 = vmatprep.subr.bf16.mxu0 0
      %8838 = vmatpush1.bf16.msra.mxu0 0
      %8839 = vmatprep.subr.bf16.mxu0 0
      %8840 = vmatpush1.bf16.msra.mxu0 0
      %8841 = vmatprep.subr.bf16.mxu0 0
      %8842 = vmatpush1.bf16.msra.mxu0 0
      %8843 = vmatprep.subr.bf16.mxu0 0
      %8844 = vmatpush1.bf16.msra.mxu0 0
      %8845 = vmatprep.mubr.bf16.mxu0 0
      %8846 = vmatmul.mubr.bf16.gmra.mrb[0].mxu0 %v7922
      %v8847 = vpop.f32.mrb[0].mxu0
      %v8848 = vadd.f32 0.0, %v8847
      %v8849 = vpop.f32.mrb[0].mxu0
      %v8850 = vpop.f32.mrb[0].mxu0
      %v8851 = vadd.f32 0.0, %v8850
      %v8852 = vpop.f32.mrb[0].mxu0
      %8853 = vmatprep.mubr.bf16.mxu0 0
      %8854 = vmatmul.mubr.bf16.gmra.mrb[0].mxu0 %v7925
      %v8855 = vpop.f32.mrb[0].mxu0
      %v8856 = vadd.f32 0.0, %v8855
      %v8857 = vpop.f32.mrb[0].mxu0
      %v8858 = vpop.f32.mrb[0].mxu0
      %v8859 = vadd.f32 0.0, %v8858
      %v8860 = vpop.f32.mrb[0].mxu0
      %8861 = vmatprep.mubr.bf16.mxu0 0
      %8862 = vmatmul.mubr.bf16.gmra.mrb[0].mxu0 %v7928
      %v8863 = vpop.f32.mrb[0].mxu0
      %v8864 = vadd.f32 0.0, %v8863
      %v8865 = vpop.f32.mrb[0].mxu0
      %v8866 = vpop.f32.mrb[0].mxu0
      %v8867 = vadd.f32 0.0, %v8866
      %v8868 = vpop.f32.mrb[0].mxu0
      %8869 = vmatprep.mubr.bf16.mxu0 0
      %8870 = vmatmul.mubr.bf16.gmra.mrb[0].mxu0 %v7931
      %v8871 = vpop.f32.mrb[0].mxu0
      %v8872 = vadd.f32 0.0, %v8871
      %v8873 = vpop.f32.mrb[0].mxu0
      %v8874 = vpop.f32.mrb[0].mxu0
      %v8875 = vadd.f32 0.0, %v8874
      %v8876 = vpop.f32.mrb[0].mxu0
      %8877 = vmatprep.mubr.bf16.mxu0 0
      %8878 = vmatmul.mubr.bf16.gmra.mrb[0].mxu0 %v7934
      %v8879 = vpop.f32.mrb[0].mxu0
      %v8880 = vadd.f32 0.0, %v8879
      %v8881 = vpop.f32.mrb[0].mxu0
      %v8882 = vpop.f32.mrb[0].mxu0
      %v8883 = vadd.f32 0.0, %v8882
      %v8884 = vpop.f32.mrb[0].mxu0
      %8885 = vmatprep.mubr.bf16.mxu0 0
      %8886 = vmatmul.mubr.bf16.gmra.mrb[0].mxu0 %v7937
      %v8887 = vpop.f32.mrb[0].mxu0
      %v8888 = vadd.f32 0.0, %v8887
      %v8889 = vpop.f32.mrb[0].mxu0
      %v8890 = vpop.f32.mrb[0].mxu0
      %v8891 = vadd.f32 0.0, %v8890
      %v8892 = vpop.f32.mrb[0].mxu0
      %8893 = vmatprep.mubr.bf16.mxu0 0
      %8894 = vmatmul.mubr.bf16.gmra.mrb[0].mxu0 %v7940
      %v8895 = vpop.f32.mrb[0].mxu0
      %v8896 = vadd.f32 0.0, %v8895
      %v8897 = vpop.f32.mrb[0].mxu0
      %v8898 = vpop.f32.mrb[0].mxu0
      %v8899 = vadd.f32 0.0, %v8898
      %v8900 = vpop.f32.mrb[0].mxu0
      %8901 = vmatprep.mubr.bf16.mxu0 0
      %8902 = vmatmul.mubr.bf16.gmra.mrb[0].mxu0 %v7943
      %v8903 = vpop.f32.mrb[0].mxu0
      %v8904 = vadd.f32 0.0, %v8903
      %v8905 = vpop.f32.mrb[0].mxu0
      %v8906 = vpop.f32.mrb[0].mxu0
      %v8907 = vadd.f32 0.0, %v8906
      %v8908 = vpop.f32.mrb[0].mxu0
      %8909 = vdwg.mxu0
      %v8910 = vpack.c.bf16 %v8851, %v8848
      %v8911 = vpack.c.bf16 %v8859, %v8856
      %v8912 = vpack.c.bf16 %v8867, %v8864
      %v8913 = vpack.c.bf16 %v8875, %v8872
      %v8914 = vpack.c.bf16 %v8883, %v8880
      %v8915 = vpack.c.bf16 %v8891, %v8888
      %v8916 = vpack.c.bf16 %v8899, %v8896
      %v8917 = vpack.c.bf16 %v8907, %v8904
      %s8918 = scalar_lea.vmem %s7, 192
      %v8919 = vld [vmem:[%s8918] sm:$0xf]
      %v8920 = vld [vmem:[%s8918 + $0x4] sm:$0xf]
      %v8921 = vld [vmem:[%s8918 + $0x8] sm:$0xf]
      %v8922 = vld [vmem:[%s8918 + $0xc] sm:$0xf]
      %v8923 = vld [vmem:[%s8918 + $0x10] sm:$0xf]
      %v8924 = vld [vmem:[%s8918 + $0x14] sm:$0xf]
      %v8925 = vld [vmem:[%s8918 + $0x18] sm:$0xf]
      %v8926 = vld [vmem:[%s8918 + $0x1c] sm:$0xf]
      %v8927 = vld [vmem:[%s8918 + $0x20] sm:$0xf]
      %v8928 = vld [vmem:[%s8918 + $0x24] sm:$0xf]
      %v8929 = vld [vmem:[%s8918 + $0x28] sm:$0xf]
      %v8930 = vld [vmem:[%s8918 + $0x2c] sm:$0xf]
      %v8931 = vld [vmem:[%s8918 + $0x30] sm:$0xf]
      %v8932 = vld [vmem:[%s8918 + $0x34] sm:$0xf]
      %v8933 = vld [vmem:[%s8918 + $0x38] sm:$0xf]
      %v8934 = vld [vmem:[%s8918 + $0x3c] sm:$0xf]
      %v8951 = vunpack.c.l.b16 %v8919
      %v8952 = vunpack.c.l.b16 %v8920
      %v8953 = vunpack.c.l.b16 %v8921
      %v8954 = vunpack.c.l.b16 %v8922
      %v8955 = vunpack.c.l.b16 %v8923
      %v8956 = vunpack.c.l.b16 %v8924
      %v8957 = vunpack.c.l.b16 %v8925
      %v8958 = vunpack.c.l.b16 %v8926
      %v8959 = vunpack.c.l.b16 %v8927
      %v8960 = vunpack.c.l.b16 %v8928
      %v8961 = vunpack.c.l.b16 %v8929
      %v8962 = vunpack.c.l.b16 %v8930
      %v8963 = vunpack.c.l.b16 %v8931
      %v8964 = vunpack.c.l.b16 %v8932
      %v8965 = vunpack.c.l.b16 %v8933
      %v8966 = vunpack.c.l.b16 %v8934
      %v8967 = vpack.c.b16 %v8952, %v8951
      %v8968 = vpack.c.b16 %v8954, %v8953
      %v8969 = vpack.c.b16 %v8956, %v8955
      %v8970 = vpack.c.b16 %v8958, %v8957
      %v8971 = vpack.c.b16 %v8960, %v8959
      %v8972 = vpack.c.b16 %v8962, %v8961
      %v8973 = vpack.c.b16 %v8964, %v8963
      %v8974 = vpack.c.b16 %v8966, %v8965
      %8983 = vmatprep.subr.bf16.mxu0 0
      %8984 = vmatpush1.bf16.msra.mxu0 %v8910
      %8985 = vmatprep.subr.bf16.mxu0 0
      %8986 = vmatpush1.bf16.msra.mxu0 %v8911
      %8987 = vmatprep.subr.bf16.mxu0 0
      %8988 = vmatpush1.bf16.msra.mxu0 %v8912
      %8989 = vmatprep.subr.bf16.mxu0 0
      %8990 = vmatpush1.bf16.msra.mxu0 %v8913
      %8991 = vmatprep.subr.bf16.mxu0 0
      %8992 = vmatpush1.bf16.msra.mxu0 %v8914
      %8993 = vmatprep.subr.bf16.mxu0 0
      %8994 = vmatpush1.bf16.msra.mxu0 %v8915
      %8995 = vmatprep.subr.bf16.mxu0 0
      %8996 = vmatpush1.bf16.msra.mxu0 %v8916
      %8997 = vmatprep.subr.bf16.mxu0 0
      %8998 = vmatpush1.bf16.msra.mxu0 %v8917
      %8999 = vmatprep.subr.bf16.mxu0 0
      %9000 = vmatpush1.bf16.msra.mxu0 0
      %9001 = vmatprep.subr.bf16.mxu0 0
      %9002 = vmatpush1.bf16.msra.mxu0 0
      %9003 = vmatprep.subr.bf16.mxu0 0
      %9004 = vmatpush1.bf16.msra.mxu0 0
      %9005 = vmatprep.subr.bf16.mxu0 0
      %9006 = vmatpush1.bf16.msra.mxu0 0
      %9007 = vmatprep.subr.bf16.mxu0 0
      %9008 = vmatpush1.bf16.msra.mxu0 0
      %9009 = vmatprep.subr.bf16.mxu0 0
      %9010 = vmatpush1.bf16.msra.mxu0 0
      %9011 = vmatprep.subr.bf16.mxu0 0
      %9012 = vmatpush1.bf16.msra.mxu0 0
      %9013 = vmatprep.subr.bf16.mxu0 0
      %9014 = vmatpush1.bf16.msra.mxu0 0
      %9015 = vmatprep.mubr.bf16.mxu0 0
      %9016 = vmatmul.mubr.bf16.gmra.mrb[0].mxu0 %v8967
      %v9017 = vpop.f32.mrb[0].mxu0
      %v9018 = vadd.f32 0.0, %v9017
      %v9019 = vpop.f32.mrb[0].mxu0
      %v9020 = vpop.f32.mrb[0].mxu0
      %v9021 = vadd.f32 0.0, %v9020
      %v9022 = vpop.f32.mrb[0].mxu0
      %9023 = vmatprep.mubr.bf16.mxu0 0
      %9024 = vmatmul.mubr.bf16.gmra.mrb[0].mxu0 %v8968
      %v9025 = vpop.f32.mrb[0].mxu0
      %v9026 = vadd.f32 0.0, %v9025
      %v9027 = vpop.f32.mrb[0].mxu0
      %v9028 = vpop.f32.mrb[0].mxu0
      %v9029 = vadd.f32 0.0, %v9028
      %v9030 = vpop.f32.mrb[0].mxu0
      %9031 = vmatprep.mubr.bf16.mxu0 0
      %9032 = vmatmul.mubr.bf16.gmra.mrb[0].mxu0 %v8969
      %v9033 = vpop.f32.mrb[0].mxu0
      %v9034 = vadd.f32 0.0, %v9033
      %v9035 = vpop.f32.mrb[0].mxu0
      %v9036 = vpop.f32.mrb[0].mxu0
      %v9037 = vadd.f32 0.0, %v9036
      %v9038 = vpop.f32.mrb[0].mxu0
      %9039 = vmatprep.mubr.bf16.mxu0 0
      %9040 = vmatmul.mubr.bf16.gmra.mrb[0].mxu0 %v8970
      %v9041 = vpop.f32.mrb[0].mxu0
      %v9042 = vadd.f32 0.0, %v9041
      %v9043 = vpop.f32.mrb[0].mxu0
      %v9044 = vpop.f32.mrb[0].mxu0
      %v9045 = vadd.f32 0.0, %v9044
      %v9046 = vpop.f32.mrb[0].mxu0
      %9047 = vmatprep.mubr.bf16.mxu0 0
      %9048 = vmatmul.mubr.bf16.gmra.mrb[0].mxu0 %v8971
      %v9049 = vpop.f32.mrb[0].mxu0
      %v9050 = vadd.f32 0.0, %v9049
      %v9051 = vpop.f32.mrb[0].mxu0
      %v9052 = vpop.f32.mrb[0].mxu0
      %v9053 = vadd.f32 0.0, %v9052
      %v9054 = vpop.f32.mrb[0].mxu0
      %9055 = vmatprep.mubr.bf16.mxu0 0
      %9056 = vmatmul.mubr.bf16.gmra.mrb[0].mxu0 %v8972
      %v9057 = vpop.f32.mrb[0].mxu0
      %v9058 = vadd.f32 0.0, %v9057
      %v9059 = vpop.f32.mrb[0].mxu0
      %v9060 = vpop.f32.mrb[0].mxu0
      %v9061 = vadd.f32 0.0, %v9060
      %v9062 = vpop.f32.mrb[0].mxu0
      %9063 = vmatprep.mubr.bf16.mxu0 0
      %9064 = vmatmul.mubr.bf16.gmra.mrb[0].mxu0 %v8973
      %v9065 = vpop.f32.mrb[0].mxu0
      %v9066 = vadd.f32 0.0, %v9065
      %v9067 = vpop.f32.mrb[0].mxu0
      %v9068 = vpop.f32.mrb[0].mxu0
      %v9069 = vadd.f32 0.0, %v9068
      %v9070 = vpop.f32.mrb[0].mxu0
      %9071 = vmatprep.mubr.bf16.mxu0 0
      %9072 = vmatmul.mubr.bf16.gmra.mrb[0].mxu0 %v8974
      %v9073 = vpop.f32.mrb[0].mxu0
      %v9074 = vadd.f32 0.0, %v9073
      %v9075 = vpop.f32.mrb[0].mxu0
      %v9076 = vpop.f32.mrb[0].mxu0
      %v9077 = vadd.f32 0.0, %v9076
      %v9078 = vpop.f32.mrb[0].mxu0
      %9079 = vdwg.mxu0
      %v9080 = vadd.f32 %v8781, %v9018
      %v9081 = vadd.f32 %v8782, %v9021
      %v9082 = vadd.f32 %v8783, %v9026
      %v9083 = vadd.f32 %v8784, %v9029
      %v9084 = vadd.f32 %v8785, %v9034
      %v9085 = vadd.f32 %v8786, %v9037
      %v9086 = vadd.f32 %v8787, %v9042
      %v9087 = vadd.f32 %v8788, %v9045
      %v9088 = vadd.f32 %v8789, %v9050
      %v9089 = vadd.f32 %v8790, %v9053
      %v9090 = vadd.f32 %v8791, %v9058
      %v9091 = vadd.f32 %v8792, %v9061
      %v9092 = vadd.f32 %v8793, %v9066
      %v9093 = vadd.f32 %v8794, %v9069
      %v9094 = vadd.f32 %v8795, %v9074
      %v9095 = vadd.f32 %v8796, %v9077
      %v9096 = vmul.f32 %v9080, 0.2
      %v9097 = vmul.f32 %v9081, 0.2
      %v9098 = vmul.f32 %v9082, 0.2
      %v9099 = vmul.f32 %v9083, 0.2
      %v9100 = vmul.f32 %v9084, 0.2
      %v9101 = vmul.f32 %v9085, 0.2
      %v9102 = vmul.f32 %v9086, 0.2
      %v9103 = vmul.f32 %v9087, 0.2
      %v9104 = vmul.f32 %v9088, 0.2
      %v9105 = vmul.f32 %v9089, 0.2
      %v9106 = vmul.f32 %v9090, 0.2
      %v9107 = vmul.f32 %v9091, 0.2
      %v9108 = vmul.f32 %v9092, 0.2
      %v9109 = vmul.f32 %v9093, 0.2
      %v9110 = vmul.f32 %v9094, 0.2
      %v9111 = vmul.f32 %v9095, 0.2
      %v9112 = vmax.f32 %v9080, %v9096
      %v9113 = vmax.f32 %v9081, %v9097
      %v9114 = vmax.f32 %v9082, %v9098
      %v9115 = vmax.f32 %v9083, %v9099
      %v9116 = vmax.f32 %v9084, %v9100
      %v9117 = vmax.f32 %v9085, %v9101
      %v9118 = vmax.f32 %v9086, %v9102
      %v9119 = vmax.f32 %v9087, %v9103
      %v9120 = vmax.f32 %v9088, %v9104
      %v9121 = vmax.f32 %v9089, %v9105
      %v9122 = vmax.f32 %v9090, %v9106
      %v9123 = vmax.f32 %v9091, %v9107
      %v9124 = vmax.f32 %v9092, %v9108
      %v9125 = vmax.f32 %v9093, %v9109
      %v9126 = vmax.f32 %v9094, %v9110
      %v9127 = vmax.f32 %v9095, %v9111
      %v9128 = vpack.c.bf16 %v9113, %v9112
      %v9129 = vpack.c.bf16 %v9115, %v9114
      %v9130 = vpack.c.bf16 %v9117, %v9116
      %v9131 = vpack.c.bf16 %v9119, %v9118
      %v9132 = vpack.c.bf16 %v9121, %v9120
      %v9133 = vpack.c.bf16 %v9123, %v9122
      %v9134 = vpack.c.bf16 %v9125, %v9124
      %v9135 = vpack.c.bf16 %v9127, %v9126
      %v9136 = vld [vmem:[%s10] sm:$0xf]
      %v9137 = vld [vmem:[%s10 + $0x4] sm:$0x3]
      %v9140 = vunpack.c.l.b16 %v9136
      %v9141 = vunpack.c.l.b16 %v9137
      %v9142 = vpack.c.b16 %v9141, %v9140
      %vm9143 = vcmask 97280
      %v9145 = vsel %vm9143, %v9128, 0
      %v9148 = vsel %vm9143, %v9129, 0
      %v9151 = vsel %vm9143, %v9130, 0
      %v9154 = vsel %vm9143, %v9131, 0
      %v9157 = vsel %vm9143, %v9132, 0
      %v9160 = vsel %vm9143, %v9133, 0
      %v9163 = vsel %vm9143, %v9134, 0
      %v9166 = vsel %vm9143, %v9135, 0
      %vm9168 = vcmask 1045504
      %v9170 = vsel %vm9168, %v9142, 0
      %9172 = vmatprep.subr.bf16.mxu0 0
      %9173 = vmatpush1.bf16.msra.mxu0 %v9170
      %9174 = vmatprep.subr.bf16.mxu0 0
      %9175 = vmatpush1.bf16.msra.mxu0 0
      %9176 = vmatprep.subr.bf16.mxu0 0
      %9177 = vmatpush1.bf16.msra.mxu0 0
      %9178 = vmatprep.subr.bf16.mxu0 0
      %9179 = vmatpush1.bf16.msra.mxu0 0
      %9180 = vmatprep.subr.bf16.mxu0 0
      %9181 = vmatpush1.bf16.msra.mxu0 0
      %9182 = vmatprep.subr.bf16.mxu0 0
      %9183 = vmatpush1.bf16.msra.mxu0 0
      %9184 = vmatprep.subr.bf16.mxu0 0
      %9185 = vmatpush1.bf16.msra.mxu0 0
      %9186 = vmatprep.subr.bf16.mxu0 0
      %9187 = vmatpush1.bf16.msra.mxu0 0
      %9188 = vmatprep.subr.bf16.mxu0 0
      %9189 = vmatpush1.bf16.msra.mxu0 0
      %9190 = vmatprep.subr.bf16.mxu0 0
      %9191 = vmatpush1.bf16.msra.mxu0 0
      %9192 = vmatprep.subr.bf16.mxu0 0
      %9193 = vmatpush1.bf16.msra.mxu0 0
      %9194 = vmatprep.subr.bf16.mxu0 0
      %9195 = vmatpush1.bf16.msra.mxu0 0
      %9196 = vmatprep.subr.bf16.mxu0 0
      %9197 = vmatpush1.bf16.msra.mxu0 0
      %9198 = vmatprep.subr.bf16.mxu0 0
      %9199 = vmatpush1.bf16.msra.mxu0 0
      %9200 = vmatprep.subr.bf16.mxu0 0
      %9201 = vmatpush1.bf16.msra.mxu0 0
      %9202 = vmatprep.subr.bf16.mxu0 0
      %9203 = vmatpush1.bf16.msra.mxu0 0
      %9204 = vmatprep.mubr.bf16.mxu0 0
      %9205 = vmatmul.mubr.bf16.gmra.mrb[0].mxu0 %v9145
      %v9206 = vpop.f32.mrb[0].mxu0
      %v9207 = vadd.f32 0.0, %v9206
      %v9208 = vpop.f32.mrb[0].mxu0
      %v9209 = vpop.f32.mrb[0].mxu0
      %v9210 = vadd.f32 0.0, %v9209
      %v9211 = vpop.f32.mrb[0].mxu0
      %9212 = vmatprep.mubr.bf16.mxu0 0
      %9213 = vmatmul.mubr.bf16.gmra.mrb[0].mxu0 %v9148
      %v9214 = vpop.f32.mrb[0].mxu0
      %v9215 = vadd.f32 0.0, %v9214
      %v9216 = vpop.f32.mrb[0].mxu0
      %v9217 = vpop.f32.mrb[0].mxu0
      %v9218 = vadd.f32 0.0, %v9217
      %v9219 = vpop.f32.mrb[0].mxu0
      %9220 = vmatprep.mubr.bf16.mxu0 0
      %9221 = vmatmul.mubr.bf16.gmra.mrb[0].mxu0 %v9151
      %v9222 = vpop.f32.mrb[0].mxu0
      %v9223 = vadd.f32 0.0, %v9222
      %v9224 = vpop.f32.mrb[0].mxu0
      %v9225 = vpop.f32.mrb[0].mxu0
      %v9226 = vadd.f32 0.0, %v9225
      %v9227 = vpop.f32.mrb[0].mxu0
      %9228 = vmatprep.mubr.bf16.mxu0 0
      %9229 = vmatmul.mubr.bf16.gmra.mrb[0].mxu0 %v9154
      %v9230 = vpop.f32.mrb[0].mxu0
      %v9231 = vadd.f32 0.0, %v9230
      %v9232 = vpop.f32.mrb[0].mxu0
      %v9233 = vpop.f32.mrb[0].mxu0
      %v9234 = vadd.f32 0.0, %v9233
      %v9235 = vpop.f32.mrb[0].mxu0
      %9236 = vmatprep.mubr.bf16.mxu0 0
      %9237 = vmatmul.mubr.bf16.gmra.mrb[0].mxu0 %v9157
      %v9238 = vpop.f32.mrb[0].mxu0
      %v9239 = vadd.f32 0.0, %v9238
      %v9240 = vpop.f32.mrb[0].mxu0
      %v9241 = vpop.f32.mrb[0].mxu0
      %v9242 = vadd.f32 0.0, %v9241
      %v9243 = vpop.f32.mrb[0].mxu0
      %9244 = vmatprep.mubr.bf16.mxu0 0
      %9245 = vmatmul.mubr.bf16.gmra.mrb[0].mxu0 %v9160
      %v9246 = vpop.f32.mrb[0].mxu0
      %v9247 = vadd.f32 0.0, %v9246
      %v9248 = vpop.f32.mrb[0].mxu0
      %v9249 = vpop.f32.mrb[0].mxu0
      %v9250 = vadd.f32 0.0, %v9249
      %v9251 = vpop.f32.mrb[0].mxu0
      %9252 = vmatprep.mubr.bf16.mxu0 0
      %9253 = vmatmul.mubr.bf16.gmra.mrb[0].mxu0 %v9163
      %v9254 = vpop.f32.mrb[0].mxu0
      %v9255 = vadd.f32 0.0, %v9254
      %v9256 = vpop.f32.mrb[0].mxu0
      %v9257 = vpop.f32.mrb[0].mxu0
      %v9258 = vadd.f32 0.0, %v9257
      %v9259 = vpop.f32.mrb[0].mxu0
      %9260 = vmatprep.mubr.bf16.mxu0 0
      %9261 = vmatmul.mubr.bf16.gmra.mrb[0].mxu0 %v9166
      %v9262 = vpop.f32.mrb[0].mxu0
      %v9263 = vadd.f32 0.0, %v9262
      %v9264 = vpop.f32.mrb[0].mxu0
      %v9265 = vpop.f32.mrb[0].mxu0
      %v9266 = vadd.f32 0.0, %v9265
      %v9267 = vpop.f32.mrb[0].mxu0
      %9268 = vdwg.mxu0
      %v9269 = vpack.c.bf16 %v9210, %v9207
      %v9270 = vpack.c.bf16 %v9218, %v9215
      %v9271 = vpack.c.bf16 %v9226, %v9223
      %v9272 = vpack.c.bf16 %v9234, %v9231
      %v9273 = vpack.c.bf16 %v9242, %v9239
      %v9274 = vpack.c.bf16 %v9250, %v9247
      %v9275 = vpack.c.bf16 %v9258, %v9255
      %v9276 = vpack.c.bf16 %v9266, %v9263
      %v9277 = vld [vmem:[%s9] sm:$0xf]
      %v9278 = vld [vmem:[%s9 + $0x4] sm:$0xf]
      %v9279 = vld [vmem:[%s9 + $0x8] sm:$0xf]
      %v9280 = vld [vmem:[%s9 + $0xc] sm:$0xf]
      %v9281 = vld [vmem:[%s9 + $0x10] sm:$0xf]
      %v9282 = vld [vmem:[%s9 + $0x14] sm:$0xf]
      %v9283 = vld [vmem:[%s9 + $0x18] sm:$0xf]
      %v9284 = vld [vmem:[%s9 + $0x1c] sm:$0xf]
      %v9285 = vld [vmem:[%s9 + $0x20] sm:$0xf]
      %v9286 = vld [vmem:[%s9 + $0x24] sm:$0xf]
      %v9287 = vld [vmem:[%s9 + $0x28] sm:$0xf]
      %v9288 = vld [vmem:[%s9 + $0x2c] sm:$0xf]
      %v9289 = vld [vmem:[%s9 + $0x30] sm:$0xf]
      %v9290 = vld [vmem:[%s9 + $0x34] sm:$0xf]
      %v9291 = vld [vmem:[%s9 + $0x38] sm:$0xf]
      %v9292 = vld [vmem:[%s9 + $0x3c] sm:$0xf]
      %s9293 = scalar_lea.vmem %s10, 8
      %v9294 = vld [vmem:[%s9293] sm:$0xf]
      %v9295 = vld [vmem:[%s9293 + $0x4] sm:$0x3]
      %v9298 = vunpack.c.l.b16 %v9294
      %v9299 = vunpack.c.l.b16 %v9295
      %v9300 = vpack.c.b16 %v9299, %v9298
      %v9302 = vsel %vm9168, %v9300, 0
      %9304 = vmatprep.subr.bf16.mxu0 0
      %9305 = vmatpush1.bf16.msra.mxu0 %v9302
      %9306 = vmatprep.subr.bf16.mxu0 0
      %9307 = vmatpush1.bf16.msra.mxu0 0
      %9308 = vmatprep.subr.bf16.mxu0 0
      %9309 = vmatpush1.bf16.msra.mxu0 0
      %9310 = vmatprep.subr.bf16.mxu0 0
      %9311 = vmatpush1.bf16.msra.mxu0 0
      %9312 = vmatprep.subr.bf16.mxu0 0
      %9313 = vmatpush1.bf16.msra.mxu0 0
      %9314 = vmatprep.subr.bf16.mxu0 0
      %9315 = vmatpush1.bf16.msra.mxu0 0
      %9316 = vmatprep.subr.bf16.mxu0 0
      %9317 = vmatpush1.bf16.msra.mxu0 0
      %9318 = vmatprep.subr.bf16.mxu0 0
      %9319 = vmatpush1.bf16.msra.mxu0 0
      %9320 = vmatprep.subr.bf16.mxu0 0
      %9321 = vmatpush1.bf16.msra.mxu0 0
      %9322 = vmatprep.subr.bf16.mxu0 0
      %9323 = vmatpush1.bf16.msra.mxu0 0
      %9324 = vmatprep.subr.bf16.mxu0 0
      %9325 = vmatpush1.bf16.msra.mxu0 0
      %9326 = vmatprep.subr.bf16.mxu0 0
      %9327 = vmatpush1.bf16.msra.mxu0 0
      %9328 = vmatprep.subr.bf16.mxu0 0
      %9329 = vmatpush1.bf16.msra.mxu0 0
      %9330 = vmatprep.subr.bf16.mxu0 0
      %9331 = vmatpush1.bf16.msra.mxu0 0
      %9332 = vmatprep.subr.bf16.mxu0 0
      %9333 = vmatpush1.bf16.msra.mxu0 0
      %9334 = vmatprep.subr.bf16.mxu0 0
      %9335 = vmatpush1.bf16.msra.mxu0 0
      %9336 = vmatprep.mubr.bf16.mxu0 0
      %9337 = vmatmul.mubr.bf16.gmra.mrb[0].mxu0 %v9145
      %v9338 = vpop.f32.mrb[0].mxu0
      %v9339 = vadd.f32 0.0, %v9338
      %v9340 = vpop.f32.mrb[0].mxu0
      %v9341 = vpop.f32.mrb[0].mxu0
      %v9342 = vadd.f32 0.0, %v9341
      %v9343 = vpop.f32.mrb[0].mxu0
      %9344 = vmatprep.mubr.bf16.mxu0 0
      %9345 = vmatmul.mubr.bf16.gmra.mrb[0].mxu0 %v9148
      %v9346 = vpop.f32.mrb[0].mxu0
      %v9347 = vadd.f32 0.0, %v9346
      %v9348 = vpop.f32.mrb[0].mxu0
      %v9349 = vpop.f32.mrb[0].mxu0
      %v9350 = vadd.f32 0.0, %v9349
      %v9351 = vpop.f32.mrb[0].mxu0
      %9352 = vmatprep.mubr.bf16.mxu0 0
      %9353 = vmatmul.mubr.bf16.gmra.mrb[0].mxu0 %v9151
      %v9354 = vpop.f32.mrb[0].mxu0
      %v9355 = vadd.f32 0.0, %v9354
      %v9356 = vpop.f32.mrb[0].mxu0
      %v9357 = vpop.f32.mrb[0].mxu0
      %v9358 = vadd.f32 0.0, %v9357
      %v9359 = vpop.f32.mrb[0].mxu0
      %9360 = vmatprep.mubr.bf16.mxu0 0
      %9361 = vmatmul.mubr.bf16.gmra.mrb[0].mxu0 %v9154
      %v9362 = vpop.f32.mrb[0].mxu0
      %v9363 = vadd.f32 0.0, %v9362
      %v9364 = vpop.f32.mrb[0].mxu0
      %v9365 = vpop.f32.mrb[0].mxu0
      %v9366 = vadd.f32 0.0, %v9365
      %v9367 = vpop.f32.mrb[0].mxu0
      %9368 = vmatprep.mubr.bf16.mxu0 0
      %9369 = vmatmul.mubr.bf16.gmra.mrb[0].mxu0 %v9157
      %v9370 = vpop.f32.mrb[0].mxu0
      %v9371 = vadd.f32 0.0, %v9370
      %v9372 = vpop.f32.mrb[0].mxu0
      %v9373 = vpop.f32.mrb[0].mxu0
      %v9374 = vadd.f32 0.0, %v9373
      %v9375 = vpop.f32.mrb[0].mxu0
      %9376 = vmatprep.mubr.bf16.mxu0 0
      %9377 = vmatmul.mubr.bf16.gmra.mrb[0].mxu0 %v9160
      %v9378 = vpop.f32.mrb[0].mxu0
      %v9379 = vadd.f32 0.0, %v9378
      %v9380 = vpop.f32.mrb[0].mxu0
      %v9381 = vpop.f32.mrb[0].mxu0
      %v9382 = vadd.f32 0.0, %v9381
      %v9383 = vpop.f32.mrb[0].mxu0
      %9384 = vmatprep.mubr.bf16.mxu0 0
      %9385 = vmatmul.mubr.bf16.gmra.mrb[0].mxu0 %v9163
      %v9386 = vpop.f32.mrb[0].mxu0
      %v9387 = vadd.f32 0.0, %v9386
      %v9388 = vpop.f32.mrb[0].mxu0
      %v9389 = vpop.f32.mrb[0].mxu0
      %v9390 = vadd.f32 0.0, %v9389
      %v9391 = vpop.f32.mrb[0].mxu0
      %9392 = vmatprep.mubr.bf16.mxu0 0
      %9393 = vmatmul.mubr.bf16.gmra.mrb[0].mxu0 %v9166
      %v9394 = vpop.f32.mrb[0].mxu0
      %v9395 = vadd.f32 0.0, %v9394
      %v9396 = vpop.f32.mrb[0].mxu0
      %v9397 = vpop.f32.mrb[0].mxu0
      %v9398 = vadd.f32 0.0, %v9397
      %v9399 = vpop.f32.mrb[0].mxu0
      %9400 = vdwg.mxu0
      %v9401 = vpack.c.bf16 %v9342, %v9339
      %v9402 = vpack.c.bf16 %v9350, %v9347
      %v9403 = vpack.c.bf16 %v9358, %v9355
      %v9404 = vpack.c.bf16 %v9366, %v9363
      %v9405 = vpack.c.bf16 %v9374, %v9371
      %v9406 = vpack.c.bf16 %v9382, %v9379
      %v9407 = vpack.c.bf16 %v9390, %v9387
      %v9408 = vpack.c.bf16 %v9398, %v9395
      %s9409 = scalar_lea.vmem %s9, 64
      %v9410 = vld [vmem:[%s9409] sm:$0xf]
      %v9411 = vld [vmem:[%s9409 + $0x4] sm:$0xf]
      %v9412 = vld [vmem:[%s9409 + $0x8] sm:$0xf]
      %v9413 = vld [vmem:[%s9409 + $0xc] sm:$0xf]
      %v9414 = vld [vmem:[%s9409 + $0x10] sm:$0xf]
      %v9415 = vld [vmem:[%s9409 + $0x14] sm:$0xf]
      %v9416 = vld [vmem:[%s9409 + $0x18] sm:$0xf]
      %v9417 = vld [vmem:[%s9409 + $0x1c] sm:$0xf]
      %v9418 = vld [vmem:[%s9409 + $0x20] sm:$0xf]
      %v9419 = vld [vmem:[%s9409 + $0x24] sm:$0xf]
      %v9420 = vld [vmem:[%s9409 + $0x28] sm:$0xf]
      %v9421 = vld [vmem:[%s9409 + $0x2c] sm:$0xf]
      %v9422 = vld [vmem:[%s9409 + $0x30] sm:$0xf]
      %v9423 = vld [vmem:[%s9409 + $0x34] sm:$0xf]
      %v9424 = vld [vmem:[%s9409 + $0x38] sm:$0xf]
      %v9425 = vld [vmem:[%s9409 + $0x3c] sm:$0xf]
      %v9442 = vunpack.c.l.b16 %v9410
      %v9443 = vunpack.c.l.b16 %v9411
      %v9444 = vunpack.c.l.b16 %v9412
      %v9445 = vunpack.c.l.b16 %v9413
      %v9446 = vunpack.c.l.b16 %v9414
      %v9447 = vunpack.c.l.b16 %v9415
      %v9448 = vunpack.c.l.b16 %v9416
      %v9449 = vunpack.c.l.b16 %v9417
      %v9450 = vunpack.c.l.b16 %v9418
      %v9451 = vunpack.c.l.b16 %v9419
      %v9452 = vunpack.c.l.b16 %v9420
      %v9453 = vunpack.c.l.b16 %v9421
      %v9454 = vunpack.c.l.b16 %v9422
      %v9455 = vunpack.c.l.b16 %v9423
      %v9456 = vunpack.c.l.b16 %v9424
      %v9457 = vunpack.c.l.b16 %v9425
      %v9458 = vpack.c.b16 %v9443, %v9442
      %v9459 = vpack.c.b16 %v9445, %v9444
      %v9460 = vpack.c.b16 %v9447, %v9446
      %v9461 = vpack.c.b16 %v9449, %v9448
      %v9462 = vpack.c.b16 %v9451, %v9450
      %v9463 = vpack.c.b16 %v9453, %v9452
      %v9464 = vpack.c.b16 %v9455, %v9454
      %v9465 = vpack.c.b16 %v9457, %v9456
      %9474 = vmatprep.subr.bf16.mxu0 0
      %9475 = vmatpush1.bf16.msra.mxu0 %v9401
      %9476 = vmatprep.subr.bf16.mxu0 0
      %9477 = vmatpush1.bf16.msra.mxu0 %v9402
      %9478 = vmatprep.subr.bf16.mxu0 0
      %9479 = vmatpush1.bf16.msra.mxu0 %v9403
      %9480 = vmatprep.subr.bf16.mxu0 0
      %9481 = vmatpush1.bf16.msra.mxu0 %v9404
      %9482 = vmatprep.subr.bf16.mxu0 0
      %9483 = vmatpush1.bf16.msra.mxu0 %v9405
      %9484 = vmatprep.subr.bf16.mxu0 0
      %9485 = vmatpush1.bf16.msra.mxu0 %v9406
      %9486 = vmatprep.subr.bf16.mxu0 0
      %9487 = vmatpush1.bf16.msra.mxu0 %v9407
      %9488 = vmatprep.subr.bf16.mxu0 0
      %9489 = vmatpush1.bf16.msra.mxu0 %v9408
      %9490 = vmatprep.subr.bf16.mxu0 0
      %9491 = vmatpush1.bf16.msra.mxu0 0
      %9492 = vmatprep.subr.bf16.mxu0 0
      %9493 = vmatpush1.bf16.msra.mxu0 0
      %9494 = vmatprep.subr.bf16.mxu0 0
      %9495 = vmatpush1.bf16.msra.mxu0 0
      %9496 = vmatprep.subr.bf16.mxu0 0
      %9497 = vmatpush1.bf16.msra.mxu0 0
      %9498 = vmatprep.subr.bf16.mxu0 0
      %9499 = vmatpush1.bf16.msra.mxu0 0
      %9500 = vmatprep.subr.bf16.mxu0 0
      %9501 = vmatpush1.bf16.msra.mxu0 0
      %9502 = vmatprep.subr.bf16.mxu0 0
      %9503 = vmatpush1.bf16.msra.mxu0 0
      %9504 = vmatprep.subr.bf16.mxu0 0
      %9505 = vmatpush1.bf16.msra.mxu0 0
      %9506 = vmatprep.mubr.bf16.mxu0 0
      %9507 = vmatmul.mubr.bf16.gmra.mrb[0].mxu0 %v9458
      %v9508 = vpop.f32.mrb[0].mxu0
      %v9509 = vadd.f32 0.0, %v9508
      %v9510 = vpop.f32.mrb[0].mxu0
      %v9511 = vpop.f32.mrb[0].mxu0
      %v9512 = vadd.f32 0.0, %v9511
      %v9513 = vpop.f32.mrb[0].mxu0
      %9514 = vmatprep.mubr.bf16.mxu0 0
      %9515 = vmatmul.mubr.bf16.gmra.mrb[0].mxu0 %v9459
      %v9516 = vpop.f32.mrb[0].mxu0
      %v9517 = vadd.f32 0.0, %v9516
      %v9518 = vpop.f32.mrb[0].mxu0
      %v9519 = vpop.f32.mrb[0].mxu0
      %v9520 = vadd.f32 0.0, %v9519
      %v9521 = vpop.f32.mrb[0].mxu0
      %9522 = vmatprep.mubr.bf16.mxu0 0
      %9523 = vmatmul.mubr.bf16.gmra.mrb[0].mxu0 %v9460
      %v9524 = vpop.f32.mrb[0].mxu0
      %v9525 = vadd.f32 0.0, %v9524
      %v9526 = vpop.f32.mrb[0].mxu0
      %v9527 = vpop.f32.mrb[0].mxu0
      %v9528 = vadd.f32 0.0, %v9527
      %v9529 = vpop.f32.mrb[0].mxu0
      %9530 = vmatprep.mubr.bf16.mxu0 0
      %9531 = vmatmul.mubr.bf16.gmra.mrb[0].mxu0 %v9461
      %v9532 = vpop.f32.mrb[0].mxu0
      %v9533 = vadd.f32 0.0, %v9532
      %v9534 = vpop.f32.mrb[0].mxu0
      %v9535 = vpop.f32.mrb[0].mxu0
      %v9536 = vadd.f32 0.0, %v9535
      %v9537 = vpop.f32.mrb[0].mxu0
      %9538 = vmatprep.mubr.bf16.mxu0 0
      %9539 = vmatmul.mubr.bf16.gmra.mrb[0].mxu0 %v9462
      %v9540 = vpop.f32.mrb[0].mxu0
      %v9541 = vadd.f32 0.0, %v9540
      %v9542 = vpop.f32.mrb[0].mxu0
      %v9543 = vpop.f32.mrb[0].mxu0
      %v9544 = vadd.f32 0.0, %v9543
      %v9545 = vpop.f32.mrb[0].mxu0
      %9546 = vmatprep.mubr.bf16.mxu0 0
      %9547 = vmatmul.mubr.bf16.gmra.mrb[0].mxu0 %v9463
      %v9548 = vpop.f32.mrb[0].mxu0
      %v9549 = vadd.f32 0.0, %v9548
      %v9550 = vpop.f32.mrb[0].mxu0
      %v9551 = vpop.f32.mrb[0].mxu0
      %v9552 = vadd.f32 0.0, %v9551
      %v9553 = vpop.f32.mrb[0].mxu0
      %9554 = vmatprep.mubr.bf16.mxu0 0
      %9555 = vmatmul.mubr.bf16.gmra.mrb[0].mxu0 %v9464
      %v9556 = vpop.f32.mrb[0].mxu0
      %v9557 = vadd.f32 0.0, %v9556
      %v9558 = vpop.f32.mrb[0].mxu0
      %v9559 = vpop.f32.mrb[0].mxu0
      %v9560 = vadd.f32 0.0, %v9559
      %v9561 = vpop.f32.mrb[0].mxu0
      %9562 = vmatprep.mubr.bf16.mxu0 0
      %9563 = vmatmul.mubr.bf16.gmra.mrb[0].mxu0 %v9465
      %v9564 = vpop.f32.mrb[0].mxu0
      %v9565 = vadd.f32 0.0, %v9564
      %v9566 = vpop.f32.mrb[0].mxu0
      %v9567 = vpop.f32.mrb[0].mxu0
      %v9568 = vadd.f32 0.0, %v9567
      %v9569 = vpop.f32.mrb[0].mxu0
      %9570 = vdwg.mxu0
      %v9587 = vunpack.c.l.b16 %v9277
      %v9588 = vunpack.c.l.b16 %v9278
      %v9589 = vunpack.c.l.b16 %v9279
      %v9590 = vunpack.c.l.b16 %v9280
      %v9591 = vunpack.c.l.b16 %v9281
      %v9592 = vunpack.c.l.b16 %v9282
      %v9593 = vunpack.c.l.b16 %v9283
      %v9594 = vunpack.c.l.b16 %v9284
      %v9595 = vunpack.c.l.b16 %v9285
      %v9596 = vunpack.c.l.b16 %v9286
      %v9597 = vunpack.c.l.b16 %v9287
      %v9598 = vunpack.c.l.b16 %v9288
      %v9599 = vunpack.c.l.b16 %v9289
      %v9600 = vunpack.c.l.b16 %v9290
      %v9601 = vunpack.c.l.b16 %v9291
      %v9602 = vunpack.c.l.b16 %v9292
      %v9603 = vpack.c.b16 %v9588, %v9587
      %v9604 = vpack.c.b16 %v9590, %v9589
      %v9605 = vpack.c.b16 %v9592, %v9591
      %v9606 = vpack.c.b16 %v9594, %v9593
      %v9607 = vpack.c.b16 %v9596, %v9595
      %v9608 = vpack.c.b16 %v9598, %v9597
      %v9609 = vpack.c.b16 %v9600, %v9599
      %v9610 = vpack.c.b16 %v9602, %v9601
      %9619 = vmatprep.subr.bf16.mxu0 0
      %9620 = vmatpush1.bf16.msra.mxu0 %v9269
      %9621 = vmatprep.subr.bf16.mxu0 0
      %9622 = vmatpush1.bf16.msra.mxu0 %v9270
      %9623 = vmatprep.subr.bf16.mxu0 0
      %9624 = vmatpush1.bf16.msra.mxu0 %v9271
      %9625 = vmatprep.subr.bf16.mxu0 0
      %9626 = vmatpush1.bf16.msra.mxu0 %v9272
      %9627 = vmatprep.subr.bf16.mxu0 0
      %9628 = vmatpush1.bf16.msra.mxu0 %v9273
      %9629 = vmatprep.subr.bf16.mxu0 0
      %9630 = vmatpush1.bf16.msra.mxu0 %v9274
      %9631 = vmatprep.subr.bf16.mxu0 0
      %9632 = vmatpush1.bf16.msra.mxu0 %v9275
      %9633 = vmatprep.subr.bf16.mxu0 0
      %9634 = vmatpush1.bf16.msra.mxu0 %v9276
      %9635 = vmatprep.subr.bf16.mxu0 0
      %9636 = vmatpush1.bf16.msra.mxu0 0
      %9637 = vmatprep.subr.bf16.mxu0 0
      %9638 = vmatpush1.bf16.msra.mxu0 0
      %9639 = vmatprep.subr.bf16.mxu0 0
      %9640 = vmatpush1.bf16.msra.mxu0 0
      %9641 = vmatprep.subr.bf16.mxu0 0
      %9642 = vmatpush1.bf16.msra.mxu0 0
      %9643 = vmatprep.subr.bf16.mxu0 0
      %9644 = vmatpush1.bf16.msra.mxu0 0
      %9645 = vmatprep.subr.bf16.mxu0 0
      %9646 = vmatpush1.bf16.msra.mxu0 0
      %9647 = vmatprep.subr.bf16.mxu0 0
      %9648 = vmatpush1.bf16.msra.mxu0 0
      %9649 = vmatprep.subr.bf16.mxu0 0
      %9650 = vmatpush1.bf16.msra.mxu0 0
      %9651 = vmatprep.mubr.bf16.mxu0 0
      %9652 = vmatmul.mubr.bf16.gmra.mrb[0].mxu0 %v9603
      %v9653 = vpop.f32.mrb[0].mxu0
      %v9654 = vadd.f32 %v9509, %v9653
      %v9655 = vpop.f32.mrb[0].mxu0
      %v9656 = vpop.f32.mrb[0].mxu0
      %v9657 = vadd.f32 %v9512, %v9656
      %v9658 = vpop.f32.mrb[0].mxu0
      %9659 = vmatprep.mubr.bf16.mxu0 0
      %9660 = vmatmul.mubr.bf16.gmra.mrb[0].mxu0 %v9604
      %v9661 = vpop.f32.mrb[0].mxu0
      %v9662 = vadd.f32 %v9517, %v9661
      %v9663 = vpop.f32.mrb[0].mxu0
      %v9664 = vpop.f32.mrb[0].mxu0
      %v9665 = vadd.f32 %v9520, %v9664
      %v9666 = vpop.f32.mrb[0].mxu0
      %9667 = vmatprep.mubr.bf16.mxu0 0
      %9668 = vmatmul.mubr.bf16.gmra.mrb[0].mxu0 %v9605
      %v9669 = vpop.f32.mrb[0].mxu0
      %v9670 = vadd.f32 %v9525, %v9669
      %v9671 = vpop.f32.mrb[0].mxu0
      %v9672 = vpop.f32.mrb[0].mxu0
      %v9673 = vadd.f32 %v9528, %v9672
      %v9674 = vpop.f32.mrb[0].mxu0
      %9675 = vmatprep.mubr.bf16.mxu0 0
      %9676 = vmatmul.mubr.bf16.gmra.mrb[0].mxu0 %v9606
      %v9677 = vpop.f32.mrb[0].mxu0
      %v9678 = vadd.f32 %v9533, %v9677
      %v9679 = vpop.f32.mrb[0].mxu0
      %v9680 = vpop.f32.mrb[0].mxu0
      %v9681 = vadd.f32 %v9536, %v9680
      %v9682 = vpop.f32.mrb[0].mxu0
      %9683 = vmatprep.mubr.bf16.mxu0 0
      %9684 = vmatmul.mubr.bf16.gmra.mrb[0].mxu0 %v9607
      %v9685 = vpop.f32.mrb[0].mxu0
      %v9686 = vadd.f32 %v9541, %v9685
      %v9687 = vpop.f32.mrb[0].mxu0
      %v9688 = vpop.f32.mrb[0].mxu0
      %v9689 = vadd.f32 %v9544, %v9688
      %v9690 = vpop.f32.mrb[0].mxu0
      %9691 = vmatprep.mubr.bf16.mxu0 0
      %9692 = vmatmul.mubr.bf16.gmra.mrb[0].mxu0 %v9608
      %v9693 = vpop.f32.mrb[0].mxu0
      %v9694 = vadd.f32 %v9549, %v9693
      %v9695 = vpop.f32.mrb[0].mxu0
      %v9696 = vpop.f32.mrb[0].mxu0
      %v9697 = vadd.f32 %v9552, %v9696
      %v9698 = vpop.f32.mrb[0].mxu0
      %9699 = vmatprep.mubr.bf16.mxu0 0
      %9700 = vmatmul.mubr.bf16.gmra.mrb[0].mxu0 %v9609
      %v9701 = vpop.f32.mrb[0].mxu0
      %v9702 = vadd.f32 %v9557, %v9701
      %v9703 = vpop.f32.mrb[0].mxu0
      %v9704 = vpop.f32.mrb[0].mxu0
      %v9705 = vadd.f32 %v9560, %v9704
      %v9706 = vpop.f32.mrb[0].mxu0
      %9707 = vmatprep.mubr.bf16.mxu0 0
      %9708 = vmatmul.mubr.bf16.gmra.mrb[0].mxu0 %v9610
      %v9709 = vpop.f32.mrb[0].mxu0
      %v9710 = vadd.f32 %v9565, %v9709
      %v9711 = vpop.f32.mrb[0].mxu0
      %v9712 = vpop.f32.mrb[0].mxu0
      %v9713 = vadd.f32 %v9568, %v9712
      %v9714 = vpop.f32.mrb[0].mxu0
      %9715 = vdwg.mxu0
      %s9716 = scalar_lea.vmem %s10, 16
      %v9717 = vld [vmem:[%s9716] sm:$0xf]
      %v9718 = vld [vmem:[%s9716 + $0x4] sm:$0x3]
      %v9721 = vunpack.c.l.b16 %v9717
      %v9722 = vunpack.c.l.b16 %v9718
      %v9723 = vpack.c.b16 %v9722, %v9721
      %v9725 = vsel %vm9168, %v9723, 0
      %9727 = vmatprep.subr.bf16.mxu0 0
      %9728 = vmatpush1.bf16.msra.mxu0 %v9725
      %9729 = vmatprep.subr.bf16.mxu0 0
      %9730 = vmatpush1.bf16.msra.mxu0 0
      %9731 = vmatprep.subr.bf16.mxu0 0
      %9732 = vmatpush1.bf16.msra.mxu0 0
      %9733 = vmatprep.subr.bf16.mxu0 0
      %9734 = vmatpush1.bf16.msra.mxu0 0
      %9735 = vmatprep.subr.bf16.mxu0 0
      %9736 = vmatpush1.bf16.msra.mxu0 0
      %9737 = vmatprep.subr.bf16.mxu0 0
      %9738 = vmatpush1.bf16.msra.mxu0 0
      %9739 = vmatprep.subr.bf16.mxu0 0
      %9740 = vmatpush1.bf16.msra.mxu0 0
      %9741 = vmatprep.subr.bf16.mxu0 0
      %9742 = vmatpush1.bf16.msra.mxu0 0
      %9743 = vmatprep.subr.bf16.mxu0 0
      %9744 = vmatpush1.bf16.msra.mxu0 0
      %9745 = vmatprep.subr.bf16.mxu0 0
      %9746 = vmatpush1.bf16.msra.mxu0 0
      %9747 = vmatprep.subr.bf16.mxu0 0
      %9748 = vmatpush1.bf16.msra.mxu0 0
      %9749 = vmatprep.subr.bf16.mxu0 0
      %9750 = vmatpush1.bf16.msra.mxu0 0
      %9751 = vmatprep.subr.bf16.mxu0 0
      %9752 = vmatpush1.bf16.msra.mxu0 0
      %9753 = vmatprep.subr.bf16.mxu0 0
      %9754 = vmatpush1.bf16.msra.mxu0 0
      %9755 = vmatprep.subr.bf16.mxu0 0
      %9756 = vmatpush1.bf16.msra.mxu0 0
      %9757 = vmatprep.subr.bf16.mxu0 0
      %9758 = vmatpush1.bf16.msra.mxu0 0
      %9759 = vmatprep.mubr.bf16.mxu0 0
      %9760 = vmatmul.mubr.bf16.gmra.mrb[0].mxu0 %v9145
      %v9761 = vpop.f32.mrb[0].mxu0
      %v9762 = vadd.f32 0.0, %v9761
      %v9763 = vpop.f32.mrb[0].mxu0
      %v9764 = vpop.f32.mrb[0].mxu0
      %v9765 = vadd.f32 0.0, %v9764
      %v9766 = vpop.f32.mrb[0].mxu0
      %9767 = vmatprep.mubr.bf16.mxu0 0
      %9768 = vmatmul.mubr.bf16.gmra.mrb[0].mxu0 %v9148
      %v9769 = vpop.f32.mrb[0].mxu0
      %v9770 = vadd.f32 0.0, %v9769
      %v9771 = vpop.f32.mrb[0].mxu0
      %v9772 = vpop.f32.mrb[0].mxu0
      %v9773 = vadd.f32 0.0, %v9772
      %v9774 = vpop.f32.mrb[0].mxu0
      %9775 = vmatprep.mubr.bf16.mxu0 0
      %9776 = vmatmul.mubr.bf16.gmra.mrb[0].mxu0 %v9151
      %v9777 = vpop.f32.mrb[0].mxu0
      %v9778 = vadd.f32 0.0, %v9777
      %v9779 = vpop.f32.mrb[0].mxu0
      %v9780 = vpop.f32.mrb[0].mxu0
      %v9781 = vadd.f32 0.0, %v9780
      %v9782 = vpop.f32.mrb[0].mxu0
      %9783 = vmatprep.mubr.bf16.mxu0 0
      %9784 = vmatmul.mubr.bf16.gmra.mrb[0].mxu0 %v9154
      %v9785 = vpop.f32.mrb[0].mxu0
      %v9786 = vadd.f32 0.0, %v9785
      %v9787 = vpop.f32.mrb[0].mxu0
      %v9788 = vpop.f32.mrb[0].mxu0
      %v9789 = vadd.f32 0.0, %v9788
      %v9790 = vpop.f32.mrb[0].mxu0
      %9791 = vmatprep.mubr.bf16.mxu0 0
      %9792 = vmatmul.mubr.bf16.gmra.mrb[0].mxu0 %v9157
      %v9793 = vpop.f32.mrb[0].mxu0
      %v9794 = vadd.f32 0.0, %v9793
      %v9795 = vpop.f32.mrb[0].mxu0
      %v9796 = vpop.f32.mrb[0].mxu0
      %v9797 = vadd.f32 0.0, %v9796
      %v9798 = vpop.f32.mrb[0].mxu0
      %9799 = vmatprep.mubr.bf16.mxu0 0
      %9800 = vmatmul.mubr.bf16.gmra.mrb[0].mxu0 %v9160
      %v9801 = vpop.f32.mrb[0].mxu0
      %v9802 = vadd.f32 0.0, %v9801
      %v9803 = vpop.f32.mrb[0].mxu0
      %v9804 = vpop.f32.mrb[0].mxu0
      %v9805 = vadd.f32 0.0, %v9804
      %v9806 = vpop.f32.mrb[0].mxu0
      %9807 = vmatprep.mubr.bf16.mxu0 0
      %9808 = vmatmul.mubr.bf16.gmra.mrb[0].mxu0 %v9163
      %v9809 = vpop.f32.mrb[0].mxu0
      %v9810 = vadd.f32 0.0, %v9809
      %v9811 = vpop.f32.mrb[0].mxu0
      %v9812 = vpop.f32.mrb[0].mxu0
      %v9813 = vadd.f32 0.0, %v9812
      %v9814 = vpop.f32.mrb[0].mxu0
      %9815 = vmatprep.mubr.bf16.mxu0 0
      %9816 = vmatmul.mubr.bf16.gmra.mrb[0].mxu0 %v9166
      %v9817 = vpop.f32.mrb[0].mxu0
      %v9818 = vadd.f32 0.0, %v9817
      %v9819 = vpop.f32.mrb[0].mxu0
      %v9820 = vpop.f32.mrb[0].mxu0
      %v9821 = vadd.f32 0.0, %v9820
      %v9822 = vpop.f32.mrb[0].mxu0
      %9823 = vdwg.mxu0
      %v9824 = vpack.c.bf16 %v9765, %v9762
      %v9825 = vpack.c.bf16 %v9773, %v9770
      %v9826 = vpack.c.bf16 %v9781, %v9778
      %v9827 = vpack.c.bf16 %v9789, %v9786
      %v9828 = vpack.c.bf16 %v9797, %v9794
      %v9829 = vpack.c.bf16 %v9805, %v9802
      %v9830 = vpack.c.bf16 %v9813, %v9810
      %v9831 = vpack.c.bf16 %v9821, %v9818
      %s9832 = scalar_lea.vmem %s9, 128
      %v9833 = vld [vmem:[%s9832] sm:$0xf]
      %v9834 = vld [vmem:[%s9832 + $0x4] sm:$0xf]
      %v9835 = vld [vmem:[%s9832 + $0x8] sm:$0xf]
      %v9836 = vld [vmem:[%s9832 + $0xc] sm:$0xf]
      %v9837 = vld [vmem:[%s9832 + $0x10] sm:$0xf]
      %v9838 = vld [vmem:[%s9832 + $0x14] sm:$0xf]
      %v9839 = vld [vmem:[%s9832 + $0x18] sm:$0xf]
      %v9840 = vld [vmem:[%s9832 + $0x1c] sm:$0xf]
      %v9841 = vld [vmem:[%s9832 + $0x20] sm:$0xf]
      %v9842 = vld [vmem:[%s9832 + $0x24] sm:$0xf]
      %v9843 = vld [vmem:[%s9832 + $0x28] sm:$0xf]
      %v9844 = vld [vmem:[%s9832 + $0x2c] sm:$0xf]
      %v9845 = vld [vmem:[%s9832 + $0x30] sm:$0xf]
      %v9846 = vld [vmem:[%s9832 + $0x34] sm:$0xf]
      %v9847 = vld [vmem:[%s9832 + $0x38] sm:$0xf]
      %v9848 = vld [vmem:[%s9832 + $0x3c] sm:$0xf]
      %v9865 = vunpack.c.l.b16 %v9833
      %v9866 = vunpack.c.l.b16 %v9834
      %v9867 = vunpack.c.l.b16 %v9835
      %v9868 = vunpack.c.l.b16 %v9836
      %v9869 = vunpack.c.l.b16 %v9837
      %v9870 = vunpack.c.l.b16 %v9838
      %v9871 = vunpack.c.l.b16 %v9839
      %v9872 = vunpack.c.l.b16 %v9840
      %v9873 = vunpack.c.l.b16 %v9841
      %v9874 = vunpack.c.l.b16 %v9842
      %v9875 = vunpack.c.l.b16 %v9843
      %v9876 = vunpack.c.l.b16 %v9844
      %v9877 = vunpack.c.l.b16 %v9845
      %v9878 = vunpack.c.l.b16 %v9846
      %v9879 = vunpack.c.l.b16 %v9847
      %v9880 = vunpack.c.l.b16 %v9848
      %v9881 = vpack.c.b16 %v9866, %v9865
      %v9882 = vpack.c.b16 %v9868, %v9867
      %v9883 = vpack.c.b16 %v9870, %v9869
      %v9884 = vpack.c.b16 %v9872, %v9871
      %v9885 = vpack.c.b16 %v9874, %v9873
      %v9886 = vpack.c.b16 %v9876, %v9875
      %v9887 = vpack.c.b16 %v9878, %v9877
      %v9888 = vpack.c.b16 %v9880, %v9879
      %9897 = vmatprep.subr.bf16.mxu0 0
      %9898 = vmatpush1.bf16.msra.mxu0 %v9824
      %9899 = vmatprep.subr.bf16.mxu0 0
      %9900 = vmatpush1.bf16.msra.mxu0 %v9825
      %9901 = vmatprep.subr.bf16.mxu0 0
      %9902 = vmatpush1.bf16.msra.mxu0 %v9826
      %9903 = vmatprep.subr.bf16.mxu0 0
      %9904 = vmatpush1.bf16.msra.mxu0 %v9827
      %9905 = vmatprep.subr.bf16.mxu0 0
      %9906 = vmatpush1.bf16.msra.mxu0 %v9828
      %9907 = vmatprep.subr.bf16.mxu0 0
      %9908 = vmatpush1.bf16.msra.mxu0 %v9829
      %9909 = vmatprep.subr.bf16.mxu0 0
      %9910 = vmatpush1.bf16.msra.mxu0 %v9830
      %9911 = vmatprep.subr.bf16.mxu0 0
      %9912 = vmatpush1.bf16.msra.mxu0 %v9831
      %9913 = vmatprep.subr.bf16.mxu0 0
      %9914 = vmatpush1.bf16.msra.mxu0 0
      %9915 = vmatprep.subr.bf16.mxu0 0
      %9916 = vmatpush1.bf16.msra.mxu0 0
      %9917 = vmatprep.subr.bf16.mxu0 0
      %9918 = vmatpush1.bf16.msra.mxu0 0
      %9919 = vmatprep.subr.bf16.mxu0 0
      %9920 = vmatpush1.bf16.msra.mxu0 0
      %9921 = vmatprep.subr.bf16.mxu0 0
      %9922 = vmatpush1.bf16.msra.mxu0 0
      %9923 = vmatprep.subr.bf16.mxu0 0
      %9924 = vmatpush1.bf16.msra.mxu0 0
      %9925 = vmatprep.subr.bf16.mxu0 0
      %9926 = vmatpush1.bf16.msra.mxu0 0
      %9927 = vmatprep.subr.bf16.mxu0 0
      %9928 = vmatpush1.bf16.msra.mxu0 0
      %9929 = vmatprep.mubr.bf16.mxu0 0
      %9930 = vmatmul.mubr.bf16.gmra.mrb[0].mxu0 %v9881
      %v9931 = vpop.f32.mrb[0].mxu0
      %v9932 = vadd.f32 0.0, %v9931
      %v9933 = vpop.f32.mrb[0].mxu0
      %v9934 = vpop.f32.mrb[0].mxu0
      %v9935 = vadd.f32 0.0, %v9934
      %v9936 = vpop.f32.mrb[0].mxu0
      %9937 = vmatprep.mubr.bf16.mxu0 0
      %9938 = vmatmul.mubr.bf16.gmra.mrb[0].mxu0 %v9882
      %v9939 = vpop.f32.mrb[0].mxu0
      %v9940 = vadd.f32 0.0, %v9939
      %v9941 = vpop.f32.mrb[0].mxu0
      %v9942 = vpop.f32.mrb[0].mxu0
      %v9943 = vadd.f32 0.0, %v9942
      %v9944 = vpop.f32.mrb[0].mxu0
      %9945 = vmatprep.mubr.bf16.mxu0 0
      %9946 = vmatmul.mubr.bf16.gmra.mrb[0].mxu0 %v9883
      %v9947 = vpop.f32.mrb[0].mxu0
      %v9948 = vadd.f32 0.0, %v9947
      %v9949 = vpop.f32.mrb[0].mxu0
      %v9950 = vpop.f32.mrb[0].mxu0
      %v9951 = vadd.f32 0.0, %v9950
      %v9952 = vpop.f32.mrb[0].mxu0
      %9953 = vmatprep.mubr.bf16.mxu0 0
      %9954 = vmatmul.mubr.bf16.gmra.mrb[0].mxu0 %v9884
      %v9955 = vpop.f32.mrb[0].mxu0
      %v9956 = vadd.f32 0.0, %v9955
      %v9957 = vpop.f32.mrb[0].mxu0
      %v9958 = vpop.f32.mrb[0].mxu0
      %v9959 = vadd.f32 0.0, %v9958
      %v9960 = vpop.f32.mrb[0].mxu0
      %9961 = vmatprep.mubr.bf16.mxu0 0
      %9962 = vmatmul.mubr.bf16.gmra.mrb[0].mxu0 %v9885
      %v9963 = vpop.f32.mrb[0].mxu0
      %v9964 = vadd.f32 0.0, %v9963
      %v9965 = vpop.f32.mrb[0].mxu0
      %v9966 = vpop.f32.mrb[0].mxu0
      %v9967 = vadd.f32 0.0, %v9966
      %v9968 = vpop.f32.mrb[0].mxu0
      %9969 = vmatprep.mubr.bf16.mxu0 0
      %9970 = vmatmul.mubr.bf16.gmra.mrb[0].mxu0 %v9886
      %v9971 = vpop.f32.mrb[0].mxu0
      %v9972 = vadd.f32 0.0, %v9971
      %v9973 = vpop.f32.mrb[0].mxu0
      %v9974 = vpop.f32.mrb[0].mxu0
      %v9975 = vadd.f32 0.0, %v9974
      %v9976 = vpop.f32.mrb[0].mxu0
      %9977 = vmatprep.mubr.bf16.mxu0 0
      %9978 = vmatmul.mubr.bf16.gmra.mrb[0].mxu0 %v9887
      %v9979 = vpop.f32.mrb[0].mxu0
      %v9980 = vadd.f32 0.0, %v9979
      %v9981 = vpop.f32.mrb[0].mxu0
      %v9982 = vpop.f32.mrb[0].mxu0
      %v9983 = vadd.f32 0.0, %v9982
      %v9984 = vpop.f32.mrb[0].mxu0
      %9985 = vmatprep.mubr.bf16.mxu0 0
      %9986 = vmatmul.mubr.bf16.gmra.mrb[0].mxu0 %v9888
      %v9987 = vpop.f32.mrb[0].mxu0
      %v9988 = vadd.f32 0.0, %v9987
      %v9989 = vpop.f32.mrb[0].mxu0
      %v9990 = vpop.f32.mrb[0].mxu0
      %v9991 = vadd.f32 0.0, %v9990
      %v9992 = vpop.f32.mrb[0].mxu0
      %9993 = vdwg.mxu0
      %v9994 = vadd.f32 %v9654, %v9932
      %v9995 = vadd.f32 %v9657, %v9935
      %v9996 = vadd.f32 %v9662, %v9940
      %v9997 = vadd.f32 %v9665, %v9943
      %v9998 = vadd.f32 %v9670, %v9948
      %v9999 = vadd.f32 %v9673, %v9951
      %v10000 = vadd.f32 %v9678, %v9956
      %v10001 = vadd.f32 %v9681, %v9959
      %v10002 = vadd.f32 %v9686, %v9964
      %v10003 = vadd.f32 %v9689, %v9967
      %v10004 = vadd.f32 %v9694, %v9972
      %v10005 = vadd.f32 %v9697, %v9975
      %v10006 = vadd.f32 %v9702, %v9980
      %v10007 = vadd.f32 %v9705, %v9983
      %v10008 = vadd.f32 %v9710, %v9988
      %v10009 = vadd.f32 %v9713, %v9991
      %s10010 = scalar_lea.vmem %s10, 24
      %v10011 = vld [vmem:[%s10010] sm:$0xf]
      %v10012 = vld [vmem:[%s10010 + $0x4] sm:$0x3]
      %v10015 = vunpack.c.l.b16 %v10011
      %v10016 = vunpack.c.l.b16 %v10012
      %v10017 = vpack.c.b16 %v10016, %v10015
      %v10019 = vsel %vm9168, %v10017, 0
      %10021 = vmatprep.subr.bf16.mxu0 0
      %10022 = vmatpush1.bf16.msra.mxu0 %v10019
      %10023 = vmatprep.subr.bf16.mxu0 0
      %10024 = vmatpush1.bf16.msra.mxu0 0
      %10025 = vmatprep.subr.bf16.mxu0 0
      %10026 = vmatpush1.bf16.msra.mxu0 0
      %10027 = vmatprep.subr.bf16.mxu0 0
      %10028 = vmatpush1.bf16.msra.mxu0 0
      %10029 = vmatprep.subr.bf16.mxu0 0
      %10030 = vmatpush1.bf16.msra.mxu0 0
      %10031 = vmatprep.subr.bf16.mxu0 0
      %10032 = vmatpush1.bf16.msra.mxu0 0
      %10033 = vmatprep.subr.bf16.mxu0 0
      %10034 = vmatpush1.bf16.msra.mxu0 0
      %10035 = vmatprep.subr.bf16.mxu0 0
      %10036 = vmatpush1.bf16.msra.mxu0 0
      %10037 = vmatprep.subr.bf16.mxu0 0
      %10038 = vmatpush1.bf16.msra.mxu0 0
      %10039 = vmatprep.subr.bf16.mxu0 0
      %10040 = vmatpush1.bf16.msra.mxu0 0
      %10041 = vmatprep.subr.bf16.mxu0 0
      %10042 = vmatpush1.bf16.msra.mxu0 0
      %10043 = vmatprep.subr.bf16.mxu0 0
      %10044 = vmatpush1.bf16.msra.mxu0 0
      %10045 = vmatprep.subr.bf16.mxu0 0
      %10046 = vmatpush1.bf16.msra.mxu0 0
      %10047 = vmatprep.subr.bf16.mxu0 0
      %10048 = vmatpush1.bf16.msra.mxu0 0
      %10049 = vmatprep.subr.bf16.mxu0 0
      %10050 = vmatpush1.bf16.msra.mxu0 0
      %10051 = vmatprep.subr.bf16.mxu0 0
      %10052 = vmatpush1.bf16.msra.mxu0 0
      %10053 = vmatprep.mubr.bf16.mxu0 0
      %10054 = vmatmul.mubr.bf16.gmra.mrb[0].mxu0 %v9145
      %v10055 = vpop.f32.mrb[0].mxu0
      %v10056 = vadd.f32 0.0, %v10055
      %v10057 = vpop.f32.mrb[0].mxu0
      %v10058 = vpop.f32.mrb[0].mxu0
      %v10059 = vadd.f32 0.0, %v10058
      %v10060 = vpop.f32.mrb[0].mxu0
      %10061 = vmatprep.mubr.bf16.mxu0 0
      %10062 = vmatmul.mubr.bf16.gmra.mrb[0].mxu0 %v9148
      %v10063 = vpop.f32.mrb[0].mxu0
      %v10064 = vadd.f32 0.0, %v10063
      %v10065 = vpop.f32.mrb[0].mxu0
      %v10066 = vpop.f32.mrb[0].mxu0
      %v10067 = vadd.f32 0.0, %v10066
      %v10068 = vpop.f32.mrb[0].mxu0
      %10069 = vmatprep.mubr.bf16.mxu0 0
      %10070 = vmatmul.mubr.bf16.gmra.mrb[0].mxu0 %v9151
      %v10071 = vpop.f32.mrb[0].mxu0
      %v10072 = vadd.f32 0.0, %v10071
      %v10073 = vpop.f32.mrb[0].mxu0
      %v10074 = vpop.f32.mrb[0].mxu0
      %v10075 = vadd.f32 0.0, %v10074
      %v10076 = vpop.f32.mrb[0].mxu0
      %10077 = vmatprep.mubr.bf16.mxu0 0
      %10078 = vmatmul.mubr.bf16.gmra.mrb[0].mxu0 %v9154
      %v10079 = vpop.f32.mrb[0].mxu0
      %v10080 = vadd.f32 0.0, %v10079
      %v10081 = vpop.f32.mrb[0].mxu0
      %v10082 = vpop.f32.mrb[0].mxu0
      %v10083 = vadd.f32 0.0, %v10082
      %v10084 = vpop.f32.mrb[0].mxu0
      %10085 = vmatprep.mubr.bf16.mxu0 0
      %10086 = vmatmul.mubr.bf16.gmra.mrb[0].mxu0 %v9157
      %v10087 = vpop.f32.mrb[0].mxu0
      %v10088 = vadd.f32 0.0, %v10087
      %v10089 = vpop.f32.mrb[0].mxu0
      %v10090 = vpop.f32.mrb[0].mxu0
      %v10091 = vadd.f32 0.0, %v10090
      %v10092 = vpop.f32.mrb[0].mxu0
      %10093 = vmatprep.mubr.bf16.mxu0 0
      %10094 = vmatmul.mubr.bf16.gmra.mrb[0].mxu0 %v9160
      %v10095 = vpop.f32.mrb[0].mxu0
      %v10096 = vadd.f32 0.0, %v10095
      %v10097 = vpop.f32.mrb[0].mxu0
      %v10098 = vpop.f32.mrb[0].mxu0
      %v10099 = vadd.f32 0.0, %v10098
      %v10100 = vpop.f32.mrb[0].mxu0
      %10101 = vmatprep.mubr.bf16.mxu0 0
      %10102 = vmatmul.mubr.bf16.gmra.mrb[0].mxu0 %v9163
      %v10103 = vpop.f32.mrb[0].mxu0
      %v10104 = vadd.f32 0.0, %v10103
      %v10105 = vpop.f32.mrb[0].mxu0
      %v10106 = vpop.f32.mrb[0].mxu0
      %v10107 = vadd.f32 0.0, %v10106
      %v10108 = vpop.f32.mrb[0].mxu0
      %10109 = vmatprep.mubr.bf16.mxu0 0
      %10110 = vmatmul.mubr.bf16.gmra.mrb[0].mxu0 %v9166
      %v10111 = vpop.f32.mrb[0].mxu0
      %v10112 = vadd.f32 0.0, %v10111
      %v10113 = vpop.f32.mrb[0].mxu0
      %v10114 = vpop.f32.mrb[0].mxu0
      %v10115 = vadd.f32 0.0, %v10114
      %v10116 = vpop.f32.mrb[0].mxu0
      %10117 = vdwg.mxu0
      %v10118 = vpack.c.bf16 %v10059, %v10056
      %v10119 = vpack.c.bf16 %v10067, %v10064
      %v10120 = vpack.c.bf16 %v10075, %v10072
      %v10121 = vpack.c.bf16 %v10083, %v10080
      %v10122 = vpack.c.bf16 %v10091, %v10088
      %v10123 = vpack.c.bf16 %v10099, %v10096
      %v10124 = vpack.c.bf16 %v10107, %v10104
      %v10125 = vpack.c.bf16 %v10115, %v10112
      %s10126 = scalar_lea.vmem %s9, 192
      %v10127 = vld [vmem:[%s10126] sm:$0xf]
      %v10128 = vld [vmem:[%s10126 + $0x4] sm:$0xf]
      %v10129 = vld [vmem:[%s10126 + $0x8] sm:$0xf]
      %v10130 = vld [vmem:[%s10126 + $0xc] sm:$0xf]
      %v10131 = vld [vmem:[%s10126 + $0x10] sm:$0xf]
      %v10132 = vld [vmem:[%s10126 + $0x14] sm:$0xf]
      %v10133 = vld [vmem:[%s10126 + $0x18] sm:$0xf]
      %v10134 = vld [vmem:[%s10126 + $0x1c] sm:$0xf]
      %v10135 = vld [vmem:[%s10126 + $0x20] sm:$0xf]
      %v10136 = vld [vmem:[%s10126 + $0x24] sm:$0xf]
      %v10137 = vld [vmem:[%s10126 + $0x28] sm:$0xf]
      %v10138 = vld [vmem:[%s10126 + $0x2c] sm:$0xf]
      %v10139 = vld [vmem:[%s10126 + $0x30] sm:$0xf]
      %v10140 = vld [vmem:[%s10126 + $0x34] sm:$0xf]
      %v10141 = vld [vmem:[%s10126 + $0x38] sm:$0xf]
      %v10142 = vld [vmem:[%s10126 + $0x3c] sm:$0xf]
      %v10159 = vunpack.c.l.b16 %v10127
      %v10160 = vunpack.c.l.b16 %v10128
      %v10161 = vunpack.c.l.b16 %v10129
      %v10162 = vunpack.c.l.b16 %v10130
      %v10163 = vunpack.c.l.b16 %v10131
      %v10164 = vunpack.c.l.b16 %v10132
      %v10165 = vunpack.c.l.b16 %v10133
      %v10166 = vunpack.c.l.b16 %v10134
      %v10167 = vunpack.c.l.b16 %v10135
      %v10168 = vunpack.c.l.b16 %v10136
      %v10169 = vunpack.c.l.b16 %v10137
      %v10170 = vunpack.c.l.b16 %v10138
      %v10171 = vunpack.c.l.b16 %v10139
      %v10172 = vunpack.c.l.b16 %v10140
      %v10173 = vunpack.c.l.b16 %v10141
      %v10174 = vunpack.c.l.b16 %v10142
      %v10175 = vpack.c.b16 %v10160, %v10159
      %v10176 = vpack.c.b16 %v10162, %v10161
      %v10177 = vpack.c.b16 %v10164, %v10163
      %v10178 = vpack.c.b16 %v10166, %v10165
      %v10179 = vpack.c.b16 %v10168, %v10167
      %v10180 = vpack.c.b16 %v10170, %v10169
      %v10181 = vpack.c.b16 %v10172, %v10171
      %v10182 = vpack.c.b16 %v10174, %v10173
      %10191 = vmatprep.subr.bf16.mxu0 0
      %10192 = vmatpush1.bf16.msra.mxu0 %v10118
      %10193 = vmatprep.subr.bf16.mxu0 0
      %10194 = vmatpush1.bf16.msra.mxu0 %v10119
      %10195 = vmatprep.subr.bf16.mxu0 0
      %10196 = vmatpush1.bf16.msra.mxu0 %v10120
      %10197 = vmatprep.subr.bf16.mxu0 0
      %10198 = vmatpush1.bf16.msra.mxu0 %v10121
      %10199 = vmatprep.subr.bf16.mxu0 0
      %10200 = vmatpush1.bf16.msra.mxu0 %v10122
      %10201 = vmatprep.subr.bf16.mxu0 0
      %10202 = vmatpush1.bf16.msra.mxu0 %v10123
      %10203 = vmatprep.subr.bf16.mxu0 0
      %10204 = vmatpush1.bf16.msra.mxu0 %v10124
      %10205 = vmatprep.subr.bf16.mxu0 0
      %10206 = vmatpush1.bf16.msra.mxu0 %v10125
      %10207 = vmatprep.subr.bf16.mxu0 0
      %10208 = vmatpush1.bf16.msra.mxu0 0
      %10209 = vmatprep.subr.bf16.mxu0 0
      %10210 = vmatpush1.bf16.msra.mxu0 0
      %10211 = vmatprep.subr.bf16.mxu0 0
      %10212 = vmatpush1.bf16.msra.mxu0 0
      %10213 = vmatprep.subr.bf16.mxu0 0
      %10214 = vmatpush1.bf16.msra.mxu0 0
      %10215 = vmatprep.subr.bf16.mxu0 0
      %10216 = vmatpush1.bf16.msra.mxu0 0
      %10217 = vmatprep.subr.bf16.mxu0 0
      %10218 = vmatpush1.bf16.msra.mxu0 0
      %10219 = vmatprep.subr.bf16.mxu0 0
      %10220 = vmatpush1.bf16.msra.mxu0 0
      %10221 = vmatprep.subr.bf16.mxu0 0
      %10222 = vmatpush1.bf16.msra.mxu0 0
      %10223 = vmatprep.mubr.bf16.mxu0 0
      %10224 = vmatmul.mubr.bf16.gmra.mrb[0].mxu0 %v10175
      %v10225 = vpop.f32.mrb[0].mxu0
      %v10226 = vadd.f32 0.0, %v10225
      %v10227 = vpop.f32.mrb[0].mxu0
      %v10228 = vpop.f32.mrb[0].mxu0
      %v10229 = vadd.f32 0.0, %v10228
      %v10230 = vpop.f32.mrb[0].mxu0
      %10231 = vmatprep.mubr.bf16.mxu0 0
      %10232 = vmatmul.mubr.bf16.gmra.mrb[0].mxu0 %v10176
      %v10233 = vpop.f32.mrb[0].mxu0
      %v10234 = vadd.f32 0.0, %v10233
      %v10235 = vpop.f32.mrb[0].mxu0
      %v10236 = vpop.f32.mrb[0].mxu0
      %v10237 = vadd.f32 0.0, %v10236
      %v10238 = vpop.f32.mrb[0].mxu0
      %10239 = vmatprep.mubr.bf16.mxu0 0
      %10240 = vmatmul.mubr.bf16.gmra.mrb[0].mxu0 %v10177
      %v10241 = vpop.f32.mrb[0].mxu0
      %v10242 = vadd.f32 0.0, %v10241
      %v10243 = vpop.f32.mrb[0].mxu0
      %v10244 = vpop.f32.mrb[0].mxu0
      %v10245 = vadd.f32 0.0, %v10244
      %v10246 = vpop.f32.mrb[0].mxu0
      %10247 = vmatprep.mubr.bf16.mxu0 0
      %10248 = vmatmul.mubr.bf16.gmra.mrb[0].mxu0 %v10178
      %v10249 = vpop.f32.mrb[0].mxu0
      %v10250 = vadd.f32 0.0, %v10249
      %v10251 = vpop.f32.mrb[0].mxu0
      %v10252 = vpop.f32.mrb[0].mxu0
      %v10253 = vadd.f32 0.0, %v10252
      %v10254 = vpop.f32.mrb[0].mxu0
      %10255 = vmatprep.mubr.bf16.mxu0 0
      %10256 = vmatmul.mubr.bf16.gmra.mrb[0].mxu0 %v10179
      %v10257 = vpop.f32.mrb[0].mxu0
      %v10258 = vadd.f32 0.0, %v10257
      %v10259 = vpop.f32.mrb[0].mxu0
      %v10260 = vpop.f32.mrb[0].mxu0
      %v10261 = vadd.f32 0.0, %v10260
      %v10262 = vpop.f32.mrb[0].mxu0
      %10263 = vmatprep.mubr.bf16.mxu0 0
      %10264 = vmatmul.mubr.bf16.gmra.mrb[0].mxu0 %v10180
      %v10265 = vpop.f32.mrb[0].mxu0
      %v10266 = vadd.f32 0.0, %v10265
      %v10267 = vpop.f32.mrb[0].mxu0
      %v10268 = vpop.f32.mrb[0].mxu0
      %v10269 = vadd.f32 0.0, %v10268
      %v10270 = vpop.f32.mrb[0].mxu0
      %10271 = vmatprep.mubr.bf16.mxu0 0
      %10272 = vmatmul.mubr.bf16.gmra.mrb[0].mxu0 %v10181
      %v10273 = vpop.f32.mrb[0].mxu0
      %v10274 = vadd.f32 0.0, %v10273
      %v10275 = vpop.f32.mrb[0].mxu0
      %v10276 = vpop.f32.mrb[0].mxu0
      %v10277 = vadd.f32 0.0, %v10276
      %v10278 = vpop.f32.mrb[0].mxu0
      %10279 = vmatprep.mubr.bf16.mxu0 0
      %10280 = vmatmul.mubr.bf16.gmra.mrb[0].mxu0 %v10182
      %v10281 = vpop.f32.mrb[0].mxu0
      %v10282 = vadd.f32 0.0, %v10281
      %v10283 = vpop.f32.mrb[0].mxu0
      %v10284 = vpop.f32.mrb[0].mxu0
      %v10285 = vadd.f32 0.0, %v10284
      %v10286 = vpop.f32.mrb[0].mxu0
      %10287 = vdwg.mxu0
      %v10288 = vadd.f32 %v9994, %v10226
      %v10289 = vadd.f32 %v9995, %v10229
      %v10290 = vadd.f32 %v9996, %v10234
      %v10291 = vadd.f32 %v9997, %v10237
      %v10292 = vadd.f32 %v9998, %v10242
      %v10293 = vadd.f32 %v9999, %v10245
      %v10294 = vadd.f32 %v10000, %v10250
      %v10295 = vadd.f32 %v10001, %v10253
      %v10296 = vadd.f32 %v10002, %v10258
      %v10297 = vadd.f32 %v10003, %v10261
      %v10298 = vadd.f32 %v10004, %v10266
      %v10299 = vadd.f32 %v10005, %v10269
      %v10300 = vadd.f32 %v10006, %v10274
      %v10301 = vadd.f32 %v10007, %v10277
      %v10302 = vadd.f32 %v10008, %v10282
      %v10303 = vadd.f32 %v10009, %v10285
      %v10304 = vmul.f32 %v10288, 0.2
      %v10305 = vmul.f32 %v10289, 0.2
      %v10306 = vmul.f32 %v10290, 0.2
      %v10307 = vmul.f32 %v10291, 0.2
      %v10308 = vmul.f32 %v10292, 0.2
      %v10309 = vmul.f32 %v10293, 0.2
      %v10310 = vmul.f32 %v10294, 0.2
      %v10311 = vmul.f32 %v10295, 0.2
      %v10312 = vmul.f32 %v10296, 0.2
      %v10313 = vmul.f32 %v10297, 0.2
      %v10314 = vmul.f32 %v10298, 0.2
      %v10315 = vmul.f32 %v10299, 0.2
      %v10316 = vmul.f32 %v10300, 0.2
      %v10317 = vmul.f32 %v10301, 0.2
      %v10318 = vmul.f32 %v10302, 0.2
      %v10319 = vmul.f32 %v10303, 0.2
      %v10320 = vmax.f32 %v10288, %v10304
      %v10321 = vmax.f32 %v10289, %v10305
      %v10322 = vmax.f32 %v10290, %v10306
      %v10323 = vmax.f32 %v10291, %v10307
      %v10324 = vmax.f32 %v10292, %v10308
      %v10325 = vmax.f32 %v10293, %v10309
      %v10326 = vmax.f32 %v10294, %v10310
      %v10327 = vmax.f32 %v10295, %v10311
      %v10328 = vmax.f32 %v10296, %v10312
      %v10329 = vmax.f32 %v10297, %v10313
      %v10330 = vmax.f32 %v10298, %v10314
      %v10331 = vmax.f32 %v10299, %v10315
      %v10332 = vmax.f32 %v10300, %v10316
      %v10333 = vmax.f32 %v10301, %v10317
      %v10334 = vmax.f32 %v10302, %v10318
      %v10335 = vmax.f32 %v10303, %v10319
      %v10336 = vpack.c.bf16 %v10321, %v10320
      %v10337 = vpack.c.bf16 %v10323, %v10322
      %v10338 = vpack.c.bf16 %v10325, %v10324
      %v10339 = vpack.c.bf16 %v10327, %v10326
      %v10340 = vpack.c.bf16 %v10329, %v10328
      %v10341 = vpack.c.bf16 %v10331, %v10330
      %v10342 = vpack.c.bf16 %v10333, %v10332
      %v10343 = vpack.c.bf16 %v10335, %v10334
      %v10344 = vunpack.c.l.bf16 %v10336
      %v10345 = vunpack.c.h.bf16 %v10336
      %v10346 = vunpack.c.l.bf16 %v10337
      %v10347 = vunpack.c.h.bf16 %v10337
      %v10348 = vunpack.c.l.bf16 %v10338
      %v10349 = vunpack.c.h.bf16 %v10338
      %v10350 = vunpack.c.l.bf16 %v10339
      %v10351 = vunpack.c.h.bf16 %v10339
      %v10352 = vunpack.c.l.bf16 %v10340
      %v10353 = vunpack.c.h.bf16 %v10340
      %v10354 = vunpack.c.l.bf16 %v10341
      %v10355 = vunpack.c.h.bf16 %v10341
      %v10356 = vunpack.c.l.bf16 %v10342
      %v10357 = vunpack.c.h.bf16 %v10342
      %v10358 = vunpack.c.l.bf16 %v10343
      %v10359 = vunpack.c.h.bf16 %v10343
      %v10360 = vld [vmem:[%s11] sm:$0xf]
      %v10361 = vld [vmem:[%s11 + $0x4] sm:$0xf]
      %v10362 = vld [vmem:[%s11 + $0x8] sm:$0xf]
      %v10363 = vld [vmem:[%s11 + $0xc] sm:$0xf]
      %v10364 = vld [vmem:[%s11 + $0x10] sm:$0xf]
      %v10365 = vld [vmem:[%s11 + $0x14] sm:$0xf]
      %v10366 = vld [vmem:[%s11 + $0x18] sm:$0xf]
      %v10367 = vld [vmem:[%s11 + $0x1c] sm:$0xf]
      %v10368 = vld [vmem:[%s11 + $0x20] sm:$0xf]
      %v10369 = vld [vmem:[%s11 + $0x24] sm:$0xf]
      %v10370 = vld [vmem:[%s11 + $0x28] sm:$0xf]
      %v10371 = vld [vmem:[%s11 + $0x2c] sm:$0xf]
      %v10372 = vld [vmem:[%s11 + $0x30] sm:$0xf]
      %v10373 = vld [vmem:[%s11 + $0x34] sm:$0xf]
      %v10374 = vld [vmem:[%s11 + $0x38] sm:$0xf]
      %v10375 = vld [vmem:[%s11 + $0x3c] sm:$0xf]
      %v10376 = vunpack.c.l.bf16 %v10360
      %v10377 = vunpack.c.l.bf16 %v10361
      %v10378 = vunpack.c.l.bf16 %v10362
      %v10379 = vunpack.c.l.bf16 %v10363
      %v10380 = vunpack.c.l.bf16 %v10364
      %v10381 = vunpack.c.l.bf16 %v10365
      %v10382 = vunpack.c.l.bf16 %v10366
      %v10383 = vunpack.c.l.bf16 %v10367
      %v10384 = vunpack.c.l.bf16 %v10368
      %v10385 = vunpack.c.l.bf16 %v10369
      %v10386 = vunpack.c.l.bf16 %v10370
      %v10387 = vunpack.c.l.bf16 %v10371
      %v10388 = vunpack.c.l.bf16 %v10372
      %v10389 = vunpack.c.l.bf16 %v10373
      %v10390 = vunpack.c.l.bf16 %v10374
      %v10391 = vunpack.c.l.bf16 %v10375
      %v10392 = vmul.f32 %v10344, %v10376
      %v10393 = vmul.f32 %v10345, %v10377
      %v10394 = vmul.f32 %v10346, %v10378
      %v10395 = vmul.f32 %v10347, %v10379
      %v10396 = vmul.f32 %v10348, %v10380
      %v10397 = vmul.f32 %v10349, %v10381
      %v10398 = vmul.f32 %v10350, %v10382
      %v10399 = vmul.f32 %v10351, %v10383
      %v10400 = vmul.f32 %v10352, %v10384
      %v10401 = vmul.f32 %v10353, %v10385
      %v10402 = vmul.f32 %v10354, %v10386
      %v10403 = vmul.f32 %v10355, %v10387
      %v10404 = vmul.f32 %v10356, %v10388
      %v10405 = vmul.f32 %v10357, %v10389
      %v10406 = vmul.f32 %v10358, %v10390
      %v10407 = vmul.f32 %v10359, %v10391
      %vm10408 = vcmask 48128
      %v10409 = vsel %vm10408, %v10392, 0.0
      %v10410 = vsel %vm10408, %v10393, 0.0
      %v10411 = vadd.f32 %v10409, %v10410
      %v10412 = vsel %vm10408, %v10394, 0.0
      %v10413 = vadd.f32 %v10411, %v10412
      %v10414 = vsel %vm10408, %v10395, 0.0
      %v10415 = vadd.f32 %v10413, %v10414
      %v10416 = vsel %vm10408, %v10396, 0.0
      %v10417 = vadd.f32 %v10415, %v10416
      %v10418 = vsel %vm10408, %v10397, 0.0
      %v10419 = vadd.f32 %v10417, %v10418
      %v10420 = vsel %vm10408, %v10398, 0.0
      %v10421 = vadd.f32 %v10419, %v10420
      %v10422 = vsel %vm10408, %v10399, 0.0
      %v10423 = vadd.f32 %v10421, %v10422
      %v10424 = vsel %vm10408, %v10400, 0.0
      %v10425 = vadd.f32 %v10423, %v10424
      %v10426 = vsel %vm10408, %v10401, 0.0
      %v10427 = vadd.f32 %v10425, %v10426
      %v10428 = vsel %vm10408, %v10402, 0.0
      %v10429 = vadd.f32 %v10427, %v10428
      %v10430 = vsel %vm10408, %v10403, 0.0
      %v10431 = vadd.f32 %v10429, %v10430
      %v10432 = vsel %vm10408, %v10404, 0.0
      %v10433 = vadd.f32 %v10431, %v10432
      %v10434 = vsel %vm10408, %v10405, 0.0
      %v10435 = vadd.f32 %v10433, %v10434
      %v10436 = vsel %vm10408, %v10406, 0.0
      %v10437 = vadd.f32 %v10435, %v10436
      %v10438 = vsel %vm10408, %v10407, 0.0
      %v10439 = vadd.f32 %v10437, %v10438
      %10440 = vadd.xlane.f32.xlu0 %v10439
      %v10441 = vpop.xlane.xlu0 %10440
      %v10442 = vrot.slane %v10441, 4
      %v10443 = vadd.f32 %v10441, %v10442
      %v10444 = vrot.slane %v10443, 2
      %v10445 = vadd.f32 %v10443, %v10444
      %v10446 = vrot.slane %v10445, 1
      %v10447 = vadd.f32 %v10445, %v10446
      %s10448 = vtos %v10447
      %v10449 = vstv %s10448
      %v10450 = vmul.f32 %v10449, 0.2
      %v10451 = vmax.f32 %v10449, %v10450
      %vm10452 = vcmask 0
      %10453 = vst.msk [vmem:[%s409] sm:$0x1] %vm10452, %v10451
      %p10454 = scmp.lt.s32.totalorder %s23, 1
      %s10455 = scalar_select %p10454, %s23, 1
      %s10456 = scalar_lea.vmem %s12, %s10455
      // Predicated region
      $region69: #{cars_cnn_discriminator.1} parent=67 // pred_check
        %p10457 = pneg %p298
      $region70: #{cars_cnn_discriminator.1} parent=67 // pred_check_branch
        %10459 = sbr.rel (%p10457) target = $region72
      $region71: #{cars_cnn_discriminator.1} parent=67 // pred_region
        _
      $region72: #{cars_cnn_discriminator.1} parent=67 // pred_fallthru
        _
    $region68: #{cars_cnn_discriminator.1} parent=5 // pred_fallthru
      _
    %p10460 = scmp.le.s32.totalorder 2, %s18
    // Predicated region
    $region73: #{cars_cnn_discriminator.1} parent=5 // pred_check
      %p10461 = pneg %p10460
    $region74: #{cars_cnn_discriminator.1} parent=5 // pred_check_branch
      %10463 = sbr.rel (%p10461) target = $region76
    $region75: #{cars_cnn_discriminator.1} parent=5 // pred_region
      %s10464 = ssub.s32 %s18, 2
      // Predicated region
      $region77: #{cars_cnn_discriminator.1} parent=75 // pred_check
        %p10465 = pneg %p304
      $region78: #{cars_cnn_discriminator.1} parent=75 // pred_check_branch
        %10467 = sbr.rel (%p10465) target = $region80
      $region79: #{cars_cnn_discriminator.1} parent=75 // pred_region
        %p10468 = scmp.lt.s32.totalorder %s24, 1
        %s10469 = scalar_select %p10468, %s24, 1
        %s10470 = scalar_lea.vmem %s12, %s10469
      $region80: #{cars_cnn_discriminator.1} parent=75 // pred_fallthru
        _
    $region76: #{cars_cnn_discriminator.1} parent=5 // pred_fallthru
      _
  $region6: #{cars_cnn_discriminator.1} parent=0 // loop_footer
    %s22 = sadd.s32 1, %s18
  $region7: #{cars_cnn_discriminator.1} parent=0 // loop_footer_branch
    %17 = sbr.rel target = $region3
  $region8: #{cars_cnn_discriminator.1} parent=0 // loop_exit
    _

</llo_original>
